<compile_context>
chip_gen: v5e
topology: v5e:2x2
jax: 0.10.0
libtpu: 0.0.40
codegen_flags: <defaults>
</compile_context>

<pallas_src>
import functools
import math

import jax
import jax.numpy as jnp
from jax.experimental import pallas as pl
from jax.experimental.pallas import tpu as pltpu


_BF16 = jnp.bfloat16
_F32 = jnp.float32


def _tpu_tile_defaults():
    """Tile cap + scoped-VMEM limit per device generation."""
    tile_max, vmem = 256, 32 * 1024 * 1024          # safe default (v7x: 64 MiB/TC)
    try:
        kind = jax.devices()[0].device_kind.lower()
    except Exception:
        return tile_max, vmem
    if ("v5" in kind) or ("v6" in kind):            # 128 MiB physical VMEM parts
        tile_max, vmem = 512, 64 * 1024 * 1024
    return tile_max, vmem


_TILE_MAX, _VMEM_LIMIT = _tpu_tile_defaults()


def _cparams(semantics=("parallel",)):
    return pltpu.CompilerParams(
        dimension_semantics=semantics,
        vmem_limit_bytes=_VMEM_LIMIT,
    )


def _round_up(x, m):
    return ((x + m - 1) // m) * m


def _pick_tile(m, tile_max=_TILE_MAX, min_steps=2):
    """Row tile: multiple of 8, minimal padding waste, >= min_steps grid steps."""
    n_steps = max(min_steps, pl.cdiv(m, tile_max))
    tile = _round_up(pl.cdiv(m, n_steps), 8)
    return min(tile, tile_max)


def _pad_rows(a, target, axis=0, value=0.0):
    pad = target - a.shape[axis]
    if pad == 0:
        return a
    widths = [(0, 0)] * a.ndim
    widths[axis] = (0, pad)
    return jnp.pad(a, widths, constant_values=value)


# ----------------------------------------------------------------------------
# Fused kernels
# ----------------------------------------------------------------------------
def _sa_kernel(*refs, k, split_first):
    """Batched per-neighbor message MLP + max over k + skip Linear."""
    if split_first:
        (x_j_ref, rel_ref, x_dst_ref,
         w1x_ref, w1r_ref, b1_ref, w2_ref, b2_ref, wl_ref, bl_ref, o_ref) = refs
        _, tile, cin = x_j_ref.shape
        xj = x_j_ref[...].reshape(k * tile, cin)                 # bf16
        rl = rel_ref[...].reshape(k * tile, rel_ref.shape[-1])   # bf16
        h = jnp.dot(xj, w1x_ref[...], preferred_element_type=_F32)
        h = h + jnp.dot(rl, w1r_ref[...], preferred_element_type=_F32)
    else:
        (xr_ref, x_dst_ref,
         w1_ref, b1_ref, w2_ref, b2_ref, wl_ref, bl_ref, o_ref) = refs
        _, tile, cf = xr_ref.shape
        xr = xr_ref[...].reshape(k * tile, cf)                   # bf16 [x_j|rel]
        h = jnp.dot(xr, w1_ref[...], preferred_element_type=_F32)

    h = jnp.maximum(h + b1_ref[...], 0.0)                        # (k*tile, c1)
    h = jnp.dot(h.astype(_BF16), w2_ref[...],
                preferred_element_type=_F32) + b2_ref[...]       # (k*tile, c2)
    c2 = h.shape[-1]
    msg = jnp.max(h.reshape(k, tile, c2), axis=0)                # max over neighbors
    skip = jnp.dot(x_dst_ref[...], wl_ref[...],
                   preferred_element_type=_F32) + bl_ref[...]
    o_ref[...] = msg + skip


def _make_fp_kernel(k, n_rest):
    """knn-interpolation + split-concat first layer + remaining MLP layers."""
    def kernel(feats_ref, wts_ref, xskip_ref, w_int_ref, w_skip_ref, b1_ref,
               *args):
        o_ref = args[-1]
        rest = args[:-1]
        w = wts_ref[...]                                   # (tile, k) f32
        den = jnp.sum(w, axis=1, keepdims=True)
        inv = pl.reciprocal(den, approx=True)              # EUP slot
        num = feats_ref[0].astype(_F32) * w[:, 0:1]
        for j in range(1, k):
            num = num + feats_ref[j].astype(_F32) * w[:, j:j + 1]
        xi = num * inv                                     # interpolated feats
        h = jnp.dot(xi.astype(_BF16), w_int_ref[...],
                    preferred_element_type=_F32)
        h = h + jnp.dot(xskip_ref[...], w_skip_ref[...],
                        preferred_element_type=_F32)
        h = jnp.maximum(h + b1_ref[...], 0.0)
        for li in range(n_rest):
            w_l = rest[2 * li][...]
            b_l = rest[2 * li + 1][...]
            h = jnp.dot(h.astype(_BF16), w_l,
                        preferred_element_type=_F32) + b_l
            if li < n_rest - 1:
                h = jnp.maximum(h, 0.0)
        o_ref[...] = h
    return kernel


def _make_global_kernel(tile, n_valid):
    """Row-tiled MLP on [x, pos] (split weights) + running global max pool."""
    def kernel(x_ref, pos_ref, w1x_ref, w1p_ref, b1_ref, w2_ref, b2_ref,
               o_ref, gmax_ref):
        i = pl.program_id(0)

        @pl.when(i == 0)
        def _():
            gmax_ref[...] = jnp.full_like(gmax_ref, -jnp.inf)

        h = jnp.dot(x_ref[...], w1x_ref[...], preferred_element_type=_F32)
        h = h + jnp.dot(pos_ref[...], w1p_ref[...], preferred_element_type=_F32)
        h = jnp.maximum(h + b1_ref[...], 0.0)
        h = jnp.dot(h.astype(_BF16), w2_ref[...],
                    preferred_element_type=_F32) + b2_ref[...]
        row = i * tile + jax.lax.broadcasted_iota(jnp.int32, (tile, 1), 0)
        h = jnp.where(row < n_valid, h, -jnp.inf)          # mask pad rows
        gmax_ref[...] = jnp.maximum(gmax_ref[...], jnp.max(h, axis=0, keepdims=True))

        @pl.when(i == pl.num_programs(0) - 1)
        def _():
            o_ref[...] = gmax_ref[...]
    return kernel


# ----------------------------------------------------------------------------
# Fused-kernel wrappers (tiling, padding, BlockSpecs)
# ----------------------------------------------------------------------------
def sa_fused(x_j, rel, x_dst, p, *, split_first):
    """x_j: (k, m, C[+3] if concat)  rel: (k, m, 3)|None  x_dst: (m, Cin)."""
    k, m, _ = x_j.shape
    c_out = p["w2"].shape[1]
    tile = _pick_tile(m)
    m_pad = _round_up(m, tile)

    x_j = _pad_rows(x_j, m_pad, axis=1)
    x_dst = _pad_rows(x_dst, m_pad, axis=0)

    operands = [x_j]
    in_specs = [pl.BlockSpec((k, tile, x_j.shape[-1]), lambda i: (0, i, 0))]
    if split_first:
        rel = _pad_rows(rel, m_pad, axis=1)
        operands.append(rel)
        in_specs.append(pl.BlockSpec((k, tile, rel.shape[-1]),
                                     lambda i: (0, i, 0)))
    operands.append(x_dst)
    in_specs.append(pl.BlockSpec((tile, x_dst.shape[-1]), lambda i: (i, 0)))

    wnames = (("w1x", "w1r", "b1", "w2", "b2", "wl", "bl") if split_first
              else ("w1", "b1", "w2", "b2", "wl", "bl"))
    for name in wnames:
        operands.append(p[name])
        in_specs.append(pl.BlockSpec(p[name].shape, lambda i: (0, 0)))

    out = pl.pallas_call(
        functools.partial(_sa_kernel, k=k, split_first=split_first),
        out_shape=jax.ShapeDtypeStruct((m_pad, c_out), _F32),
        grid=(m_pad // tile,),
        in_specs=in_specs,
        out_specs=pl.BlockSpec((tile, c_out), lambda i: (i, 0)),
        compiler_params=_cparams(("parallel",)),
    )(*operands)
    return out[:m]


def fp_fused(feats, wts, x_skip, p, out_dim):
    """feats: (k, T, Csrc) bf16  wts: (T, k) f32  x_skip: (T, Cskip) bf16."""
    k, t, c_src = feats.shape
    c_skip = x_skip.shape[1]
    rest = p["rest"]
    n_rest = len(rest)
    c_out = rest[-1][0].shape[1]                        # lane-dense (padded)
    tile = _pick_tile(t)
    t_pad = _round_up(t, tile)

    feats = _pad_rows(feats, t_pad, axis=1)
    wts = _pad_rows(wts, t_pad, axis=0, value=1.0)      # avoid 0/0 on pad rows
    x_skip = _pad_rows(x_skip, t_pad, axis=0)
    flat_rest = [a for pair in rest for a in pair]

    in_specs = [
        pl.BlockSpec((k, tile, c_src), lambda i: (0, i, 0)),
        pl.BlockSpec((tile, k), lambda i: (i, 0)),
        pl.BlockSpec((tile, c_skip), lambda i: (i, 0)),
        pl.BlockSpec(p["w_int"].shape, lambda i: (0, 0)),
        pl.BlockSpec(p["w_skip"].shape, lambda i: (0, 0)),
        pl.BlockSpec(p["b1"].shape, lambda i: (0, 0)),
    ] + [pl.BlockSpec(a.shape, lambda i: (0, 0)) for a in flat_rest]

    out = pl.pallas_call(
        _make_fp_kernel(k, n_rest),
        out_shape=jax.ShapeDtypeStruct((t_pad, c_out), _F32),
        grid=(t_pad // tile,),
        in_specs=in_specs,
        out_specs=pl.BlockSpec((tile, c_out), lambda i: (i, 0)),
        compiler_params=_cparams(("parallel",)),
    )(feats, wts, x_skip, p["w_int"], p["w_skip"], p["b1"], *flat_rest)
    return out[:t, :out_dim]


def global_sa_fused(x, pos, p):
    """x: (n, 256)  pos: (n, 3)  ->  (1, 512) global max-pooled features."""
    n, c_in = x.shape
    c2 = p["w2"].shape[1]
    tile = _pick_tile(n, min_steps=1)                   # reduction axis: 1 step OK
    n_pad = _round_up(n, tile)
    x = _pad_rows(x.astype(_BF16), n_pad)
    pos = _pad_rows(pos.astype(_BF16), n_pad)

    in_specs = [
        pl.BlockSpec((tile, c_in), lambda i: (i, 0)),
        pl.BlockSpec((tile, pos.shape[-1]), lambda i: (i, 0)),
    ] + [pl.BlockSpec(p[name].shape, lambda i: (0, 0))
         for name in ("w1x", "w1p", "b1", "w2", "b2")]

    out = pl.pallas_call(
        _make_global_kernel(tile, n),
        out_shape=jax.ShapeDtypeStruct((1, c2), _F32),
        grid=(n_pad // tile,),
        in_specs=in_specs,
        out_specs=pl.BlockSpec((1, c2), lambda i: (0, 0)),
        scratch_shapes=[pltpu.VMEM((1, c2), _F32)],
        compiler_params=_cparams(("arbitrary",)),
    )(x, pos, p["w1x"], p["w1p"], p["b1"], p["w2"], p["b2"])
    return out


# ----------------------------------------------------------------------------
# Parameter construction (nn.Linear-style uniform init; weights stored bf16)
# ----------------------------------------------------------------------------
def _init_dense(key, fan_in, fan_out):
    k1, k2 = jax.random.split(key)
    bound = 1.0 / math.sqrt(fan_in)
    w = jax.random.uniform(k1, (fan_in, fan_out), _F32, -bound, bound)
    b = jax.random.uniform(k2, (1, fan_out), _F32, -bound, bound)
    return w, b


def _init_sa(key, cin, c1, c2, split_first):
    k1, k2, k3 = jax.random.split(key, 3)
    w1, b1 = _init_dense(k1, cin + 3, c1)      # MLP layer 1 on cat([x_j, rel])
    w2, b2 = _init_dense(k2, c1, c2)           # MLP layer 2
    wl, bl = _init_dense(k3, cin, c2)          # skip Linear
    p = {"b1": b1, "w2": w2.astype(_BF16), "b2": b2,
         "wl": wl.astype(_BF16), "bl": bl}
    if split_first:
        p["w1x"] = w1[:cin].astype(_BF16)
        p["w1r"] = w1[cin:].astype(_BF16)
    else:
        p["w1"] = w1.astype(_BF16)
    return p


def _init_gsa(key, cin, c1, c2):
    k1, k2 = jax.random.split(key)
    w1, b1 = _init_dense(k1, cin + 3, c1)
    w2, b2 = _init_dense(k2, c1, c2)
    return {"w1x": w1[:cin].astype(_BF16), "w1p": w1[cin:].astype(_BF16),
            "b1": b1, "w2": w2.astype(_BF16), "b2": b2}


def _init_fp(key, c_src, c_skip, dims):
    """dims = output widths of each MLP layer, e.g. [512, 256]."""
    keys = jax.random.split(key, len(dims))
    w1, b1 = _init_dense(keys[0], c_src + c_skip, dims[0])
    p = {"w_int": w1[:c_src].astype(_BF16),
         "w_skip": w1[c_src:].astype(_BF16),
         "b1": b1}
    rest = []
    prev = dims[0]
    for i, d in enumerate(dims[1:], start=1):
        w, b = _init_dense(keys[i], prev, d)
        rest.append([w.astype(_BF16), b])
        prev = d
    # lane-dense final store: zero-pad the last layer out to a multiple of 128
    out_pad = _round_up(dims[-1], 128)
    if out_pad != dims[-1]:
        w_last, b_last = rest[-1]
        rest[-1] = [jnp.pad(w_last, ((0, 0), (0, out_pad - dims[-1]))),
                    jnp.pad(b_last, ((0, 0), (0, out_pad - dims[-1])))]
    p["rest"] = [tuple(pair) for pair in rest]
    return p


def init_point_encoder(key, point_attr_dim, point_out_channels):
    keys = jax.random.split(key, 6)
    return {
        "sa1": _init_sa(keys[0], point_attr_dim, 64, 128, split_first=False),
        "sa2": _init_sa(keys[1], 128, 128, 256, split_first=True),
        "gsa": _init_gsa(keys[2], 256, 256, 512),
        "fp1": _init_fp(keys[3], 512, 256, [512, 256]),
        "fp2": _init_fp(keys[4], 256, 128, [256, 128]),
        "fp3": _init_fp(keys[5], 128, point_attr_dim,
                        [128, 128, point_out_channels]),
    }


# ----------------------------------------------------------------------------
# Index-building glue (plain JAX): FPS, kNN
# ----------------------------------------------------------------------------
def sq_dist(a, b):
    return jnp.sum((a[:, None, :] - b[None, :, :]) ** 2, axis=-1)


def fps(pos, m):
    """Deterministic farthest point sampling starting at index 0."""
    n = pos.shape[0]

    def body(i, state):
        idx, dists = state
        last = pos[idx[i - 1]]
        d = jnp.sum((pos - last) ** 2, axis=1)
        dists = jnp.minimum(dists, d)
        nxt = jnp.argmax(dists).astype(jnp.int32)
        return idx.at[i].set(nxt), dists

    idx0 = jnp.zeros((m,), jnp.int32)
    d0 = jnp.full((n,), jnp.inf, _F32)
    idx, _ = jax.lax.fori_loop(1, m, body, (idx0, d0))
    return idx


def knn_indices(pos_src, pos_query, k):
    d2 = sq_dist(pos_query, pos_src)
    _, idx = jax.lax.top_k(-d2, k)
    return idx


# ----------------------------------------------------------------------------
# Modules
# ----------------------------------------------------------------------------
def sa_module(p, ratio, k, x, pos, *, split_first):
    n = pos.shape[0]
    m = int(math.ceil(ratio * n))
    k = min(k, n)

    idx = fps(pos, m)
    pos_dst = pos[idx]
    x_dst = x[idx]

    nbr = knn_indices(pos, pos_dst, k)            # (m, k) into source pts
    nbr_t = nbr.T                                 # (k, m) -> neighbor-major
    rel = pos[nbr_t] - pos_dst[None, :, :]        # (k, m, 3)  pos_j - pos_i

    if split_first:
        out = sa_fused(x[nbr_t].astype(_BF16), rel.astype(_BF16),
                       x_dst.astype(_BF16), p, split_first=True)
    else:
        xr = jnp.concatenate([x[nbr_t], rel], axis=-1).astype(_BF16)
        out = sa_fused(xr, None, x_dst.astype(_BF16), p, split_first=False)
    return out, pos_dst


def global_sa_module(p, x, pos):
    g = global_sa_fused(x, pos, p)                # (1, 512)
    return g, jnp.zeros((1, 3), _F32)


def fp_module(p, k, out_dim, x, pos, x_skip, pos_skip):
    k = min(k, pos.shape[0])
    d2 = sq_dist(pos_skip, pos)                   # (T, S)
    neg_d, idx = jax.lax.top_k(-d2, k)            # (T, k)
    wts = 1.0 / jnp.maximum(-neg_d, 1e-16)        # PyG knn_interpolate weights
    feats = x[idx.T].astype(_BF16)                # (k, T, Csrc)
    out = fp_fused(feats, wts, x_skip.astype(_BF16), p, out_dim)
    return out, pos_skip


def point_encoder_forward(params, x, pos, sample_ratio, knn_num, neighbor_num,
                          point_out_channels):
    x0, pos0 = x, pos
    x1, pos1 = sa_module(params["sa1"], sample_ratio[0], knn_num[0], x0, pos0,
                         split_first=False)
    x2, pos2 = sa_module(params["sa2"], sample_ratio[1], knn_num[1], x1, pos1,
                         split_first=True)
    xg, posg = global_sa_module(params["gsa"], x2, pos2)

    xf, posf = fp_module(params["fp1"], neighbor_num[0], 256, xg, posg, x2, pos2)
    xf, posf = fp_module(params["fp2"], neighbor_num[1], 128, xf, posf, x1, pos1)
    xf, posf = fp_module(params["fp3"], neighbor_num[2], point_out_channels,
                         xf, posf, x0, pos0)
    return xf


# ----------------------------------------------------------------------------
# Main
# ----------------------------------------------------------------------------
if __name__ == "__main__":
    POINT_ATTR_DIM = 3          # FP3 MLP input is 128 + 3 -> attr dim must be 3
    POINT_OUT_CHANNELS = 8
    SAMPLE_RATIO = (0.5, 0.5)
    KNN_NUM = (4, 4)
    NEIGHBOR_NUM = (3, 3, 3)
    N = 32

    key = jax.random.PRNGKey(0)
    kx, kp, kw = jax.random.split(key, 3)
    x = jax.random.normal(kx, (N, POINT_ATTR_DIM), _F32)
    pos = jax.random.uniform(kp, (N, 3), _F32)

    params = init_point_encoder(kw, POINT_ATTR_DIM, POINT_OUT_CHANNELS)

    fwd = jax.jit(functools.partial(
        point_encoder_forward,
        sample_ratio=SAMPLE_RATIO, knn_num=KNN_NUM, neighbor_num=NEIGHBOR_NUM,
        point_out_channels=POINT_OUT_CHANNELS))

    out = jax.block_until_ready(fwd(params, x, pos))

    assert out.shape == (N, POINT_OUT_CHANNELS), out.shape
    assert out.dtype == _F32
    assert bool(jnp.all(jnp.isfinite(out)))
    print("KERNEL_OK")
</pallas_src>

<mosaic_0001>
module attributes {stable_mosaic.version = 11 : i64} {
  func.func @_sa_kernel(%arg0: i32, %arg1: memref<4x8x6xbf16, #tpu.memory_space<vmem>>, %arg2: memref<8x3xbf16, #tpu.memory_space<vmem>>, %arg3: memref<6x64xbf16, #tpu.memory_space<vmem>>, %arg4: memref<1x64xf32, #tpu.memory_space<vmem>>, %arg5: memref<64x128xbf16, #tpu.memory_space<vmem>>, %arg6: memref<1x128xf32, #tpu.memory_space<vmem>>, %arg7: memref<3x128xbf16, #tpu.memory_space<vmem>>, %arg8: memref<1x128xf32, #tpu.memory_space<vmem>>, %arg9: memref<8x128xf32, #tpu.memory_space<vmem>>) attributes {dimension_semantics = [#tpu.dimension_semantics<parallel>], iteration_bounds = array<i64: 2>, scalar_prefetch = 0 : i64, scratch_operands = 0 : i64, tpu.core_type = #tpu.core_type<tc>, window_params = [{transform_indices = @transform_0, window_bounds = array<i64: 4, 8, 6>}, {transform_indices = @transform_1, window_bounds = array<i64: 8, 3>}, {pipeline_mode = #tpu.pipeline_mode<synchronous>, transform_indices = @transform_2, window_bounds = array<i64: 6, 64>}, {pipeline_mode = #tpu.pipeline_mode<synchronous>, transform_indices = @transform_3, window_bounds = array<i64: 1, 64>}, {pipeline_mode = #tpu.pipeline_mode<synchronous>, transform_indices = @transform_4, window_bounds = array<i64: 64, 128>}, {pipeline_mode = #tpu.pipeline_mode<synchronous>, transform_indices = @transform_5, window_bounds = array<i64: 1, 128>}, {pipeline_mode = #tpu.pipeline_mode<synchronous>, transform_indices = @transform_6, window_bounds = array<i64: 3, 128>}, {pipeline_mode = #tpu.pipeline_mode<synchronous>, transform_indices = @transform_7, window_bounds = array<i64: 1, 128>}, {transform_indices = @transform_8, window_bounds = array<i64: 8, 128>}]} {
    %c0 = arith.constant 0 : index
    %c0_0 = arith.constant 0 : index
    %c0_1 = arith.constant 0 : index
    %0 = vector.load %arg1[%c0, %c0_0, %c0_1] : memref<4x8x6xbf16, #tpu.memory_space<vmem>>, vector<4x8x6xbf16>
    %1 = vector.shape_cast %0 : vector<4x8x6xbf16> to vector<32x6xbf16>
    %c0_2 = arith.constant 0 : index
    %c0_3 = arith.constant 0 : index
    %2 = vector.load %arg3[%c0_2, %c0_3] : memref<6x64xbf16, #tpu.memory_space<vmem>>, vector<6x64xbf16>
    %cst = arith.constant dense<0.000000e+00> : vector<32x64xf32>
    %3 = tpu.matmul %1, %2, %cst {dimension_numbers = #tpu.dot_dimension_numbers<[1], [0], [0], [1], [0, 0, 1, 1], [], []>} : vector<32x6xbf16>, vector<6x64xbf16>, vector<32x64xf32> -> vector<32x64xf32>
    %c0_4 = arith.constant 0 : index
    %c0_5 = arith.constant 0 : index
    %4 = vector.load %arg4[%c0_4, %c0_5] : memref<1x64xf32, #tpu.memory_space<vmem>>, vector<1x64xf32>
    %5 = vector.broadcast %4 : vector<1x64xf32> to vector<32x64xf32>
    %6 = arith.addf %3, %5 : vector<32x64xf32>
    %cst_6 = arith.constant 0.000000e+00 : f32
    %7 = vector.broadcast %cst_6 : f32 to vector<32x64xf32>
    %8 = arith.maximumf %6, %7 : vector<32x64xf32>
    %9 = arith.truncf %8 : vector<32x64xf32> to vector<32x64xbf16>
    %c0_7 = arith.constant 0 : index
    %c0_8 = arith.constant 0 : index
    %10 = vector.load %arg5[%c0_7, %c0_8] : memref<64x128xbf16, #tpu.memory_space<vmem>>, vector<64x128xbf16>
    %cst_9 = arith.constant dense<0.000000e+00> : vector<32x128xf32>
    %11 = tpu.matmul %9, %10, %cst_9 {dimension_numbers = #tpu.dot_dimension_numbers<[1], [0], [0], [1], [0, 0, 1, 1], [], []>} : vector<32x64xbf16>, vector<64x128xbf16>, vector<32x128xf32> -> vector<32x128xf32>
    %c0_10 = arith.constant 0 : index
    %c0_11 = arith.constant 0 : index
    %12 = vector.load %arg6[%c0_10, %c0_11] : memref<1x128xf32, #tpu.memory_space<vmem>>, vector<1x128xf32>
    %13 = vector.broadcast %12 : vector<1x128xf32> to vector<32x128xf32>
    %14 = arith.addf %11, %13 : vector<32x128xf32>
    %15 = vector.shape_cast %14 : vector<32x128xf32> to vector<4x8x128xf32>
    %cst_12 = arith.constant dense<0xFF800000> : vector<8x128xf32>
    %16 = vector.multi_reduction <maximumf>, %15, %cst_12 [0] : vector<4x8x128xf32> to vector<8x128xf32>
    %c0_13 = arith.constant 0 : index
    %c0_14 = arith.constant 0 : index
    %17 = vector.load %arg2[%c0_13, %c0_14] : memref<8x3xbf16, #tpu.memory_space<vmem>>, vector<8x3xbf16>
    %c0_15 = arith.constant 0 : index
    %c0_16 = arith.constant 0 : index
    %18 = vector.load %arg7[%c0_15, %c0_16] : memref<3x128xbf16, #tpu.memory_space<vmem>>, vector<3x128xbf16>
    %cst_17 = arith.constant dense<0.000000e+00> : vector<8x128xf32>
    %19 = tpu.matmul %17, %18, %cst_17 {dimension_numbers = #tpu.dot_dimension_numbers<[1], [0], [0], [1], [0, 0, 1, 1], [], []>} : vector<8x3xbf16>, vector<3x128xbf16>, vector<8x128xf32> -> vector<8x128xf32>
    %c0_18 = arith.constant 0 : index
    %c0_19 = arith.constant 0 : index
    %20 = vector.load %arg8[%c0_18, %c0_19] : memref<1x128xf32, #tpu.memory_space<vmem>>, vector<1x128xf32>
    %21 = vector.broadcast %20 : vector<1x128xf32> to vector<8x128xf32>
    %22 = arith.addf %19, %21 : vector<8x128xf32>
    %23 = arith.addf %16, %22 : vector<8x128xf32>
    %c0_20 = arith.constant 0 : index
    %c0_21 = arith.constant 0 : index
    %24 = vector.load %arg9[%c0_20, %c0_21] : memref<8x128xf32, #tpu.memory_space<vmem>>, vector<8x128xf32>
    tpu.vector_store %arg9[%c0_20, %c0_21], %23 {strides = array<i32>} : memref<8x128xf32, #tpu.memory_space<vmem>>, vector<8x128xf32>,
    return
  }
  func.func @transform_0(%arg0: i32) -> (i32, i32, i32) {
    %c0_i32 = arith.constant 0 : i32
    %c0_i32_0 = arith.constant 0 : i32
    %c0_i32_1 = arith.constant 0 : i32
    return %c0_i32, %arg0, %c0_i32_0 : i32, i32, i32
  }
  func.func @transform_1(%arg0: i32) -> (i32, i32) {
    %c0_i32 = arith.constant 0 : i32
    %c0_i32_0 = arith.constant 0 : i32
    return %arg0, %c0_i32 : i32, i32
  }
  func.func @transform_2(%arg0: i32) -> (i32, i32) {
    %c0_i32 = arith.constant 0 : i32
    %c0_i32_0 = arith.constant 0 : i32
    %c0_i32_1 = arith.constant 0 : i32
    return %c0_i32, %c0_i32_0 : i32, i32
  }
  func.func @transform_3(%arg0: i32) -> (i32, i32) {
    %c0_i32 = arith.constant 0 : i32
    %c0_i32_0 = arith.constant 0 : i32
    %c0_i32_1 = arith.constant 0 : i32
    return %c0_i32, %c0_i32_0 : i32, i32
  }
  func.func @transform_4(%arg0: i32) -> (i32, i32) {
    %c0_i32 = arith.constant 0 : i32
    %c0_i32_0 = arith.constant 0 : i32
    %c0_i32_1 = arith.constant 0 : i32
    return %c0_i32, %c0_i32_0 : i32, i32
  }
  func.func @transform_5(%arg0: i32) -> (i32, i32) {
    %c0_i32 = arith.constant 0 : i32
    %c0_i32_0 = arith.constant 0 : i32
    %c0_i32_1 = arith.constant 0 : i32
    return %c0_i32, %c0_i32_0 : i32, i32
  }
  func.func @transform_6(%arg0: i32) -> (i32, i32) {
    %c0_i32 = arith.constant 0 : i32
    %c0_i32_0 = arith.constant 0 : i32
    %c0_i32_1 = arith.constant 0 : i32
    return %c0_i32, %c0_i32_0 : i32, i32
  }
  func.func @transform_7(%arg0: i32) -> (i32, i32) {
    %c0_i32 = arith.constant 0 : i32
    %c0_i32_0 = arith.constant 0 : i32
    %c0_i32_1 = arith.constant 0 : i32
    return %c0_i32, %c0_i32_0 : i32, i32
  }
  func.func @transform_8(%arg0: i32) -> (i32, i32) {
    %c0_i32 = arith.constant 0 : i32
    %c0_i32_0 = arith.constant 0 : i32
    return %arg0, %c0_i32 : i32, i32
  }
}

module attributes {stable_mosaic.version = 11 : i64} {
  func.func @_sa_kernel(%arg0: i32, %arg1: memref<4x8x128xbf16, #tpu.memory_space<vmem>>, %arg2: memref<4x8x3xbf16, #tpu.memory_space<vmem>>, %arg3: memref<8x128xbf16, #tpu.memory_space<vmem>>, %arg4: memref<128x128xbf16, #tpu.memory_space<vmem>>, %arg5: memref<3x128xbf16, #tpu.memory_space<vmem>>, %arg6: memref<1x128xf32, #tpu.memory_space<vmem>>, %arg7: memref<128x256xbf16, #tpu.memory_space<vmem>>, %arg8: memref<1x256xf32, #tpu.memory_space<vmem>>, %arg9: memref<128x256xbf16, #tpu.memory_space<vmem>>, %arg10: memref<1x256xf32, #tpu.memory_space<vmem>>, %arg11: memref<8x256xf32, #tpu.memory_space<vmem>>) attributes {dimension_semantics = [#tpu.dimension_semantics<parallel>], iteration_bounds = array<i64: 1>, scalar_prefetch = 0 : i64, scratch_operands = 0 : i64, tpu.core_type = #tpu.core_type<tc>, window_params = [{transform_indices = @transform_0, window_bounds = array<i64: 4, 8, 128>}, {transform_indices = @transform_1, window_bounds = array<i64: 4, 8, 3>}, {transform_indices = @transform_2, window_bounds = array<i64: 8, 128>}, {pipeline_mode = #tpu.pipeline_mode<synchronous>, transform_indices = @transform_3, window_bounds = array<i64: 128, 128>}, {pipeline_mode = #tpu.pipeline_mode<synchronous>, transform_indices = @transform_4, window_bounds = array<i64: 3, 128>}, {pipeline_mode = #tpu.pipeline_mode<synchronous>, transform_indices = @transform_5, window_bounds = array<i64: 1, 128>}, {pipeline_mode = #tpu.pipeline_mode<synchronous>, transform_indices = @transform_6, window_bounds = array<i64: 128, 256>}, {pipeline_mode = #tpu.pipeline_mode<synchronous>, transform_indices = @transform_7, window_bounds = array<i64: 1, 256>}, {pipeline_mode = #tpu.pipeline_mode<synchronous>, transform_indices = @transform_8, window_bounds = array<i64: 128, 256>}, {pipeline_mode = #tpu.pipeline_mode<synchronous>, transform_indices = @transform_9, window_bounds = array<i64: 1, 256>}, {transform_indices = @transform_10, window_bounds = array<i64: 8, 256>}]} {
    %c0 = arith.constant 0 : index
    %c0_0 = arith.constant 0 : index
    %c0_1 = arith.constant 0 : index
    %0 = vector.load %arg1[%c0, %c0_0, %c0_1] : memref<4x8x128xbf16, #tpu.memory_space<vmem>>, vector<4x8x128xbf16>
    %1 = vector.shape_cast %0 : vector<4x8x128xbf16> to vector<32x128xbf16>
    %c0_2 = arith.constant 0 : index
    %c0_3 = arith.constant 0 : index
    %c0_4 = arith.constant 0 : index
    %2 = vector.load %arg2[%c0_2, %c0_3, %c0_4] : memref<4x8x3xbf16, #tpu.memory_space<vmem>>, vector<4x8x3xbf16>
    %3 = vector.shape_cast %2 : vector<4x8x3xbf16> to vector<32x3xbf16>
    %c0_5 = arith.constant 0 : index
    %c0_6 = arith.constant 0 : index
    %4 = vector.load %arg4[%c0_5, %c0_6] : memref<128x128xbf16, #tpu.memory_space<vmem>>, vector<128x128xbf16>
    %cst = arith.constant dense<0.000000e+00> : vector<32x128xf32>
    %5 = tpu.matmul %1, %4, %cst {dimension_numbers = #tpu.dot_dimension_numbers<[1], [0], [0], [1], [0, 0, 1, 1], [], []>} : vector<32x128xbf16>, vector<128x128xbf16>, vector<32x128xf32> -> vector<32x128xf32>
    %c0_7 = arith.constant 0 : index
    %c0_8 = arith.constant 0 : index
    %6 = vector.load %arg5[%c0_7, %c0_8] : memref<3x128xbf16, #tpu.memory_space<vmem>>, vector<3x128xbf16>
    %cst_9 = arith.constant dense<0.000000e+00> : vector<32x128xf32>
    %7 = tpu.matmul %3, %6, %cst_9 {dimension_numbers = #tpu.dot_dimension_numbers<[1], [0], [0], [1], [0, 0, 1, 1], [], []>} : vector<32x3xbf16>, vector<3x128xbf16>, vector<32x128xf32> -> vector<32x128xf32>
    %8 = arith.addf %5, %7 : vector<32x128xf32>
    %c0_10 = arith.constant 0 : index
    %c0_11 = arith.constant 0 : index
    %9 = vector.load %arg6[%c0_10, %c0_11] : memref<1x128xf32, #tpu.memory_space<vmem>>, vector<1x128xf32>
    %10 = vector.broadcast %9 : vector<1x128xf32> to vector<32x128xf32>
    %11 = arith.addf %8, %10 : vector<32x128xf32>
    %cst_12 = arith.constant 0.000000e+00 : f32
    %12 = vector.broadcast %cst_12 : f32 to vector<32x128xf32>
    %13 = arith.maximumf %11, %12 : vector<32x128xf32>
    %14 = arith.truncf %13 : vector<32x128xf32> to vector<32x128xbf16>
    %c0_13 = arith.constant 0 : index
    %c0_14 = arith.constant 0 : index
    %15 = vector.load %arg7[%c0_13, %c0_14] : memref<128x256xbf16, #tpu.memory_space<vmem>>, vector<128x256xbf16>
    %cst_15 = arith.constant dense<0.000000e+00> : vector<32x256xf32>
    %16 = tpu.matmul %14, %15, %cst_15 {dimension_numbers = #tpu.dot_dimension_numbers<[1], [0], [0], [1], [0, 0, 1, 1], [], []>} : vector<32x128xbf16>, vector<128x256xbf16>, vector<32x256xf32> -> vector<32x256xf32>
    %c0_16 = arith.constant 0 : index
    %c0_17 = arith.constant 0 : index
    %17 = vector.load %arg8[%c0_16, %c0_17] : memref<1x256xf32, #tpu.memory_space<vmem>>, vector<1x256xf32>
    %18 = vector.broadcast %17 : vector<1x256xf32> to vector<32x256xf32>
    %19 = arith.addf %16, %18 : vector<32x256xf32>
    %20 = vector.shape_cast %19 : vector<32x256xf32> to vector<4x8x256xf32>
    %cst_18 = arith.constant dense<0xFF800000> : vector<8x256xf32>
    %21 = vector.multi_reduction <maximumf>, %20, %cst_18 [0] : vector<4x8x256xf32> to vector<8x256xf32>
    %c0_19 = arith.constant 0 : index
    %c0_20 = arith.constant 0 : index
    %22 = vector.load %arg3[%c0_19, %c0_20] : memref<8x128xbf16, #tpu.memory_space<vmem>>, vector<8x128xbf16>
    %c0_21 = arith.constant 0 : index
    %c0_22 = arith.constant 0 : index
    %23 = vector.load %arg9[%c0_21, %c0_22] : memref<128x256xbf16, #tpu.memory_space<vmem>>, vector<128x256xbf16>
    %cst_23 = arith.constant dense<0.000000e+00> : vector<8x256xf32>
    %24 = tpu.matmul %22, %23, %cst_23 {dimension_numbers = #tpu.dot_dimension_numbers<[1], [0], [0], [1], [0, 0, 1, 1], [], []>} : vector<8x128xbf16>, vector<128x256xbf16>, vector<8x256xf32> -> vector<8x256xf32>
    %c0_24 = arith.constant 0 : index
    %c0_25 = arith.constant 0 : index
    %25 = vector.load %arg10[%c0_24, %c0_25] : memref<1x256xf32, #tpu.memory_space<vmem>>, vector<1x256xf32>
    %26 = vector.broadcast %25 : vector<1x256xf32> to vector<8x256xf32>
    %27 = arith.addf %24, %26 : vector<8x256xf32>
    %28 = arith.addf %21, %27 : vector<8x256xf32>
    %c0_26 = arith.constant 0 : index
    %c0_27 = arith.constant 0 : index
    %29 = vector.load %arg11[%c0_26, %c0_27] : memref<8x256xf32, #tpu.memory_space<vmem>>, vector<8x256xf32>
    tpu.vector_store %arg11[%c0_26, %c0_27], %28 {strides = array<i32>} : memref<8x256xf32, #tpu.memory_space<vmem>>, vector<8x256xf32>,
    return
  }
  func.func @transform_0(%arg0: i32) -> (i32, i32, i32) {
    %c0_i32 = arith.constant 0 : i32
    %c0_i32_0 = arith.constant 0 : i32
    %c0_i32_1 = arith.constant 0 : i32
    return %c0_i32, %arg0, %c0_i32_0 : i32, i32, i32
  }
  func.func @transform_1(%arg0: i32) -> (i32, i32, i32) {
    %c0_i32 = arith.constant 0 : i32
    %c0_i32_0 = arith.constant 0 : i32
    %c0_i32_1 = arith.constant 0 : i32
    return %c0_i32, %arg0, %c0_i32_0 : i32, i32, i32
  }
  func.func @transform_2(%arg0: i32) -> (i32, i32) {
    %c0_i32 = arith.constant 0 : i32
    %c0_i32_0 = arith.constant 0 : i32
    return %arg0, %c0_i32 : i32, i32
  }
  func.func @transform_3(%arg0: i32) -> (i32, i32) {
    %c0_i32 = arith.constant 0 : i32
    %c0_i32_0 = arith.constant 0 : i32
    %c0_i32_1 = arith.constant 0 : i32
    return %c0_i32, %c0_i32_0 : i32, i32
  }
  func.func @transform_4(%arg0: i32) -> (i32, i32) {
    %c0_i32 = arith.constant 0 : i32
    %c0_i32_0 = arith.constant 0 : i32
    %c0_i32_1 = arith.constant 0 : i32
    return %c0_i32, %c0_i32_0 : i32, i32
  }
  func.func @transform_5(%arg0: i32) -> (i32, i32) {
    %c0_i32 = arith.constant 0 : i32
    %c0_i32_0 = arith.constant 0 : i32
    %c0_i32_1 = arith.constant 0 : i32
    return %c0_i32, %c0_i32_0 : i32, i32
  }
  func.func @transform_6(%arg0: i32) -> (i32, i32) {
    %c0_i32 = arith.constant 0 : i32
    %c0_i32_0 = arith.constant 0 : i32
    %c0_i32_1 = arith.constant 0 : i32
    return %c0_i32, %c0_i32_0 : i32, i32
  }
  func.func @transform_7(%arg0: i32) -> (i32, i32) {
    %c0_i32 = arith.constant 0 : i32
    %c0_i32_0 = arith.constant 0 : i32
    %c0_i32_1 = arith.constant 0 : i32
    return %c0_i32, %c0_i32_0 : i32, i32
  }
  func.func @transform_8(%arg0: i32) -> (i32, i32) {
    %c0_i32 = arith.constant 0 : i32
    %c0_i32_0 = arith.constant 0 : i32
    %c0_i32_1 = arith.constant 0 : i32
    return %c0_i32, %c0_i32_0 : i32, i32
  }
  func.func @transform_9(%arg0: i32) -> (i32, i32) {
    %c0_i32 = arith.constant 0 : i32
    %c0_i32_0 = arith.constant 0 : i32
    %c0_i32_1 = arith.constant 0 : i32
    return %c0_i32, %c0_i32_0 : i32, i32
  }
  func.func @transform_10(%arg0: i32) -> (i32, i32) {
    %c0_i32 = arith.constant 0 : i32
    %c0_i32_0 = arith.constant 0 : i32
    return %arg0, %c0_i32 : i32, i32
  }
}

module attributes {stable_mosaic.version = 11 : i64} {
  func.func @kernel(%arg0: i32, %arg1: memref<8x256xbf16, #tpu.memory_space<vmem>>, %arg2: memref<8x3xbf16, #tpu.memory_space<vmem>>, %arg3: memref<256x256xbf16, #tpu.memory_space<vmem>>, %arg4: memref<3x256xbf16, #tpu.memory_space<vmem>>, %arg5: memref<1x256xf32, #tpu.memory_space<vmem>>, %arg6: memref<256x512xbf16, #tpu.memory_space<vmem>>, %arg7: memref<1x512xf32, #tpu.memory_space<vmem>>, %arg8: memref<1x512xf32, #tpu.memory_space<vmem>>, %arg9: memref<1x512xf32, #tpu.memory_space<vmem>>) attributes {dimension_semantics = [#tpu.dimension_semantics<arbitrary>], iteration_bounds = array<i64: 1>, scalar_prefetch = 0 : i64, scratch_operands = 1 : i64, tpu.core_type = #tpu.core_type<tc>, window_params = [{transform_indices = @transform_0, window_bounds = array<i64: 8, 256>}, {transform_indices = @transform_1, window_bounds = array<i64: 8, 3>}, {pipeline_mode = #tpu.pipeline_mode<synchronous>, transform_indices = @transform_2, window_bounds = array<i64: 256, 256>}, {pipeline_mode = #tpu.pipeline_mode<synchronous>, transform_indices = @transform_3, window_bounds = array<i64: 3, 256>}, {pipeline_mode = #tpu.pipeline_mode<synchronous>, transform_indices = @transform_4, window_bounds = array<i64: 1, 256>}, {pipeline_mode = #tpu.pipeline_mode<synchronous>, transform_indices = @transform_5, window_bounds = array<i64: 256, 512>}, {pipeline_mode = #tpu.pipeline_mode<synchronous>, transform_indices = @transform_6, window_bounds = array<i64: 1, 512>}, {pipeline_mode = #tpu.pipeline_mode<synchronous>, transform_indices = @transform_7, window_bounds = array<i64: 1, 512>}]} {
    %c0_i32 = arith.constant 0 : i32
    %0 = arith.cmpi eq, %arg0, %c0_i32 : i32
    %1 = arith.extui %0 : i1 to i32
    %c0_i32_0 = arith.constant 0 : i32
    %2 = arith.cmpi ne, %1, %c0_i32_0 : i32
    scf.if %2 {
      %cst_26 = arith.constant 0xFF800000 : f32
      %39 = vector.broadcast %cst_26 : f32 to vector<1x512xf32>
      %c0_27 = arith.constant 0 : index
      %c0_28 = arith.constant 0 : index
      %40 = vector.load %arg9[%c0_27, %c0_28] : memref<1x512xf32, #tpu.memory_space<vmem>>, vector<1x512xf32>
      tpu.vector_store %arg9[%c0_27, %c0_28], %39 {strides = array<i32>} : memref<1x512xf32, #tpu.memory_space<vmem>>, vector<1x512xf32>,
    } else {
    }
    %c0 = arith.constant 0 : index
    %c0_1 = arith.constant 0 : index
    %3 = vector.load %arg1[%c0, %c0_1] : memref<8x256xbf16, #tpu.memory_space<vmem>>, vector<8x256xbf16>
    %c0_2 = arith.constant 0 : index
    %c0_3 = arith.constant 0 : index
    %4 = vector.load %arg3[%c0_2, %c0_3] : memref<256x256xbf16, #tpu.memory_space<vmem>>, vector<256x256xbf16>
    %cst = arith.constant dense<0.000000e+00> : vector<8x256xf32>
    %5 = tpu.matmul %3, %4, %cst {dimension_numbers = #tpu.dot_dimension_numbers<[1], [0], [0], [1], [0, 0, 1, 1], [], []>} : vector<8x256xbf16>, vector<256x256xbf16>, vector<8x256xf32> -> vector<8x256xf32>
    %c0_4 = arith.constant 0 : index
    %c0_5 = arith.constant 0 : index
    %6 = vector.load %arg2[%c0_4, %c0_5] : memref<8x3xbf16, #tpu.memory_space<vmem>>, vector<8x3xbf16>
    %c0_6 = arith.constant 0 : index
    %c0_7 = arith.constant 0 : index
    %7 = vector.load %arg4[%c0_6, %c0_7] : memref<3x256xbf16, #tpu.memory_space<vmem>>, vector<3x256xbf16>
    %cst_8 = arith.constant dense<0.000000e+00> : vector<8x256xf32>
    %8 = tpu.matmul %6, %7, %cst_8 {dimension_numbers = #tpu.dot_dimension_numbers<[1], [0], [0], [1], [0, 0, 1, 1], [], []>} : vector<8x3xbf16>, vector<3x256xbf16>, vector<8x256xf32> -> vector<8x256xf32>
    %9 = arith.addf %5, %8 : vector<8x256xf32>
    %c0_9 = arith.constant 0 : index
    %c0_10 = arith.constant 0 : index
    %10 = vector.load %arg5[%c0_9, %c0_10] : memref<1x256xf32, #tpu.memory_space<vmem>>, vector<1x256xf32>
    %11 = vector.broadcast %10 : vector<1x256xf32> to vector<8x256xf32>
    %12 = arith.addf %9, %11 : vector<8x256xf32>
    %cst_11 = arith.constant 0.000000e+00 : f32
    %13 = vector.broadcast %cst_11 : f32 to vector<8x256xf32>
    %14 = arith.maximumf %12, %13 : vector<8x256xf32>
    %15 = arith.truncf %14 : vector<8x256xf32> to vector<8x256xbf16>
    %c0_12 = arith.constant 0 : index
    %c0_13 = arith.constant 0 : index
    %16 = vector.load %arg6[%c0_12, %c0_13] : memref<256x512xbf16, #tpu.memory_space<vmem>>, vector<256x512xbf16>
    %cst_14 = arith.constant dense<0.000000e+00> : vector<8x512xf32>
    %17 = tpu.matmul %15, %16, %cst_14 {dimension_numbers = #tpu.dot_dimension_numbers<[1], [0], [0], [1], [0, 0, 1, 1], [], []>} : vector<8x256xbf16>, vector<256x512xbf16>, vector<8x512xf32> -> vector<8x512xf32>
    %c0_15 = arith.constant 0 : index
    %c0_16 = arith.constant 0 : index
    %18 = vector.load %arg7[%c0_15, %c0_16] : memref<1x512xf32, #tpu.memory_space<vmem>>, vector<1x512xf32>
    %19 = vector.broadcast %18 : vector<1x512xf32> to vector<8x512xf32>
    %20 = arith.addf %17, %19 : vector<8x512xf32>
    %c8_i32 = arith.constant 8 : i32
    %21 = arith.muli %arg0, %c8_i32 : i32
    %22 = tpu.iota {dimensions = array<i32: 0>} : vector<8x1xi32>
    %23 = vector.broadcast %21 : i32 to vector<8x1xi32>
    %24 = arith.addi %23, %22 : vector<8x1xi32>
    %c8_i32_17 = arith.constant 8 : i32
    %25 = vector.broadcast %c8_i32_17 : i32 to vector<8x1xi32>
    %26 = arith.cmpi slt, %24, %25 : vector<8x1xi32>
    %cst_18 = arith.constant 0xFF800000 : f32
    %27 = vector.shape_cast %26 : vector<8x1xi1> to vector<8x1xi1>
    %28 = vector.broadcast %27 : vector<8x1xi1> to vector<8x512xi1>
    %29 = vector.broadcast %cst_18 : f32 to vector<8x512xf32>
    %30 = arith.select %28, %20, %29 : vector<8x512xi1>, vector<8x512xf32>
    %c0_19 = arith.constant 0 : index
    %c0_20 = arith.constant 0 : index
    %31 = vector.load %arg9[%c0_19, %c0_20] : memref<1x512xf32, #tpu.memory_space<vmem>>, vector<1x512xf32>
    %cst_21 = arith.constant dense<0xFF800000> : vector<512xf32>
    %32 = vector.multi_reduction <maximumf>, %30, %cst_21 [0] : vector<8x512xf32> to vector<512xf32>
    %33 = vector.shape_cast %32 : vector<512xf32> to vector<1x512xf32>
    %34 = arith.maximumf %31, %33 : vector<1x512xf32>
    %c0_22 = arith.constant 0 : index
    %c0_23 = arith.constant 0 : index
    %35 = vector.load %arg9[%c0_22, %c0_23] : memref<1x512xf32, #tpu.memory_space<vmem>>, vector<1x512xf32>
    tpu.vector_store %arg9[%c0_22, %c0_23], %34 {strides = array<i32>} : memref<1x512xf32, #tpu.memory_space<vmem>>, vector<1x512xf32>,
    %c0_i32_24 = arith.constant 0 : i32
    %36 = arith.cmpi eq, %arg0, %c0_i32_24 : i32
    %37 = arith.extui %36 : i1 to i32
    %c0_i32_25 = arith.constant 0 : i32
    %38 = arith.cmpi ne, %37, %c0_i32_25 : i32
    scf.if %38 {
      %c0_26 = arith.constant 0 : index
      %c0_27 = arith.constant 0 : index
      %39 = vector.load %arg9[%c0_26, %c0_27] : memref<1x512xf32, #tpu.memory_space<vmem>>, vector<1x512xf32>
      %c0_28 = arith.constant 0 : index
      %c0_29 = arith.constant 0 : index
      %40 = vector.load %arg8[%c0_28, %c0_29] : memref<1x512xf32, #tpu.memory_space<vmem>>, vector<1x512xf32>
      tpu.vector_store %arg8[%c0_28, %c0_29], %39 {strides = array<i32>} : memref<1x512xf32, #tpu.memory_space<vmem>>, vector<1x512xf32>,
    } else {
    }
    return
  }
  func.func @transform_0(%arg0: i32) -> (i32, i32) {
    %c0_i32 = arith.constant 0 : i32
    %c0_i32_0 = arith.constant 0 : i32
    return %arg0, %c0_i32 : i32, i32
  }
  func.func @transform_1(%arg0: i32) -> (i32, i32) {
    %c0_i32 = arith.constant 0 : i32
    %c0_i32_0 = arith.constant 0 : i32
    return %arg0, %c0_i32 : i32, i32
  }
  func.func @transform_2(%arg0: i32) -> (i32, i32) {
    %c0_i32 = arith.constant 0 : i32
    %c0_i32_0 = arith.constant 0 : i32
    %c0_i32_1 = arith.constant 0 : i32
    return %c0_i32, %c0_i32_0 : i32, i32
  }
  func.func @transform_3(%arg0: i32) -> (i32, i32) {
    %c0_i32 = arith.constant 0 : i32
    %c0_i32_0 = arith.constant 0 : i32
    %c0_i32_1 = arith.constant 0 : i32
    return %c0_i32, %c0_i32_0 : i32, i32
  }
  func.func @transform_4(%arg0: i32) -> (i32, i32) {
    %c0_i32 = arith.constant 0 : i32
    %c0_i32_0 = arith.constant 0 : i32
    %c0_i32_1 = arith.constant 0 : i32
    return %c0_i32, %c0_i32_0 : i32, i32
  }
  func.func @transform_5(%arg0: i32) -> (i32, i32) {
    %c0_i32 = arith.constant 0 : i32
    %c0_i32_0 = arith.constant 0 : i32
    %c0_i32_1 = arith.constant 0 : i32
    return %c0_i32, %c0_i32_0 : i32, i32
  }
  func.func @transform_6(%arg0: i32) -> (i32, i32) {
    %c0_i32 = arith.constant 0 : i32
    %c0_i32_0 = arith.constant 0 : i32
    %c0_i32_1 = arith.constant 0 : i32
    return %c0_i32, %c0_i32_0 : i32, i32
  }
  func.func @transform_7(%arg0: i32) -> (i32, i32) {
    %c0_i32 = arith.constant 0 : i32
    %c0_i32_0 = arith.constant 0 : i32
    %c0_i32_1 = arith.constant 0 : i32
    return %c0_i32, %c0_i32_0 : i32, i32
  }
}

module attributes {stable_mosaic.version = 11 : i64} {
  func.func @kernel(%arg0: i32, %arg1: memref<1x8x512xbf16, #tpu.memory_space<vmem>>, %arg2: memref<8x1xf32, #tpu.memory_space<vmem>>, %arg3: memref<8x256xbf16, #tpu.memory_space<vmem>>, %arg4: memref<512x512xbf16, #tpu.memory_space<vmem>>, %arg5: memref<256x512xbf16, #tpu.memory_space<vmem>>, %arg6: memref<1x512xf32, #tpu.memory_space<vmem>>, %arg7: memref<512x256xbf16, #tpu.memory_space<vmem>>, %arg8: memref<1x256xf32, #tpu.memory_space<vmem>>, %arg9: memref<8x256xf32, #tpu.memory_space<vmem>>) attributes {dimension_semantics = [#tpu.dimension_semantics<parallel>], iteration_bounds = array<i64: 1>, scalar_prefetch = 0 : i64, scratch_operands = 0 : i64, tpu.core_type = #tpu.core_type<tc>, window_params = [{transform_indices = @transform_0, window_bounds = array<i64: 1, 8, 512>}, {transform_indices = @transform_1, window_bounds = array<i64: 8, 1>}, {transform_indices = @transform_2, window_bounds = array<i64: 8, 256>}, {pipeline_mode = #tpu.pipeline_mode<synchronous>, transform_indices = @transform_3, window_bounds = array<i64: 512, 512>}, {pipeline_mode = #tpu.pipeline_mode<synchronous>, transform_indices = @transform_4, window_bounds = array<i64: 256, 512>}, {pipeline_mode = #tpu.pipeline_mode<synchronous>, transform_indices = @transform_5, window_bounds = array<i64: 1, 512>}, {pipeline_mode = #tpu.pipeline_mode<synchronous>, transform_indices = @transform_6, window_bounds = array<i64: 512, 256>}, {pipeline_mode = #tpu.pipeline_mode<synchronous>, transform_indices = @transform_7, window_bounds = array<i64: 1, 256>}, {transform_indices = @transform_8, window_bounds = array<i64: 8, 256>}]} {
    %c0 = arith.constant 0 : index
    %c0_0 = arith.constant 0 : index
    %0 = vector.load %arg2[%c0, %c0_0] : memref<8x1xf32, #tpu.memory_space<vmem>>, vector<8x1xf32>
    %cst = arith.constant dense<0.000000e+00> : vector<8xf32>
    %1 = vector.multi_reduction <add>, %0, %cst [1] : vector<8x1xf32> to vector<8xf32>
    %2 = vector.shape_cast %1 : vector<8xf32> to vector<8x1xf32>
    %3 = tpu.reciprocal %2 {approx = true} : vector<8x1xf32> -> vector<8x1xf32>
    %c0_1 = arith.constant 0 : index
    %c0_2 = arith.constant 0 : index
    %c0_3 = arith.constant 0 : index
    %4 = vector.load %arg1[%c0_1, %c0_2, %c0_3] : memref<1x8x512xbf16, #tpu.memory_space<vmem>>, vector<1x8x512xbf16>
    %5 = vector.shape_cast %4 : vector<1x8x512xbf16> to vector<8x512xbf16>
    %6 = arith.extf %5 : vector<8x512xbf16> to vector<8x512xf32>
    %7 = vector.broadcast %0 : vector<8x1xf32> to vector<8x512xf32>
    %8 = arith.mulf %6, %7 : vector<8x512xf32>
    %9 = vector.broadcast %3 : vector<8x1xf32> to vector<8x512xf32>
    %10 = arith.mulf %8, %9 : vector<8x512xf32>
    %11 = arith.truncf %10 : vector<8x512xf32> to vector<8x512xbf16>
    %c0_4 = arith.constant 0 : index
    %c0_5 = arith.constant 0 : index
    %12 = vector.load %arg4[%c0_4, %c0_5] : memref<512x512xbf16, #tpu.memory_space<vmem>>, vector<512x512xbf16>
    %cst_6 = arith.constant dense<0.000000e+00> : vector<8x512xf32>
    %13 = tpu.matmul %11, %12, %cst_6 {dimension_numbers = #tpu.dot_dimension_numbers<[1], [0], [0], [1], [0, 0, 1, 1], [], []>} : vector<8x512xbf16>, vector<512x512xbf16>, vector<8x512xf32> -> vector<8x512xf32>
    %c0_7 = arith.constant 0 : index
    %c0_8 = arith.constant 0 : index
    %14 = vector.load %arg3[%c0_7, %c0_8] : memref<8x256xbf16, #tpu.memory_space<vmem>>, vector<8x256xbf16>
    %c0_9 = arith.constant 0 : index
    %c0_10 = arith.constant 0 : index
    %15 = vector.load %arg5[%c0_9, %c0_10] : memref<256x512xbf16, #tpu.memory_space<vmem>>, vector<256x512xbf16>
    %cst_11 = arith.constant dense<0.000000e+00> : vector<8x512xf32>
    %16 = tpu.matmul %14, %15, %cst_11 {dimension_numbers = #tpu.dot_dimension_numbers<[1], [0], [0], [1], [0, 0, 1, 1], [], []>} : vector<8x256xbf16>, vector<256x512xbf16>, vector<8x512xf32> -> vector<8x512xf32>
    %17 = arith.addf %13, %16 : vector<8x512xf32>
    %c0_12 = arith.constant 0 : index
    %c0_13 = arith.constant 0 : index
    %18 = vector.load %arg6[%c0_12, %c0_13] : memref<1x512xf32, #tpu.memory_space<vmem>>, vector<1x512xf32>
    %19 = vector.broadcast %18 : vector<1x512xf32> to vector<8x512xf32>
    %20 = arith.addf %17, %19 : vector<8x512xf32>
    %cst_14 = arith.constant 0.000000e+00 : f32
    %21 = vector.broadcast %cst_14 : f32 to vector<8x512xf32>
    %22 = arith.maximumf %20, %21 : vector<8x512xf32>
    %c0_15 = arith.constant 0 : index
    %c0_16 = arith.constant 0 : index
    %23 = vector.load %arg7[%c0_15, %c0_16] : memref<512x256xbf16, #tpu.memory_space<vmem>>, vector<512x256xbf16>
    %c0_17 = arith.constant 0 : index
    %c0_18 = arith.constant 0 : index
    %24 = vector.load %arg8[%c0_17, %c0_18] : memref<1x256xf32, #tpu.memory_space<vmem>>, vector<1x256xf32>
    %25 = arith.truncf %22 : vector<8x512xf32> to vector<8x512xbf16>
    %cst_19 = arith.constant dense<0.000000e+00> : vector<8x256xf32>
    %26 = tpu.matmul %25, %23, %cst_19 {dimension_numbers = #tpu.dot_dimension_numbers<[1], [0], [0], [1], [0, 0, 1, 1], [], []>} : vector<8x512xbf16>, vector<512x256xbf16>, vector<8x256xf32> -> vector<8x256xf32>
    %27 = vector.broadcast %24 : vector<1x256xf32> to vector<8x256xf32>
    %28 = arith.addf %26, %27 : vector<8x256xf32>
    %c0_20 = arith.constant 0 : index
    %c0_21 = arith.constant 0 : index
    %29 = vector.load %arg9[%c0_20, %c0_21] : memref<8x256xf32, #tpu.memory_space<vmem>>, vector<8x256xf32>
    tpu.vector_store %arg9[%c0_20, %c0_21], %28 {strides = array<i32>} : memref<8x256xf32, #tpu.memory_space<vmem>>, vector<8x256xf32>,
    return
  }
  func.func @transform_0(%arg0: i32) -> (i32, i32, i32) {
    %c0_i32 = arith.constant 0 : i32
    %c0_i32_0 = arith.constant 0 : i32
    %c0_i32_1 = arith.constant 0 : i32
    return %c0_i32, %arg0, %c0_i32_0 : i32, i32, i32
  }
  func.func @transform_1(%arg0: i32) -> (i32, i32) {
    %c0_i32 = arith.constant 0 : i32
    %c0_i32_0 = arith.constant 0 : i32
    return %arg0, %c0_i32 : i32, i32
  }
  func.func @transform_2(%arg0: i32) -> (i32, i32) {
    %c0_i32 = arith.constant 0 : i32
    %c0_i32_0 = arith.constant 0 : i32
    return %arg0, %c0_i32 : i32, i32
  }
  func.func @transform_3(%arg0: i32) -> (i32, i32) {
    %c0_i32 = arith.constant 0 : i32
    %c0_i32_0 = arith.constant 0 : i32
    %c0_i32_1 = arith.constant 0 : i32
    return %c0_i32, %c0_i32_0 : i32, i32
  }
  func.func @transform_4(%arg0: i32) -> (i32, i32) {
    %c0_i32 = arith.constant 0 : i32
    %c0_i32_0 = arith.constant 0 : i32
    %c0_i32_1 = arith.constant 0 : i32
    return %c0_i32, %c0_i32_0 : i32, i32
  }
  func.func @transform_5(%arg0: i32) -> (i32, i32) {
    %c0_i32 = arith.constant 0 : i32
    %c0_i32_0 = arith.constant 0 : i32
    %c0_i32_1 = arith.constant 0 : i32
    return %c0_i32, %c0_i32_0 : i32, i32
  }
  func.func @transform_6(%arg0: i32) -> (i32, i32) {
    %c0_i32 = arith.constant 0 : i32
    %c0_i32_0 = arith.constant 0 : i32
    %c0_i32_1 = arith.constant 0 : i32
    return %c0_i32, %c0_i32_0 : i32, i32
  }
  func.func @transform_7(%arg0: i32) -> (i32, i32) {
    %c0_i32 = arith.constant 0 : i32
    %c0_i32_0 = arith.constant 0 : i32
    %c0_i32_1 = arith.constant 0 : i32
    return %c0_i32, %c0_i32_0 : i32, i32
  }
  func.func @transform_8(%arg0: i32) -> (i32, i32) {
    %c0_i32 = arith.constant 0 : i32
    %c0_i32_0 = arith.constant 0 : i32
    return %arg0, %c0_i32 : i32, i32
  }
}

module attributes {stable_mosaic.version = 11 : i64} {
  func.func @kernel(%arg0: i32, %arg1: memref<3x8x256xbf16, #tpu.memory_space<vmem>>, %arg2: memref<8x3xf32, #tpu.memory_space<vmem>>, %arg3: memref<8x128xbf16, #tpu.memory_space<vmem>>, %arg4: memref<256x256xbf16, #tpu.memory_space<vmem>>, %arg5: memref<128x256xbf16, #tpu.memory_space<vmem>>, %arg6: memref<1x256xf32, #tpu.memory_space<vmem>>, %arg7: memref<256x128xbf16, #tpu.memory_space<vmem>>, %arg8: memref<1x128xf32, #tpu.memory_space<vmem>>, %arg9: memref<8x128xf32, #tpu.memory_space<vmem>>) attributes {dimension_semantics = [#tpu.dimension_semantics<parallel>], iteration_bounds = array<i64: 2>, scalar_prefetch = 0 : i64, scratch_operands = 0 : i64, tpu.core_type = #tpu.core_type<tc>, window_params = [{transform_indices = @transform_0, window_bounds = array<i64: 3, 8, 256>}, {transform_indices = @transform_1, window_bounds = array<i64: 8, 3>}, {transform_indices = @transform_2, window_bounds = array<i64: 8, 128>}, {pipeline_mode = #tpu.pipeline_mode<synchronous>, transform_indices = @transform_3, window_bounds = array<i64: 256, 256>}, {pipeline_mode = #tpu.pipeline_mode<synchronous>, transform_indices = @transform_4, window_bounds = array<i64: 128, 256>}, {pipeline_mode = #tpu.pipeline_mode<synchronous>, transform_indices = @transform_5, window_bounds = array<i64: 1, 256>}, {pipeline_mode = #tpu.pipeline_mode<synchronous>, transform_indices = @transform_6, window_bounds = array<i64: 256, 128>}, {pipeline_mode = #tpu.pipeline_mode<synchronous>, transform_indices = @transform_7, window_bounds = array<i64: 1, 128>}, {transform_indices = @transform_8, window_bounds = array<i64: 8, 128>}]} {
    %c0 = arith.constant 0 : index
    %c0_0 = arith.constant 0 : index
    %0 = vector.load %arg2[%c0, %c0_0] : memref<8x3xf32, #tpu.memory_space<vmem>>, vector<8x3xf32>
    %cst = arith.constant dense<0.000000e+00> : vector<8xf32>
    %1 = vector.multi_reduction <add>, %0, %cst [1] : vector<8x3xf32> to vector<8xf32>
    %2 = vector.shape_cast %1 : vector<8xf32> to vector<8x1xf32>
    %3 = tpu.reciprocal %2 {approx = true} : vector<8x1xf32> -> vector<8x1xf32>
    %c0_1 = arith.constant 0 : index
    %c0_2 = arith.constant 0 : index
    %c0_3 = arith.constant 0 : index
    %4 = vector.load %arg1[%c0_1, %c0_2, %c0_3] : memref<3x8x256xbf16, #tpu.memory_space<vmem>>, vector<1x8x256xbf16>
    %5 = vector.shape_cast %4 : vector<1x8x256xbf16> to vector<8x256xbf16>
    %6 = arith.extf %5 : vector<8x256xbf16> to vector<8x256xf32>
    %7 = vector.extract_strided_slice %0 {offsets = [0, 0], sizes = [8, 1], strides = [1, 1]} : vector<8x3xf32> to vector<8x1xf32>
    %8 = vector.broadcast %7 : vector<8x1xf32> to vector<8x256xf32>
    %9 = arith.mulf %6, %8 : vector<8x256xf32>
    %c1 = arith.constant 1 : index
    %c0_4 = arith.constant 0 : index
    %c0_5 = arith.constant 0 : index
    %10 = vector.load %arg1[%c1, %c0_4, %c0_5] : memref<3x8x256xbf16, #tpu.memory_space<vmem>>, vector<1x8x256xbf16>
    %11 = vector.shape_cast %10 : vector<1x8x256xbf16> to vector<8x256xbf16>
    %12 = arith.extf %11 : vector<8x256xbf16> to vector<8x256xf32>
    %13 = vector.extract_strided_slice %0 {offsets = [0, 1], sizes = [8, 1], strides = [1, 1]} : vector<8x3xf32> to vector<8x1xf32>
    %14 = vector.broadcast %13 : vector<8x1xf32> to vector<8x256xf32>
    %15 = arith.mulf %12, %14 : vector<8x256xf32>
    %16 = arith.addf %9, %15 : vector<8x256xf32>
    %c2 = arith.constant 2 : index
    %c0_6 = arith.constant 0 : index
    %c0_7 = arith.constant 0 : index
    %17 = vector.load %arg1[%c2, %c0_6, %c0_7] : memref<3x8x256xbf16, #tpu.memory_space<vmem>>, vector<1x8x256xbf16>
    %18 = vector.shape_cast %17 : vector<1x8x256xbf16> to vector<8x256xbf16>
    %19 = arith.extf %18 : vector<8x256xbf16> to vector<8x256xf32>
    %20 = vector.extract_strided_slice %0 {offsets = [0, 2], sizes = [8, 1], strides = [1, 1]} : vector<8x3xf32> to vector<8x1xf32>
    %21 = vector.broadcast %20 : vector<8x1xf32> to vector<8x256xf32>
    %22 = arith.mulf %19, %21 : vector<8x256xf32>
    %23 = arith.addf %16, %22 : vector<8x256xf32>
    %24 = vector.broadcast %3 : vector<8x1xf32> to vector<8x256xf32>
    %25 = arith.mulf %23, %24 : vector<8x256xf32>
    %26 = arith.truncf %25 : vector<8x256xf32> to vector<8x256xbf16>
    %c0_8 = arith.constant 0 : index
    %c0_9 = arith.constant 0 : index
    %27 = vector.load %arg4[%c0_8, %c0_9] : memref<256x256xbf16, #tpu.memory_space<vmem>>, vector<256x256xbf16>
    %cst_10 = arith.constant dense<0.000000e+00> : vector<8x256xf32>
    %28 = tpu.matmul %26, %27, %cst_10 {dimension_numbers = #tpu.dot_dimension_numbers<[1], [0], [0], [1], [0, 0, 1, 1], [], []>} : vector<8x256xbf16>, vector<256x256xbf16>, vector<8x256xf32> -> vector<8x256xf32>
    %c0_11 = arith.constant 0 : index
    %c0_12 = arith.constant 0 : index
    %29 = vector.load %arg3[%c0_11, %c0_12] : memref<8x128xbf16, #tpu.memory_space<vmem>>, vector<8x128xbf16>
    %c0_13 = arith.constant 0 : index
    %c0_14 = arith.constant 0 : index
    %30 = vector.load %arg5[%c0_13, %c0_14] : memref<128x256xbf16, #tpu.memory_space<vmem>>, vector<128x256xbf16>
    %cst_15 = arith.constant dense<0.000000e+00> : vector<8x256xf32>
    %31 = tpu.matmul %29, %30, %cst_15 {dimension_numbers = #tpu.dot_dimension_numbers<[1], [0], [0], [1], [0, 0, 1, 1], [], []>} : vector<8x128xbf16>, vector<128x256xbf16>, vector<8x256xf32> -> vector<8x256xf32>
    %32 = arith.addf %28, %31 : vector<8x256xf32>
    %c0_16 = arith.constant 0 : index
    %c0_17 = arith.constant 0 : index
    %33 = vector.load %arg6[%c0_16, %c0_17] : memref<1x256xf32, #tpu.memory_space<vmem>>, vector<1x256xf32>
    %34 = vector.broadcast %33 : vector<1x256xf32> to vector<8x256xf32>
    %35 = arith.addf %32, %34 : vector<8x256xf32>
    %cst_18 = arith.constant 0.000000e+00 : f32
    %36 = vector.broadcast %cst_18 : f32 to vector<8x256xf32>
    %37 = arith.maximumf %35, %36 : vector<8x256xf32>
    %c0_19 = arith.constant 0 : index
    %c0_20 = arith.constant 0 : index
    %38 = vector.load %arg7[%c0_19, %c0_20] : memref<256x128xbf16, #tpu.memory_space<vmem>>, vector<256x128xbf16>
    %c0_21 = arith.constant 0 : index
    %c0_22 = arith.constant 0 : index
    %39 = vector.load %arg8[%c0_21, %c0_22] : memref<1x128xf32, #tpu.memory_space<vmem>>, vector<1x128xf32>
    %40 = arith.truncf %37 : vector<8x256xf32> to vector<8x256xbf16>
    %cst_23 = arith.constant dense<0.000000e+00> : vector<8x128xf32>
    %41 = tpu.matmul %40, %38, %cst_23 {dimension_numbers = #tpu.dot_dimension_numbers<[1], [0], [0], [1], [0, 0, 1, 1], [], []>} : vector<8x256xbf16>, vector<256x128xbf16>, vector<8x128xf32> -> vector<8x128xf32>
    %42 = vector.broadcast %39 : vector<1x128xf32> to vector<8x128xf32>
    %43 = arith.addf %41, %42 : vector<8x128xf32>
    %c0_24 = arith.constant 0 : index
    %c0_25 = arith.constant 0 : index
    %44 = vector.load %arg9[%c0_24, %c0_25] : memref<8x128xf32, #tpu.memory_space<vmem>>, vector<8x128xf32>
    tpu.vector_store %arg9[%c0_24, %c0_25], %43 {strides = array<i32>} : memref<8x128xf32, #tpu.memory_space<vmem>>, vector<8x128xf32>,
    return
  }
  func.func @transform_0(%arg0: i32) -> (i32, i32, i32) {
    %c0_i32 = arith.constant 0 : i32
    %c0_i32_0 = arith.constant 0 : i32
    %c0_i32_1 = arith.constant 0 : i32
    return %c0_i32, %arg0, %c0_i32_0 : i32, i32, i32
  }
  func.func @transform_1(%arg0: i32) -> (i32, i32) {
    %c0_i32 = arith.constant 0 : i32
    %c0_i32_0 = arith.constant 0 : i32
    return %arg0, %c0_i32 : i32, i32
  }
  func.func @transform_2(%arg0: i32) -> (i32, i32) {
    %c0_i32 = arith.constant 0 : i32
    %c0_i32_0 = arith.constant 0 : i32
    return %arg0, %c0_i32 : i32, i32
  }
  func.func @transform_3(%arg0: i32) -> (i32, i32) {
    %c0_i32 = arith.constant 0 : i32
    %c0_i32_0 = arith.constant 0 : i32
    %c0_i32_1 = arith.constant 0 : i32
    return %c0_i32, %c0_i32_0 : i32, i32
  }
  func.func @transform_4(%arg0: i32) -> (i32, i32) {
    %c0_i32 = arith.constant 0 : i32
    %c0_i32_0 = arith.constant 0 : i32
    %c0_i32_1 = arith.constant 0 : i32
    return %c0_i32, %c0_i32_0 : i32, i32
  }
  func.func @transform_5(%arg0: i32) -> (i32, i32) {
    %c0_i32 = arith.constant 0 : i32
    %c0_i32_0 = arith.constant 0 : i32
    %c0_i32_1 = arith.constant 0 : i32
    return %c0_i32, %c0_i32_0 : i32, i32
  }
  func.func @transform_6(%arg0: i32) -> (i32, i32) {
    %c0_i32 = arith.constant 0 : i32
    %c0_i32_0 = arith.constant 0 : i32
    %c0_i32_1 = arith.constant 0 : i32
    return %c0_i32, %c0_i32_0 : i32, i32
  }
  func.func @transform_7(%arg0: i32) -> (i32, i32) {
    %c0_i32 = arith.constant 0 : i32
    %c0_i32_0 = arith.constant 0 : i32
    %c0_i32_1 = arith.constant 0 : i32
    return %c0_i32, %c0_i32_0 : i32, i32
  }
  func.func @transform_8(%arg0: i32) -> (i32, i32) {
    %c0_i32 = arith.constant 0 : i32
    %c0_i32_0 = arith.constant 0 : i32
    return %arg0, %c0_i32 : i32, i32
  }
}

module attributes {stable_mosaic.version = 11 : i64} {
  func.func @kernel(%arg0: i32, %arg1: memref<3x16x128xbf16, #tpu.memory_space<vmem>>, %arg2: memref<16x3xf32, #tpu.memory_space<vmem>>, %arg3: memref<16x3xbf16, #tpu.memory_space<vmem>>, %arg4: memref<128x128xbf16, #tpu.memory_space<vmem>>, %arg5: memref<3x128xbf16, #tpu.memory_space<vmem>>, %arg6: memref<1x128xf32, #tpu.memory_space<vmem>>, %arg7: memref<128x128xbf16, #tpu.memory_space<vmem>>, %arg8: memref<1x128xf32, #tpu.memory_space<vmem>>, %arg9: memref<128x128xbf16, #tpu.memory_space<vmem>>, %arg10: memref<1x128xf32, #tpu.memory_space<vmem>>, %arg11: memref<16x128xf32, #tpu.memory_space<vmem>>) attributes {dimension_semantics = [#tpu.dimension_semantics<parallel>], iteration_bounds = array<i64: 2>, scalar_prefetch = 0 : i64, scratch_operands = 0 : i64, tpu.core_type = #tpu.core_type<tc>, window_params = [{transform_indices = @transform_0, window_bounds = array<i64: 3, 16, 128>}, {transform_indices = @transform_1, window_bounds = array<i64: 16, 3>}, {transform_indices = @transform_2, window_bounds = array<i64: 16, 3>}, {pipeline_mode = #tpu.pipeline_mode<synchronous>, transform_indices = @transform_3, window_bounds = array<i64: 128, 128>}, {pipeline_mode = #tpu.pipeline_mode<synchronous>, transform_indices = @transform_4, window_bounds = array<i64: 3, 128>}, {pipeline_mode = #tpu.pipeline_mode<synchronous>, transform_indices = @transform_5, window_bounds = array<i64: 1, 128>}, {pipeline_mode = #tpu.pipeline_mode<synchronous>, transform_indices = @transform_6, window_bounds = array<i64: 128, 128>}, {pipeline_mode = #tpu.pipeline_mode<synchronous>, transform_indices = @transform_7, window_bounds = array<i64: 1, 128>}, {pipeline_mode = #tpu.pipeline_mode<synchronous>, transform_indices = @transform_8, window_bounds = array<i64: 128, 128>}, {pipeline_mode = #tpu.pipeline_mode<synchronous>, transform_indices = @transform_9, window_bounds = array<i64: 1, 128>}, {transform_indices = @transform_10, window_bounds = array<i64: 16, 128>}]} {
    %c0 = arith.constant 0 : index
    %c0_0 = arith.constant 0 : index
    %0 = vector.load %arg2[%c0, %c0_0] : memref<16x3xf32, #tpu.memory_space<vmem>>, vector<16x3xf32>
    %cst = arith.constant dense<0.000000e+00> : vector<16xf32>
    %1 = vector.multi_reduction <add>, %0, %cst [1] : vector<16x3xf32> to vector<16xf32>
    %2 = vector.shape_cast %1 : vector<16xf32> to vector<16x1xf32>
    %3 = tpu.reciprocal %2 {approx = true} : vector<16x1xf32> -> vector<16x1xf32>
    %c0_1 = arith.constant 0 : index
    %c0_2 = arith.constant 0 : index
    %c0_3 = arith.constant 0 : index
    %4 = vector.load %arg1[%c0_1, %c0_2, %c0_3] : memref<3x16x128xbf16, #tpu.memory_space<vmem>>, vector<1x16x128xbf16>
    %5 = vector.shape_cast %4 : vector<1x16x128xbf16> to vector<16x128xbf16>
    %6 = arith.extf %5 : vector<16x128xbf16> to vector<16x128xf32>
    %7 = vector.extract_strided_slice %0 {offsets = [0, 0], sizes = [16, 1], strides = [1, 1]} : vector<16x3xf32> to vector<16x1xf32>
    %8 = vector.broadcast %7 : vector<16x1xf32> to vector<16x128xf32>
    %9 = arith.mulf %6, %8 : vector<16x128xf32>
    %c1 = arith.constant 1 : index
    %c0_4 = arith.constant 0 : index
    %c0_5 = arith.constant 0 : index
    %10 = vector.load %arg1[%c1, %c0_4, %c0_5] : memref<3x16x128xbf16, #tpu.memory_space<vmem>>, vector<1x16x128xbf16>
    %11 = vector.shape_cast %10 : vector<1x16x128xbf16> to vector<16x128xbf16>
    %12 = arith.extf %11 : vector<16x128xbf16> to vector<16x128xf32>
    %13 = vector.extract_strided_slice %0 {offsets = [0, 1], sizes = [16, 1], strides = [1, 1]} : vector<16x3xf32> to vector<16x1xf32>
    %14 = vector.broadcast %13 : vector<16x1xf32> to vector<16x128xf32>
    %15 = arith.mulf %12, %14 : vector<16x128xf32>
    %16 = arith.addf %9, %15 : vector<16x128xf32>
    %c2 = arith.constant 2 : index
    %c0_6 = arith.constant 0 : index
    %c0_7 = arith.constant 0 : index
    %17 = vector.load %arg1[%c2, %c0_6, %c0_7] : memref<3x16x128xbf16, #tpu.memory_space<vmem>>, vector<1x16x128xbf16>
    %18 = vector.shape_cast %17 : vector<1x16x128xbf16> to vector<16x128xbf16>
    %19 = arith.extf %18 : vector<16x128xbf16> to vector<16x128xf32>
    %20 = vector.extract_strided_slice %0 {offsets = [0, 2], sizes = [16, 1], strides = [1, 1]} : vector<16x3xf32> to vector<16x1xf32>
    %21 = vector.broadcast %20 : vector<16x1xf32> to vector<16x128xf32>
    %22 = arith.mulf %19, %21 : vector<16x128xf32>
    %23 = arith.addf %16, %22 : vector<16x128xf32>
    %24 = vector.broadcast %3 : vector<16x1xf32> to vector<16x128xf32>
    %25 = arith.mulf %23, %24 : vector<16x128xf32>
    %26 = arith.truncf %25 : vector<16x128xf32> to vector<16x128xbf16>
    %c0_8 = arith.constant 0 : index
    %c0_9 = arith.constant 0 : index
    %27 = vector.load %arg4[%c0_8, %c0_9] : memref<128x128xbf16, #tpu.memory_space<vmem>>, vector<128x128xbf16>
    %cst_10 = arith.constant dense<0.000000e+00> : vector<16x128xf32>
    %28 = tpu.matmul %26, %27, %cst_10 {dimension_numbers = #tpu.dot_dimension_numbers<[1], [0], [0], [1], [0, 0, 1, 1], [], []>} : vector<16x128xbf16>, vector<128x128xbf16>, vector<16x128xf32> -> vector<16x128xf32>
    %c0_11 = arith.constant 0 : index
    %c0_12 = arith.constant 0 : index
    %29 = vector.load %arg3[%c0_11, %c0_12] : memref<16x3xbf16, #tpu.memory_space<vmem>>, vector<16x3xbf16>
    %c0_13 = arith.constant 0 : index
    %c0_14 = arith.constant 0 : index
    %30 = vector.load %arg5[%c0_13, %c0_14] : memref<3x128xbf16, #tpu.memory_space<vmem>>, vector<3x128xbf16>
    %cst_15 = arith.constant dense<0.000000e+00> : vector<16x128xf32>
    %31 = tpu.matmul %29, %30, %cst_15 {dimension_numbers = #tpu.dot_dimension_numbers<[1], [0], [0], [1], [0, 0, 1, 1], [], []>} : vector<16x3xbf16>, vector<3x128xbf16>, vector<16x128xf32> -> vector<16x128xf32>
    %32 = arith.addf %28, %31 : vector<16x128xf32>
    %c0_16 = arith.constant 0 : index
    %c0_17 = arith.constant 0 : index
    %33 = vector.load %arg6[%c0_16, %c0_17] : memref<1x128xf32, #tpu.memory_space<vmem>>, vector<1x128xf32>
    %34 = vector.broadcast %33 : vector<1x128xf32> to vector<16x128xf32>
    %35 = arith.addf %32, %34 : vector<16x128xf32>
    %cst_18 = arith.constant 0.000000e+00 : f32
    %36 = vector.broadcast %cst_18 : f32 to vector<16x128xf32>
    %37 = arith.maximumf %35, %36 : vector<16x128xf32>
    %c0_19 = arith.constant 0 : index
    %c0_20 = arith.constant 0 : index
    %38 = vector.load %arg7[%c0_19, %c0_20] : memref<128x128xbf16, #tpu.memory_space<vmem>>, vector<128x128xbf16>
    %c0_21 = arith.constant 0 : index
    %c0_22 = arith.constant 0 : index
    %39 = vector.load %arg8[%c0_21, %c0_22] : memref<1x128xf32, #tpu.memory_space<vmem>>, vector<1x128xf32>
    %40 = arith.truncf %37 : vector<16x128xf32> to vector<16x128xbf16>
    %cst_23 = arith.constant dense<0.000000e+00> : vector<16x128xf32>
    %41 = tpu.matmul %40, %38, %cst_23 {dimension_numbers = #tpu.dot_dimension_numbers<[1], [0], [0], [1], [0, 0, 1, 1], [], []>} : vector<16x128xbf16>, vector<128x128xbf16>, vector<16x128xf32> -> vector<16x128xf32>
    %42 = vector.broadcast %39 : vector<1x128xf32> to vector<16x128xf32>
    %43 = arith.addf %41, %42 : vector<16x128xf32>
    %cst_24 = arith.constant 0.000000e+00 : f32
    %44 = vector.broadcast %cst_24 : f32 to vector<16x128xf32>
    %45 = arith.maximumf %43, %44 : vector<16x128xf32>
    %c0_25 = arith.constant 0 : index
    %c0_26 = arith.constant 0 : index
    %46 = vector.load %arg9[%c0_25, %c0_26] : memref<128x128xbf16, #tpu.memory_space<vmem>>, vector<128x128xbf16>
    %c0_27 = arith.constant 0 : index
    %c0_28 = arith.constant 0 : index
    %47 = vector.load %arg10[%c0_27, %c0_28] : memref<1x128xf32, #tpu.memory_space<vmem>>, vector<1x128xf32>
    %48 = arith.truncf %45 : vector<16x128xf32> to vector<16x128xbf16>
    %cst_29 = arith.constant dense<0.000000e+00> : vector<16x128xf32>
    %49 = tpu.matmul %48, %46, %cst_29 {dimension_numbers = #tpu.dot_dimension_numbers<[1], [0], [0], [1], [0, 0, 1, 1], [], []>} : vector<16x128xbf16>, vector<128x128xbf16>, vector<16x128xf32> -> vector<16x128xf32>
    %50 = vector.broadcast %47 : vector<1x128xf32> to vector<16x128xf32>
    %51 = arith.addf %49, %50 : vector<16x128xf32>
    %c0_30 = arith.constant 0 : index
    %c0_31 = arith.constant 0 : index
    %52 = vector.load %arg11[%c0_30, %c0_31] : memref<16x128xf32, #tpu.memory_space<vmem>>, vector<16x128xf32>
    tpu.vector_store %arg11[%c0_30, %c0_31], %51 {strides = array<i32>} : memref<16x128xf32, #tpu.memory_space<vmem>>, vector<16x128xf32>,
    return
  }
  func.func @transform_0(%arg0: i32) -> (i32, i32, i32) {
    %c0_i32 = arith.constant 0 : i32
    %c0_i32_0 = arith.constant 0 : i32
    %c0_i32_1 = arith.constant 0 : i32
    return %c0_i32, %arg0, %c0_i32_0 : i32, i32, i32
  }
  func.func @transform_1(%arg0: i32) -> (i32, i32) {
    %c0_i32 = arith.constant 0 : i32
    %c0_i32_0 = arith.constant 0 : i32
    return %arg0, %c0_i32 : i32, i32
  }
  func.func @transform_2(%arg0: i32) -> (i32, i32) {
    %c0_i32 = arith.constant 0 : i32
    %c0_i32_0 = arith.constant 0 : i32
    return %arg0, %c0_i32 : i32, i32
  }
  func.func @transform_3(%arg0: i32) -> (i32, i32) {
    %c0_i32 = arith.constant 0 : i32
    %c0_i32_0 = arith.constant 0 : i32
    %c0_i32_1 = arith.constant 0 : i32
    return %c0_i32, %c0_i32_0 : i32, i32
  }
  func.func @transform_4(%arg0: i32) -> (i32, i32) {
    %c0_i32 = arith.constant 0 : i32
    %c0_i32_0 = arith.constant 0 : i32
    %c0_i32_1 = arith.constant 0 : i32
    return %c0_i32, %c0_i32_0 : i32, i32
  }
  func.func @transform_5(%arg0: i32) -> (i32, i32) {
    %c0_i32 = arith.constant 0 : i32
    %c0_i32_0 = arith.constant 0 : i32
    %c0_i32_1 = arith.constant 0 : i32
    return %c0_i32, %c0_i32_0 : i32, i32
  }
  func.func @transform_6(%arg0: i32) -> (i32, i32) {
    %c0_i32 = arith.constant 0 : i32
    %c0_i32_0 = arith.constant 0 : i32
    %c0_i32_1 = arith.constant 0 : i32
    return %c0_i32, %c0_i32_0 : i32, i32
  }
  func.func @transform_7(%arg0: i32) -> (i32, i32) {
    %c0_i32 = arith.constant 0 : i32
    %c0_i32_0 = arith.constant 0 : i32
    %c0_i32_1 = arith.constant 0 : i32
    return %c0_i32, %c0_i32_0 : i32, i32
  }
  func.func @transform_8(%arg0: i32) -> (i32, i32) {
    %c0_i32 = arith.constant 0 : i32
    %c0_i32_0 = arith.constant 0 : i32
    %c0_i32_1 = arith.constant 0 : i32
    return %c0_i32, %c0_i32_0 : i32, i32
  }
  func.func @transform_9(%arg0: i32) -> (i32, i32) {
    %c0_i32 = arith.constant 0 : i32
    %c0_i32_0 = arith.constant 0 : i32
    %c0_i32_1 = arith.constant 0 : i32
    return %c0_i32, %c0_i32_0 : i32, i32
  }
  func.func @transform_10(%arg0: i32) -> (i32, i32) {
    %c0_i32 = arith.constant 0 : i32
    %c0_i32_0 = arith.constant 0 : i32
    return %arg0, %c0_i32 : i32, i32
  }
}

</mosaic_0001>

<llo_original>
// kernel: custom-call
$region0: #{custom-call}
  %s0 = inlined_call_operand.vmem [shape: f32[32], index: 0, kind: output, shape index: {}]

// kernel: neg.8
$region0: #{neg.8}
  #allocation0 [shape = 's32[1]{0}', space=sflag, size = 0x4, scoped, tag = 'scoped memory for neg.8']
  %s0 = inlined_call_operand.vmem [shape: f32[16,32], index: 0, kind: input, shape index: {}]
  %s1 = inlined_call_operand.vmem [shape: f32[16,32], index: 1, kind: output, shape index: {}]
  %v2 = vld [vmem:[%s0] sm:$0xff]
  %3 = xla_tuple %v2
  %4 = xla_tuple %3
  %v5 = vxor.u32 %v2, 2147483648
  %6 = xla_tuple %v5
  %7 = vst [vmem:[%s1] sm:$0xff] %v5
  %s8 = scalar_lea.vmem %s0, 8
  %v9 = vld [vmem:[%s8] sm:$0xff]
  %10 = xla_tuple %v9
  %11 = xla_tuple %10
  %v12 = vxor.u32 %v9, 2147483648
  %13 = xla_tuple %v12
  %s14 = scalar_lea.vmem %s1, 8
  %15 = vst [vmem:[%s14] sm:$0xff] %v12

// kernel: custom-call.1
$region0: #{custom-call.1}
  %s0 = inlined_call_operand.vmem [shape: f32[16], index: 0, kind: output, shape index: {}]

// kernel: neg.9
$region0: #{neg.9}
  #allocation0 [shape = 's32[1]{0}', space=sflag, size = 0x4, scoped, tag = 'scoped memory for neg.9']
  %s0 = inlined_call_operand.vmem [shape: f32[8,16], index: 0, kind: input, shape index: {}]
  %s1 = inlined_call_operand.vmem [shape: f32[8,16], index: 1, kind: output, shape index: {}]
  %v2 = vld [vmem:[%s0] sm:$0xff]
  %3 = xla_tuple %v2
  %4 = xla_tuple %3
  %v5 = vxor.u32 %v2, 2147483648
  %6 = xla_tuple %v5
  %7 = vst [vmem:[%s1] sm:$0xff] %v5

// kernel: point_encoder_forward.6
$region0: #{point_encoder_forward.6}
  #allocation0 [shape = 'u32[]', space=smem, size = 0x4, offset = 0x4, fixed_abs, tag = 'smem constant byte address 0x4 - core index']
  #allocation1 [shape = 'u32[72,128]{1,0:T(1,128)}', space=vmem, size = 0x9000, scoped, tag = 'internal scratch']
  %s0 = inlined_call_operand.vmem [shape: bf16[4,16,6], index: 0, kind: input, shape index: {}]
  %s1 = inlined_call_operand.vmem [shape: bf16[16,3], index: 1, kind: input, shape index: {}]
  %s2 = inlined_call_operand.vmem [shape: bf16[6,64], index: 2, kind: input, shape index: {}]
  %s3 = inlined_call_operand.vmem [shape: f32[1,64], index: 3, kind: input, shape index: {}]
  %s4 = inlined_call_operand.vmem [shape: bf16[64,128], index: 4, kind: input, shape index: {}]
  %s5 = inlined_call_operand.vmem [shape: f32[1,128], index: 5, kind: input, shape index: {}]
  %s6 = inlined_call_operand.vmem [shape: bf16[3,128], index: 6, kind: input, shape index: {}]
  %s7 = inlined_call_operand.vmem [shape: f32[1,128], index: 7, kind: input, shape index: {}]
  %s8 = inlined_call_operand.vmem [shape: f32[16,128], index: 8, kind: output, shape index: {}]
  %s9 = sld [smem:[#allocation0]]
  $region106: #{point_encoder_forward.6} parent=0
    _
  %s11 = ssub.s32 1, %s9
  %s12 = scalar_select 0, %s11, %s9
  $region1: #{point_encoder_forward.6} parent=0
    #allocation2 [shape = 'u8[16384]{0}', space=vmem, size = 0x4000, scoped, tag = 'input window, operand 0']
    loop: start=0, step=1, limit=4
    $region2: #{point_encoder_forward.6} parent=1 // loop_pre_header
      _
    $region3: #{point_encoder_forward.6} parent=1 // loop_header
      %s14 = sphi 0, %s18
      %p15 = scmp.ge.s32.totalorder %s14, 4
      %s24 = sphi 0, %s26
      %s27 = sphi 0, %s24
      %s28 = sphi 0, %s27
      %s44 = sphi 0, %s28
      %s50 = sphi 0, %s52
      %s53 = sphi 0, %s50
      %s54 = sphi 0, %s53
      %s70 = sphi 0, %s54
      %s74 = sphi 0, %s74
      %s76 = sphi 0, %s74
      %s77 = sphi 0, %s76
      %s91 = sphi 0, %s77
      %s95 = sphi 0, %s95
      %s97 = sphi 0, %s95
      %s98 = sphi 0, %s97
      %s112 = sphi 0, %s98
      %s116 = sphi 0, %s116
      %s118 = sphi 0, %s116
      %s119 = sphi 0, %s118
      %s133 = sphi 0, %s119
      %s137 = sphi 0, %s137
      %s139 = sphi 0, %s137
      %s140 = sphi 0, %s139
      %s154 = sphi 0, %s140
      %s158 = sphi 0, %s158
      %s160 = sphi 0, %s158
      %s161 = sphi 0, %s160
      %s175 = sphi 0, %s161
      %s179 = sphi 0, %s179
      %s181 = sphi 0, %s179
      %s182 = sphi 0, %s181
      %s196 = sphi 0, %s182
      %s202 = sphi 0, %s204
      %s205 = sphi 0, %s202
      %s206 = sphi 0, %s205
      %s222 = sphi 0, %s206
    $region4: #{point_encoder_forward.6} parent=1 // loop_header_branch
      %17 = sbr.rel (%p15) target = $region8
    $region5: #{point_encoder_forward.6} parent=1 // loop_body
      %s19 = ssub.s32 %s14, 1
      %s20 = ssub.s32 %s14, 2
      %s21 = sadd.s32 %s14, 1
      %s22 = ssub.s32 %s14, %s21
      %p23 = scmp.eq.s32.totalorder %s22, 0
      %s25 = sadd.s32 %s24, 1
      %s26 = scalar_select %p23, %s24, %s25
      %p29 = pneg %p23
      %p30 = scmp.eq.s32.totalorder %s14, 1
      %p31 = por %p29, %p30
      %p32 = scmp.ne.s32.totalorder %s24, %s27
      %p33 = scmp.eq.s32.totalorder %s14, 0
      %p34 = por %p32, %p33
      %p35 = scmp.ne.s32.totalorder %s24, %s27
      %p36 = scmp.eq.s32.totalorder %s19, 1
      %p37 = por %p35, %p36
      %p38 = scmp.ne.s32.totalorder %s27, %s28
      %p39 = scmp.eq.s32.totalorder %s19, 0
      %p40 = por %p38, %p39
      %p41 = scmp.ne.s32.totalorder %s27, %s28
      %p42 = scmp.eq.s32.totalorder %s20, 1
      %p43 = por %p41, %p42
      %p45 = scmp.ne.s32.totalorder %s28, %s44
      %p46 = scmp.eq.s32.totalorder %s20, 0
      %p47 = por %p45, %p46
      %s48 = ssub.s32 %s14, %s21
      %p49 = scmp.eq.s32.totalorder %s48, 0
      %s51 = sadd.s32 %s50, 1
      %s52 = scalar_select %p49, %s50, %s51
      %p55 = pneg %p49
      %p56 = scmp.eq.s32.totalorder %s14, 1
      %p57 = por %p55, %p56
      %p58 = scmp.ne.s32.totalorder %s50, %s53
      %p59 = scmp.eq.s32.totalorder %s14, 0
      %p60 = por %p58, %p59
      %p61 = scmp.ne.s32.totalorder %s50, %s53
      %p62 = scmp.eq.s32.totalorder %s19, 1
      %p63 = por %p61, %p62
      %p64 = scmp.ne.s32.totalorder %s53, %s54
      %p65 = scmp.eq.s32.totalorder %s19, 0
      %p66 = por %p64, %p65
      %p67 = scmp.ne.s32.totalorder %s53, %s54
      %p68 = scmp.eq.s32.totalorder %s20, 1
      %p69 = por %p67, %p68
      %p71 = scmp.ne.s32.totalorder %s54, %s70
      %p72 = scmp.eq.s32.totalorder %s20, 0
      %p73 = por %p71, %p72
      %s75 = sadd.s32 %s74, 1
      %p78 = scmp.eq.s32.totalorder %s14, 1
      %p79 = scmp.ne.s32.totalorder %s74, %s76
      %p80 = scmp.eq.s32.totalorder %s14, 0
      %p81 = por %p79, %p80
      %p82 = scmp.ne.s32.totalorder %s74, %s76
      %p83 = scmp.eq.s32.totalorder %s19, 1
      %p84 = por %p82, %p83
      %p85 = scmp.ne.s32.totalorder %s76, %s77
      %p86 = scmp.eq.s32.totalorder %s19, 0
      %p87 = por %p85, %p86
      %p88 = scmp.ne.s32.totalorder %s76, %s77
      %p89 = scmp.eq.s32.totalorder %s20, 1
      %p90 = por %p88, %p89
      %p92 = scmp.ne.s32.totalorder %s77, %s91
      %p93 = scmp.eq.s32.totalorder %s20, 0
      %p94 = por %p92, %p93
      %s96 = sadd.s32 %s95, 1
      %p99 = scmp.eq.s32.totalorder %s14, 1
      %p100 = scmp.ne.s32.totalorder %s95, %s97
      %p101 = scmp.eq.s32.totalorder %s14, 0
      %p102 = por %p100, %p101
      %p103 = scmp.ne.s32.totalorder %s95, %s97
      %p104 = scmp.eq.s32.totalorder %s19, 1
      %p105 = por %p103, %p104
      %p106 = scmp.ne.s32.totalorder %s97, %s98
      %p107 = scmp.eq.s32.totalorder %s19, 0
      %p108 = por %p106, %p107
      %p109 = scmp.ne.s32.totalorder %s97, %s98
      %p110 = scmp.eq.s32.totalorder %s20, 1
      %p111 = por %p109, %p110
      %p113 = scmp.ne.s32.totalorder %s98, %s112
      %p114 = scmp.eq.s32.totalorder %s20, 0
      %p115 = por %p113, %p114
      %s117 = sadd.s32 %s116, 1
      %p120 = scmp.eq.s32.totalorder %s14, 1
      %p121 = scmp.ne.s32.totalorder %s116, %s118
      %p122 = scmp.eq.s32.totalorder %s14, 0
      %p123 = por %p121, %p122
      %p124 = scmp.ne.s32.totalorder %s116, %s118
      %p125 = scmp.eq.s32.totalorder %s19, 1
      %p126 = por %p124, %p125
      %p127 = scmp.ne.s32.totalorder %s118, %s119
      %p128 = scmp.eq.s32.totalorder %s19, 0
      %p129 = por %p127, %p128
      %p130 = scmp.ne.s32.totalorder %s118, %s119
      %p131 = scmp.eq.s32.totalorder %s20, 1
      %p132 = por %p130, %p131
      %p134 = scmp.ne.s32.totalorder %s119, %s133
      %p135 = scmp.eq.s32.totalorder %s20, 0
      %p136 = por %p134, %p135
      %s138 = sadd.s32 %s137, 1
      %p141 = scmp.eq.s32.totalorder %s14, 1
      %p142 = scmp.ne.s32.totalorder %s137, %s139
      %p143 = scmp.eq.s32.totalorder %s14, 0
      %p144 = por %p142, %p143
      %p145 = scmp.ne.s32.totalorder %s137, %s139
      %p146 = scmp.eq.s32.totalorder %s19, 1
      %p147 = por %p145, %p146
      %p148 = scmp.ne.s32.totalorder %s139, %s140
      %p149 = scmp.eq.s32.totalorder %s19, 0
      %p150 = por %p148, %p149
      %p151 = scmp.ne.s32.totalorder %s139, %s140
      %p152 = scmp.eq.s32.totalorder %s20, 1
      %p153 = por %p151, %p152
      %p155 = scmp.ne.s32.totalorder %s140, %s154
      %p156 = scmp.eq.s32.totalorder %s20, 0
      %p157 = por %p155, %p156
      %s159 = sadd.s32 %s158, 1
      %p162 = scmp.eq.s32.totalorder %s14, 1
      %p163 = scmp.ne.s32.totalorder %s158, %s160
      %p164 = scmp.eq.s32.totalorder %s14, 0
      %p165 = por %p163, %p164
      %p166 = scmp.ne.s32.totalorder %s158, %s160
      %p167 = scmp.eq.s32.totalorder %s19, 1
      %p168 = por %p166, %p167
      %p169 = scmp.ne.s32.totalorder %s160, %s161
      %p170 = scmp.eq.s32.totalorder %s19, 0
      %p171 = por %p169, %p170
      %p172 = scmp.ne.s32.totalorder %s160, %s161
      %p173 = scmp.eq.s32.totalorder %s20, 1
      %p174 = por %p172, %p173
      %p176 = scmp.ne.s32.totalorder %s161, %s175
      %p177 = scmp.eq.s32.totalorder %s20, 0
      %p178 = por %p176, %p177
      %s180 = sadd.s32 %s179, 1
      %p183 = scmp.eq.s32.totalorder %s14, 1
      %p184 = scmp.ne.s32.totalorder %s179, %s181
      %p185 = scmp.eq.s32.totalorder %s14, 0
      %p186 = por %p184, %p185
      %p187 = scmp.ne.s32.totalorder %s179, %s181
      %p188 = scmp.eq.s32.totalorder %s19, 1
      %p189 = por %p187, %p188
      %p190 = scmp.ne.s32.totalorder %s181, %s182
      %p191 = scmp.eq.s32.totalorder %s19, 0
      %p192 = por %p190, %p191
      %p193 = scmp.ne.s32.totalorder %s181, %s182
      %p194 = scmp.eq.s32.totalorder %s20, 1
      %p195 = por %p193, %p194
      %p197 = scmp.ne.s32.totalorder %s182, %s196
      %p198 = scmp.eq.s32.totalorder %s20, 0
      %p199 = por %p197, %p198
      %s200 = ssub.s32 %s14, %s21
      %p201 = scmp.eq.s32.totalorder %s200, 0
      %s203 = sadd.s32 %s202, 1
      %s204 = scalar_select %p201, %s202, %s203
      %p207 = pneg %p201
      %p208 = scmp.eq.s32.totalorder %s14, 1
      %p209 = por %p207, %p208
      %p210 = scmp.ne.s32.totalorder %s202, %s205
      %p211 = scmp.eq.s32.totalorder %s14, 0
      %p212 = por %p210, %p211
      %p213 = scmp.ne.s32.totalorder %s202, %s205
      %p214 = scmp.eq.s32.totalorder %s19, 1
      %p215 = por %p213, %p214
      %p216 = scmp.ne.s32.totalorder %s205, %s206
      %p217 = scmp.eq.s32.totalorder %s19, 0
      %p218 = por %p216, %p217
      %p219 = scmp.ne.s32.totalorder %s205, %s206
      %p220 = scmp.eq.s32.totalorder %s20, 1
      %p221 = por %p219, %p220
      %p223 = scmp.ne.s32.totalorder %s206, %s222
      %p224 = scmp.eq.s32.totalorder %s20, 0
      %p225 = por %p223, %p224
      %p226 = scmp.le.s32.totalorder 1, %s14
      %p227 = scmp.lt.s32.totalorder %s14, 3
      %p228 = pnand %p226, %p227
      %p229 = pneg %p228
      // Predicated region
      $region9: #{point_encoder_forward.6} parent=5 // pred_check
        _
      $region10: #{point_encoder_forward.6} parent=5 // pred_check_branch
        %231 = sbr.rel (%p228) target = $region12
      $region11: #{point_encoder_forward.6} parent=5 // pred_region
        %s232 = ssub.s32 %s14, 1
        // Predicated region
        $region13: #{point_encoder_forward.6} parent=11 // pred_check
          %p233 = pneg %p87
        $region14: #{point_encoder_forward.6} parent=11 // pred_check_branch
          %235 = sbr.rel (%p233) target = $region16
        $region15: #{point_encoder_forward.6} parent=11 // pred_region
          _
        $region16: #{point_encoder_forward.6} parent=11 // pred_fallthru
          _
        // Predicated region
        $region17: #{point_encoder_forward.6} parent=11 // pred_check
          %p236 = pneg %p108
        $region18: #{point_encoder_forward.6} parent=11 // pred_check_branch
          %238 = sbr.rel (%p236) target = $region20
        $region19: #{point_encoder_forward.6} parent=11 // pred_region
          _
        $region20: #{point_encoder_forward.6} parent=11 // pred_fallthru
          _
        // Predicated region
        $region21: #{point_encoder_forward.6} parent=11 // pred_check
          %p239 = pneg %p129
        $region22: #{point_encoder_forward.6} parent=11 // pred_check_branch
          %241 = sbr.rel (%p239) target = $region24
        $region23: #{point_encoder_forward.6} parent=11 // pred_region
          _
        $region24: #{point_encoder_forward.6} parent=11 // pred_fallthru
          _
        // Predicated region
        $region25: #{point_encoder_forward.6} parent=11 // pred_check
          %p242 = pneg %p150
        $region26: #{point_encoder_forward.6} parent=11 // pred_check_branch
          %244 = sbr.rel (%p242) target = $region28
        $region27: #{point_encoder_forward.6} parent=11 // pred_region
          _
        $region28: #{point_encoder_forward.6} parent=11 // pred_fallthru
          _
        // Predicated region
        $region29: #{point_encoder_forward.6} parent=11 // pred_check
          %p245 = pneg %p171
        $region30: #{point_encoder_forward.6} parent=11 // pred_check_branch
          %247 = sbr.rel (%p245) target = $region32
        $region31: #{point_encoder_forward.6} parent=11 // pred_region
          _
        $region32: #{point_encoder_forward.6} parent=11 // pred_fallthru
          _
        // Predicated region
        $region33: #{point_encoder_forward.6} parent=11 // pred_check
          %p248 = pneg %p192
        $region34: #{point_encoder_forward.6} parent=11 // pred_check_branch
          %250 = sbr.rel (%p248) target = $region36
        $region35: #{point_encoder_forward.6} parent=11 // pred_region
          _
        $region36: #{point_encoder_forward.6} parent=11 // pred_fallthru
          _
      $region12: #{point_encoder_forward.6} parent=5 // pred_fallthru
        _
      %p251 = scmp.lt.s32.totalorder %s14, 2
      // Predicated region
      $region37: #{point_encoder_forward.6} parent=5 // pred_check
        %p252 = pneg %p251
      $region38: #{point_encoder_forward.6} parent=5 // pred_check_branch
        %254 = sbr.rel (%p252) target = $region40
      $region39: #{point_encoder_forward.6} parent=5 // pred_region
        // Predicated region
        $region41: #{point_encoder_forward.6} parent=39 // pred_check
          %p255 = pneg %p34
        $region42: #{point_encoder_forward.6} parent=39 // pred_check_branch
          %257 = sbr.rel (%p255) target = $region44
        $region43: #{point_encoder_forward.6} parent=39 // pred_region
          %s258 = sand.u32 %s24, 1
          %s259 = sand.u32 %s24, 1
          %s260 = smul.addr %s259, 16
          %s261 = scalar_lea.vmem [#allocation2], %s260
          %s262 = smul.addr %s14, 4
          %s263 = scalar_lea.vmem %s0, %s262
          // Predicated region
          $region45: #{point_encoder_forward.6} parent=43 // pred_check
            _
          $region46: #{point_encoder_forward.6} parent=43 // pred_check_branch
            %265 = sbr.rel (0) target = $region48
          $region47: #{point_encoder_forward.6} parent=43 // pred_region
            // Predicated region
            $region49: #{point_encoder_forward.6} parent=47 // pred_check
              _
            $region50: #{point_encoder_forward.6} parent=47 // pred_check_branch
              %267 = sbr.rel target = $region52
            $region51: #{point_encoder_forward.6} parent=47 // pred_region
              // Predicated region
              $region64: #{point_encoder_forward.6} parent=51 // pred_check
                _
              $region65: #{point_encoder_forward.6} parent=51 // pred_check_branch
                %289 = sbr.rel (0) target = $region67
              $region66: #{point_encoder_forward.6} parent=51 // pred_region
                loop: start=0, step=1, limit=1
                $region68: #{point_encoder_forward.6} parent=66 // loop_pre_header
                  _
                $region69: #{point_encoder_forward.6} parent=66 // loop_header
                  %s291 = sphi 0, %s295
                  %p292 = scmp.ge.s32.totalorder %s291, 1
                  %s296 = sphi %s263, %s263
                  %s297 = sphi %s261, %s261
                $region70: #{point_encoder_forward.6} parent=66 // loop_header_branch
                  %294 = sbr.rel (%p292) target = $region74
                $region71: #{point_encoder_forward.6} parent=66 // loop_body
                  _
                $region72: #{point_encoder_forward.6} parent=66 // loop_footer
                  %s295 = sadd.s32 1, %s291
                $region73: #{point_encoder_forward.6} parent=66 // loop_footer_branch
                  %290 = sbr.rel target = $region69
                $region74: #{point_encoder_forward.6} parent=66 // loop_exit
                  _
                %s299 = ssub.s32 16, 1
                loop: start=0, step=1, limit=1
                $region75: #{point_encoder_forward.6} parent=66 // loop_pre_header
                  _
                $region76: #{point_encoder_forward.6} parent=66 // loop_header
                  %s301 = sphi 0, %s305
                  %p302 = scmp.ge.s32.totalorder %s301, 1
                  %s306 = sphi %s263, %s263
                  %s307 = sphi %s261, %s261
                $region77: #{point_encoder_forward.6} parent=66 // loop_header_branch
                  %304 = sbr.rel (%p302) target = $region81
                $region78: #{point_encoder_forward.6} parent=66 // loop_body
                  %v308 = vld [vmem:[%s306] sm:%s299]
                  %309 = vst [vmem:[%s307] sm:%s299] %v308
                  %v310 = vld [vmem:[%s306 + $0x8] sm:%s299]
                  %311 = vst [vmem:[%s307 + $0x4] sm:%s299] %v310
                  %v312 = vld [vmem:[%s306 + $0x10] sm:%s299]
                  %313 = vst [vmem:[%s307 + $0x8] sm:%s299] %v312
                  %v314 = vld [vmem:[%s306 + $0x18] sm:%s299]
                  %315 = vst [vmem:[%s307 + $0xc] sm:%s299] %v314
                $region79: #{point_encoder_forward.6} parent=66 // loop_footer
                  %s305 = sadd.s32 1, %s301
                $region80: #{point_encoder_forward.6} parent=66 // loop_footer_branch
                  %300 = sbr.rel target = $region76
                $region81: #{point_encoder_forward.6} parent=66 // loop_exit
                  _
              $region67: #{point_encoder_forward.6} parent=51 // pred_fallthru
                _
            $region52: #{point_encoder_forward.6} parent=47 // pred_fallthru
              _
            // Predicated region
            $region53: #{point_encoder_forward.6} parent=47 // pred_check
              _
            $region54: #{point_encoder_forward.6} parent=47 // pred_check_branch
              %269 = sbr.rel (0) target = $region56
            $region55: #{point_encoder_forward.6} parent=47 // pred_region
              %s271 = ssub.s32 16, 1
              loop: start=0, step=1, limit=1
              $region57: #{point_encoder_forward.6} parent=55 // loop_pre_header
                _
              $region58: #{point_encoder_forward.6} parent=55 // loop_header
                %s273 = sphi 0, %s277
                %p274 = scmp.ge.s32.totalorder %s273, 1
                %s278 = sphi %s263, %s263
                %s279 = sphi %s261, %s261
              $region59: #{point_encoder_forward.6} parent=55 // loop_header_branch
                %276 = sbr.rel (%p274) target = $region63
              $region60: #{point_encoder_forward.6} parent=55 // loop_body
                %v280 = vld [vmem:[%s278] sm:%s271]
                %281 = vst [vmem:[%s279] sm:%s271] %v280
                %v282 = vld [vmem:[%s278 + $0x8] sm:%s271]
                %283 = vst [vmem:[%s279 + $0x4] sm:%s271] %v282
                %v284 = vld [vmem:[%s278 + $0x10] sm:%s271]
                %285 = vst [vmem:[%s279 + $0x8] sm:%s271] %v284
                %v286 = vld [vmem:[%s278 + $0x18] sm:%s271]
                %287 = vst [vmem:[%s279 + $0xc] sm:%s271] %v286
              $region61: #{point_encoder_forward.6} parent=55 // loop_footer
                %s277 = sadd.s32 1, %s273
              $region62: #{point_encoder_forward.6} parent=55 // loop_footer_branch
                %272 = sbr.rel target = $region58
              $region63: #{point_encoder_forward.6} parent=55 // loop_exit
                _
            $region56: #{point_encoder_forward.6} parent=47 // pred_fallthru
              _
          $region48: #{point_encoder_forward.6} parent=43 // pred_fallthru
            _
          %316 = vnop
        $region44: #{point_encoder_forward.6} parent=39 // pred_fallthru
          _
        // Predicated region
        $region82: #{point_encoder_forward.6} parent=39 // pred_check
          %p317 = pneg %p60
        $region83: #{point_encoder_forward.6} parent=39 // pred_check_branch
          %319 = sbr.rel (%p317) target = $region85
        $region84: #{point_encoder_forward.6} parent=39 // pred_region
          %p320 = scmp.lt.s32.totalorder %s14, 1
          %s321 = scalar_select %p320, %s14, 1
          %s322 = smul.addr %s321, 4
          %s323 = scalar_lea.vmem %s1, %s322
        $region85: #{point_encoder_forward.6} parent=39 // pred_fallthru
          _
      $region40: #{point_encoder_forward.6} parent=5 // pred_fallthru
        _
      %p324 = scmp.le.s32.totalorder 1, %s14
      %p325 = scmp.lt.s32.totalorder %s14, 3
      %p326 = pnand %p324, %p325
      %p327 = pneg %p326
      // Predicated region
      $region86: #{point_encoder_forward.6} parent=5 // pred_check
        _
      $region87: #{point_encoder_forward.6} parent=5 // pred_check_branch
        %329 = sbr.rel (%p326) target = $region89
      $region88: #{point_encoder_forward.6} parent=5 // pred_region
        %s330 = ssub.s32 %s14, 1
        %s331 = sand.u32 %s27, 1
        %s332 = sand.u32 %s27, 1
        %s333 = smul.addr %s332, 16
        %s334 = scalar_lea.vmem [#allocation2], %s333
        // Predicated region
        $region90: #{point_encoder_forward.6} parent=88 // pred_check
          %p335 = pneg %p40
        $region91: #{point_encoder_forward.6} parent=88 // pred_check_branch
          %337 = sbr.rel (%p335) target = $region93
        $region92: #{point_encoder_forward.6} parent=88 // pred_region
          _
        $region93: #{point_encoder_forward.6} parent=88 // pred_fallthru
          _
        %s338 = sand.u32 %s27, 1
        %s339 = sand.u32 %s27, 1
        %s340 = smul.addr %s339, 16
        %s341 = scalar_lea.vmem [#allocation2], %s340
        %p342 = pneg %p40
        %p343 = pneg %p37
        %p344 = scmp.lt.s32.totalorder %s19, 1
        %s345 = scalar_select %p344, %s19, 1
        %s346 = smul.addr %s345, 4
        %s347 = scalar_lea.vmem %s1, %s346
        %p348 = pneg %p66
        %p349 = pneg %p63
        %p350 = pneg %p87
        %p351 = pneg %p84
        %p352 = pneg %p108
        %p353 = pneg %p105
        %p354 = pneg %p129
        %p355 = pneg %p126
        %p356 = pneg %p150
        %p357 = pneg %p147
        %p358 = pneg %p171
        %p359 = pneg %p168
        %p360 = pneg %p192
        %p361 = pneg %p189
        %p362 = pneg %p218
        %p363 = pneg %p215
        %p364 = scmp.lt.s32.totalorder %s19, 1
        %s365 = scalar_select %p364, %s19, 1
        %s366 = smul.addr %s365, 8
        %s367 = scalar_lea.vmem %s8, %s366
        %p368 = scmp.lt.s32.totalorder %s19, 1
        %s369 = scalar_select %p368, %s19, 1
        %s370 = smul.addr %s369, 4
        %s371 = scalar_lea.vmem %s1, %s370
        %p372 = scmp.lt.s32.totalorder %s19, 1
        %s373 = scalar_select %p372, %s19, 1
        %s374 = smul.addr %s373, 8
        %s375 = scalar_lea.vmem %s8, %s374
        %v377 = vld [vmem:[%s334] sm:$0xf]
        %v378 = vld [vmem:[%s334 + $0x4] sm:$0xf]
        %v379 = vld [vmem:[%s334 + $0x8] sm:$0xf]
        %v380 = vld [vmem:[%s334 + $0xc] sm:$0xf]
        %v381 = vld [vmem:[%s2] sm:$0x7]
        %v382 = vld [vmem:[%s3] sm:$0x1]
        %v384 = vperm.slane %v382, 0
        %v390 = vunpack.c.l.b16 %v377
        %v391 = vunpack.c.l.b16 %v378
        %v392 = vunpack.c.l.b16 %v379
        %v393 = vunpack.c.l.b16 %v380
        %v394 = vpack.c.b16 %v391, %v390
        %v395 = vpack.c.b16 %v393, %v392
        %vm396 = vcmask 48128
        %v398 = vsel %vm396, %v394, 0
        %v401 = vsel %vm396, %v395, 0
        %vm403 = vcmask 1042432
        %v405 = vsel %vm403, %v381, 0
        %407 = vmatpush.bf16.msra.mxu0 0
        %408 = vmatpush.bf16.msra.mxu0 0
        %409 = vmatpush.bf16.msra.mxu0 0
        %410 = vmatpush.bf16.msra.mxu0 0
        %411 = vmatpush.bf16.msra.mxu0 0
        %412 = vmatpush.bf16.msra.mxu0 0
        %413 = vmatpush.bf16.msra.mxu0 0
        %414 = vmatpush.bf16.msra.mxu0 %v405
        %415 = vmatmul.bf16.gmra.mxu0 %v398
        %v416 = vpop.f32.mrf.mxu0
        %v417 = vadd.f32 %v384, %v416
        %v418 = vpop.f32.mrf.mxu0
        %v419 = vadd.f32 %v384, %v418
        %420 = vmatmul.bf16.gmra.mxu0 %v401
        %v421 = vpop.f32.mrf.mxu0
        %v422 = vadd.f32 %v384, %v421
        %v423 = vpop.f32.mrf.mxu0
        %v424 = vadd.f32 %v384, %v423
        %425 = vdwg.mxu0
        %v426 = vmax.f32 %v417, 0.0
        %v427 = vmax.f32 %v419, 0.0
        %v428 = vmax.f32 %v422, 0.0
        %v429 = vmax.f32 %v424, 0.0
        %v430 = vpack.c.bf16 %v427, %v426
        %v431 = vpack.c.bf16 %v429, %v428
        %v432 = vld [vmem:[%s4] sm:$0xf]
        %v433 = vld [vmem:[%s4 + $0x4] sm:$0xf]
        %v434 = vld [vmem:[%s4 + $0x8] sm:$0xf]
        %v435 = vld [vmem:[%s4 + $0xc] sm:$0xf]
        %v436 = vld [vmem:[%s4 + $0x10] sm:$0xf]
        %v437 = vld [vmem:[%s4 + $0x14] sm:$0xf]
        %v438 = vld [vmem:[%s4 + $0x18] sm:$0xf]
        %v439 = vld [vmem:[%s4 + $0x1c] sm:$0xf]
        %v440 = vld [vmem:[%s5] sm:$0x1]
        %v442 = vperm.slane %v440, 0
        %v452 = vunpack.c.l.b16 %v432
        %v453 = vunpack.c.l.b16 %v433
        %v454 = vunpack.c.l.b16 %v434
        %v455 = vunpack.c.l.b16 %v435
        %v456 = vunpack.c.l.b16 %v436
        %v457 = vunpack.c.l.b16 %v437
        %v458 = vunpack.c.l.b16 %v438
        %v459 = vunpack.c.l.b16 %v439
        %v460 = vpack.c.b16 %v453, %v452
        %v461 = vpack.c.b16 %v455, %v454
        %v462 = vpack.c.b16 %v457, %v456
        %v463 = vpack.c.b16 %v459, %v458
        %vm468 = vcmask 523264
        %v470 = vsel %vm468, %v430, 0
        %v473 = vsel %vm468, %v431, 0
        %475 = vmatpush.bf16.msra.mxu0 0
        %476 = vmatpush.bf16.msra.mxu0 0
        %477 = vmatpush.bf16.msra.mxu0 0
        %478 = vmatpush.bf16.msra.mxu0 0
        %479 = vmatpush.bf16.msra.mxu0 %v463
        %480 = vmatpush.bf16.msra.mxu0 %v462
        %481 = vmatpush.bf16.msra.mxu0 %v461
        %482 = vmatpush.bf16.msra.mxu0 %v460
        %483 = vmatmul.bf16.gmra.mxu0 %v470
        %v484 = vpop.f32.mrf.mxu0
        %v485 = vadd.f32 %v442, %v484
        %v486 = vpop.f32.mrf.mxu0
        %v487 = vadd.f32 %v442, %v486
        %488 = vmatmul.bf16.gmra.mxu0 %v473
        %v489 = vpop.f32.mrf.mxu0
        %v490 = vadd.f32 %v442, %v489
        %v491 = vpop.f32.mrf.mxu0
        %v492 = vadd.f32 %v442, %v491
        %493 = vdwg.mxu0
        %v494 = vmax.f32 %v485, %v487
        %v495 = vmax.f32 %v490, %v492
        %v496 = vmax.f32 %v494, %v495
        %v497 = vld [vmem:[%s371] sm:$0xf]
        %v498 = vld [vmem:[%s6] sm:$0x3]
        %v499 = vld [vmem:[%s7] sm:$0x1]
        %v501 = vperm.slane %v499, 0
        %vm503 = vcmask 23552
        %v505 = vsel %vm503, %v497, 0
        %vm507 = vcmask 1040384
        %vm508 = vcmask 1041408
        %v509 = vsel %vm507, 4294967295, 65535
        %v510 = vsel %vm508, %v509, 0
        %v512 = vand.u32 %v498, %v510
        %514 = vmatpush.bf16.msra.mxu0 0
        %515 = vmatpush.bf16.msra.mxu0 0
        %516 = vmatpush.bf16.msra.mxu0 0
        %517 = vmatpush.bf16.msra.mxu0 0
        %518 = vmatpush.bf16.msra.mxu0 0
        %519 = vmatpush.bf16.msra.mxu0 0
        %520 = vmatpush.bf16.msra.mxu0 0
        %521 = vmatpush.bf16.msra.mxu0 %v512
        %522 = vmatmul.bf16.gmra.mxu0 %v505
        %v523 = vpop.f32.mrf.mxu0
        %v524 = vadd.f32 %v501, %v523
        %v525 = vpop.f32.mrf.mxu0
        %526 = vdwg.mxu0
        %v527 = vadd.f32 %v496, %v524
        %528 = vst [vmem:[%s375] sm:$0xff] %v527
        %p529 = scmp.lt.s32.totalorder %s19, 1
        %s530 = scalar_select %p529, %s19, 1
        %s531 = smul.addr %s530, 8
        %s532 = scalar_lea.vmem %s8, %s531
        // Predicated region
        $region94: #{point_encoder_forward.6} parent=88 // pred_check
          %p533 = pneg %p215
        $region95: #{point_encoder_forward.6} parent=88 // pred_check_branch
          %535 = sbr.rel (%p533) target = $region97
        $region96: #{point_encoder_forward.6} parent=88 // pred_region
          _
        $region97: #{point_encoder_forward.6} parent=88 // pred_fallthru
          _
      $region89: #{point_encoder_forward.6} parent=5 // pred_fallthru
        _
      %p536 = scmp.le.s32.totalorder 2, %s14
      // Predicated region
      $region98: #{point_encoder_forward.6} parent=5 // pred_check
        %p537 = pneg %p536
      $region99: #{point_encoder_forward.6} parent=5 // pred_check_branch
        %539 = sbr.rel (%p537) target = $region101
      $region100: #{point_encoder_forward.6} parent=5 // pred_region
        %s540 = ssub.s32 %s14, 2
        // Predicated region
        $region102: #{point_encoder_forward.6} parent=100 // pred_check
          %p541 = pneg %p221
        $region103: #{point_encoder_forward.6} parent=100 // pred_check_branch
          %543 = sbr.rel (%p541) target = $region105
        $region104: #{point_encoder_forward.6} parent=100 // pred_region
          %p544 = scmp.lt.s32.totalorder %s20, 1
          %s545 = scalar_select %p544, %s20, 1
          %s546 = smul.addr %s545, 8
          %s547 = scalar_lea.vmem %s8, %s546
        $region105: #{point_encoder_forward.6} parent=100 // pred_fallthru
          _
      $region101: #{point_encoder_forward.6} parent=5 // pred_fallthru
        _
    $region6: #{point_encoder_forward.6} parent=1 // loop_footer
      %s18 = sadd.s32 1, %s14
    $region7: #{point_encoder_forward.6} parent=1 // loop_footer_branch
      %13 = sbr.rel target = $region3
    $region8: #{point_encoder_forward.6} parent=1 // loop_exit
      _

// kernel: neg.12
$region0: #{neg.12}
  #allocation0 [shape = 's32[1]{0}', space=sflag, size = 0x4, scoped, tag = 'scoped memory for neg.12']
  %s0 = inlined_call_operand.vmem [shape: f32[16,8], index: 0, kind: input, shape index: {}]
  %s1 = inlined_call_operand.vmem [shape: f32[16,8], index: 1, kind: output, shape index: {}]
  %v2 = vld [vmem:[%s0] sm:$0xff]
  %3 = xla_tuple %v2
  %4 = xla_tuple %3
  %v5 = vxor.u32 %v2, 2147483648
  %6 = xla_tuple %v5
  %7 = vst [vmem:[%s1] sm:$0xff] %v5

// kernel: point_encoder_forward.7
$region0: #{point_encoder_forward.7}
  #allocation0 [shape = 'u32[]', space=smem, size = 0x4, offset = 0x4, fixed_abs, tag = 'smem constant byte address 0x4 - core index']
  #allocation1 [shape = 'u32[72,128]{1,0:T(1,128)}', space=vmem, size = 0x9000, scoped, tag = 'internal scratch']
  %s0 = inlined_call_operand.vmem [shape: bf16[4,8,128], index: 0, kind: input, shape index: {}]
  %s1 = inlined_call_operand.vmem [shape: bf16[4,8,3], index: 1, kind: input, shape index: {}]
  %s2 = inlined_call_operand.vmem [shape: bf16[8,128], index: 2, kind: input, shape index: {}]
  %s3 = inlined_call_operand.vmem [shape: bf16[128,128], index: 3, kind: input, shape index: {}]
  %s4 = inlined_call_operand.hbm [shape: bf16[3,128], index: 4, kind: input, shape index: {}]
  %s5 = inlined_call_operand.hbm [shape: f32[1,128], index: 5, kind: input, shape index: {}]
  %s6 = inlined_call_operand.vmem [shape: bf16[128,256], index: 6, kind: input, shape index: {}]
  %s7 = inlined_call_operand.hbm [shape: f32[1,256], index: 7, kind: input, shape index: {}]
  %s8 = inlined_call_operand.hbm [shape: bf16[128,256], index: 8, kind: input, shape index: {}]
  %s9 = inlined_call_operand.hbm [shape: f32[1,256], index: 9, kind: input, shape index: {}]
  %s10 = inlined_call_operand.vmem [shape: f32[8,256], index: 10, kind: output, shape index: {}]
  %s11 = sld [smem:[#allocation0]]
  $region70: #{point_encoder_forward.7} parent=0
    _
  %s13 = ssub.s32 1, %s11
  %s14 = scalar_select 0, %s13, %s11
  $region1: #{point_encoder_forward.7} parent=0
    #allocation2 [shape = 'u8[1024]{0}', space=vmem, size = 0x400, scoped, tag = 'input window, operand 4, single buffered']
    #allocation3 [shape = 's32[1]{0}', space=sflag, size = 0x4, scoped, tag = 'scoped memory for point_encoder_forward.7']
    #allocation4 [shape = 'u8[512]{0}', space=vmem, size = 0x400, scoped, tag = 'input window, operand 5, single buffered']
    #allocation5 [shape = 's32[1]{0}', space=sflag, size = 0x4, scoped, tag = 'scoped memory for point_encoder_forward.7']
    #allocation6 [shape = 'u8[1024]{0}', space=vmem, size = 0x400, scoped, tag = 'input window, operand 7, single buffered']
    #allocation7 [shape = 'u8[65536]{0}', space=vmem, size = 0x10000, scoped, tag = 'input window, operand 8, single buffered']
    #allocation8 [shape = 's32[1]{0}', space=sflag, size = 0x4, scoped, tag = 'scoped memory for point_encoder_forward.7']
    #allocation9 [shape = 'u8[1024]{0}', space=vmem, size = 0x400, scoped, tag = 'input window, operand 9, single buffered']
    %15 = vsyncpa [#allocation3], 0
    %16 = vsyncpa [#allocation5], 0
    %17 = vsyncpa [#allocation8], 0
    // Predicated region
    $region2: #{point_encoder_forward.7} parent=1 // pred_check
      _
    $region3: #{point_encoder_forward.7} parent=1 // pred_check_branch
      %19 = sbr.rel (0) target = $region5
    $region4: #{point_encoder_forward.7} parent=1 // pred_region
      _
    $region5: #{point_encoder_forward.7} parent=1 // pred_fallthru
      _
    // Predicated region
    $region6: #{point_encoder_forward.7} parent=1 // pred_check
      _
    $region7: #{point_encoder_forward.7} parent=1 // pred_check_branch
      %21 = sbr.rel (0) target = $region9
    $region8: #{point_encoder_forward.7} parent=1 // pred_region
      _
    $region9: #{point_encoder_forward.7} parent=1 // pred_fallthru
      _
    // Predicated region
    $region10: #{point_encoder_forward.7} parent=1 // pred_check
      _
    $region11: #{point_encoder_forward.7} parent=1 // pred_check_branch
      %23 = sbr.rel (0) target = $region13
    $region12: #{point_encoder_forward.7} parent=1 // pred_region
      _
    $region13: #{point_encoder_forward.7} parent=1 // pred_fallthru
      _
    // Predicated region
    $region14: #{point_encoder_forward.7} parent=1 // pred_check
      _
    $region15: #{point_encoder_forward.7} parent=1 // pred_check_branch
      %25 = sbr.rel (0) target = $region17
    $region16: #{point_encoder_forward.7} parent=1 // pred_region
      _
    $region17: #{point_encoder_forward.7} parent=1 // pred_fallthru
      _
    // Predicated region
    $region18: #{point_encoder_forward.7} parent=1 // pred_check
      _
    $region19: #{point_encoder_forward.7} parent=1 // pred_check_branch
      %27 = sbr.rel (0) target = $region21
    $region20: #{point_encoder_forward.7} parent=1 // pred_region
      %29 = vsyncadd [#allocation3], 0
      %s31 = sshll.u32 %s4, 4
      %s32 = int_to_ptr.hbm [resolvable:$true] %s31
      %s33 = sshll.u32 [#allocation2], 4
      %s34 = int_to_ptr.vmem [resolvable:$true] %s33
      %36 = dma.hbm_to_vmem [thread:$0]  %s32, 32, %s34, [#allocation3]
    $region21: #{point_encoder_forward.7} parent=1 // pred_fallthru
      _
    // Predicated region
    $region22: #{point_encoder_forward.7} parent=1 // pred_check
      _
    $region23: #{point_encoder_forward.7} parent=1 // pred_check_branch
      %38 = sbr.rel (0) target = $region25
    $region24: #{point_encoder_forward.7} parent=1 // pred_region
      %40 = vsyncadd [#allocation5], 0
      %s42 = sshll.u32 %s5, 4
      %s43 = int_to_ptr.hbm [resolvable:$true] %s42
      %s44 = sshll.u32 [#allocation4], 4
      %s45 = int_to_ptr.vmem [resolvable:$true] %s44
      %47 = dma.hbm_to_vmem [thread:$0]  %s43, 16, %s45, [#allocation5]
    $region25: #{point_encoder_forward.7} parent=1 // pred_fallthru
      _
    // Predicated region
    $region26: #{point_encoder_forward.7} parent=1 // pred_check
      _
    $region27: #{point_encoder_forward.7} parent=1 // pred_check_branch
      %49 = sbr.rel (0) target = $region29
    $region28: #{point_encoder_forward.7} parent=1 // pred_region
      _
    $region29: #{point_encoder_forward.7} parent=1 // pred_fallthru
      _
    // Predicated region
    $region30: #{point_encoder_forward.7} parent=1 // pred_check
      _
    $region31: #{point_encoder_forward.7} parent=1 // pred_check_branch
      %51 = sbr.rel (0) target = $region33
    $region32: #{point_encoder_forward.7} parent=1 // pred_region
      %53 = vsyncadd [#allocation5], 0
      %s55 = sshll.u32 %s7, 4
      %s56 = int_to_ptr.hbm [resolvable:$true] %s55
      %s57 = sshll.u32 [#allocation6], 4
      %s58 = int_to_ptr.vmem [resolvable:$true] %s57
      %60 = dma.hbm_to_vmem [thread:$0]  %s56, 32, %s58, [#allocation5]
    $region33: #{point_encoder_forward.7} parent=1 // pred_fallthru
      _
    // Predicated region
    $region34: #{point_encoder_forward.7} parent=1 // pred_check
      _
    $region35: #{point_encoder_forward.7} parent=1 // pred_check_branch
      %62 = sbr.rel (0) target = $region37
    $region36: #{point_encoder_forward.7} parent=1 // pred_region
      %64 = vsyncadd [#allocation8], 0
      %s65 = sshll.u32 %s8, 4
      %s66 = int_to_ptr.hbm [resolvable:$true] %s65
      %s67 = sshll.u32 [#allocation7], 4
      %s68 = int_to_ptr.vmem [resolvable:$true] %s67
      %73 = dma.hbm_to_vmem [thread:$0]  %s66, 2048, %s68, [#allocation8], 128, 128, 8
    $region37: #{point_encoder_forward.7} parent=1 // pred_fallthru
      _
    // Predicated region
    $region38: #{point_encoder_forward.7} parent=1 // pred_check
      _
    $region39: #{point_encoder_forward.7} parent=1 // pred_check_branch
      %75 = sbr.rel (0) target = $region41
    $region40: #{point_encoder_forward.7} parent=1 // pred_region
      %77 = vsyncadd [#allocation8], 0
      %s79 = sshll.u32 %s9, 4
      %s80 = int_to_ptr.hbm [resolvable:$true] %s79
      %s81 = sshll.u32 [#allocation9], 4
      %s82 = int_to_ptr.vmem [resolvable:$true] %s81
      %84 = dma.hbm_to_vmem [thread:$0]  %s80, 32, %s82, [#allocation8]
    $region41: #{point_encoder_forward.7} parent=1 // pred_fallthru
      _
    // Predicated region
    $region42: #{point_encoder_forward.7} parent=1 // pred_check
      _
    $region43: #{point_encoder_forward.7} parent=1 // pred_check_branch
      %86 = sbr.rel (0) target = $region45
    $region44: #{point_encoder_forward.7} parent=1 // pred_region
      %88 = dma.done [#allocation3], 32
    $region45: #{point_encoder_forward.7} parent=1 // pred_fallthru
      _
    // Predicated region
    $region46: #{point_encoder_forward.7} parent=1 // pred_check
      _
    $region47: #{point_encoder_forward.7} parent=1 // pred_check_branch
      %90 = sbr.rel (0) target = $region49
    $region48: #{point_encoder_forward.7} parent=1 // pred_region
      %92 = dma.done [#allocation5], 16
    $region49: #{point_encoder_forward.7} parent=1 // pred_fallthru
      _
    // Predicated region
    $region50: #{point_encoder_forward.7} parent=1 // pred_check
      _
    $region51: #{point_encoder_forward.7} parent=1 // pred_check_branch
      %94 = sbr.rel (0) target = $region53
    $region52: #{point_encoder_forward.7} parent=1 // pred_region
      %96 = dma.done [#allocation5], 32
    $region53: #{point_encoder_forward.7} parent=1 // pred_fallthru
      _
    // Predicated region
    $region54: #{point_encoder_forward.7} parent=1 // pred_check
      _
    $region55: #{point_encoder_forward.7} parent=1 // pred_check_branch
      %98 = sbr.rel (0) target = $region57
    $region56: #{point_encoder_forward.7} parent=1 // pred_region
      %100 = dma.done [#allocation8], 2048
    $region57: #{point_encoder_forward.7} parent=1 // pred_fallthru
      _
    // Predicated region
    $region58: #{point_encoder_forward.7} parent=1 // pred_check
      _
    $region59: #{point_encoder_forward.7} parent=1 // pred_check_branch
      %102 = sbr.rel (0) target = $region61
    $region60: #{point_encoder_forward.7} parent=1 // pred_region
      %104 = dma.done [#allocation8], 32
    $region61: #{point_encoder_forward.7} parent=1 // pred_fallthru
      _
    %v106 = vld [vmem:[%s0] sm:$0xf]
    %v107 = vld [vmem:[%s0 + $0x4] sm:$0xf]
    %v108 = vld [vmem:[%s0 + $0x8] sm:$0xf]
    %v109 = vld [vmem:[%s0 + $0xc] sm:$0xf]
    %v110 = vld [vmem:[%s1] sm:$0xf]
    %v111 = vld [vmem:[%s1 + $0x4] sm:$0xf]
    %v112 = vld [vmem:[%s1 + $0x8] sm:$0xf]
    %v113 = vld [vmem:[%s1 + $0xc] sm:$0xf]
    %v114 = vld [vmem:[%s3] sm:$0xf]
    %v115 = vld [vmem:[%s3 + $0x4] sm:$0xf]
    %v116 = vld [vmem:[%s3 + $0x8] sm:$0xf]
    %v117 = vld [vmem:[%s3 + $0xc] sm:$0xf]
    %v118 = vld [vmem:[%s3 + $0x10] sm:$0xf]
    %v119 = vld [vmem:[%s3 + $0x14] sm:$0xf]
    %v120 = vld [vmem:[%s3 + $0x18] sm:$0xf]
    %v121 = vld [vmem:[%s3 + $0x1c] sm:$0xf]
    %v122 = vld [vmem:[%s3 + $0x20] sm:$0xf]
    %v123 = vld [vmem:[%s3 + $0x24] sm:$0xf]
    %v124 = vld [vmem:[%s3 + $0x28] sm:$0xf]
    %v125 = vld [vmem:[%s3 + $0x2c] sm:$0xf]
    %v126 = vld [vmem:[%s3 + $0x30] sm:$0xf]
    %v127 = vld [vmem:[%s3 + $0x34] sm:$0xf]
    %v128 = vld [vmem:[%s3 + $0x38] sm:$0xf]
    %v129 = vld [vmem:[%s3 + $0x3c] sm:$0xf]
    %v130 = vld [vmem:[#allocation2] sm:$0x3]
    %v135 = vunpack.c.l.b16 %v110
    %v136 = vunpack.c.l.b16 %v111
    %v137 = vunpack.c.l.b16 %v112
    %v138 = vunpack.c.l.b16 %v113
    %v139 = vpack.c.b16 %v136, %v135
    %v140 = vpack.c.b16 %v138, %v137
    %vm141 = vcmask 23552
    %v143 = vsel %vm141, %v139, 0
    %v146 = vsel %vm141, %v140, 0
    %vm148 = vcmask 1040384
    %vm149 = vcmask 1041408
    %v150 = vsel %vm148, 4294967295, 65535
    %v151 = vsel %vm149, %v150, 0
    %v153 = vand.u32 %v130, %v151
    %155 = vmatpush.bf16.msra.mxu0 0
    %156 = vmatpush.bf16.msra.mxu0 0
    %157 = vmatpush.bf16.msra.mxu0 0
    %158 = vmatpush.bf16.msra.mxu0 0
    %159 = vmatpush.bf16.msra.mxu0 0
    %160 = vmatpush.bf16.msra.mxu0 0
    %161 = vmatpush.bf16.msra.mxu0 0
    %162 = vmatpush.bf16.msra.mxu0 %v153
    %163 = vmatmul.bf16.gmra.mxu0 %v143
    %v164 = vpop.f32.mrf.mxu0
    %v165 = vadd.f32 0.0, %v164
    %v166 = vpop.f32.mrf.mxu0
    %v167 = vadd.f32 0.0, %v166
    %168 = vmatmul.bf16.gmra.mxu0 %v146
    %v169 = vpop.f32.mrf.mxu0
    %v170 = vadd.f32 0.0, %v169
    %v171 = vpop.f32.mrf.mxu0
    %v172 = vadd.f32 0.0, %v171
    %173 = vdwg.mxu0
    %v178 = vunpack.c.l.b16 %v106
    %v179 = vunpack.c.l.b16 %v107
    %v180 = vunpack.c.l.b16 %v108
    %v181 = vunpack.c.l.b16 %v109
    %v182 = vpack.c.b16 %v179, %v178
    %v183 = vpack.c.b16 %v181, %v180
    %v202 = vunpack.c.l.b16 %v114
    %v203 = vunpack.c.l.b16 %v115
    %v204 = vunpack.c.l.b16 %v116
    %v205 = vunpack.c.l.b16 %v117
    %v206 = vunpack.c.l.b16 %v118
    %v207 = vunpack.c.l.b16 %v119
    %v208 = vunpack.c.l.b16 %v120
    %v209 = vunpack.c.l.b16 %v121
    %v210 = vunpack.c.l.b16 %v122
    %v211 = vunpack.c.l.b16 %v123
    %v212 = vunpack.c.l.b16 %v124
    %v213 = vunpack.c.l.b16 %v125
    %v214 = vunpack.c.l.b16 %v126
    %v215 = vunpack.c.l.b16 %v127
    %v216 = vunpack.c.l.b16 %v128
    %v217 = vunpack.c.l.b16 %v129
    %v218 = vpack.c.b16 %v203, %v202
    %v219 = vpack.c.b16 %v205, %v204
    %v220 = vpack.c.b16 %v207, %v206
    %v221 = vpack.c.b16 %v209, %v208
    %v222 = vpack.c.b16 %v211, %v210
    %v223 = vpack.c.b16 %v213, %v212
    %v224 = vpack.c.b16 %v215, %v214
    %v225 = vpack.c.b16 %v217, %v216
    %234 = vmatpush.bf16.msra.mxu0 %v225
    %235 = vmatpush.bf16.msra.mxu0 %v224
    %236 = vmatpush.bf16.msra.mxu0 %v223
    %237 = vmatpush.bf16.msra.mxu0 %v222
    %238 = vmatpush.bf16.msra.mxu0 %v221
    %239 = vmatpush.bf16.msra.mxu0 %v220
    %240 = vmatpush.bf16.msra.mxu0 %v219
    %241 = vmatpush.bf16.msra.mxu0 %v218
    %242 = vmatmul.bf16.gmra.mxu0 %v182
    %v243 = vpop.f32.mrf.mxu0
    %v244 = vadd.f32 %v165, %v243
    %v245 = vpop.f32.mrf.mxu0
    %v246 = vadd.f32 %v167, %v245
    %247 = vmatmul.bf16.gmra.mxu0 %v183
    %v248 = vpop.f32.mrf.mxu0
    %v249 = vadd.f32 %v170, %v248
    %v250 = vpop.f32.mrf.mxu0
    %v251 = vadd.f32 %v172, %v250
    %252 = vdwg.mxu0
    %v253 = vld [vmem:[#allocation4] sm:$0x1]
    %v255 = vperm.slane %v253, 0
    %v257 = vadd.f32 %v244, %v255
    %v258 = vadd.f32 %v246, %v255
    %v259 = vadd.f32 %v249, %v255
    %v260 = vadd.f32 %v251, %v255
    %v261 = vmax.f32 %v257, 0.0
    %v262 = vmax.f32 %v258, 0.0
    %v263 = vmax.f32 %v259, 0.0
    %v264 = vmax.f32 %v260, 0.0
    %v265 = vpack.c.bf16 %v262, %v261
    %v266 = vpack.c.bf16 %v264, %v263
    %v267 = vld [vmem:[%s6] sm:$0xff]
    %v268 = vld [vmem:[%s6 + $0x8] sm:$0xff]
    %v269 = vld [vmem:[%s6 + $0x10] sm:$0xff]
    %v270 = vld [vmem:[%s6 + $0x18] sm:$0xff]
    %v271 = vld [vmem:[%s6 + $0x20] sm:$0xff]
    %v272 = vld [vmem:[%s6 + $0x28] sm:$0xff]
    %v273 = vld [vmem:[%s6 + $0x30] sm:$0xff]
    %v274 = vld [vmem:[%s6 + $0x38] sm:$0xff]
    %v275 = vld [vmem:[%s6 + $0x40] sm:$0xff]
    %v276 = vld [vmem:[%s6 + $0x48] sm:$0xff]
    %v277 = vld [vmem:[%s6 + $0x50] sm:$0xff]
    %v278 = vld [vmem:[%s6 + $0x58] sm:$0xff]
    %v279 = vld [vmem:[%s6 + $0x60] sm:$0xff]
    %v280 = vld [vmem:[%s6 + $0x68] sm:$0xff]
    %v281 = vld [vmem:[%s6 + $0x70] sm:$0xff]
    %v282 = vld [vmem:[%s6 + $0x78] sm:$0xff]
    %v283 = vld [vmem:[#allocation6] sm:$0x3]
    %v285 = vperm.slane %v283, 0
    %v286 = vperm.slane %v283, 1
    %v305 = vunpack.c.l.b16 %v267
    %v306 = vunpack.c.h.b16 %v267
    %v307 = vunpack.c.l.b16 %v268
    %v308 = vunpack.c.h.b16 %v268
    %v309 = vunpack.c.l.b16 %v269
    %v310 = vunpack.c.h.b16 %v269
    %v311 = vunpack.c.l.b16 %v270
    %v312 = vunpack.c.h.b16 %v270
    %v313 = vunpack.c.l.b16 %v271
    %v314 = vunpack.c.h.b16 %v271
    %v315 = vunpack.c.l.b16 %v272
    %v316 = vunpack.c.h.b16 %v272
    %v317 = vunpack.c.l.b16 %v273
    %v318 = vunpack.c.h.b16 %v273
    %v319 = vunpack.c.l.b16 %v274
    %v320 = vunpack.c.h.b16 %v274
    %v321 = vunpack.c.l.b16 %v275
    %v322 = vunpack.c.h.b16 %v275
    %v323 = vunpack.c.l.b16 %v276
    %v324 = vunpack.c.h.b16 %v276
    %v325 = vunpack.c.l.b16 %v277
    %v326 = vunpack.c.h.b16 %v277
    %v327 = vunpack.c.l.b16 %v278
    %v328 = vunpack.c.h.b16 %v278
    %v329 = vunpack.c.l.b16 %v279
    %v330 = vunpack.c.h.b16 %v279
    %v331 = vunpack.c.l.b16 %v280
    %v332 = vunpack.c.h.b16 %v280
    %v333 = vunpack.c.l.b16 %v281
    %v334 = vunpack.c.h.b16 %v281
    %v335 = vunpack.c.l.b16 %v282
    %v336 = vunpack.c.h.b16 %v282
    %v337 = vpack.c.b16 %v307, %v305
    %v338 = vpack.c.b16 %v308, %v306
    %v339 = vpack.c.b16 %v311, %v309
    %v340 = vpack.c.b16 %v312, %v310
    %v341 = vpack.c.b16 %v315, %v313
    %v342 = vpack.c.b16 %v316, %v314
    %v343 = vpack.c.b16 %v319, %v317
    %v344 = vpack.c.b16 %v320, %v318
    %v345 = vpack.c.b16 %v323, %v321
    %v346 = vpack.c.b16 %v324, %v322
    %v347 = vpack.c.b16 %v327, %v325
    %v348 = vpack.c.b16 %v328, %v326
    %v349 = vpack.c.b16 %v331, %v329
    %v350 = vpack.c.b16 %v332, %v330
    %v351 = vpack.c.b16 %v335, %v333
    %v352 = vpack.c.b16 %v336, %v334
    %369 = vmatpush.bf16.msra.mxu0 %v351
    %370 = vmatpush.bf16.msra.mxu0 %v349
    %371 = vmatpush.bf16.msra.mxu0 %v347
    %372 = vmatpush.bf16.msra.mxu0 %v345
    %373 = vmatpush.bf16.msra.mxu0 %v343
    %374 = vmatpush.bf16.msra.mxu0 %v341
    %375 = vmatpush.bf16.msra.mxu0 %v339
    %376 = vmatpush.bf16.msra.mxu0 %v337
    %377 = vmatmul.bf16.gmra.mxu0 %v265
    %v378 = vpop.f32.mrf.mxu0
    %v379 = vadd.f32 %v285, %v378
    %v380 = vpop.f32.mrf.mxu0
    %v381 = vadd.f32 %v285, %v380
    %382 = vmatmul.bf16.gmra.mxu0 %v266
    %v383 = vpop.f32.mrf.mxu0
    %v384 = vadd.f32 %v285, %v383
    %v385 = vpop.f32.mrf.mxu0
    %v386 = vadd.f32 %v285, %v385
    %387 = vdwg.mxu0
    %388 = vmatpush.bf16.msra.mxu0 %v352
    %389 = vmatpush.bf16.msra.mxu0 %v350
    %390 = vmatpush.bf16.msra.mxu0 %v348
    %391 = vmatpush.bf16.msra.mxu0 %v346
    %392 = vmatpush.bf16.msra.mxu0 %v344
    %393 = vmatpush.bf16.msra.mxu0 %v342
    %394 = vmatpush.bf16.msra.mxu0 %v340
    %395 = vmatpush.bf16.msra.mxu0 %v338
    %396 = vmatmul.bf16.gmra.mxu0 %v265
    %v397 = vpop.f32.mrf.mxu0
    %v398 = vadd.f32 %v286, %v397
    %v399 = vpop.f32.mrf.mxu0
    %v400 = vadd.f32 %v286, %v399
    %401 = vmatmul.bf16.gmra.mxu0 %v266
    %v402 = vpop.f32.mrf.mxu0
    %v403 = vadd.f32 %v286, %v402
    %v404 = vpop.f32.mrf.mxu0
    %v405 = vadd.f32 %v286, %v404
    %406 = vdwg.mxu0
    %v407 = vmax.f32 %v379, %v384
    %v408 = vmax.f32 %v381, %v386
    %v409 = vmax.f32 %v407, %v408
    %v410 = vmax.f32 %v398, %v403
    %v411 = vmax.f32 %v400, %v405
    %v412 = vmax.f32 %v410, %v411
    %v413 = vld [vmem:[%s2] sm:$0xf]
    %v414 = vld [vmem:[#allocation7] sm:$0xff]
    %v415 = vld [vmem:[#allocation7 + $0x8] sm:$0xff]
    %v416 = vld [vmem:[#allocation7 + $0x10] sm:$0xff]
    %v417 = vld [vmem:[#allocation7 + $0x18] sm:$0xff]
    %v418 = vld [vmem:[#allocation7 + $0x20] sm:$0xff]
    %v419 = vld [vmem:[#allocation7 + $0x28] sm:$0xff]
    %v420 = vld [vmem:[#allocation7 + $0x30] sm:$0xff]
    %v421 = vld [vmem:[#allocation7 + $0x38] sm:$0xff]
    %v422 = vld [vmem:[#allocation7 + $0x40] sm:$0xff]
    %v423 = vld [vmem:[#allocation7 + $0x48] sm:$0xff]
    %v424 = vld [vmem:[#allocation7 + $0x50] sm:$0xff]
    %v425 = vld [vmem:[#allocation7 + $0x58] sm:$0xff]
    %v426 = vld [vmem:[#allocation7 + $0x60] sm:$0xff]
    %v427 = vld [vmem:[#allocation7 + $0x68] sm:$0xff]
    %v428 = vld [vmem:[#allocation7 + $0x70] sm:$0xff]
    %v429 = vld [vmem:[#allocation7 + $0x78] sm:$0xff]
    %v430 = vld [vmem:[#allocation9] sm:$0x3]
    %v432 = vperm.slane %v430, 0
    %v433 = vperm.slane %v430, 1
    %v452 = vunpack.c.l.b16 %v414
    %v453 = vunpack.c.h.b16 %v414
    %v454 = vunpack.c.l.b16 %v415
    %v455 = vunpack.c.h.b16 %v415
    %v456 = vunpack.c.l.b16 %v416
    %v457 = vunpack.c.h.b16 %v416
    %v458 = vunpack.c.l.b16 %v417
    %v459 = vunpack.c.h.b16 %v417
    %v460 = vunpack.c.l.b16 %v418
    %v461 = vunpack.c.h.b16 %v418
    %v462 = vunpack.c.l.b16 %v419
    %v463 = vunpack.c.h.b16 %v419
    %v464 = vunpack.c.l.b16 %v420
    %v465 = vunpack.c.h.b16 %v420
    %v466 = vunpack.c.l.b16 %v421
    %v467 = vunpack.c.h.b16 %v421
    %v468 = vunpack.c.l.b16 %v422
    %v469 = vunpack.c.h.b16 %v422
    %v470 = vunpack.c.l.b16 %v423
    %v471 = vunpack.c.h.b16 %v423
    %v472 = vunpack.c.l.b16 %v424
    %v473 = vunpack.c.h.b16 %v424
    %v474 = vunpack.c.l.b16 %v425
    %v475 = vunpack.c.h.b16 %v425
    %v476 = vunpack.c.l.b16 %v426
    %v477 = vunpack.c.h.b16 %v426
    %v478 = vunpack.c.l.b16 %v427
    %v479 = vunpack.c.h.b16 %v427
    %v480 = vunpack.c.l.b16 %v428
    %v481 = vunpack.c.h.b16 %v428
    %v482 = vunpack.c.l.b16 %v429
    %v483 = vunpack.c.h.b16 %v429
    %v484 = vpack.c.b16 %v454, %v452
    %v485 = vpack.c.b16 %v455, %v453
    %v486 = vpack.c.b16 %v458, %v456
    %v487 = vpack.c.b16 %v459, %v457
    %v488 = vpack.c.b16 %v462, %v460
    %v489 = vpack.c.b16 %v463, %v461
    %v490 = vpack.c.b16 %v466, %v464
    %v491 = vpack.c.b16 %v467, %v465
    %v492 = vpack.c.b16 %v470, %v468
    %v493 = vpack.c.b16 %v471, %v469
    %v494 = vpack.c.b16 %v474, %v472
    %v495 = vpack.c.b16 %v475, %v473
    %v496 = vpack.c.b16 %v478, %v476
    %v497 = vpack.c.b16 %v479, %v477
    %v498 = vpack.c.b16 %v482, %v480
    %v499 = vpack.c.b16 %v483, %v481
    %516 = vmatpush.bf16.msra.mxu0 %v498
    %517 = vmatpush.bf16.msra.mxu0 %v496
    %518 = vmatpush.bf16.msra.mxu0 %v494
    %519 = vmatpush.bf16.msra.mxu0 %v492
    %520 = vmatpush.bf16.msra.mxu0 %v490
    %521 = vmatpush.bf16.msra.mxu0 %v488
    %522 = vmatpush.bf16.msra.mxu0 %v486
    %523 = vmatpush.bf16.msra.mxu0 %v484
    %524 = vmatmul.bf16.gmra.mxu0 %v413
    %v525 = vpop.f32.mrf.mxu0
    %v526 = vadd.f32 %v432, %v525
    %v527 = vpop.f32.mrf.mxu0
    %528 = vdwg.mxu0
    %529 = vmatpush.bf16.msra.mxu0 %v499
    %530 = vmatpush.bf16.msra.mxu0 %v497
    %531 = vmatpush.bf16.msra.mxu0 %v495
    %532 = vmatpush.bf16.msra.mxu0 %v493
    %533 = vmatpush.bf16.msra.mxu0 %v491
    %534 = vmatpush.bf16.msra.mxu0 %v489
    %535 = vmatpush.bf16.msra.mxu0 %v487
    %536 = vmatpush.bf16.msra.mxu0 %v485
    %537 = vmatmul.bf16.gmra.mxu0 %v413
    %v538 = vpop.f32.mrf.mxu0
    %v539 = vadd.f32 %v433, %v538
    %v540 = vpop.f32.mrf.mxu0
    %541 = vdwg.mxu0
    %v542 = vadd.f32 %v409, %v526
    %v543 = vadd.f32 %v412, %v539
    %544 = vst [vmem:[%s10] sm:$0xff] %v542
    %545 = vst [vmem:[%s10 + $0x8] sm:$0xff] %v543
    // Predicated region
    $region62: #{point_encoder_forward.7} parent=1 // pred_check
      _
    $region63: #{point_encoder_forward.7} parent=1 // pred_check_branch
      %547 = sbr.rel (0) target = $region65
    $region64: #{point_encoder_forward.7} parent=1 // pred_region
      _
    $region65: #{point_encoder_forward.7} parent=1 // pred_fallthru
      _
    // Predicated region
    $region66: #{point_encoder_forward.7} parent=1 // pred_check
      _
    $region67: #{point_encoder_forward.7} parent=1 // pred_check_branch
      %549 = sbr.rel (0) target = $region69
    $region68: #{point_encoder_forward.7} parent=1 // pred_region
      _
    $region69: #{point_encoder_forward.7} parent=1 // pred_fallthru
      _
    %550 = vsyncpa [#allocation3], 1
    %551 = vsyncpa [#allocation5], 1
    %552 = vsyncpa [#allocation8], 1

// kernel: neg.14
$region0: #{neg.14}
  #allocation0 [shape = 's32[1]{0}', space=sflag, size = 0x4, scoped, tag = 'scoped memory for neg.14']
  %s0 = inlined_call_operand.vmem [shape: f32[32,16], index: 0, kind: input, shape index: {}]
  %s1 = inlined_call_operand.vmem [shape: f32[32,16], index: 1, kind: output, shape index: {}]
  %v2 = vld [vmem:[%s0] sm:$0xff]
  %3 = xla_tuple %v2
  %4 = xla_tuple %3
  %v5 = vxor.u32 %v2, 2147483648
  %6 = xla_tuple %v5
  %7 = vst [vmem:[%s1] sm:$0xff] %v5
  %s8 = scalar_lea.vmem %s0, 8
  %v9 = vld [vmem:[%s8] sm:$0xff]
  %10 = xla_tuple %v9
  %11 = xla_tuple %10
  %v12 = vxor.u32 %v9, 2147483648
  %13 = xla_tuple %v12
  %s14 = scalar_lea.vmem %s1, 8
  %15 = vst [vmem:[%s14] sm:$0xff] %v12

// kernel: point_encoder_forward.8
$region0: #{point_encoder_forward.8}
  #allocation0 [shape = 'u32[]', space=smem, size = 0x4, offset = 0x4, fixed_abs, tag = 'smem constant byte address 0x4 - core index']
  #allocation1 [shape = 'u32[72,128]{1,0:T(1,128)}', space=vmem, size = 0x9000, scoped, tag = 'internal scratch']
  #allocation2 [shape = 'f32[1,512]{1,0:T(1,128)}', space=vmem, size = 0x800, scoped, tag = 'scratch operand']
  %s0 = inlined_call_operand.vmem [shape: bf16[8,256], index: 0, kind: input, shape index: {}]
  %s1 = inlined_call_operand.vmem [shape: bf16[8,3], index: 1, kind: input, shape index: {}]
  %s2 = inlined_call_operand.hbm [shape: bf16[256,256], index: 2, kind: input, shape index: {}]
  %s3 = inlined_call_operand.vmem [shape: bf16[3,256], index: 3, kind: input, shape index: {}]
  %s4 = inlined_call_operand.hbm [shape: f32[1,256], index: 4, kind: input, shape index: {}]
  %s5 = inlined_call_operand.vmem [shape: bf16[256,512], index: 5, kind: input, shape index: {}]
  %s6 = inlined_call_operand.vmem [shape: f32[1,512], index: 6, kind: input, shape index: {}]
  %s7 = inlined_call_operand.vmem [shape: f32[1,512], index: 7, kind: output, shape index: {}]
  %s8 = sld [smem:[#allocation0]]
  $region54: #{point_encoder_forward.8} parent=0
    _
  %s10 = ssub.s32 1, %s8
  %s11 = scalar_select 0, %s10, %s8
  $region1: #{point_encoder_forward.8} parent=0
    #allocation3 [shape = 'u8[131072]{0}', space=vmem, size = 0x20000, scoped, tag = 'input window, operand 2, single buffered']
    #allocation4 [shape = 's32[1]{0}', space=sflag, size = 0x4, scoped, tag = 'scoped memory for point_encoder_forward.8']
    #allocation5 [shape = 'u8[1024]{0}', space=vmem, size = 0x400, scoped, tag = 'input window, operand 4, single buffered']
    #allocation6 [shape = 's32[1]{0}', space=sflag, size = 0x4, scoped, tag = 'scoped memory for point_encoder_forward.8']
    %12 = vsyncpa [#allocation4], 0
    %13 = vsyncpa [#allocation6], 0
    // Predicated region
    $region2: #{point_encoder_forward.8} parent=1 // pred_check
      _
    $region3: #{point_encoder_forward.8} parent=1 // pred_check_branch
      %15 = sbr.rel (0) target = $region5
    $region4: #{point_encoder_forward.8} parent=1 // pred_region
      _
    $region5: #{point_encoder_forward.8} parent=1 // pred_fallthru
      _
    // Predicated region
    $region6: #{point_encoder_forward.8} parent=1 // pred_check
      _
    $region7: #{point_encoder_forward.8} parent=1 // pred_check_branch
      %17 = sbr.rel (0) target = $region9
    $region8: #{point_encoder_forward.8} parent=1 // pred_region
      _
    $region9: #{point_encoder_forward.8} parent=1 // pred_fallthru
      _
    // Predicated region
    $region10: #{point_encoder_forward.8} parent=1 // pred_check
      _
    $region11: #{point_encoder_forward.8} parent=1 // pred_check_branch
      %19 = sbr.rel (0) target = $region13
    $region12: #{point_encoder_forward.8} parent=1 // pred_region
      %21 = vsyncadd [#allocation4], 0
      %s22 = sshll.u32 %s2, 4
      %s23 = int_to_ptr.hbm [resolvable:$true] %s22
      %s24 = sshll.u32 [#allocation3], 4
      %s25 = int_to_ptr.vmem [resolvable:$true] %s24
      %30 = dma.hbm_to_vmem [thread:$0]  %s23, 4096, %s25, [#allocation4], 128, 128, 8
    $region13: #{point_encoder_forward.8} parent=1 // pred_fallthru
      _
    // Predicated region
    $region14: #{point_encoder_forward.8} parent=1 // pred_check
      _
    $region15: #{point_encoder_forward.8} parent=1 // pred_check_branch
      %32 = sbr.rel (0) target = $region17
    $region16: #{point_encoder_forward.8} parent=1 // pred_region
      _
    $region17: #{point_encoder_forward.8} parent=1 // pred_fallthru
      _
    // Predicated region
    $region18: #{point_encoder_forward.8} parent=1 // pred_check
      _
    $region19: #{point_encoder_forward.8} parent=1 // pred_check_branch
      %34 = sbr.rel (0) target = $region21
    $region20: #{point_encoder_forward.8} parent=1 // pred_region
      %36 = vsyncadd [#allocation6], 0
      %s38 = sshll.u32 %s4, 4
      %s39 = int_to_ptr.hbm [resolvable:$true] %s38
      %s40 = sshll.u32 [#allocation5], 4
      %s41 = int_to_ptr.vmem [resolvable:$true] %s40
      %43 = dma.hbm_to_vmem [thread:$0]  %s39, 32, %s41, [#allocation6]
    $region21: #{point_encoder_forward.8} parent=1 // pred_fallthru
      _
    // Predicated region
    $region22: #{point_encoder_forward.8} parent=1 // pred_check
      _
    $region23: #{point_encoder_forward.8} parent=1 // pred_check_branch
      %45 = sbr.rel (0) target = $region25
    $region24: #{point_encoder_forward.8} parent=1 // pred_region
      _
    $region25: #{point_encoder_forward.8} parent=1 // pred_fallthru
      _
    // Predicated region
    $region26: #{point_encoder_forward.8} parent=1 // pred_check
      _
    $region27: #{point_encoder_forward.8} parent=1 // pred_check_branch
      %47 = sbr.rel (0) target = $region29
    $region28: #{point_encoder_forward.8} parent=1 // pred_region
      _
    $region29: #{point_encoder_forward.8} parent=1 // pred_fallthru
      _
    // Predicated region
    $region30: #{point_encoder_forward.8} parent=1 // pred_check
      _
    $region31: #{point_encoder_forward.8} parent=1 // pred_check_branch
      %49 = sbr.rel (0) target = $region33
    $region32: #{point_encoder_forward.8} parent=1 // pred_region
      %51 = dma.done [#allocation4], 4096
    $region33: #{point_encoder_forward.8} parent=1 // pred_fallthru
      _
    // Predicated region
    $region34: #{point_encoder_forward.8} parent=1 // pred_check
      _
    $region35: #{point_encoder_forward.8} parent=1 // pred_check_branch
      %53 = sbr.rel (0) target = $region37
    $region36: #{point_encoder_forward.8} parent=1 // pred_region
      %55 = dma.done [#allocation6], 32
    $region37: #{point_encoder_forward.8} parent=1 // pred_fallthru
      _
    %p57 = scmp.eq.s32.totalorder 0, 0
    // Predicated region
    $region38: #{point_encoder_forward.8} parent=1 // pred_check
      %p58 = pneg %p57
    $region39: #{point_encoder_forward.8} parent=1 // pred_check_branch
      %60 = sbr.rel (%p58) target = $region41
    $region40: #{point_encoder_forward.8} parent=1 // pred_region
      %v61 = vlaneseq
      %vm62 = vcmp.ge.s32.totalorder %v61, 0
      %vm63 = vcmp.lt.s32.totalorder %v61, 512
      %vm64 = vmand %vm62, %vm63
      %65 = vst.msk [vmem:[#allocation2] sm:$0xf] %vm64, -inf
    $region41: #{point_encoder_forward.8} parent=1 // pred_fallthru
      _
    %v66 = vld [vmem:[%s0] sm:$0xff]
    %v67 = vld [vmem:[#allocation3] sm:$0xff]
    %v68 = vld [vmem:[#allocation3 + $0x8] sm:$0xff]
    %v69 = vld [vmem:[#allocation3 + $0x10] sm:$0xff]
    %v70 = vld [vmem:[#allocation3 + $0x18] sm:$0xff]
    %v71 = vld [vmem:[#allocation3 + $0x20] sm:$0xff]
    %v72 = vld [vmem:[#allocation3 + $0x28] sm:$0xff]
    %v73 = vld [vmem:[#allocation3 + $0x30] sm:$0xff]
    %v74 = vld [vmem:[#allocation3 + $0x38] sm:$0xff]
    %v75 = vld [vmem:[#allocation3 + $0x40] sm:$0xff]
    %v76 = vld [vmem:[#allocation3 + $0x48] sm:$0xff]
    %v77 = vld [vmem:[#allocation3 + $0x50] sm:$0xff]
    %v78 = vld [vmem:[#allocation3 + $0x58] sm:$0xff]
    %v79 = vld [vmem:[#allocation3 + $0x60] sm:$0xff]
    %v80 = vld [vmem:[#allocation3 + $0x68] sm:$0xff]
    %v81 = vld [vmem:[#allocation3 + $0x70] sm:$0xff]
    %v82 = vld [vmem:[#allocation3 + $0x78] sm:$0xff]
    %v83 = vld [vmem:[#allocation3 + $0x80] sm:$0xff]
    %v84 = vld [vmem:[#allocation3 + $0x88] sm:$0xff]
    %v85 = vld [vmem:[#allocation3 + $0x90] sm:$0xff]
    %v86 = vld [vmem:[#allocation3 + $0x98] sm:$0xff]
    %v87 = vld [vmem:[#allocation3 + $0xa0] sm:$0xff]
    %v88 = vld [vmem:[#allocation3 + $0xa8] sm:$0xff]
    %v89 = vld [vmem:[#allocation3 + $0xb0] sm:$0xff]
    %v90 = vld [vmem:[#allocation3 + $0xb8] sm:$0xff]
    %v91 = vld [vmem:[#allocation3 + $0xc0] sm:$0xff]
    %v92 = vld [vmem:[#allocation3 + $0xc8] sm:$0xff]
    %v93 = vld [vmem:[#allocation3 + $0xd0] sm:$0xff]
    %v94 = vld [vmem:[#allocation3 + $0xd8] sm:$0xff]
    %v95 = vld [vmem:[#allocation3 + $0xe0] sm:$0xff]
    %v96 = vld [vmem:[#allocation3 + $0xe8] sm:$0xff]
    %v97 = vld [vmem:[#allocation3 + $0xf0] sm:$0xff]
    %v98 = vld [vmem:[#allocation3 + $0xf8] sm:$0xff]
    %v99 = vld [vmem:[%s1] sm:$0xf]
    %v100 = vld [vmem:[%s3] sm:$0xf]
    %102 = vst [vmem:[#allocation1] ss:$4 sm:$0xff] %v100
    %v103 = vld.sshfl [vmem:[#allocation1] sm:$0xff pattern:$0x73625140]
    %v104 = vld.sshfl [vmem:[#allocation1 + $0x8] sm:$0xff pattern:$0x73625140]
    %vm105 = vcmask 23552
    %v107 = vsel %vm105, %v99, 0
    %vm109 = vcmask 1040384
    %vm110 = vcmask 1041408
    %v111 = vsel %vm109, 4294967295, 65535
    %v112 = vsel %vm110, %v111, 0
    %v113 = vand.u32 %v103, %v112
    %v115 = vand.u32 %v104, %v112
    %117 = vmatpush.bf16.msra.mxu0 0
    %118 = vmatpush.bf16.msra.mxu0 0
    %119 = vmatpush.bf16.msra.mxu0 0
    %120 = vmatpush.bf16.msra.mxu0 0
    %121 = vmatpush.bf16.msra.mxu0 0
    %122 = vmatpush.bf16.msra.mxu0 0
    %123 = vmatpush.bf16.msra.mxu0 0
    %124 = vmatpush.bf16.msra.mxu0 %v113
    %125 = vmatmul.bf16.gmra.mxu0 %v107
    %v126 = vpop.f32.mrf.mxu0
    %v127 = vadd.f32 0.0, %v126
    %v128 = vpop.f32.mrf.mxu0
    %129 = vdwg.mxu0
    %130 = vmatpush.bf16.msra.mxu0 0
    %131 = vmatpush.bf16.msra.mxu0 0
    %132 = vmatpush.bf16.msra.mxu0 0
    %133 = vmatpush.bf16.msra.mxu0 0
    %134 = vmatpush.bf16.msra.mxu0 0
    %135 = vmatpush.bf16.msra.mxu0 0
    %136 = vmatpush.bf16.msra.mxu0 0
    %137 = vmatpush.bf16.msra.mxu0 %v115
    %138 = vmatmul.bf16.gmra.mxu0 %v107
    %v139 = vpop.f32.mrf.mxu0
    %v140 = vadd.f32 0.0, %v139
    %v141 = vpop.f32.mrf.mxu0
    %142 = vdwg.mxu0
    %v144 = vunpack.c.l.b16 %v66
    %v145 = vunpack.c.h.b16 %v66
    %v146 = vpack.c.b16 %v144, %v144
    %v147 = vpack.c.b16 %v145, %v145
    %v182 = vunpack.c.l.b16 %v67
    %v183 = vunpack.c.h.b16 %v67
    %v184 = vunpack.c.l.b16 %v68
    %v185 = vunpack.c.h.b16 %v68
    %v186 = vunpack.c.l.b16 %v69
    %v187 = vunpack.c.h.b16 %v69
    %v188 = vunpack.c.l.b16 %v70
    %v189 = vunpack.c.h.b16 %v70
    %v190 = vunpack.c.l.b16 %v71
    %v191 = vunpack.c.h.b16 %v71
    %v192 = vunpack.c.l.b16 %v72
    %v193 = vunpack.c.h.b16 %v72
    %v194 = vunpack.c.l.b16 %v73
    %v195 = vunpack.c.h.b16 %v73
    %v196 = vunpack.c.l.b16 %v74
    %v197 = vunpack.c.h.b16 %v74
    %v198 = vunpack.c.l.b16 %v75
    %v199 = vunpack.c.h.b16 %v75
    %v200 = vunpack.c.l.b16 %v76
    %v201 = vunpack.c.h.b16 %v76
    %v202 = vunpack.c.l.b16 %v77
    %v203 = vunpack.c.h.b16 %v77
    %v204 = vunpack.c.l.b16 %v78
    %v205 = vunpack.c.h.b16 %v78
    %v206 = vunpack.c.l.b16 %v79
    %v207 = vunpack.c.h.b16 %v79
    %v208 = vunpack.c.l.b16 %v80
    %v209 = vunpack.c.h.b16 %v80
    %v210 = vunpack.c.l.b16 %v81
    %v211 = vunpack.c.h.b16 %v81
    %v212 = vunpack.c.l.b16 %v82
    %v213 = vunpack.c.h.b16 %v82
    %v214 = vunpack.c.l.b16 %v83
    %v215 = vunpack.c.h.b16 %v83
    %v216 = vunpack.c.l.b16 %v84
    %v217 = vunpack.c.h.b16 %v84
    %v218 = vunpack.c.l.b16 %v85
    %v219 = vunpack.c.h.b16 %v85
    %v220 = vunpack.c.l.b16 %v86
    %v221 = vunpack.c.h.b16 %v86
    %v222 = vunpack.c.l.b16 %v87
    %v223 = vunpack.c.h.b16 %v87
    %v224 = vunpack.c.l.b16 %v88
    %v225 = vunpack.c.h.b16 %v88
    %v226 = vunpack.c.l.b16 %v89
    %v227 = vunpack.c.h.b16 %v89
    %v228 = vunpack.c.l.b16 %v90
    %v229 = vunpack.c.h.b16 %v90
    %v230 = vunpack.c.l.b16 %v91
    %v231 = vunpack.c.h.b16 %v91
    %v232 = vunpack.c.l.b16 %v92
    %v233 = vunpack.c.h.b16 %v92
    %v234 = vunpack.c.l.b16 %v93
    %v235 = vunpack.c.h.b16 %v93
    %v236 = vunpack.c.l.b16 %v94
    %v237 = vunpack.c.h.b16 %v94
    %v238 = vunpack.c.l.b16 %v95
    %v239 = vunpack.c.h.b16 %v95
    %v240 = vunpack.c.l.b16 %v96
    %v241 = vunpack.c.h.b16 %v96
    %v242 = vunpack.c.l.b16 %v97
    %v243 = vunpack.c.h.b16 %v97
    %v244 = vunpack.c.l.b16 %v98
    %v245 = vunpack.c.h.b16 %v98
    %v246 = vpack.c.b16 %v184, %v182
    %v247 = vpack.c.b16 %v185, %v183
    %v248 = vpack.c.b16 %v188, %v186
    %v249 = vpack.c.b16 %v189, %v187
    %v250 = vpack.c.b16 %v192, %v190
    %v251 = vpack.c.b16 %v193, %v191
    %v252 = vpack.c.b16 %v196, %v194
    %v253 = vpack.c.b16 %v197, %v195
    %v254 = vpack.c.b16 %v200, %v198
    %v255 = vpack.c.b16 %v201, %v199
    %v256 = vpack.c.b16 %v204, %v202
    %v257 = vpack.c.b16 %v205, %v203
    %v258 = vpack.c.b16 %v208, %v206
    %v259 = vpack.c.b16 %v209, %v207
    %v260 = vpack.c.b16 %v212, %v210
    %v261 = vpack.c.b16 %v213, %v211
    %v262 = vpack.c.b16 %v216, %v214
    %v263 = vpack.c.b16 %v217, %v215
    %v264 = vpack.c.b16 %v220, %v218
    %v265 = vpack.c.b16 %v221, %v219
    %v266 = vpack.c.b16 %v224, %v222
    %v267 = vpack.c.b16 %v225, %v223
    %v268 = vpack.c.b16 %v228, %v226
    %v269 = vpack.c.b16 %v229, %v227
    %v270 = vpack.c.b16 %v232, %v230
    %v271 = vpack.c.b16 %v233, %v231
    %v272 = vpack.c.b16 %v236, %v234
    %v273 = vpack.c.b16 %v237, %v235
    %v274 = vpack.c.b16 %v240, %v238
    %v275 = vpack.c.b16 %v241, %v239
    %v276 = vpack.c.b16 %v244, %v242
    %v277 = vpack.c.b16 %v245, %v243
    %310 = vmatpush.bf16.msra.mxu0 %v260
    %311 = vmatpush.bf16.msra.mxu0 %v258
    %312 = vmatpush.bf16.msra.mxu0 %v256
    %313 = vmatpush.bf16.msra.mxu0 %v254
    %314 = vmatpush.bf16.msra.mxu0 %v252
    %315 = vmatpush.bf16.msra.mxu0 %v250
    %316 = vmatpush.bf16.msra.mxu0 %v248
    %317 = vmatpush.bf16.msra.mxu0 %v246
    %318 = vmatmul.bf16.gmra.mxu0 %v146
    %v319 = vpop.f32.mrf.mxu0
    %v320 = vadd.f32 %v127, %v319
    %v321 = vpop.f32.mrf.mxu0
    %322 = vdwg.mxu0
    %323 = vmatpush.bf16.msra.mxu0 %v276
    %324 = vmatpush.bf16.msra.mxu0 %v274
    %325 = vmatpush.bf16.msra.mxu0 %v272
    %326 = vmatpush.bf16.msra.mxu0 %v270
    %327 = vmatpush.bf16.msra.mxu0 %v268
    %328 = vmatpush.bf16.msra.mxu0 %v266
    %329 = vmatpush.bf16.msra.mxu0 %v264
    %330 = vmatpush.bf16.msra.mxu0 %v262
    %331 = vmatmul.bf16.gmra.mxu0 %v147
    %v332 = vpop.f32.mrf.mxu0
    %v333 = vadd.f32 %v320, %v332
    %v334 = vpop.f32.mrf.mxu0
    %335 = vdwg.mxu0
    %336 = vmatpush.bf16.msra.mxu0 %v261
    %337 = vmatpush.bf16.msra.mxu0 %v259
    %338 = vmatpush.bf16.msra.mxu0 %v257
    %339 = vmatpush.bf16.msra.mxu0 %v255
    %340 = vmatpush.bf16.msra.mxu0 %v253
    %341 = vmatpush.bf16.msra.mxu0 %v251
    %342 = vmatpush.bf16.msra.mxu0 %v249
    %343 = vmatpush.bf16.msra.mxu0 %v247
    %344 = vmatmul.bf16.gmra.mxu0 %v146
    %v345 = vpop.f32.mrf.mxu0
    %v346 = vadd.f32 %v140, %v345
    %v347 = vpop.f32.mrf.mxu0
    %348 = vdwg.mxu0
    %349 = vmatpush.bf16.msra.mxu0 %v277
    %350 = vmatpush.bf16.msra.mxu0 %v275
    %351 = vmatpush.bf16.msra.mxu0 %v273
    %352 = vmatpush.bf16.msra.mxu0 %v271
    %353 = vmatpush.bf16.msra.mxu0 %v269
    %354 = vmatpush.bf16.msra.mxu0 %v267
    %355 = vmatpush.bf16.msra.mxu0 %v265
    %356 = vmatpush.bf16.msra.mxu0 %v263
    %357 = vmatmul.bf16.gmra.mxu0 %v147
    %v358 = vpop.f32.mrf.mxu0
    %v359 = vadd.f32 %v346, %v358
    %v360 = vpop.f32.mrf.mxu0
    %361 = vdwg.mxu0
    %v362 = vld [vmem:[#allocation5] sm:$0x3]
    %v364 = vperm.slane %v362, 0
    %v365 = vperm.slane %v362, 1
    %v368 = vadd.f32 %v333, %v364
    %v369 = vadd.f32 %v359, %v365
    %v370 = vmax.f32 %v368, 0.0
    %v371 = vmax.f32 %v369, 0.0
    %v372 = vpack.c.bf16 %v370, %v370
    %v373 = vpack.c.bf16 %v371, %v371
    %v374 = vld [vmem:[%s5] sm:$0xff]
    %v375 = vld [vmem:[%s5 + $0x8] sm:$0xff]
    %v376 = vld [vmem:[%s5 + $0x10] sm:$0xff]
    %v377 = vld [vmem:[%s5 + $0x18] sm:$0xff]
    %v378 = vld [vmem:[%s5 + $0x20] sm:$0xff]
    %v379 = vld [vmem:[%s5 + $0x28] sm:$0xff]
    %v380 = vld [vmem:[%s5 + $0x30] sm:$0xff]
    %v381 = vld [vmem:[%s5 + $0x38] sm:$0xff]
    %v382 = vld [vmem:[%s5 + $0x40] sm:$0xff]
    %v383 = vld [vmem:[%s5 + $0x48] sm:$0xff]
    %v384 = vld [vmem:[%s5 + $0x50] sm:$0xff]
    %v385 = vld [vmem:[%s5 + $0x58] sm:$0xff]
    %v386 = vld [vmem:[%s5 + $0x60] sm:$0xff]
    %v387 = vld [vmem:[%s5 + $0x68] sm:$0xff]
    %v388 = vld [vmem:[%s5 + $0x70] sm:$0xff]
    %v389 = vld [vmem:[%s5 + $0x78] sm:$0xff]
    %v390 = vld [vmem:[%s5 + $0x80] sm:$0xff]
    %v391 = vld [vmem:[%s5 + $0x88] sm:$0xff]
    %v392 = vld [vmem:[%s5 + $0x90] sm:$0xff]
    %v393 = vld [vmem:[%s5 + $0x98] sm:$0xff]
    %v394 = vld [vmem:[%s5 + $0xa0] sm:$0xff]
    %v395 = vld [vmem:[%s5 + $0xa8] sm:$0xff]
    %v396 = vld [vmem:[%s5 + $0xb0] sm:$0xff]
    %v397 = vld [vmem:[%s5 + $0xb8] sm:$0xff]
    %v398 = vld [vmem:[%s5 + $0xc0] sm:$0xff]
    %v399 = vld [vmem:[%s5 + $0xc8] sm:$0xff]
    %v400 = vld [vmem:[%s5 + $0xd0] sm:$0xff]
    %v401 = vld [vmem:[%s5 + $0xd8] sm:$0xff]
    %v402 = vld [vmem:[%s5 + $0xe0] sm:$0xff]
    %v403 = vld [vmem:[%s5 + $0xe8] sm:$0xff]
    %v404 = vld [vmem:[%s5 + $0xf0] sm:$0xff]
    %v405 = vld [vmem:[%s5 + $0xf8] sm:$0xff]
    %v406 = vld [vmem:[%s5 + $0x100] sm:$0xff]
    %v407 = vld [vmem:[%s5 + $0x108] sm:$0xff]
    %v408 = vld [vmem:[%s5 + $0x110] sm:$0xff]
    %v409 = vld [vmem:[%s5 + $0x118] sm:$0xff]
    %v410 = vld [vmem:[%s5 + $0x120] sm:$0xff]
    %v411 = vld [vmem:[%s5 + $0x128] sm:$0xff]
    %v412 = vld [vmem:[%s5 + $0x130] sm:$0xff]
    %v413 = vld [vmem:[%s5 + $0x138] sm:$0xff]
    %v414 = vld [vmem:[%s5 + $0x140] sm:$0xff]
    %v415 = vld [vmem:[%s5 + $0x148] sm:$0xff]
    %v416 = vld [vmem:[%s5 + $0x150] sm:$0xff]
    %v417 = vld [vmem:[%s5 + $0x158] sm:$0xff]
    %v418 = vld [vmem:[%s5 + $0x160] sm:$0xff]
    %v419 = vld [vmem:[%s5 + $0x168] sm:$0xff]
    %v420 = vld [vmem:[%s5 + $0x170] sm:$0xff]
    %v421 = vld [vmem:[%s5 + $0x178] sm:$0xff]
    %v422 = vld [vmem:[%s5 + $0x180] sm:$0xff]
    %v423 = vld [vmem:[%s5 + $0x188] sm:$0xff]
    %v424 = vld [vmem:[%s5 + $0x190] sm:$0xff]
    %v425 = vld [vmem:[%s5 + $0x198] sm:$0xff]
    %v426 = vld [vmem:[%s5 + $0x1a0] sm:$0xff]
    %v427 = vld [vmem:[%s5 + $0x1a8] sm:$0xff]
    %v428 = vld [vmem:[%s5 + $0x1b0] sm:$0xff]
    %v429 = vld [vmem:[%s5 + $0x1b8] sm:$0xff]
    %v430 = vld [vmem:[%s5 + $0x1c0] sm:$0xff]
    %v431 = vld [vmem:[%s5 + $0x1c8] sm:$0xff]
    %v432 = vld [vmem:[%s5 + $0x1d0] sm:$0xff]
    %v433 = vld [vmem:[%s5 + $0x1d8] sm:$0xff]
    %v434 = vld [vmem:[%s5 + $0x1e0] sm:$0xff]
    %v435 = vld [vmem:[%s5 + $0x1e8] sm:$0xff]
    %v436 = vld [vmem:[%s5 + $0x1f0] sm:$0xff]
    %v437 = vld [vmem:[%s5 + $0x1f8] sm:$0xff]
    %v438 = vld [vmem:[%s6] sm:$0xf]
    %v440 = vperm.slane %v438, 0
    %v441 = vperm.slane %v438, 1
    %v442 = vperm.slane %v438, 2
    %v443 = vperm.slane %v438, 3
    %v512 = vunpack.c.l.b16 %v374
    %v513 = vunpack.c.h.b16 %v374
    %v514 = vunpack.c.l.b16 %v375
    %v515 = vunpack.c.h.b16 %v375
    %v516 = vunpack.c.l.b16 %v376
    %v517 = vunpack.c.h.b16 %v376
    %v518 = vunpack.c.l.b16 %v377
    %v519 = vunpack.c.h.b16 %v377
    %v520 = vunpack.c.l.b16 %v378
    %v521 = vunpack.c.h.b16 %v378
    %v522 = vunpack.c.l.b16 %v379
    %v523 = vunpack.c.h.b16 %v379
    %v524 = vunpack.c.l.b16 %v380
    %v525 = vunpack.c.h.b16 %v380
    %v526 = vunpack.c.l.b16 %v381
    %v527 = vunpack.c.h.b16 %v381
    %v528 = vunpack.c.l.b16 %v382
    %v529 = vunpack.c.h.b16 %v382
    %v530 = vunpack.c.l.b16 %v383
    %v531 = vunpack.c.h.b16 %v383
    %v532 = vunpack.c.l.b16 %v384
    %v533 = vunpack.c.h.b16 %v384
    %v534 = vunpack.c.l.b16 %v385
    %v535 = vunpack.c.h.b16 %v385
    %v536 = vunpack.c.l.b16 %v386
    %v537 = vunpack.c.h.b16 %v386
    %v538 = vunpack.c.l.b16 %v387
    %v539 = vunpack.c.h.b16 %v387
    %v540 = vunpack.c.l.b16 %v388
    %v541 = vunpack.c.h.b16 %v388
    %v542 = vunpack.c.l.b16 %v389
    %v543 = vunpack.c.h.b16 %v389
    %v544 = vunpack.c.l.b16 %v390
    %v545 = vunpack.c.h.b16 %v390
    %v546 = vunpack.c.l.b16 %v391
    %v547 = vunpack.c.h.b16 %v391
    %v548 = vunpack.c.l.b16 %v392
    %v549 = vunpack.c.h.b16 %v392
    %v550 = vunpack.c.l.b16 %v393
    %v551 = vunpack.c.h.b16 %v393
    %v552 = vunpack.c.l.b16 %v394
    %v553 = vunpack.c.h.b16 %v394
    %v554 = vunpack.c.l.b16 %v395
    %v555 = vunpack.c.h.b16 %v395
    %v556 = vunpack.c.l.b16 %v396
    %v557 = vunpack.c.h.b16 %v396
    %v558 = vunpack.c.l.b16 %v397
    %v559 = vunpack.c.h.b16 %v397
    %v560 = vunpack.c.l.b16 %v398
    %v561 = vunpack.c.h.b16 %v398
    %v562 = vunpack.c.l.b16 %v399
    %v563 = vunpack.c.h.b16 %v399
    %v564 = vunpack.c.l.b16 %v400
    %v565 = vunpack.c.h.b16 %v400
    %v566 = vunpack.c.l.b16 %v401
    %v567 = vunpack.c.h.b16 %v401
    %v568 = vunpack.c.l.b16 %v402
    %v569 = vunpack.c.h.b16 %v402
    %v570 = vunpack.c.l.b16 %v403
    %v571 = vunpack.c.h.b16 %v403
    %v572 = vunpack.c.l.b16 %v404
    %v573 = vunpack.c.h.b16 %v404
    %v574 = vunpack.c.l.b16 %v405
    %v575 = vunpack.c.h.b16 %v405
    %v576 = vunpack.c.l.b16 %v406
    %v577 = vunpack.c.h.b16 %v406
    %v578 = vunpack.c.l.b16 %v407
    %v579 = vunpack.c.h.b16 %v407
    %v580 = vunpack.c.l.b16 %v408
    %v581 = vunpack.c.h.b16 %v408
    %v582 = vunpack.c.l.b16 %v409
    %v583 = vunpack.c.h.b16 %v409
    %v584 = vunpack.c.l.b16 %v410
    %v585 = vunpack.c.h.b16 %v410
    %v586 = vunpack.c.l.b16 %v411
    %v587 = vunpack.c.h.b16 %v411
    %v588 = vunpack.c.l.b16 %v412
    %v589 = vunpack.c.h.b16 %v412
    %v590 = vunpack.c.l.b16 %v413
    %v591 = vunpack.c.h.b16 %v413
    %v592 = vunpack.c.l.b16 %v414
    %v593 = vunpack.c.h.b16 %v414
    %v594 = vunpack.c.l.b16 %v415
    %v595 = vunpack.c.h.b16 %v415
    %v596 = vunpack.c.l.b16 %v416
    %v597 = vunpack.c.h.b16 %v416
    %v598 = vunpack.c.l.b16 %v417
    %v599 = vunpack.c.h.b16 %v417
    %v600 = vunpack.c.l.b16 %v418
    %v601 = vunpack.c.h.b16 %v418
    %v602 = vunpack.c.l.b16 %v419
    %v603 = vunpack.c.h.b16 %v419
    %v604 = vunpack.c.l.b16 %v420
    %v605 = vunpack.c.h.b16 %v420
    %v606 = vunpack.c.l.b16 %v421
    %v607 = vunpack.c.h.b16 %v421
    %v608 = vunpack.c.l.b16 %v422
    %v609 = vunpack.c.h.b16 %v422
    %v610 = vunpack.c.l.b16 %v423
    %v611 = vunpack.c.h.b16 %v423
    %v612 = vunpack.c.l.b16 %v424
    %v613 = vunpack.c.h.b16 %v424
    %v614 = vunpack.c.l.b16 %v425
    %v615 = vunpack.c.h.b16 %v425
    %v616 = vunpack.c.l.b16 %v426
    %v617 = vunpack.c.h.b16 %v426
    %v618 = vunpack.c.l.b16 %v427
    %v619 = vunpack.c.h.b16 %v427
    %v620 = vunpack.c.l.b16 %v428
    %v621 = vunpack.c.h.b16 %v428
    %v622 = vunpack.c.l.b16 %v429
    %v623 = vunpack.c.h.b16 %v429
    %v624 = vunpack.c.l.b16 %v430
    %v625 = vunpack.c.h.b16 %v430
    %v626 = vunpack.c.l.b16 %v431
    %v627 = vunpack.c.h.b16 %v431
    %v628 = vunpack.c.l.b16 %v432
    %v629 = vunpack.c.h.b16 %v432
    %v630 = vunpack.c.l.b16 %v433
    %v631 = vunpack.c.h.b16 %v433
    %v632 = vunpack.c.l.b16 %v434
    %v633 = vunpack.c.h.b16 %v434
    %v634 = vunpack.c.l.b16 %v435
    %v635 = vunpack.c.h.b16 %v435
    %v636 = vunpack.c.l.b16 %v436
    %v637 = vunpack.c.h.b16 %v436
    %v638 = vunpack.c.l.b16 %v437
    %v639 = vunpack.c.h.b16 %v437
    %v640 = vpack.c.b16 %v516, %v512
    %v641 = vpack.c.b16 %v517, %v513
    %v642 = vpack.c.b16 %v518, %v514
    %v643 = vpack.c.b16 %v519, %v515
    %v644 = vpack.c.b16 %v524, %v520
    %v645 = vpack.c.b16 %v525, %v521
    %v646 = vpack.c.b16 %v526, %v522
    %v647 = vpack.c.b16 %v527, %v523
    %v648 = vpack.c.b16 %v532, %v528
    %v649 = vpack.c.b16 %v533, %v529
    %v650 = vpack.c.b16 %v534, %v530
    %v651 = vpack.c.b16 %v535, %v531
    %v652 = vpack.c.b16 %v540, %v536
    %v653 = vpack.c.b16 %v541, %v537
    %v654 = vpack.c.b16 %v542, %v538
    %v655 = vpack.c.b16 %v543, %v539
    %v656 = vpack.c.b16 %v548, %v544
    %v657 = vpack.c.b16 %v549, %v545
    %v658 = vpack.c.b16 %v550, %v546
    %v659 = vpack.c.b16 %v551, %v547
    %v660 = vpack.c.b16 %v556, %v552
    %v661 = vpack.c.b16 %v557, %v553
    %v662 = vpack.c.b16 %v558, %v554
    %v663 = vpack.c.b16 %v559, %v555
    %v664 = vpack.c.b16 %v564, %v560
    %v665 = vpack.c.b16 %v565, %v561
    %v666 = vpack.c.b16 %v566, %v562
    %v667 = vpack.c.b16 %v567, %v563
    %v668 = vpack.c.b16 %v572, %v568
    %v669 = vpack.c.b16 %v573, %v569
    %v670 = vpack.c.b16 %v574, %v570
    %v671 = vpack.c.b16 %v575, %v571
    %v672 = vpack.c.b16 %v580, %v576
    %v673 = vpack.c.b16 %v581, %v577
    %v674 = vpack.c.b16 %v582, %v578
    %v675 = vpack.c.b16 %v583, %v579
    %v676 = vpack.c.b16 %v588, %v584
    %v677 = vpack.c.b16 %v589, %v585
    %v678 = vpack.c.b16 %v590, %v586
    %v679 = vpack.c.b16 %v591, %v587
    %v680 = vpack.c.b16 %v596, %v592
    %v681 = vpack.c.b16 %v597, %v593
    %v682 = vpack.c.b16 %v598, %v594
    %v683 = vpack.c.b16 %v599, %v595
    %v684 = vpack.c.b16 %v604, %v600
    %v685 = vpack.c.b16 %v605, %v601
    %v686 = vpack.c.b16 %v606, %v602
    %v687 = vpack.c.b16 %v607, %v603
    %v688 = vpack.c.b16 %v612, %v608
    %v689 = vpack.c.b16 %v613, %v609
    %v690 = vpack.c.b16 %v614, %v610
    %v691 = vpack.c.b16 %v615, %v611
    %v692 = vpack.c.b16 %v620, %v616
    %v693 = vpack.c.b16 %v621, %v617
    %v694 = vpack.c.b16 %v622, %v618
    %v695 = vpack.c.b16 %v623, %v619
    %v696 = vpack.c.b16 %v628, %v624
    %v697 = vpack.c.b16 %v629, %v625
    %v698 = vpack.c.b16 %v630, %v626
    %v699 = vpack.c.b16 %v631, %v627
    %v700 = vpack.c.b16 %v636, %v632
    %v701 = vpack.c.b16 %v637, %v633
    %v702 = vpack.c.b16 %v638, %v634
    %v703 = vpack.c.b16 %v639, %v635
    %768 = vmatpush.bf16.msra.mxu0 %v668
    %769 = vmatpush.bf16.msra.mxu0 %v664
    %770 = vmatpush.bf16.msra.mxu0 %v660
    %771 = vmatpush.bf16.msra.mxu0 %v656
    %772 = vmatpush.bf16.msra.mxu0 %v652
    %773 = vmatpush.bf16.msra.mxu0 %v648
    %774 = vmatpush.bf16.msra.mxu0 %v644
    %775 = vmatpush.bf16.msra.mxu0 %v640
    %776 = vmatmul.bf16.gmra.mxu0 %v372
    %v777 = vpop.f32.mrf.mxu0
    %v778 = vadd.f32 %v440, %v777
    %v779 = vpop.f32.mrf.mxu0
    %780 = vdwg.mxu0
    %781 = vmatpush.bf16.msra.mxu0 %v700
    %782 = vmatpush.bf16.msra.mxu0 %v696
    %783 = vmatpush.bf16.msra.mxu0 %v692
    %784 = vmatpush.bf16.msra.mxu0 %v688
    %785 = vmatpush.bf16.msra.mxu0 %v684
    %786 = vmatpush.bf16.msra.mxu0 %v680
    %787 = vmatpush.bf16.msra.mxu0 %v676
    %788 = vmatpush.bf16.msra.mxu0 %v672
    %789 = vmatmul.bf16.gmra.mxu0 %v373
    %v790 = vpop.f32.mrf.mxu0
    %v791 = vadd.f32 %v778, %v790
    %v792 = vpop.f32.mrf.mxu0
    %793 = vdwg.mxu0
    %794 = vmatpush.bf16.msra.mxu0 %v669
    %795 = vmatpush.bf16.msra.mxu0 %v665
    %796 = vmatpush.bf16.msra.mxu0 %v661
    %797 = vmatpush.bf16.msra.mxu0 %v657
    %798 = vmatpush.bf16.msra.mxu0 %v653
    %799 = vmatpush.bf16.msra.mxu0 %v649
    %800 = vmatpush.bf16.msra.mxu0 %v645
    %801 = vmatpush.bf16.msra.mxu0 %v641
    %802 = vmatmul.bf16.gmra.mxu0 %v372
    %v803 = vpop.f32.mrf.mxu0
    %v804 = vadd.f32 %v441, %v803
    %v805 = vpop.f32.mrf.mxu0
    %806 = vdwg.mxu0
    %807 = vmatpush.bf16.msra.mxu0 %v701
    %808 = vmatpush.bf16.msra.mxu0 %v697
    %809 = vmatpush.bf16.msra.mxu0 %v693
    %810 = vmatpush.bf16.msra.mxu0 %v689
    %811 = vmatpush.bf16.msra.mxu0 %v685
    %812 = vmatpush.bf16.msra.mxu0 %v681
    %813 = vmatpush.bf16.msra.mxu0 %v677
    %814 = vmatpush.bf16.msra.mxu0 %v673
    %815 = vmatmul.bf16.gmra.mxu0 %v373
    %v816 = vpop.f32.mrf.mxu0
    %v817 = vadd.f32 %v804, %v816
    %v818 = vpop.f32.mrf.mxu0
    %819 = vdwg.mxu0
    %820 = vmatpush.bf16.msra.mxu0 %v670
    %821 = vmatpush.bf16.msra.mxu0 %v666
    %822 = vmatpush.bf16.msra.mxu0 %v662
    %823 = vmatpush.bf16.msra.mxu0 %v658
    %824 = vmatpush.bf16.msra.mxu0 %v654
    %825 = vmatpush.bf16.msra.mxu0 %v650
    %826 = vmatpush.bf16.msra.mxu0 %v646
    %827 = vmatpush.bf16.msra.mxu0 %v642
    %828 = vmatmul.bf16.gmra.mxu0 %v372
    %v829 = vpop.f32.mrf.mxu0
    %v830 = vadd.f32 %v442, %v829
    %v831 = vpop.f32.mrf.mxu0
    %832 = vdwg.mxu0
    %833 = vmatpush.bf16.msra.mxu0 %v702
    %834 = vmatpush.bf16.msra.mxu0 %v698
    %835 = vmatpush.bf16.msra.mxu0 %v694
    %836 = vmatpush.bf16.msra.mxu0 %v690
    %837 = vmatpush.bf16.msra.mxu0 %v686
    %838 = vmatpush.bf16.msra.mxu0 %v682
    %839 = vmatpush.bf16.msra.mxu0 %v678
    %840 = vmatpush.bf16.msra.mxu0 %v674
    %841 = vmatmul.bf16.gmra.mxu0 %v373
    %v842 = vpop.f32.mrf.mxu0
    %v843 = vadd.f32 %v830, %v842
    %v844 = vpop.f32.mrf.mxu0
    %845 = vdwg.mxu0
    %846 = vmatpush.bf16.msra.mxu0 %v671
    %847 = vmatpush.bf16.msra.mxu0 %v667
    %848 = vmatpush.bf16.msra.mxu0 %v663
    %849 = vmatpush.bf16.msra.mxu0 %v659
    %850 = vmatpush.bf16.msra.mxu0 %v655
    %851 = vmatpush.bf16.msra.mxu0 %v651
    %852 = vmatpush.bf16.msra.mxu0 %v647
    %853 = vmatpush.bf16.msra.mxu0 %v643
    %854 = vmatmul.bf16.gmra.mxu0 %v372
    %v855 = vpop.f32.mrf.mxu0
    %v856 = vadd.f32 %v443, %v855
    %v857 = vpop.f32.mrf.mxu0
    %858 = vdwg.mxu0
    %859 = vmatpush.bf16.msra.mxu0 %v703
    %860 = vmatpush.bf16.msra.mxu0 %v699
    %861 = vmatpush.bf16.msra.mxu0 %v695
    %862 = vmatpush.bf16.msra.mxu0 %v691
    %863 = vmatpush.bf16.msra.mxu0 %v687
    %864 = vmatpush.bf16.msra.mxu0 %v683
    %865 = vmatpush.bf16.msra.mxu0 %v679
    %866 = vmatpush.bf16.msra.mxu0 %v675
    %867 = vmatmul.bf16.gmra.mxu0 %v373
    %v868 = vpop.f32.mrf.mxu0
    %v869 = vadd.f32 %v856, %v868
    %v870 = vpop.f32.mrf.mxu0
    %871 = vdwg.mxu0
    %s872 = smul.u32 0, 8
    %v873 = vlaneseq
    %v874 = vshrl.u32 %v873, 7
    %v875 = vstv %s872
    %v876 = vadd.s32 %v875, %v874
    %vm877 = vcmp.lt.s32.totalorder %v876, 8
    %v878 = vsel %vm877, 1, 0
    %vm879 = vcmp.eq.s32.totalorder %v878, 1
    %v880 = vsel %vm879, %v791, -inf
    %v881 = vsel %vm879, %v817, -inf
    %v882 = vsel %vm879, %v843, -inf
    %v883 = vsel %vm879, %v869, -inf
    %v884 = vld [vmem:[#allocation2] sm:$0xf]
    %v885 = vrot.slane %v880, 4
    %v886 = vmax.f32 %v880, %v885
    %v887 = vrot.slane %v886, 2
    %v888 = vmax.f32 %v886, %v887
    %v889 = vrot.slane %v888, 1
    %v890 = vmax.f32 %v888, %v889
    %v891 = vrot.slane %v881, 4
    %v892 = vmax.f32 %v881, %v891
    %v893 = vrot.slane %v892, 2
    %v894 = vmax.f32 %v892, %v893
    %v895 = vrot.slane %v894, 1
    %v896 = vmax.f32 %v894, %v895
    %v897 = vrot.slane %v882, 4
    %v898 = vmax.f32 %v882, %v897
    %v899 = vrot.slane %v898, 2
    %v900 = vmax.f32 %v898, %v899
    %v901 = vrot.slane %v900, 1
    %v902 = vmax.f32 %v900, %v901
    %v903 = vrot.slane %v883, 4
    %v904 = vmax.f32 %v883, %v903
    %v905 = vrot.slane %v904, 2
    %v906 = vmax.f32 %v904, %v905
    %v907 = vrot.slane %v906, 1
    %v908 = vmax.f32 %v906, %v907
    %v913 = vrot.slane %v896, 7
    %v914 = vrot.slane %v902, 6
    %v915 = vrot.slane %v908, 5
    %v916 = vsel %vm109, %v890, %v913
    %vm917 = vcmask 1042434
    %v918 = vsel %vm917, %v914, %v915
    %v919 = vsel %vm110, %v916, %v918
    %v921 = vmax.f32 %v884, %v919
    %v922 = vlaneseq
    %vm923 = vcmp.ge.s32.totalorder %v922, 0
    %vm924 = vcmp.lt.s32.totalorder %v922, 512
    %vm925 = vmand %vm923, %vm924
    %926 = vst.msk [vmem:[#allocation2] sm:$0xf] %vm925, %v921
    // Predicated region
    $region42: #{point_encoder_forward.8} parent=1 // pred_check
      %p927 = pneg %p57
    $region43: #{point_encoder_forward.8} parent=1 // pred_check_branch
      %929 = sbr.rel (%p927) target = $region45
    $region44: #{point_encoder_forward.8} parent=1 // pred_region
      %v930 = vld [vmem:[#allocation2] sm:$0xf]
      %931 = vst.msk [vmem:[%s7] sm:$0xf] %vm925, %v930
    $region45: #{point_encoder_forward.8} parent=1 // pred_fallthru
      _
    // Predicated region
    $region46: #{point_encoder_forward.8} parent=1 // pred_check
      _
    $region47: #{point_encoder_forward.8} parent=1 // pred_check_branch
      %933 = sbr.rel (0) target = $region49
    $region48: #{point_encoder_forward.8} parent=1 // pred_region
      _
    $region49: #{point_encoder_forward.8} parent=1 // pred_fallthru
      _
    // Predicated region
    $region50: #{point_encoder_forward.8} parent=1 // pred_check
      _
    $region51: #{point_encoder_forward.8} parent=1 // pred_check_branch
      %935 = sbr.rel (0) target = $region53
    $region52: #{point_encoder_forward.8} parent=1 // pred_region
      _
    $region53: #{point_encoder_forward.8} parent=1 // pred_fallthru
      _
    %936 = vsyncpa [#allocation4], 1
    %937 = vsyncpa [#allocation6], 1

// kernel: point_encoder_forward.10
$region0: #{point_encoder_forward.10}
  #allocation0 [shape = 'u32[]', space=smem, size = 0x4, offset = 0x4, fixed_abs, tag = 'smem constant byte address 0x4 - core index']
  #allocation1 [shape = 'u32[72,128]{1,0:T(1,128)}', space=vmem, size = 0x9000, scoped, tag = 'internal scratch']
  %s0 = inlined_call_operand.vmem [shape: bf16[3,16,256], index: 0, kind: input, shape index: {}]
  %s1 = inlined_call_operand.vmem [shape: f32[16,3], index: 1, kind: input, shape index: {}]
  %s2 = inlined_call_operand.vmem [shape: bf16[16,128], index: 2, kind: input, shape index: {}]
  %s3 = inlined_call_operand.vmem [shape: bf16[256,256], index: 3, kind: input, shape index: {}]
  %s4 = inlined_call_operand.vmem [shape: bf16[128,256], index: 4, kind: input, shape index: {}]
  %s5 = inlined_call_operand.vmem [shape: f32[1,256], index: 5, kind: input, shape index: {}]
  %s6 = inlined_call_operand.vmem [shape: bf16[256,128], index: 6, kind: input, shape index: {}]
  %s7 = inlined_call_operand.vmem [shape: f32[1,128], index: 7, kind: input, shape index: {}]
  %s8 = inlined_call_operand.vmem [shape: f32[16,128], index: 8, kind: output, shape index: {}]
  %s9 = sld [smem:[#allocation0]]
  $region103: #{point_encoder_forward.10} parent=0
    _
  %s11 = ssub.s32 1, %s9
  %s12 = scalar_select 0, %s11, %s9
  $region1: #{point_encoder_forward.10} parent=0
    #allocation2 [shape = 'u8[24576]{0}', space=vmem, size = 0x6000, scoped, tag = 'input window, operand 0']
    loop: start=0, step=1, limit=4
    $region2: #{point_encoder_forward.10} parent=1 // loop_pre_header
      _
    $region3: #{point_encoder_forward.10} parent=1 // loop_header
      %s14 = sphi 0, %s18
      %p15 = scmp.ge.s32.totalorder %s14, 4
      %s24 = sphi 0, %s26
      %s27 = sphi 0, %s24
      %s28 = sphi 0, %s27
      %s44 = sphi 0, %s28
      %s50 = sphi 0, %s52
      %s53 = sphi 0, %s50
      %s54 = sphi 0, %s53
      %s70 = sphi 0, %s54
      %s76 = sphi 0, %s78
      %s79 = sphi 0, %s76
      %s80 = sphi 0, %s79
      %s96 = sphi 0, %s80
      %s100 = sphi 0, %s100
      %s102 = sphi 0, %s100
      %s103 = sphi 0, %s102
      %s117 = sphi 0, %s103
      %s121 = sphi 0, %s121
      %s123 = sphi 0, %s121
      %s124 = sphi 0, %s123
      %s138 = sphi 0, %s124
      %s142 = sphi 0, %s142
      %s144 = sphi 0, %s142
      %s145 = sphi 0, %s144
      %s159 = sphi 0, %s145
      %s163 = sphi 0, %s163
      %s165 = sphi 0, %s163
      %s166 = sphi 0, %s165
      %s180 = sphi 0, %s166
      %s184 = sphi 0, %s184
      %s186 = sphi 0, %s184
      %s187 = sphi 0, %s186
      %s201 = sphi 0, %s187
      %s207 = sphi 0, %s209
      %s210 = sphi 0, %s207
      %s211 = sphi 0, %s210
      %s227 = sphi 0, %s211
    $region4: #{point_encoder_forward.10} parent=1 // loop_header_branch
      %17 = sbr.rel (%p15) target = $region8
    $region5: #{point_encoder_forward.10} parent=1 // loop_body
      %s19 = ssub.s32 %s14, 1
      %s20 = ssub.s32 %s14, 2
      %s21 = sadd.s32 %s14, 1
      %s22 = ssub.s32 %s14, %s21
      %p23 = scmp.eq.s32.totalorder %s22, 0
      %s25 = sadd.s32 %s24, 1
      %s26 = scalar_select %p23, %s24, %s25
      %p29 = pneg %p23
      %p30 = scmp.eq.s32.totalorder %s14, 1
      %p31 = por %p29, %p30
      %p32 = scmp.ne.s32.totalorder %s24, %s27
      %p33 = scmp.eq.s32.totalorder %s14, 0
      %p34 = por %p32, %p33
      %p35 = scmp.ne.s32.totalorder %s24, %s27
      %p36 = scmp.eq.s32.totalorder %s19, 1
      %p37 = por %p35, %p36
      %p38 = scmp.ne.s32.totalorder %s27, %s28
      %p39 = scmp.eq.s32.totalorder %s19, 0
      %p40 = por %p38, %p39
      %p41 = scmp.ne.s32.totalorder %s27, %s28
      %p42 = scmp.eq.s32.totalorder %s20, 1
      %p43 = por %p41, %p42
      %p45 = scmp.ne.s32.totalorder %s28, %s44
      %p46 = scmp.eq.s32.totalorder %s20, 0
      %p47 = por %p45, %p46
      %s48 = ssub.s32 %s14, %s21
      %p49 = scmp.eq.s32.totalorder %s48, 0
      %s51 = sadd.s32 %s50, 1
      %s52 = scalar_select %p49, %s50, %s51
      %p55 = pneg %p49
      %p56 = scmp.eq.s32.totalorder %s14, 1
      %p57 = por %p55, %p56
      %p58 = scmp.ne.s32.totalorder %s50, %s53
      %p59 = scmp.eq.s32.totalorder %s14, 0
      %p60 = por %p58, %p59
      %p61 = scmp.ne.s32.totalorder %s50, %s53
      %p62 = scmp.eq.s32.totalorder %s19, 1
      %p63 = por %p61, %p62
      %p64 = scmp.ne.s32.totalorder %s53, %s54
      %p65 = scmp.eq.s32.totalorder %s19, 0
      %p66 = por %p64, %p65
      %p67 = scmp.ne.s32.totalorder %s53, %s54
      %p68 = scmp.eq.s32.totalorder %s20, 1
      %p69 = por %p67, %p68
      %p71 = scmp.ne.s32.totalorder %s54, %s70
      %p72 = scmp.eq.s32.totalorder %s20, 0
      %p73 = por %p71, %p72
      %s74 = ssub.s32 %s14, %s21
      %p75 = scmp.eq.s32.totalorder %s74, 0
      %s77 = sadd.s32 %s76, 1
      %s78 = scalar_select %p75, %s76, %s77
      %p81 = pneg %p75
      %p82 = scmp.eq.s32.totalorder %s14, 1
      %p83 = por %p81, %p82
      %p84 = scmp.ne.s32.totalorder %s76, %s79
      %p85 = scmp.eq.s32.totalorder %s14, 0
      %p86 = por %p84, %p85
      %p87 = scmp.ne.s32.totalorder %s76, %s79
      %p88 = scmp.eq.s32.totalorder %s19, 1
      %p89 = por %p87, %p88
      %p90 = scmp.ne.s32.totalorder %s79, %s80
      %p91 = scmp.eq.s32.totalorder %s19, 0
      %p92 = por %p90, %p91
      %p93 = scmp.ne.s32.totalorder %s79, %s80
      %p94 = scmp.eq.s32.totalorder %s20, 1
      %p95 = por %p93, %p94
      %p97 = scmp.ne.s32.totalorder %s80, %s96
      %p98 = scmp.eq.s32.totalorder %s20, 0
      %p99 = por %p97, %p98
      %s101 = sadd.s32 %s100, 1
      %p104 = scmp.eq.s32.totalorder %s14, 1
      %p105 = scmp.ne.s32.totalorder %s100, %s102
      %p106 = scmp.eq.s32.totalorder %s14, 0
      %p107 = por %p105, %p106
      %p108 = scmp.ne.s32.totalorder %s100, %s102
      %p109 = scmp.eq.s32.totalorder %s19, 1
      %p110 = por %p108, %p109
      %p111 = scmp.ne.s32.totalorder %s102, %s103
      %p112 = scmp.eq.s32.totalorder %s19, 0
      %p113 = por %p111, %p112
      %p114 = scmp.ne.s32.totalorder %s102, %s103
      %p115 = scmp.eq.s32.totalorder %s20, 1
      %p116 = por %p114, %p115
      %p118 = scmp.ne.s32.totalorder %s103, %s117
      %p119 = scmp.eq.s32.totalorder %s20, 0
      %p120 = por %p118, %p119
      %s122 = sadd.s32 %s121, 1
      %p125 = scmp.eq.s32.totalorder %s14, 1
      %p126 = scmp.ne.s32.totalorder %s121, %s123
      %p127 = scmp.eq.s32.totalorder %s14, 0
      %p128 = por %p126, %p127
      %p129 = scmp.ne.s32.totalorder %s121, %s123
      %p130 = scmp.eq.s32.totalorder %s19, 1
      %p131 = por %p129, %p130
      %p132 = scmp.ne.s32.totalorder %s123, %s124
      %p133 = scmp.eq.s32.totalorder %s19, 0
      %p134 = por %p132, %p133
      %p135 = scmp.ne.s32.totalorder %s123, %s124
      %p136 = scmp.eq.s32.totalorder %s20, 1
      %p137 = por %p135, %p136
      %p139 = scmp.ne.s32.totalorder %s124, %s138
      %p140 = scmp.eq.s32.totalorder %s20, 0
      %p141 = por %p139, %p140
      %s143 = sadd.s32 %s142, 1
      %p146 = scmp.eq.s32.totalorder %s14, 1
      %p147 = scmp.ne.s32.totalorder %s142, %s144
      %p148 = scmp.eq.s32.totalorder %s14, 0
      %p149 = por %p147, %p148
      %p150 = scmp.ne.s32.totalorder %s142, %s144
      %p151 = scmp.eq.s32.totalorder %s19, 1
      %p152 = por %p150, %p151
      %p153 = scmp.ne.s32.totalorder %s144, %s145
      %p154 = scmp.eq.s32.totalorder %s19, 0
      %p155 = por %p153, %p154
      %p156 = scmp.ne.s32.totalorder %s144, %s145
      %p157 = scmp.eq.s32.totalorder %s20, 1
      %p158 = por %p156, %p157
      %p160 = scmp.ne.s32.totalorder %s145, %s159
      %p161 = scmp.eq.s32.totalorder %s20, 0
      %p162 = por %p160, %p161
      %s164 = sadd.s32 %s163, 1
      %p167 = scmp.eq.s32.totalorder %s14, 1
      %p168 = scmp.ne.s32.totalorder %s163, %s165
      %p169 = scmp.eq.s32.totalorder %s14, 0
      %p170 = por %p168, %p169
      %p171 = scmp.ne.s32.totalorder %s163, %s165
      %p172 = scmp.eq.s32.totalorder %s19, 1
      %p173 = por %p171, %p172
      %p174 = scmp.ne.s32.totalorder %s165, %s166
      %p175 = scmp.eq.s32.totalorder %s19, 0
      %p176 = por %p174, %p175
      %p177 = scmp.ne.s32.totalorder %s165, %s166
      %p178 = scmp.eq.s32.totalorder %s20, 1
      %p179 = por %p177, %p178
      %p181 = scmp.ne.s32.totalorder %s166, %s180
      %p182 = scmp.eq.s32.totalorder %s20, 0
      %p183 = por %p181, %p182
      %s185 = sadd.s32 %s184, 1
      %p188 = scmp.eq.s32.totalorder %s14, 1
      %p189 = scmp.ne.s32.totalorder %s184, %s186
      %p190 = scmp.eq.s32.totalorder %s14, 0
      %p191 = por %p189, %p190
      %p192 = scmp.ne.s32.totalorder %s184, %s186
      %p193 = scmp.eq.s32.totalorder %s19, 1
      %p194 = por %p192, %p193
      %p195 = scmp.ne.s32.totalorder %s186, %s187
      %p196 = scmp.eq.s32.totalorder %s19, 0
      %p197 = por %p195, %p196
      %p198 = scmp.ne.s32.totalorder %s186, %s187
      %p199 = scmp.eq.s32.totalorder %s20, 1
      %p200 = por %p198, %p199
      %p202 = scmp.ne.s32.totalorder %s187, %s201
      %p203 = scmp.eq.s32.totalorder %s20, 0
      %p204 = por %p202, %p203
      %s205 = ssub.s32 %s14, %s21
      %p206 = scmp.eq.s32.totalorder %s205, 0
      %s208 = sadd.s32 %s207, 1
      %s209 = scalar_select %p206, %s207, %s208
      %p212 = pneg %p206
      %p213 = scmp.eq.s32.totalorder %s14, 1
      %p214 = por %p212, %p213
      %p215 = scmp.ne.s32.totalorder %s207, %s210
      %p216 = scmp.eq.s32.totalorder %s14, 0
      %p217 = por %p215, %p216
      %p218 = scmp.ne.s32.totalorder %s207, %s210
      %p219 = scmp.eq.s32.totalorder %s19, 1
      %p220 = por %p218, %p219
      %p221 = scmp.ne.s32.totalorder %s210, %s211
      %p222 = scmp.eq.s32.totalorder %s19, 0
      %p223 = por %p221, %p222
      %p224 = scmp.ne.s32.totalorder %s210, %s211
      %p225 = scmp.eq.s32.totalorder %s20, 1
      %p226 = por %p224, %p225
      %p228 = scmp.ne.s32.totalorder %s211, %s227
      %p229 = scmp.eq.s32.totalorder %s20, 0
      %p230 = por %p228, %p229
      %p231 = scmp.le.s32.totalorder 1, %s14
      %p232 = scmp.lt.s32.totalorder %s14, 3
      %p233 = pnand %p231, %p232
      %p234 = pneg %p233
      // Predicated region
      $region9: #{point_encoder_forward.10} parent=5 // pred_check
        _
      $region10: #{point_encoder_forward.10} parent=5 // pred_check_branch
        %236 = sbr.rel (%p233) target = $region12
      $region11: #{point_encoder_forward.10} parent=5 // pred_region
        %s237 = ssub.s32 %s14, 1
        // Predicated region
        $region13: #{point_encoder_forward.10} parent=11 // pred_check
          %p238 = pneg %p113
        $region14: #{point_encoder_forward.10} parent=11 // pred_check_branch
          %240 = sbr.rel (%p238) target = $region16
        $region15: #{point_encoder_forward.10} parent=11 // pred_region
          _
        $region16: #{point_encoder_forward.10} parent=11 // pred_fallthru
          _
        // Predicated region
        $region17: #{point_encoder_forward.10} parent=11 // pred_check
          %p241 = pneg %p134
        $region18: #{point_encoder_forward.10} parent=11 // pred_check_branch
          %243 = sbr.rel (%p241) target = $region20
        $region19: #{point_encoder_forward.10} parent=11 // pred_region
          _
        $region20: #{point_encoder_forward.10} parent=11 // pred_fallthru
          _
        // Predicated region
        $region21: #{point_encoder_forward.10} parent=11 // pred_check
          %p244 = pneg %p155
        $region22: #{point_encoder_forward.10} parent=11 // pred_check_branch
          %246 = sbr.rel (%p244) target = $region24
        $region23: #{point_encoder_forward.10} parent=11 // pred_region
          _
        $region24: #{point_encoder_forward.10} parent=11 // pred_fallthru
          _
        // Predicated region
        $region25: #{point_encoder_forward.10} parent=11 // pred_check
          %p247 = pneg %p176
        $region26: #{point_encoder_forward.10} parent=11 // pred_check_branch
          %249 = sbr.rel (%p247) target = $region28
        $region27: #{point_encoder_forward.10} parent=11 // pred_region
          _
        $region28: #{point_encoder_forward.10} parent=11 // pred_fallthru
          _
        // Predicated region
        $region29: #{point_encoder_forward.10} parent=11 // pred_check
          %p250 = pneg %p197
        $region30: #{point_encoder_forward.10} parent=11 // pred_check_branch
          %252 = sbr.rel (%p250) target = $region32
        $region31: #{point_encoder_forward.10} parent=11 // pred_region
          _
        $region32: #{point_encoder_forward.10} parent=11 // pred_fallthru
          _
      $region12: #{point_encoder_forward.10} parent=5 // pred_fallthru
        _
      %p253 = scmp.lt.s32.totalorder %s14, 2
      // Predicated region
      $region33: #{point_encoder_forward.10} parent=5 // pred_check
        %p254 = pneg %p253
      $region34: #{point_encoder_forward.10} parent=5 // pred_check_branch
        %256 = sbr.rel (%p254) target = $region36
      $region35: #{point_encoder_forward.10} parent=5 // pred_region
        // Predicated region
        $region37: #{point_encoder_forward.10} parent=35 // pred_check
          %p257 = pneg %p34
        $region38: #{point_encoder_forward.10} parent=35 // pred_check_branch
          %259 = sbr.rel (%p257) target = $region40
        $region39: #{point_encoder_forward.10} parent=35 // pred_region
          %s260 = sand.u32 %s24, 1
          %s261 = sand.u32 %s24, 1
          %s262 = smul.addr %s261, 24
          %s263 = scalar_lea.vmem [#allocation2], %s262
          %s264 = smul.addr %s14, 2
          %s265 = smul.addr %s264, 4
          %s266 = scalar_lea.vmem %s0, %s265
          // Predicated region
          $region41: #{point_encoder_forward.10} parent=39 // pred_check
            _
          $region42: #{point_encoder_forward.10} parent=39 // pred_check_branch
            %268 = sbr.rel (0) target = $region44
          $region43: #{point_encoder_forward.10} parent=39 // pred_region
            // Predicated region
            $region45: #{point_encoder_forward.10} parent=43 // pred_check
              _
            $region46: #{point_encoder_forward.10} parent=43 // pred_check_branch
              %270 = sbr.rel (0) target = $region48
            $region47: #{point_encoder_forward.10} parent=43 // pred_region
              // Predicated region
              $region60: #{point_encoder_forward.10} parent=47 // pred_check
                _
              $region61: #{point_encoder_forward.10} parent=47 // pred_check_branch
                %290 = sbr.rel (0) target = $region63
              $region62: #{point_encoder_forward.10} parent=47 // pred_region
                loop: start=0, step=1, limit=1
                $region64: #{point_encoder_forward.10} parent=62 // loop_pre_header
                  _
                $region65: #{point_encoder_forward.10} parent=62 // loop_header
                  %s292 = sphi 0, %s296
                  %p293 = scmp.ge.s32.totalorder %s292, 1
                  %s297 = sphi %s266, %s266
                  %s298 = sphi %s263, %s263
                $region66: #{point_encoder_forward.10} parent=62 // loop_header_branch
                  %295 = sbr.rel (%p293) target = $region70
                $region67: #{point_encoder_forward.10} parent=62 // loop_body
                  %v299 = vld [vmem:[%s297] sm:$0xff]
                  %300 = vst [vmem:[%s298] sm:$0xff] %v299
                  %v301 = vld [vmem:[%s297 + $0x10] sm:$0xff]
                  %302 = vst [vmem:[%s298 + $0x8] sm:$0xff] %v301
                  %v303 = vld [vmem:[%s297 + $0x20] sm:$0xff]
                  %304 = vst [vmem:[%s298 + $0x10] sm:$0xff] %v303
                $region68: #{point_encoder_forward.10} parent=62 // loop_footer
                  %s296 = sadd.s32 1, %s292
                $region69: #{point_encoder_forward.10} parent=62 // loop_footer_branch
                  %291 = sbr.rel target = $region65
                $region70: #{point_encoder_forward.10} parent=62 // loop_exit
                  _
              $region63: #{point_encoder_forward.10} parent=47 // pred_fallthru
                _
              // Predicated region
              $region71: #{point_encoder_forward.10} parent=47 // pred_check
                _
              $region72: #{point_encoder_forward.10} parent=47 // pred_check_branch
                %306 = sbr.rel target = $region74
              $region73: #{point_encoder_forward.10} parent=47 // pred_region
                _
              $region74: #{point_encoder_forward.10} parent=47 // pred_fallthru
                _
            $region48: #{point_encoder_forward.10} parent=43 // pred_fallthru
              _
            // Predicated region
            $region49: #{point_encoder_forward.10} parent=43 // pred_check
              _
            $region50: #{point_encoder_forward.10} parent=43 // pred_check_branch
              %272 = sbr.rel target = $region52
            $region51: #{point_encoder_forward.10} parent=43 // pred_region
              %s274 = ssub.s32 256, 1
              loop: start=0, step=1, limit=1
              $region53: #{point_encoder_forward.10} parent=51 // loop_pre_header
                _
              $region54: #{point_encoder_forward.10} parent=51 // loop_header
                %s276 = sphi 0, %s280
                %p277 = scmp.ge.s32.totalorder %s276, 1
                %s281 = sphi %s266, %s266
                %s282 = sphi %s263, %s263
              $region55: #{point_encoder_forward.10} parent=51 // loop_header_branch
                %279 = sbr.rel (%p277) target = $region59
              $region56: #{point_encoder_forward.10} parent=51 // loop_body
                %v283 = vld [vmem:[%s281] sm:%s274]
                %284 = vst [vmem:[%s282] sm:%s274] %v283
                %v285 = vld [vmem:[%s281 + $0x10] sm:%s274]
                %286 = vst [vmem:[%s282 + $0x8] sm:%s274] %v285
                %v287 = vld [vmem:[%s281 + $0x20] sm:%s274]
                %288 = vst [vmem:[%s282 + $0x10] sm:%s274] %v287
              $region57: #{point_encoder_forward.10} parent=51 // loop_footer
                %s280 = sadd.s32 1, %s276
              $region58: #{point_encoder_forward.10} parent=51 // loop_footer_branch
                %275 = sbr.rel target = $region54
              $region59: #{point_encoder_forward.10} parent=51 // loop_exit
                _
            $region52: #{point_encoder_forward.10} parent=43 // pred_fallthru
              _
          $region44: #{point_encoder_forward.10} parent=39 // pred_fallthru
            _
          %307 = vnop
        $region40: #{point_encoder_forward.10} parent=35 // pred_fallthru
          _
        // Predicated region
        $region75: #{point_encoder_forward.10} parent=35 // pred_check
          %p308 = pneg %p60
        $region76: #{point_encoder_forward.10} parent=35 // pred_check_branch
          %310 = sbr.rel (%p308) target = $region78
        $region77: #{point_encoder_forward.10} parent=35 // pred_region
          %p311 = scmp.lt.s32.totalorder %s14, 1
          %s312 = scalar_select %p311, %s14, 1
          %s313 = smul.addr %s312, 8
          %s314 = scalar_lea.vmem %s1, %s313
        $region78: #{point_encoder_forward.10} parent=35 // pred_fallthru
          _
        // Predicated region
        $region79: #{point_encoder_forward.10} parent=35 // pred_check
          %p315 = pneg %p86
        $region80: #{point_encoder_forward.10} parent=35 // pred_check_branch
          %317 = sbr.rel (%p315) target = $region82
        $region81: #{point_encoder_forward.10} parent=35 // pred_region
          %p318 = scmp.lt.s32.totalorder %s14, 1
          %s319 = scalar_select %p318, %s14, 1
          %s320 = smul.addr %s319, 4
          %s321 = scalar_lea.vmem %s2, %s320
        $region82: #{point_encoder_forward.10} parent=35 // pred_fallthru
          _
      $region36: #{point_encoder_forward.10} parent=5 // pred_fallthru
        _
      %p322 = scmp.le.s32.totalorder 1, %s14
      %p323 = scmp.lt.s32.totalorder %s14, 3
      %p324 = pnand %p322, %p323
      %p325 = pneg %p324
      // Predicated region
      $region83: #{point_encoder_forward.10} parent=5 // pred_check
        _
      $region84: #{point_encoder_forward.10} parent=5 // pred_check_branch
        %327 = sbr.rel (%p324) target = $region86
      $region85: #{point_encoder_forward.10} parent=5 // pred_region
        %s328 = ssub.s32 %s14, 1
        %s329 = sand.u32 %s27, 1
        %s330 = sand.u32 %s27, 1
        %s331 = smul.addr %s330, 24
        %s332 = scalar_lea.vmem [#allocation2], %s331
        // Predicated region
        $region87: #{point_encoder_forward.10} parent=85 // pred_check
          %p333 = pneg %p40
        $region88: #{point_encoder_forward.10} parent=85 // pred_check_branch
          %335 = sbr.rel (%p333) target = $region90
        $region89: #{point_encoder_forward.10} parent=85 // pred_region
          _
        $region90: #{point_encoder_forward.10} parent=85 // pred_fallthru
          _
        %s336 = sand.u32 %s27, 1
        %s337 = sand.u32 %s27, 1
        %s338 = smul.addr %s337, 24
        %s339 = scalar_lea.vmem [#allocation2], %s338
        %p340 = pneg %p40
        %p341 = pneg %p37
        %p342 = scmp.lt.s32.totalorder %s19, 1
        %s343 = scalar_select %p342, %s19, 1
        %s344 = smul.addr %s343, 8
        %s345 = scalar_lea.vmem %s1, %s344
        %p346 = pneg %p66
        %p347 = pneg %p63
        %p348 = scmp.lt.s32.totalorder %s19, 1
        %s349 = scalar_select %p348, %s19, 1
        %s350 = smul.addr %s349, 4
        %s351 = scalar_lea.vmem %s2, %s350
        %p352 = pneg %p92
        %p353 = pneg %p89
        %p354 = pneg %p113
        %p355 = pneg %p110
        %p356 = pneg %p134
        %p357 = pneg %p131
        %p358 = pneg %p155
        %p359 = pneg %p152
        %p360 = pneg %p176
        %p361 = pneg %p173
        %p362 = pneg %p197
        %p363 = pneg %p194
        %p364 = pneg %p223
        %p365 = pneg %p220
        %p366 = scmp.lt.s32.totalorder %s19, 1
        %s367 = scalar_select %p366, %s19, 1
        %s368 = smul.addr %s367, 8
        %s369 = scalar_lea.vmem %s8, %s368
        %p370 = scmp.lt.s32.totalorder %s19, 1
        %s371 = scalar_select %p370, %s19, 1
        %s372 = smul.addr %s371, 8
        %s373 = scalar_lea.vmem %s1, %s372
        %p374 = scmp.lt.s32.totalorder %s19, 1
        %s375 = scalar_select %p374, %s19, 1
        %s376 = smul.addr %s375, 4
        %s377 = scalar_lea.vmem %s2, %s376
        %p378 = scmp.lt.s32.totalorder %s19, 1
        %s379 = scalar_select %p378, %s19, 1
        %s380 = smul.addr %s379, 8
        %s381 = scalar_lea.vmem %s8, %s380
        %v382 = vld [vmem:[%s373] sm:$0xff]
        %vm383 = vcmask 23552
        %v384 = vsel %vm383, %v382, 0.0
        %385 = vadd.xlane.f32.xlu0 %v384
        %v386 = vpop.xlane.xlu0 %385
        %v387 = vrcp.pop %v386
        %v388 = vld [vmem:[%s332] sm:$0xff]
        %v389 = vunpack.c.l.bf16 %v388
        %v390 = vunpack.c.h.bf16 %v388
        %392 = vset.pattern.permute.xlu0 0
        %393 = vperm.xlu0 %392, %v382
        %v394 = vpop.permute.xlu0 %393
        %v396 = vmul.f32 %v389, %v394
        %v397 = vmul.f32 %v390, %v394
        %s398 = scalar_lea.vmem %s332, 8 [#allocation2]
        %v399 = vld [vmem:[%s398] sm:$0xff]
        %v400 = vunpack.c.l.bf16 %v399
        %v401 = vunpack.c.h.bf16 %v399
        %402 = vset.pattern.permute.xlu0 1
        %403 = vperm.xlu0 %402, %v382
        %v404 = vpop.permute.xlu0 %403
        %v406 = vmul.f32 %v400, %v404
        %v407 = vmul.f32 %v401, %v404
        %v408 = vadd.f32 %v396, %v406
        %v409 = vadd.f32 %v397, %v407
        %s410 = scalar_lea.vmem %s332, 16 [#allocation2]
        %v411 = vld [vmem:[%s410] sm:$0xff]
        %v412 = vunpack.c.l.bf16 %v411
        %v413 = vunpack.c.h.bf16 %v411
        %414 = vset.pattern.permute.xlu0 2
        %415 = vperm.xlu0 %414, %v382
        %v416 = vpop.permute.xlu0 %415
        %v418 = vmul.f32 %v412, %v416
        %v419 = vmul.f32 %v413, %v416
        %v420 = vadd.f32 %v408, %v418
        %v421 = vadd.f32 %v409, %v419
        %v422 = vmul.f32 %v420, %v387
        %v423 = vmul.f32 %v421, %v387
        %v424 = vpack.c.bf16 %v422, %v422
        %v425 = vpack.c.bf16 %v423, %v423
        %v426 = vld [vmem:[%s3] sm:$0xff]
        %v427 = vld [vmem:[%s3 + $0x8] sm:$0xff]
        %v428 = vld [vmem:[%s3 + $0x10] sm:$0xff]
        %v429 = vld [vmem:[%s3 + $0x18] sm:$0xff]
        %v430 = vld [vmem:[%s3 + $0x20] sm:$0xff]
        %v431 = vld [vmem:[%s3 + $0x28] sm:$0xff]
        %v432 = vld [vmem:[%s3 + $0x30] sm:$0xff]
        %v433 = vld [vmem:[%s3 + $0x38] sm:$0xff]
        %v434 = vld [vmem:[%s3 + $0x40] sm:$0xff]
        %v435 = vld [vmem:[%s3 + $0x48] sm:$0xff]
        %v436 = vld [vmem:[%s3 + $0x50] sm:$0xff]
        %v437 = vld [vmem:[%s3 + $0x58] sm:$0xff]
        %v438 = vld [vmem:[%s3 + $0x60] sm:$0xff]
        %v439 = vld [vmem:[%s3 + $0x68] sm:$0xff]
        %v440 = vld [vmem:[%s3 + $0x70] sm:$0xff]
        %v441 = vld [vmem:[%s3 + $0x78] sm:$0xff]
        %v442 = vld [vmem:[%s3 + $0x80] sm:$0xff]
        %v443 = vld [vmem:[%s3 + $0x88] sm:$0xff]
        %v444 = vld [vmem:[%s3 + $0x90] sm:$0xff]
        %v445 = vld [vmem:[%s3 + $0x98] sm:$0xff]
        %v446 = vld [vmem:[%s3 + $0xa0] sm:$0xff]
        %v447 = vld [vmem:[%s3 + $0xa8] sm:$0xff]
        %v448 = vld [vmem:[%s3 + $0xb0] sm:$0xff]
        %v449 = vld [vmem:[%s3 + $0xb8] sm:$0xff]
        %v450 = vld [vmem:[%s3 + $0xc0] sm:$0xff]
        %v451 = vld [vmem:[%s3 + $0xc8] sm:$0xff]
        %v452 = vld [vmem:[%s3 + $0xd0] sm:$0xff]
        %v453 = vld [vmem:[%s3 + $0xd8] sm:$0xff]
        %v454 = vld [vmem:[%s3 + $0xe0] sm:$0xff]
        %v455 = vld [vmem:[%s3 + $0xe8] sm:$0xff]
        %v456 = vld [vmem:[%s3 + $0xf0] sm:$0xff]
        %v457 = vld [vmem:[%s3 + $0xf8] sm:$0xff]
        %v458 = vld [vmem:[%s377] sm:$0xf]
        %v459 = vld [vmem:[%s4] sm:$0xff]
        %v460 = vld [vmem:[%s4 + $0x8] sm:$0xff]
        %v461 = vld [vmem:[%s4 + $0x10] sm:$0xff]
        %v462 = vld [vmem:[%s4 + $0x18] sm:$0xff]
        %v463 = vld [vmem:[%s4 + $0x20] sm:$0xff]
        %v464 = vld [vmem:[%s4 + $0x28] sm:$0xff]
        %v465 = vld [vmem:[%s4 + $0x30] sm:$0xff]
        %v466 = vld [vmem:[%s4 + $0x38] sm:$0xff]
        %v467 = vld [vmem:[%s4 + $0x40] sm:$0xff]
        %v468 = vld [vmem:[%s4 + $0x48] sm:$0xff]
        %v469 = vld [vmem:[%s4 + $0x50] sm:$0xff]
        %v470 = vld [vmem:[%s4 + $0x58] sm:$0xff]
        %v471 = vld [vmem:[%s4 + $0x60] sm:$0xff]
        %v472 = vld [vmem:[%s4 + $0x68] sm:$0xff]
        %v473 = vld [vmem:[%s4 + $0x70] sm:$0xff]
        %v474 = vld [vmem:[%s4 + $0x78] sm:$0xff]
        %v491 = vunpack.c.l.b16 %v459
        %v492 = vunpack.c.h.b16 %v459
        %v493 = vunpack.c.l.b16 %v460
        %v494 = vunpack.c.h.b16 %v460
        %v495 = vunpack.c.l.b16 %v461
        %v496 = vunpack.c.h.b16 %v461
        %v497 = vunpack.c.l.b16 %v462
        %v498 = vunpack.c.h.b16 %v462
        %v499 = vunpack.c.l.b16 %v463
        %v500 = vunpack.c.h.b16 %v463
        %v501 = vunpack.c.l.b16 %v464
        %v502 = vunpack.c.h.b16 %v464
        %v503 = vunpack.c.l.b16 %v465
        %v504 = vunpack.c.h.b16 %v465
        %v505 = vunpack.c.l.b16 %v466
        %v506 = vunpack.c.h.b16 %v466
        %v507 = vunpack.c.l.b16 %v467
        %v508 = vunpack.c.h.b16 %v467
        %v509 = vunpack.c.l.b16 %v468
        %v510 = vunpack.c.h.b16 %v468
        %v511 = vunpack.c.l.b16 %v469
        %v512 = vunpack.c.h.b16 %v469
        %v513 = vunpack.c.l.b16 %v470
        %v514 = vunpack.c.h.b16 %v470
        %v515 = vunpack.c.l.b16 %v471
        %v516 = vunpack.c.h.b16 %v471
        %v517 = vunpack.c.l.b16 %v472
        %v518 = vunpack.c.h.b16 %v472
        %v519 = vunpack.c.l.b16 %v473
        %v520 = vunpack.c.h.b16 %v473
        %v521 = vunpack.c.l.b16 %v474
        %v522 = vunpack.c.h.b16 %v474
        %v523 = vpack.c.b16 %v493, %v491
        %v524 = vpack.c.b16 %v494, %v492
        %v525 = vpack.c.b16 %v497, %v495
        %v526 = vpack.c.b16 %v498, %v496
        %v527 = vpack.c.b16 %v501, %v499
        %v528 = vpack.c.b16 %v502, %v500
        %v529 = vpack.c.b16 %v505, %v503
        %v530 = vpack.c.b16 %v506, %v504
        %v531 = vpack.c.b16 %v509, %v507
        %v532 = vpack.c.b16 %v510, %v508
        %v533 = vpack.c.b16 %v513, %v511
        %v534 = vpack.c.b16 %v514, %v512
        %v535 = vpack.c.b16 %v517, %v515
        %v536 = vpack.c.b16 %v518, %v516
        %v537 = vpack.c.b16 %v521, %v519
        %v538 = vpack.c.b16 %v522, %v520
        %555 = vmatpush.bf16.msra.mxu0 %v537
        %556 = vmatpush.bf16.msra.mxu0 %v535
        %557 = vmatpush.bf16.msra.mxu0 %v533
        %558 = vmatpush.bf16.msra.mxu0 %v531
        %559 = vmatpush.bf16.msra.mxu0 %v529
        %560 = vmatpush.bf16.msra.mxu0 %v527
        %561 = vmatpush.bf16.msra.mxu0 %v525
        %562 = vmatpush.bf16.msra.mxu0 %v523
        %563 = vmatmul.bf16.gmra.mxu0 %v458
        %v564 = vpop.f32.mrf.mxu0
        %v565 = vadd.f32 0.0, %v564
        %v566 = vpop.f32.mrf.mxu0
        %567 = vdwg.mxu0
        %568 = vmatpush.bf16.msra.mxu0 %v538
        %569 = vmatpush.bf16.msra.mxu0 %v536
        %570 = vmatpush.bf16.msra.mxu0 %v534
        %571 = vmatpush.bf16.msra.mxu0 %v532
        %572 = vmatpush.bf16.msra.mxu0 %v530
        %573 = vmatpush.bf16.msra.mxu0 %v528
        %574 = vmatpush.bf16.msra.mxu0 %v526
        %575 = vmatpush.bf16.msra.mxu0 %v524
        %576 = vmatmul.bf16.gmra.mxu0 %v458
        %v577 = vpop.f32.mrf.mxu0
        %v578 = vadd.f32 0.0, %v577
        %v579 = vpop.f32.mrf.mxu0
        %580 = vdwg.mxu0
        %v613 = vunpack.c.l.b16 %v426
        %v614 = vunpack.c.h.b16 %v426
        %v615 = vunpack.c.l.b16 %v427
        %v616 = vunpack.c.h.b16 %v427
        %v617 = vunpack.c.l.b16 %v428
        %v618 = vunpack.c.h.b16 %v428
        %v619 = vunpack.c.l.b16 %v429
        %v620 = vunpack.c.h.b16 %v429
        %v621 = vunpack.c.l.b16 %v430
        %v622 = vunpack.c.h.b16 %v430
        %v623 = vunpack.c.l.b16 %v431
        %v624 = vunpack.c.h.b16 %v431
        %v625 = vunpack.c.l.b16 %v432
        %v626 = vunpack.c.h.b16 %v432
        %v627 = vunpack.c.l.b16 %v433
        %v628 = vunpack.c.h.b16 %v433
        %v629 = vunpack.c.l.b16 %v434
        %v630 = vunpack.c.h.b16 %v434
        %v631 = vunpack.c.l.b16 %v435
        %v632 = vunpack.c.h.b16 %v435
        %v633 = vunpack.c.l.b16 %v436
        %v634 = vunpack.c.h.b16 %v436
        %v635 = vunpack.c.l.b16 %v437
        %v636 = vunpack.c.h.b16 %v437
        %v637 = vunpack.c.l.b16 %v438
        %v638 = vunpack.c.h.b16 %v438
        %v639 = vunpack.c.l.b16 %v439
        %v640 = vunpack.c.h.b16 %v439
        %v641 = vunpack.c.l.b16 %v440
        %v642 = vunpack.c.h.b16 %v440
        %v643 = vunpack.c.l.b16 %v441
        %v644 = vunpack.c.h.b16 %v441
        %v645 = vunpack.c.l.b16 %v442
        %v646 = vunpack.c.h.b16 %v442
        %v647 = vunpack.c.l.b16 %v443
        %v648 = vunpack.c.h.b16 %v443
        %v649 = vunpack.c.l.b16 %v444
        %v650 = vunpack.c.h.b16 %v444
        %v651 = vunpack.c.l.b16 %v445
        %v652 = vunpack.c.h.b16 %v445
        %v653 = vunpack.c.l.b16 %v446
        %v654 = vunpack.c.h.b16 %v446
        %v655 = vunpack.c.l.b16 %v447
        %v656 = vunpack.c.h.b16 %v447
        %v657 = vunpack.c.l.b16 %v448
        %v658 = vunpack.c.h.b16 %v448
        %v659 = vunpack.c.l.b16 %v449
        %v660 = vunpack.c.h.b16 %v449
        %v661 = vunpack.c.l.b16 %v450
        %v662 = vunpack.c.h.b16 %v450
        %v663 = vunpack.c.l.b16 %v451
        %v664 = vunpack.c.h.b16 %v451
        %v665 = vunpack.c.l.b16 %v452
        %v666 = vunpack.c.h.b16 %v452
        %v667 = vunpack.c.l.b16 %v453
        %v668 = vunpack.c.h.b16 %v453
        %v669 = vunpack.c.l.b16 %v454
        %v670 = vunpack.c.h.b16 %v454
        %v671 = vunpack.c.l.b16 %v455
        %v672 = vunpack.c.h.b16 %v455
        %v673 = vunpack.c.l.b16 %v456
        %v674 = vunpack.c.h.b16 %v456
        %v675 = vunpack.c.l.b16 %v457
        %v676 = vunpack.c.h.b16 %v457
        %v677 = vpack.c.b16 %v615, %v613
        %v678 = vpack.c.b16 %v616, %v614
        %v679 = vpack.c.b16 %v619, %v617
        %v680 = vpack.c.b16 %v620, %v618
        %v681 = vpack.c.b16 %v623, %v621
        %v682 = vpack.c.b16 %v624, %v622
        %v683 = vpack.c.b16 %v627, %v625
        %v684 = vpack.c.b16 %v628, %v626
        %v685 = vpack.c.b16 %v631, %v629
        %v686 = vpack.c.b16 %v632, %v630
        %v687 = vpack.c.b16 %v635, %v633
        %v688 = vpack.c.b16 %v636, %v634
        %v689 = vpack.c.b16 %v639, %v637
        %v690 = vpack.c.b16 %v640, %v638
        %v691 = vpack.c.b16 %v643, %v641
        %v692 = vpack.c.b16 %v644, %v642
        %v693 = vpack.c.b16 %v647, %v645
        %v694 = vpack.c.b16 %v648, %v646
        %v695 = vpack.c.b16 %v651, %v649
        %v696 = vpack.c.b16 %v652, %v650
        %v697 = vpack.c.b16 %v655, %v653
        %v698 = vpack.c.b16 %v656, %v654
        %v699 = vpack.c.b16 %v659, %v657
        %v700 = vpack.c.b16 %v660, %v658
        %v701 = vpack.c.b16 %v663, %v661
        %v702 = vpack.c.b16 %v664, %v662
        %v703 = vpack.c.b16 %v667, %v665
        %v704 = vpack.c.b16 %v668, %v666
        %v705 = vpack.c.b16 %v671, %v669
        %v706 = vpack.c.b16 %v672, %v670
        %v707 = vpack.c.b16 %v675, %v673
        %v708 = vpack.c.b16 %v676, %v674
        %741 = vmatpush.bf16.msra.mxu0 %v691
        %742 = vmatpush.bf16.msra.mxu0 %v689
        %743 = vmatpush.bf16.msra.mxu0 %v687
        %744 = vmatpush.bf16.msra.mxu0 %v685
        %745 = vmatpush.bf16.msra.mxu0 %v683
        %746 = vmatpush.bf16.msra.mxu0 %v681
        %747 = vmatpush.bf16.msra.mxu0 %v679
        %748 = vmatpush.bf16.msra.mxu0 %v677
        %749 = vmatmul.bf16.gmra.mxu0 %v424
        %v750 = vpop.f32.mrf.mxu0
        %v751 = vadd.f32 %v565, %v750
        %v752 = vpop.f32.mrf.mxu0
        %753 = vdwg.mxu0
        %754 = vmatpush.bf16.msra.mxu0 %v707
        %755 = vmatpush.bf16.msra.mxu0 %v705
        %756 = vmatpush.bf16.msra.mxu0 %v703
        %757 = vmatpush.bf16.msra.mxu0 %v701
        %758 = vmatpush.bf16.msra.mxu0 %v699
        %759 = vmatpush.bf16.msra.mxu0 %v697
        %760 = vmatpush.bf16.msra.mxu0 %v695
        %761 = vmatpush.bf16.msra.mxu0 %v693
        %762 = vmatmul.bf16.gmra.mxu0 %v425
        %v763 = vpop.f32.mrf.mxu0
        %v764 = vadd.f32 %v751, %v763
        %v765 = vpop.f32.mrf.mxu0
        %766 = vdwg.mxu0
        %767 = vmatpush.bf16.msra.mxu0 %v692
        %768 = vmatpush.bf16.msra.mxu0 %v690
        %769 = vmatpush.bf16.msra.mxu0 %v688
        %770 = vmatpush.bf16.msra.mxu0 %v686
        %771 = vmatpush.bf16.msra.mxu0 %v684
        %772 = vmatpush.bf16.msra.mxu0 %v682
        %773 = vmatpush.bf16.msra.mxu0 %v680
        %774 = vmatpush.bf16.msra.mxu0 %v678
        %775 = vmatmul.bf16.gmra.mxu0 %v424
        %v776 = vpop.f32.mrf.mxu0
        %v777 = vadd.f32 %v578, %v776
        %v778 = vpop.f32.mrf.mxu0
        %779 = vdwg.mxu0
        %780 = vmatpush.bf16.msra.mxu0 %v708
        %781 = vmatpush.bf16.msra.mxu0 %v706
        %782 = vmatpush.bf16.msra.mxu0 %v704
        %783 = vmatpush.bf16.msra.mxu0 %v702
        %784 = vmatpush.bf16.msra.mxu0 %v700
        %785 = vmatpush.bf16.msra.mxu0 %v698
        %786 = vmatpush.bf16.msra.mxu0 %v696
        %787 = vmatpush.bf16.msra.mxu0 %v694
        %788 = vmatmul.bf16.gmra.mxu0 %v425
        %v789 = vpop.f32.mrf.mxu0
        %v790 = vadd.f32 %v777, %v789
        %v791 = vpop.f32.mrf.mxu0
        %792 = vdwg.mxu0
        %v793 = vld [vmem:[%s5] sm:$0x3]
        %v795 = vperm.slane %v793, 0
        %v796 = vperm.slane %v793, 1
        %v799 = vadd.f32 %v764, %v795
        %v800 = vadd.f32 %v790, %v796
        %v801 = vmax.f32 %v799, 0.0
        %v802 = vmax.f32 %v800, 0.0
        %v803 = vld [vmem:[%s6] sm:$0xf]
        %v804 = vld [vmem:[%s6 + $0x4] sm:$0xf]
        %v805 = vld [vmem:[%s6 + $0x8] sm:$0xf]
        %v806 = vld [vmem:[%s6 + $0xc] sm:$0xf]
        %v807 = vld [vmem:[%s6 + $0x10] sm:$0xf]
        %v808 = vld [vmem:[%s6 + $0x14] sm:$0xf]
        %v809 = vld [vmem:[%s6 + $0x18] sm:$0xf]
        %v810 = vld [vmem:[%s6 + $0x1c] sm:$0xf]
        %v811 = vld [vmem:[%s6 + $0x20] sm:$0xf]
        %v812 = vld [vmem:[%s6 + $0x24] sm:$0xf]
        %v813 = vld [vmem:[%s6 + $0x28] sm:$0xf]
        %v814 = vld [vmem:[%s6 + $0x2c] sm:$0xf]
        %v815 = vld [vmem:[%s6 + $0x30] sm:$0xf]
        %v816 = vld [vmem:[%s6 + $0x34] sm:$0xf]
        %v817 = vld [vmem:[%s6 + $0x38] sm:$0xf]
        %v818 = vld [vmem:[%s6 + $0x3c] sm:$0xf]
        %v819 = vld [vmem:[%s6 + $0x40] sm:$0xf]
        %v820 = vld [vmem:[%s6 + $0x44] sm:$0xf]
        %v821 = vld [vmem:[%s6 + $0x48] sm:$0xf]
        %v822 = vld [vmem:[%s6 + $0x4c] sm:$0xf]
        %v823 = vld [vmem:[%s6 + $0x50] sm:$0xf]
        %v824 = vld [vmem:[%s6 + $0x54] sm:$0xf]
        %v825 = vld [vmem:[%s6 + $0x58] sm:$0xf]
        %v826 = vld [vmem:[%s6 + $0x5c] sm:$0xf]
        %v827 = vld [vmem:[%s6 + $0x60] sm:$0xf]
        %v828 = vld [vmem:[%s6 + $0x64] sm:$0xf]
        %v829 = vld [vmem:[%s6 + $0x68] sm:$0xf]
        %v830 = vld [vmem:[%s6 + $0x6c] sm:$0xf]
        %v831 = vld [vmem:[%s6 + $0x70] sm:$0xf]
        %v832 = vld [vmem:[%s6 + $0x74] sm:$0xf]
        %v833 = vld [vmem:[%s6 + $0x78] sm:$0xf]
        %v834 = vld [vmem:[%s6 + $0x7c] sm:$0xf]
        %v835 = vld [vmem:[%s7] sm:$0x1]
        %v836 = vpack.c.bf16 %v801, %v801
        %v837 = vpack.c.bf16 %v802, %v802
        %v839 = vperm.slane %v835, 0
        %v873 = vunpack.c.l.b16 %v803
        %v874 = vunpack.c.l.b16 %v804
        %v875 = vunpack.c.l.b16 %v805
        %v876 = vunpack.c.l.b16 %v806
        %v877 = vunpack.c.l.b16 %v807
        %v878 = vunpack.c.l.b16 %v808
        %v879 = vunpack.c.l.b16 %v809
        %v880 = vunpack.c.l.b16 %v810
        %v881 = vunpack.c.l.b16 %v811
        %v882 = vunpack.c.l.b16 %v812
        %v883 = vunpack.c.l.b16 %v813
        %v884 = vunpack.c.l.b16 %v814
        %v885 = vunpack.c.l.b16 %v815
        %v886 = vunpack.c.l.b16 %v816
        %v887 = vunpack.c.l.b16 %v817
        %v888 = vunpack.c.l.b16 %v818
        %v889 = vunpack.c.l.b16 %v819
        %v890 = vunpack.c.l.b16 %v820
        %v891 = vunpack.c.l.b16 %v821
        %v892 = vunpack.c.l.b16 %v822
        %v893 = vunpack.c.l.b16 %v823
        %v894 = vunpack.c.l.b16 %v824
        %v895 = vunpack.c.l.b16 %v825
        %v896 = vunpack.c.l.b16 %v826
        %v897 = vunpack.c.l.b16 %v827
        %v898 = vunpack.c.l.b16 %v828
        %v899 = vunpack.c.l.b16 %v829
        %v900 = vunpack.c.l.b16 %v830
        %v901 = vunpack.c.l.b16 %v831
        %v902 = vunpack.c.l.b16 %v832
        %v903 = vunpack.c.l.b16 %v833
        %v904 = vunpack.c.l.b16 %v834
        %v905 = vpack.c.b16 %v874, %v873
        %v906 = vpack.c.b16 %v876, %v875
        %v907 = vpack.c.b16 %v878, %v877
        %v908 = vpack.c.b16 %v880, %v879
        %v909 = vpack.c.b16 %v882, %v881
        %v910 = vpack.c.b16 %v884, %v883
        %v911 = vpack.c.b16 %v886, %v885
        %v912 = vpack.c.b16 %v888, %v887
        %v913 = vpack.c.b16 %v890, %v889
        %v914 = vpack.c.b16 %v892, %v891
        %v915 = vpack.c.b16 %v894, %v893
        %v916 = vpack.c.b16 %v896, %v895
        %v917 = vpack.c.b16 %v898, %v897
        %v918 = vpack.c.b16 %v900, %v899
        %v919 = vpack.c.b16 %v902, %v901
        %v920 = vpack.c.b16 %v904, %v903
        %937 = vmatpush.bf16.msra.mxu0 %v912
        %938 = vmatpush.bf16.msra.mxu0 %v911
        %939 = vmatpush.bf16.msra.mxu0 %v910
        %940 = vmatpush.bf16.msra.mxu0 %v909
        %941 = vmatpush.bf16.msra.mxu0 %v908
        %942 = vmatpush.bf16.msra.mxu0 %v907
        %943 = vmatpush.bf16.msra.mxu0 %v906
        %944 = vmatpush.bf16.msra.mxu0 %v905
        %945 = vmatmul.bf16.gmra.mxu0 %v836
        %v946 = vpop.f32.mrf.mxu0
        %v947 = vadd.f32 %v839, %v946
        %v948 = vpop.f32.mrf.mxu0
        %949 = vdwg.mxu0
        %950 = vmatpush.bf16.msra.mxu0 %v920
        %951 = vmatpush.bf16.msra.mxu0 %v919
        %952 = vmatpush.bf16.msra.mxu0 %v918
        %953 = vmatpush.bf16.msra.mxu0 %v917
        %954 = vmatpush.bf16.msra.mxu0 %v916
        %955 = vmatpush.bf16.msra.mxu0 %v915
        %956 = vmatpush.bf16.msra.mxu0 %v914
        %957 = vmatpush.bf16.msra.mxu0 %v913
        %958 = vmatmul.bf16.gmra.mxu0 %v837
        %v959 = vpop.f32.mrf.mxu0
        %v960 = vadd.f32 %v947, %v959
        %v961 = vpop.f32.mrf.mxu0
        %962 = vdwg.mxu0
        %963 = vst [vmem:[%s381] sm:$0xff] %v960
        %p964 = scmp.lt.s32.totalorder %s19, 1
        %s965 = scalar_select %p964, %s19, 1
        %s966 = smul.addr %s965, 8
        %s967 = scalar_lea.vmem %s8, %s966
        // Predicated region
        $region91: #{point_encoder_forward.10} parent=85 // pred_check
          %p968 = pneg %p220
        $region92: #{point_encoder_forward.10} parent=85 // pred_check_branch
          %970 = sbr.rel (%p968) target = $region94
        $region93: #{point_encoder_forward.10} parent=85 // pred_region
          _
        $region94: #{point_encoder_forward.10} parent=85 // pred_fallthru
          _
      $region86: #{point_encoder_forward.10} parent=5 // pred_fallthru
        _
      %p971 = scmp.le.s32.totalorder 2, %s14
      // Predicated region
      $region95: #{point_encoder_forward.10} parent=5 // pred_check
        %p972 = pneg %p971
      $region96: #{point_encoder_forward.10} parent=5 // pred_check_branch
        %974 = sbr.rel (%p972) target = $region98
      $region97: #{point_encoder_forward.10} parent=5 // pred_region
        %s975 = ssub.s32 %s14, 2
        // Predicated region
        $region99: #{point_encoder_forward.10} parent=97 // pred_check
          %p976 = pneg %p226
        $region100: #{point_encoder_forward.10} parent=97 // pred_check_branch
          %978 = sbr.rel (%p976) target = $region102
        $region101: #{point_encoder_forward.10} parent=97 // pred_region
          %p979 = scmp.lt.s32.totalorder %s20, 1
          %s980 = scalar_select %p979, %s20, 1
          %s981 = smul.addr %s980, 8
          %s982 = scalar_lea.vmem %s8, %s981
        $region102: #{point_encoder_forward.10} parent=97 // pred_fallthru
          _
      $region98: #{point_encoder_forward.10} parent=5 // pred_fallthru
        _
    $region6: #{point_encoder_forward.10} parent=1 // loop_footer
      %s18 = sadd.s32 1, %s14
    $region7: #{point_encoder_forward.10} parent=1 // loop_footer_branch
      %13 = sbr.rel target = $region3
    $region8: #{point_encoder_forward.10} parent=1 // loop_exit
      _

// kernel: point_encoder_forward.9
$region0: #{point_encoder_forward.9}
  #allocation0 [shape = 'u32[]', space=smem, size = 0x4, offset = 0x4, fixed_abs, tag = 'smem constant byte address 0x4 - core index']
  #allocation1 [shape = 'u32[72,128]{1,0:T(1,128)}', space=vmem, size = 0x9000, scoped, tag = 'internal scratch']
  %s0 = inlined_call_operand.vmem [shape: bf16[1,8,512], index: 0, kind: input, shape index: {}]
  %s1 = inlined_call_operand.vmem [shape: f32[8,1], index: 1, kind: input, shape index: {}]
  %s2 = inlined_call_operand.vmem [shape: bf16[8,256], index: 2, kind: input, shape index: {}]
  %s3 = inlined_call_operand.vmem [shape: bf16[512,512], index: 3, kind: input, shape index: {}]
  %s4 = inlined_call_operand.vmem [shape: bf16[256,512], index: 4, kind: input, shape index: {}]
  %s5 = inlined_call_operand.hbm [shape: f32[1,512], index: 5, kind: input, shape index: {}]
  %s6 = inlined_call_operand.vmem [shape: bf16[512,256], index: 6, kind: input, shape index: {}]
  %s7 = inlined_call_operand.hbm [shape: f32[1,256], index: 7, kind: input, shape index: {}]
  %s8 = inlined_call_operand.vmem [shape: f32[8,256], index: 8, kind: output, shape index: {}]
  %s9 = sld [smem:[#allocation0]]
  $region50: #{point_encoder_forward.9} parent=0
    _
  %s11 = ssub.s32 1, %s9
  %s12 = scalar_select 0, %s11, %s9
  $region1: #{point_encoder_forward.9} parent=0
    #allocation2 [shape = 'u8[2048]{0}', space=vmem, size = 0x800, scoped, tag = 'input window, operand 5, single buffered']
    #allocation3 [shape = 's32[1]{0}', space=sflag, size = 0x4, scoped, tag = 'scoped memory for point_encoder_forward.9']
    #allocation4 [shape = 'u8[1024]{0}', space=vmem, size = 0x400, scoped, tag = 'input window, operand 7, single buffered']
    #allocation5 [shape = 's32[1]{0}', space=sflag, size = 0x4, scoped, tag = 'scoped memory for point_encoder_forward.9']
    %13 = vsyncpa [#allocation3], 0
    %14 = vsyncpa [#allocation5], 0
    // Predicated region
    $region2: #{point_encoder_forward.9} parent=1 // pred_check
      _
    $region3: #{point_encoder_forward.9} parent=1 // pred_check_branch
      %16 = sbr.rel (0) target = $region5
    $region4: #{point_encoder_forward.9} parent=1 // pred_region
      _
    $region5: #{point_encoder_forward.9} parent=1 // pred_fallthru
      _
    // Predicated region
    $region6: #{point_encoder_forward.9} parent=1 // pred_check
      _
    $region7: #{point_encoder_forward.9} parent=1 // pred_check_branch
      %18 = sbr.rel (0) target = $region9
    $region8: #{point_encoder_forward.9} parent=1 // pred_region
      _
    $region9: #{point_encoder_forward.9} parent=1 // pred_fallthru
      _
    // Predicated region
    $region10: #{point_encoder_forward.9} parent=1 // pred_check
      _
    $region11: #{point_encoder_forward.9} parent=1 // pred_check_branch
      %20 = sbr.rel (0) target = $region13
    $region12: #{point_encoder_forward.9} parent=1 // pred_region
      _
    $region13: #{point_encoder_forward.9} parent=1 // pred_fallthru
      _
    // Predicated region
    $region14: #{point_encoder_forward.9} parent=1 // pred_check
      _
    $region15: #{point_encoder_forward.9} parent=1 // pred_check_branch
      %22 = sbr.rel (0) target = $region17
    $region16: #{point_encoder_forward.9} parent=1 // pred_region
      _
    $region17: #{point_encoder_forward.9} parent=1 // pred_fallthru
      _
    // Predicated region
    $region18: #{point_encoder_forward.9} parent=1 // pred_check
      _
    $region19: #{point_encoder_forward.9} parent=1 // pred_check_branch
      %24 = sbr.rel (0) target = $region21
    $region20: #{point_encoder_forward.9} parent=1 // pred_region
      _
    $region21: #{point_encoder_forward.9} parent=1 // pred_fallthru
      _
    // Predicated region
    $region22: #{point_encoder_forward.9} parent=1 // pred_check
      _
    $region23: #{point_encoder_forward.9} parent=1 // pred_check_branch
      %26 = sbr.rel (0) target = $region25
    $region24: #{point_encoder_forward.9} parent=1 // pred_region
      %28 = vsyncadd [#allocation3], 0
      %s30 = sshll.u32 %s5, 4
      %s31 = int_to_ptr.hbm [resolvable:$true] %s30
      %s32 = sshll.u32 [#allocation2], 4
      %s33 = int_to_ptr.vmem [resolvable:$true] %s32
      %35 = dma.hbm_to_vmem [thread:$0]  %s31, 64, %s33, [#allocation3]
    $region25: #{point_encoder_forward.9} parent=1 // pred_fallthru
      _
    // Predicated region
    $region26: #{point_encoder_forward.9} parent=1 // pred_check
      _
    $region27: #{point_encoder_forward.9} parent=1 // pred_check_branch
      %37 = sbr.rel (0) target = $region29
    $region28: #{point_encoder_forward.9} parent=1 // pred_region
      _
    $region29: #{point_encoder_forward.9} parent=1 // pred_fallthru
      _
    // Predicated region
    $region30: #{point_encoder_forward.9} parent=1 // pred_check
      _
    $region31: #{point_encoder_forward.9} parent=1 // pred_check_branch
      %39 = sbr.rel (0) target = $region33
    $region32: #{point_encoder_forward.9} parent=1 // pred_region
      %41 = vsyncadd [#allocation5], 0
      %s43 = sshll.u32 %s7, 4
      %s44 = int_to_ptr.hbm [resolvable:$true] %s43
      %s45 = sshll.u32 [#allocation4], 4
      %s46 = int_to_ptr.vmem [resolvable:$true] %s45
      %48 = dma.hbm_to_vmem [thread:$0]  %s44, 32, %s46, [#allocation5]
    $region33: #{point_encoder_forward.9} parent=1 // pred_fallthru
      _
    // Predicated region
    $region34: #{point_encoder_forward.9} parent=1 // pred_check
      _
    $region35: #{point_encoder_forward.9} parent=1 // pred_check_branch
      %50 = sbr.rel (0) target = $region37
    $region36: #{point_encoder_forward.9} parent=1 // pred_region
      %52 = dma.done [#allocation3], 64
    $region37: #{point_encoder_forward.9} parent=1 // pred_fallthru
      _
    // Predicated region
    $region38: #{point_encoder_forward.9} parent=1 // pred_check
      _
    $region39: #{point_encoder_forward.9} parent=1 // pred_check_branch
      %54 = sbr.rel (0) target = $region41
    $region40: #{point_encoder_forward.9} parent=1 // pred_region
      %56 = dma.done [#allocation5], 32
    $region41: #{point_encoder_forward.9} parent=1 // pred_fallthru
      _
    %v57 = vld [vmem:[%s1] sm:$0xff]
    %v58 = vadd.f32 %v57, 0.0
    %v59 = vrcp.pop %v58
    %v60 = vld [vmem:[%s0] sm:$0xff]
    %v61 = vld [vmem:[%s0 + $0x8] sm:$0xff]
    %v62 = vunpack.c.l.bf16 %v60
    %v63 = vunpack.c.h.bf16 %v60
    %v64 = vunpack.c.l.bf16 %v61
    %v65 = vunpack.c.h.bf16 %v61
    %67 = vset.pattern.permute.xlu0 0
    %68 = vperm.xlu0 %67, %v57
    %v69 = vpop.permute.xlu0 %68
    %v71 = vmul.f32 %v62, %v69
    %v72 = vmul.f32 %v63, %v69
    %v73 = vmul.f32 %v64, %v69
    %v74 = vmul.f32 %v65, %v69
    %76 = vset.pattern.permute.xlu0 0
    %77 = vperm.xlu0 %76, %v59
    %v78 = vpop.permute.xlu0 %77
    %v80 = vmul.f32 %v71, %v78
    %v81 = vmul.f32 %v72, %v78
    %v82 = vmul.f32 %v73, %v78
    %v83 = vmul.f32 %v74, %v78
    %v84 = vpack.c.bf16 %v80, %v80
    %v85 = vpack.c.bf16 %v81, %v81
    %v86 = vpack.c.bf16 %v82, %v82
    %v87 = vpack.c.bf16 %v83, %v83
    %v88 = vld [vmem:[%s3] sm:$0xff]
    %v89 = vld [vmem:[%s3 + $0x8] sm:$0xff]
    %v90 = vld [vmem:[%s3 + $0x10] sm:$0xff]
    %v91 = vld [vmem:[%s3 + $0x18] sm:$0xff]
    %v92 = vld [vmem:[%s3 + $0x20] sm:$0xff]
    %v93 = vld [vmem:[%s3 + $0x28] sm:$0xff]
    %v94 = vld [vmem:[%s3 + $0x30] sm:$0xff]
    %v95 = vld [vmem:[%s3 + $0x38] sm:$0xff]
    %v96 = vld [vmem:[%s3 + $0x40] sm:$0xff]
    %v97 = vld [vmem:[%s3 + $0x48] sm:$0xff]
    %v98 = vld [vmem:[%s3 + $0x50] sm:$0xff]
    %v99 = vld [vmem:[%s3 + $0x58] sm:$0xff]
    %v100 = vld [vmem:[%s3 + $0x60] sm:$0xff]
    %v101 = vld [vmem:[%s3 + $0x68] sm:$0xff]
    %v102 = vld [vmem:[%s3 + $0x70] sm:$0xff]
    %v103 = vld [vmem:[%s3 + $0x78] sm:$0xff]
    %v104 = vld [vmem:[%s3 + $0x80] sm:$0xff]
    %v105 = vld [vmem:[%s3 + $0x88] sm:$0xff]
    %v106 = vld [vmem:[%s3 + $0x90] sm:$0xff]
    %v107 = vld [vmem:[%s3 + $0x98] sm:$0xff]
    %v108 = vld [vmem:[%s3 + $0xa0] sm:$0xff]
    %v109 = vld [vmem:[%s3 + $0xa8] sm:$0xff]
    %v110 = vld [vmem:[%s3 + $0xb0] sm:$0xff]
    %v111 = vld [vmem:[%s3 + $0xb8] sm:$0xff]
    %v112 = vld [vmem:[%s3 + $0xc0] sm:$0xff]
    %v113 = vld [vmem:[%s3 + $0xc8] sm:$0xff]
    %v114 = vld [vmem:[%s3 + $0xd0] sm:$0xff]
    %v115 = vld [vmem:[%s3 + $0xd8] sm:$0xff]
    %v116 = vld [vmem:[%s3 + $0xe0] sm:$0xff]
    %v117 = vld [vmem:[%s3 + $0xe8] sm:$0xff]
    %v118 = vld [vmem:[%s3 + $0xf0] sm:$0xff]
    %v119 = vld [vmem:[%s3 + $0xf8] sm:$0xff]
    %v120 = vld [vmem:[%s3 + $0x100] sm:$0xff]
    %v121 = vld [vmem:[%s3 + $0x108] sm:$0xff]
    %v122 = vld [vmem:[%s3 + $0x110] sm:$0xff]
    %v123 = vld [vmem:[%s3 + $0x118] sm:$0xff]
    %v124 = vld [vmem:[%s3 + $0x120] sm:$0xff]
    %v125 = vld [vmem:[%s3 + $0x128] sm:$0xff]
    %v126 = vld [vmem:[%s3 + $0x130] sm:$0xff]
    %v127 = vld [vmem:[%s3 + $0x138] sm:$0xff]
    %v128 = vld [vmem:[%s3 + $0x140] sm:$0xff]
    %v129 = vld [vmem:[%s3 + $0x148] sm:$0xff]
    %v130 = vld [vmem:[%s3 + $0x150] sm:$0xff]
    %v131 = vld [vmem:[%s3 + $0x158] sm:$0xff]
    %v132 = vld [vmem:[%s3 + $0x160] sm:$0xff]
    %v133 = vld [vmem:[%s3 + $0x168] sm:$0xff]
    %v134 = vld [vmem:[%s3 + $0x170] sm:$0xff]
    %v135 = vld [vmem:[%s3 + $0x178] sm:$0xff]
    %v136 = vld [vmem:[%s3 + $0x180] sm:$0xff]
    %v137 = vld [vmem:[%s3 + $0x188] sm:$0xff]
    %v138 = vld [vmem:[%s3 + $0x190] sm:$0xff]
    %v139 = vld [vmem:[%s3 + $0x198] sm:$0xff]
    %v140 = vld [vmem:[%s3 + $0x1a0] sm:$0xff]
    %v141 = vld [vmem:[%s3 + $0x1a8] sm:$0xff]
    %v142 = vld [vmem:[%s3 + $0x1b0] sm:$0xff]
    %v143 = vld [vmem:[%s3 + $0x1b8] sm:$0xff]
    %v144 = vld [vmem:[%s3 + $0x1c0] sm:$0xff]
    %v145 = vld [vmem:[%s3 + $0x1c8] sm:$0xff]
    %v146 = vld [vmem:[%s3 + $0x1d0] sm:$0xff]
    %v147 = vld [vmem:[%s3 + $0x1d8] sm:$0xff]
    %v148 = vld [vmem:[%s3 + $0x1e0] sm:$0xff]
    %v149 = vld [vmem:[%s3 + $0x1e8] sm:$0xff]
    %v150 = vld [vmem:[%s3 + $0x1f0] sm:$0xff]
    %v151 = vld [vmem:[%s3 + $0x1f8] sm:$0xff]
    %v152 = vld [vmem:[%s3 + $0x200] sm:$0xff]
    %v153 = vld [vmem:[%s3 + $0x208] sm:$0xff]
    %v154 = vld [vmem:[%s3 + $0x210] sm:$0xff]
    %v155 = vld [vmem:[%s3 + $0x218] sm:$0xff]
    %v156 = vld [vmem:[%s3 + $0x220] sm:$0xff]
    %v157 = vld [vmem:[%s3 + $0x228] sm:$0xff]
    %v158 = vld [vmem:[%s3 + $0x230] sm:$0xff]
    %v159 = vld [vmem:[%s3 + $0x238] sm:$0xff]
    %v160 = vld [vmem:[%s3 + $0x240] sm:$0xff]
    %v161 = vld [vmem:[%s3 + $0x248] sm:$0xff]
    %v162 = vld [vmem:[%s3 + $0x250] sm:$0xff]
    %v163 = vld [vmem:[%s3 + $0x258] sm:$0xff]
    %v164 = vld [vmem:[%s3 + $0x260] sm:$0xff]
    %v165 = vld [vmem:[%s3 + $0x268] sm:$0xff]
    %v166 = vld [vmem:[%s3 + $0x270] sm:$0xff]
    %v167 = vld [vmem:[%s3 + $0x278] sm:$0xff]
    %v168 = vld [vmem:[%s3 + $0x280] sm:$0xff]
    %v169 = vld [vmem:[%s3 + $0x288] sm:$0xff]
    %v170 = vld [vmem:[%s3 + $0x290] sm:$0xff]
    %v171 = vld [vmem:[%s3 + $0x298] sm:$0xff]
    %v172 = vld [vmem:[%s3 + $0x2a0] sm:$0xff]
    %v173 = vld [vmem:[%s3 + $0x2a8] sm:$0xff]
    %v174 = vld [vmem:[%s3 + $0x2b0] sm:$0xff]
    %v175 = vld [vmem:[%s3 + $0x2b8] sm:$0xff]
    %v176 = vld [vmem:[%s3 + $0x2c0] sm:$0xff]
    %v177 = vld [vmem:[%s3 + $0x2c8] sm:$0xff]
    %v178 = vld [vmem:[%s3 + $0x2d0] sm:$0xff]
    %v179 = vld [vmem:[%s3 + $0x2d8] sm:$0xff]
    %v180 = vld [vmem:[%s3 + $0x2e0] sm:$0xff]
    %v181 = vld [vmem:[%s3 + $0x2e8] sm:$0xff]
    %v182 = vld [vmem:[%s3 + $0x2f0] sm:$0xff]
    %v183 = vld [vmem:[%s3 + $0x2f8] sm:$0xff]
    %v184 = vld [vmem:[%s3 + $0x300] sm:$0xff]
    %v185 = vld [vmem:[%s3 + $0x308] sm:$0xff]
    %v186 = vld [vmem:[%s3 + $0x310] sm:$0xff]
    %v187 = vld [vmem:[%s3 + $0x318] sm:$0xff]
    %v188 = vld [vmem:[%s3 + $0x320] sm:$0xff]
    %v189 = vld [vmem:[%s3 + $0x328] sm:$0xff]
    %v190 = vld [vmem:[%s3 + $0x330] sm:$0xff]
    %v191 = vld [vmem:[%s3 + $0x338] sm:$0xff]
    %v192 = vld [vmem:[%s3 + $0x340] sm:$0xff]
    %v193 = vld [vmem:[%s3 + $0x348] sm:$0xff]
    %v194 = vld [vmem:[%s3 + $0x350] sm:$0xff]
    %v195 = vld [vmem:[%s3 + $0x358] sm:$0xff]
    %v196 = vld [vmem:[%s3 + $0x360] sm:$0xff]
    %v197 = vld [vmem:[%s3 + $0x368] sm:$0xff]
    %v198 = vld [vmem:[%s3 + $0x370] sm:$0xff]
    %v199 = vld [vmem:[%s3 + $0x378] sm:$0xff]
    %v200 = vld [vmem:[%s3 + $0x380] sm:$0xff]
    %v201 = vld [vmem:[%s3 + $0x388] sm:$0xff]
    %v202 = vld [vmem:[%s3 + $0x390] sm:$0xff]
    %v203 = vld [vmem:[%s3 + $0x398] sm:$0xff]
    %v204 = vld [vmem:[%s3 + $0x3a0] sm:$0xff]
    %v205 = vld [vmem:[%s3 + $0x3a8] sm:$0xff]
    %v206 = vld [vmem:[%s3 + $0x3b0] sm:$0xff]
    %v207 = vld [vmem:[%s3 + $0x3b8] sm:$0xff]
    %v208 = vld [vmem:[%s3 + $0x3c0] sm:$0xff]
    %v209 = vld [vmem:[%s3 + $0x3c8] sm:$0xff]
    %v210 = vld [vmem:[%s3 + $0x3d0] sm:$0xff]
    %v211 = vld [vmem:[%s3 + $0x3d8] sm:$0xff]
    %v212 = vld [vmem:[%s3 + $0x3e0] sm:$0xff]
    %v213 = vld [vmem:[%s3 + $0x3e8] sm:$0xff]
    %v214 = vld [vmem:[%s3 + $0x3f0] sm:$0xff]
    %v215 = vld [vmem:[%s3 + $0x3f8] sm:$0xff]
    %v216 = vld [vmem:[%s2] sm:$0xff]
    %v217 = vld [vmem:[%s4] sm:$0xff]
    %v218 = vld [vmem:[%s4 + $0x8] sm:$0xff]
    %v219 = vld [vmem:[%s4 + $0x10] sm:$0xff]
    %v220 = vld [vmem:[%s4 + $0x18] sm:$0xff]
    %v221 = vld [vmem:[%s4 + $0x20] sm:$0xff]
    %v222 = vld [vmem:[%s4 + $0x28] sm:$0xff]
    %v223 = vld [vmem:[%s4 + $0x30] sm:$0xff]
    %v224 = vld [vmem:[%s4 + $0x38] sm:$0xff]
    %v225 = vld [vmem:[%s4 + $0x40] sm:$0xff]
    %v226 = vld [vmem:[%s4 + $0x48] sm:$0xff]
    %v227 = vld [vmem:[%s4 + $0x50] sm:$0xff]
    %v228 = vld [vmem:[%s4 + $0x58] sm:$0xff]
    %v229 = vld [vmem:[%s4 + $0x60] sm:$0xff]
    %v230 = vld [vmem:[%s4 + $0x68] sm:$0xff]
    %v231 = vld [vmem:[%s4 + $0x70] sm:$0xff]
    %v232 = vld [vmem:[%s4 + $0x78] sm:$0xff]
    %v233 = vld [vmem:[%s4 + $0x80] sm:$0xff]
    %v234 = vld [vmem:[%s4 + $0x88] sm:$0xff]
    %v235 = vld [vmem:[%s4 + $0x90] sm:$0xff]
    %v236 = vld [vmem:[%s4 + $0x98] sm:$0xff]
    %v237 = vld [vmem:[%s4 + $0xa0] sm:$0xff]
    %v238 = vld [vmem:[%s4 + $0xa8] sm:$0xff]
    %v239 = vld [vmem:[%s4 + $0xb0] sm:$0xff]
    %v240 = vld [vmem:[%s4 + $0xb8] sm:$0xff]
    %v241 = vld [vmem:[%s4 + $0xc0] sm:$0xff]
    %v242 = vld [vmem:[%s4 + $0xc8] sm:$0xff]
    %v243 = vld [vmem:[%s4 + $0xd0] sm:$0xff]
    %v244 = vld [vmem:[%s4 + $0xd8] sm:$0xff]
    %v245 = vld [vmem:[%s4 + $0xe0] sm:$0xff]
    %v246 = vld [vmem:[%s4 + $0xe8] sm:$0xff]
    %v247 = vld [vmem:[%s4 + $0xf0] sm:$0xff]
    %v248 = vld [vmem:[%s4 + $0xf8] sm:$0xff]
    %v249 = vld [vmem:[%s4 + $0x100] sm:$0xff]
    %v250 = vld [vmem:[%s4 + $0x108] sm:$0xff]
    %v251 = vld [vmem:[%s4 + $0x110] sm:$0xff]
    %v252 = vld [vmem:[%s4 + $0x118] sm:$0xff]
    %v253 = vld [vmem:[%s4 + $0x120] sm:$0xff]
    %v254 = vld [vmem:[%s4 + $0x128] sm:$0xff]
    %v255 = vld [vmem:[%s4 + $0x130] sm:$0xff]
    %v256 = vld [vmem:[%s4 + $0x138] sm:$0xff]
    %v257 = vld [vmem:[%s4 + $0x140] sm:$0xff]
    %v258 = vld [vmem:[%s4 + $0x148] sm:$0xff]
    %v259 = vld [vmem:[%s4 + $0x150] sm:$0xff]
    %v260 = vld [vmem:[%s4 + $0x158] sm:$0xff]
    %v261 = vld [vmem:[%s4 + $0x160] sm:$0xff]
    %v262 = vld [vmem:[%s4 + $0x168] sm:$0xff]
    %v263 = vld [vmem:[%s4 + $0x170] sm:$0xff]
    %v264 = vld [vmem:[%s4 + $0x178] sm:$0xff]
    %v265 = vld [vmem:[%s4 + $0x180] sm:$0xff]
    %v266 = vld [vmem:[%s4 + $0x188] sm:$0xff]
    %v267 = vld [vmem:[%s4 + $0x190] sm:$0xff]
    %v268 = vld [vmem:[%s4 + $0x198] sm:$0xff]
    %v269 = vld [vmem:[%s4 + $0x1a0] sm:$0xff]
    %v270 = vld [vmem:[%s4 + $0x1a8] sm:$0xff]
    %v271 = vld [vmem:[%s4 + $0x1b0] sm:$0xff]
    %v272 = vld [vmem:[%s4 + $0x1b8] sm:$0xff]
    %v273 = vld [vmem:[%s4 + $0x1c0] sm:$0xff]
    %v274 = vld [vmem:[%s4 + $0x1c8] sm:$0xff]
    %v275 = vld [vmem:[%s4 + $0x1d0] sm:$0xff]
    %v276 = vld [vmem:[%s4 + $0x1d8] sm:$0xff]
    %v277 = vld [vmem:[%s4 + $0x1e0] sm:$0xff]
    %v278 = vld [vmem:[%s4 + $0x1e8] sm:$0xff]
    %v279 = vld [vmem:[%s4 + $0x1f0] sm:$0xff]
    %v280 = vld [vmem:[%s4 + $0x1f8] sm:$0xff]
    %v282 = vunpack.c.l.b16 %v216
    %v283 = vunpack.c.h.b16 %v216
    %v284 = vpack.c.b16 %v282, %v282
    %v285 = vpack.c.b16 %v283, %v283
    %v352 = vunpack.c.l.b16 %v217
    %v353 = vunpack.c.h.b16 %v217
    %v354 = vunpack.c.l.b16 %v218
    %v355 = vunpack.c.h.b16 %v218
    %v356 = vunpack.c.l.b16 %v219
    %v357 = vunpack.c.h.b16 %v219
    %v358 = vunpack.c.l.b16 %v220
    %v359 = vunpack.c.h.b16 %v220
    %v360 = vunpack.c.l.b16 %v221
    %v361 = vunpack.c.h.b16 %v221
    %v362 = vunpack.c.l.b16 %v222
    %v363 = vunpack.c.h.b16 %v222
    %v364 = vunpack.c.l.b16 %v223
    %v365 = vunpack.c.h.b16 %v223
    %v366 = vunpack.c.l.b16 %v224
    %v367 = vunpack.c.h.b16 %v224
    %v368 = vunpack.c.l.b16 %v225
    %v369 = vunpack.c.h.b16 %v225
    %v370 = vunpack.c.l.b16 %v226
    %v371 = vunpack.c.h.b16 %v226
    %v372 = vunpack.c.l.b16 %v227
    %v373 = vunpack.c.h.b16 %v227
    %v374 = vunpack.c.l.b16 %v228
    %v375 = vunpack.c.h.b16 %v228
    %v376 = vunpack.c.l.b16 %v229
    %v377 = vunpack.c.h.b16 %v229
    %v378 = vunpack.c.l.b16 %v230
    %v379 = vunpack.c.h.b16 %v230
    %v380 = vunpack.c.l.b16 %v231
    %v381 = vunpack.c.h.b16 %v231
    %v382 = vunpack.c.l.b16 %v232
    %v383 = vunpack.c.h.b16 %v232
    %v384 = vunpack.c.l.b16 %v233
    %v385 = vunpack.c.h.b16 %v233
    %v386 = vunpack.c.l.b16 %v234
    %v387 = vunpack.c.h.b16 %v234
    %v388 = vunpack.c.l.b16 %v235
    %v389 = vunpack.c.h.b16 %v235
    %v390 = vunpack.c.l.b16 %v236
    %v391 = vunpack.c.h.b16 %v236
    %v392 = vunpack.c.l.b16 %v237
    %v393 = vunpack.c.h.b16 %v237
    %v394 = vunpack.c.l.b16 %v238
    %v395 = vunpack.c.h.b16 %v238
    %v396 = vunpack.c.l.b16 %v239
    %v397 = vunpack.c.h.b16 %v239
    %v398 = vunpack.c.l.b16 %v240
    %v399 = vunpack.c.h.b16 %v240
    %v400 = vunpack.c.l.b16 %v241
    %v401 = vunpack.c.h.b16 %v241
    %v402 = vunpack.c.l.b16 %v242
    %v403 = vunpack.c.h.b16 %v242
    %v404 = vunpack.c.l.b16 %v243
    %v405 = vunpack.c.h.b16 %v243
    %v406 = vunpack.c.l.b16 %v244
    %v407 = vunpack.c.h.b16 %v244
    %v408 = vunpack.c.l.b16 %v245
    %v409 = vunpack.c.h.b16 %v245
    %v410 = vunpack.c.l.b16 %v246
    %v411 = vunpack.c.h.b16 %v246
    %v412 = vunpack.c.l.b16 %v247
    %v413 = vunpack.c.h.b16 %v247
    %v414 = vunpack.c.l.b16 %v248
    %v415 = vunpack.c.h.b16 %v248
    %v416 = vunpack.c.l.b16 %v249
    %v417 = vunpack.c.h.b16 %v249
    %v418 = vunpack.c.l.b16 %v250
    %v419 = vunpack.c.h.b16 %v250
    %v420 = vunpack.c.l.b16 %v251
    %v421 = vunpack.c.h.b16 %v251
    %v422 = vunpack.c.l.b16 %v252
    %v423 = vunpack.c.h.b16 %v252
    %v424 = vunpack.c.l.b16 %v253
    %v425 = vunpack.c.h.b16 %v253
    %v426 = vunpack.c.l.b16 %v254
    %v427 = vunpack.c.h.b16 %v254
    %v428 = vunpack.c.l.b16 %v255
    %v429 = vunpack.c.h.b16 %v255
    %v430 = vunpack.c.l.b16 %v256
    %v431 = vunpack.c.h.b16 %v256
    %v432 = vunpack.c.l.b16 %v257
    %v433 = vunpack.c.h.b16 %v257
    %v434 = vunpack.c.l.b16 %v258
    %v435 = vunpack.c.h.b16 %v258
    %v436 = vunpack.c.l.b16 %v259
    %v437 = vunpack.c.h.b16 %v259
    %v438 = vunpack.c.l.b16 %v260
    %v439 = vunpack.c.h.b16 %v260
    %v440 = vunpack.c.l.b16 %v261
    %v441 = vunpack.c.h.b16 %v261
    %v442 = vunpack.c.l.b16 %v262
    %v443 = vunpack.c.h.b16 %v262
    %v444 = vunpack.c.l.b16 %v263
    %v445 = vunpack.c.h.b16 %v263
    %v446 = vunpack.c.l.b16 %v264
    %v447 = vunpack.c.h.b16 %v264
    %v448 = vunpack.c.l.b16 %v265
    %v449 = vunpack.c.h.b16 %v265
    %v450 = vunpack.c.l.b16 %v266
    %v451 = vunpack.c.h.b16 %v266
    %v452 = vunpack.c.l.b16 %v267
    %v453 = vunpack.c.h.b16 %v267
    %v454 = vunpack.c.l.b16 %v268
    %v455 = vunpack.c.h.b16 %v268
    %v456 = vunpack.c.l.b16 %v269
    %v457 = vunpack.c.h.b16 %v269
    %v458 = vunpack.c.l.b16 %v270
    %v459 = vunpack.c.h.b16 %v270
    %v460 = vunpack.c.l.b16 %v271
    %v461 = vunpack.c.h.b16 %v271
    %v462 = vunpack.c.l.b16 %v272
    %v463 = vunpack.c.h.b16 %v272
    %v464 = vunpack.c.l.b16 %v273
    %v465 = vunpack.c.h.b16 %v273
    %v466 = vunpack.c.l.b16 %v274
    %v467 = vunpack.c.h.b16 %v274
    %v468 = vunpack.c.l.b16 %v275
    %v469 = vunpack.c.h.b16 %v275
    %v470 = vunpack.c.l.b16 %v276
    %v471 = vunpack.c.h.b16 %v276
    %v472 = vunpack.c.l.b16 %v277
    %v473 = vunpack.c.h.b16 %v277
    %v474 = vunpack.c.l.b16 %v278
    %v475 = vunpack.c.h.b16 %v278
    %v476 = vunpack.c.l.b16 %v279
    %v477 = vunpack.c.h.b16 %v279
    %v478 = vunpack.c.l.b16 %v280
    %v479 = vunpack.c.h.b16 %v280
    %v480 = vpack.c.b16 %v356, %v352
    %v481 = vpack.c.b16 %v357, %v353
    %v482 = vpack.c.b16 %v358, %v354
    %v483 = vpack.c.b16 %v359, %v355
    %v484 = vpack.c.b16 %v364, %v360
    %v485 = vpack.c.b16 %v365, %v361
    %v486 = vpack.c.b16 %v366, %v362
    %v487 = vpack.c.b16 %v367, %v363
    %v488 = vpack.c.b16 %v372, %v368
    %v489 = vpack.c.b16 %v373, %v369
    %v490 = vpack.c.b16 %v374, %v370
    %v491 = vpack.c.b16 %v375, %v371
    %v492 = vpack.c.b16 %v380, %v376
    %v493 = vpack.c.b16 %v381, %v377
    %v494 = vpack.c.b16 %v382, %v378
    %v495 = vpack.c.b16 %v383, %v379
    %v496 = vpack.c.b16 %v388, %v384
    %v497 = vpack.c.b16 %v389, %v385
    %v498 = vpack.c.b16 %v390, %v386
    %v499 = vpack.c.b16 %v391, %v387
    %v500 = vpack.c.b16 %v396, %v392
    %v501 = vpack.c.b16 %v397, %v393
    %v502 = vpack.c.b16 %v398, %v394
    %v503 = vpack.c.b16 %v399, %v395
    %v504 = vpack.c.b16 %v404, %v400
    %v505 = vpack.c.b16 %v405, %v401
    %v506 = vpack.c.b16 %v406, %v402
    %v507 = vpack.c.b16 %v407, %v403
    %v508 = vpack.c.b16 %v412, %v408
    %v509 = vpack.c.b16 %v413, %v409
    %v510 = vpack.c.b16 %v414, %v410
    %v511 = vpack.c.b16 %v415, %v411
    %v512 = vpack.c.b16 %v420, %v416
    %v513 = vpack.c.b16 %v421, %v417
    %v514 = vpack.c.b16 %v422, %v418
    %v515 = vpack.c.b16 %v423, %v419
    %v516 = vpack.c.b16 %v428, %v424
    %v517 = vpack.c.b16 %v429, %v425
    %v518 = vpack.c.b16 %v430, %v426
    %v519 = vpack.c.b16 %v431, %v427
    %v520 = vpack.c.b16 %v436, %v432
    %v521 = vpack.c.b16 %v437, %v433
    %v522 = vpack.c.b16 %v438, %v434
    %v523 = vpack.c.b16 %v439, %v435
    %v524 = vpack.c.b16 %v444, %v440
    %v525 = vpack.c.b16 %v445, %v441
    %v526 = vpack.c.b16 %v446, %v442
    %v527 = vpack.c.b16 %v447, %v443
    %v528 = vpack.c.b16 %v452, %v448
    %v529 = vpack.c.b16 %v453, %v449
    %v530 = vpack.c.b16 %v454, %v450
    %v531 = vpack.c.b16 %v455, %v451
    %v532 = vpack.c.b16 %v460, %v456
    %v533 = vpack.c.b16 %v461, %v457
    %v534 = vpack.c.b16 %v462, %v458
    %v535 = vpack.c.b16 %v463, %v459
    %v536 = vpack.c.b16 %v468, %v464
    %v537 = vpack.c.b16 %v469, %v465
    %v538 = vpack.c.b16 %v470, %v466
    %v539 = vpack.c.b16 %v471, %v467
    %v540 = vpack.c.b16 %v476, %v472
    %v541 = vpack.c.b16 %v477, %v473
    %v542 = vpack.c.b16 %v478, %v474
    %v543 = vpack.c.b16 %v479, %v475
    %608 = vmatpush.bf16.msra.mxu0 %v508
    %609 = vmatpush.bf16.msra.mxu0 %v504
    %610 = vmatpush.bf16.msra.mxu0 %v500
    %611 = vmatpush.bf16.msra.mxu0 %v496
    %612 = vmatpush.bf16.msra.mxu0 %v492
    %613 = vmatpush.bf16.msra.mxu0 %v488
    %614 = vmatpush.bf16.msra.mxu0 %v484
    %615 = vmatpush.bf16.msra.mxu0 %v480
    %616 = vmatmul.bf16.gmra.mxu0 %v284
    %v617 = vpop.f32.mrf.mxu0
    %v618 = vadd.f32 0.0, %v617
    %v619 = vpop.f32.mrf.mxu0
    %620 = vdwg.mxu0
    %621 = vmatpush.bf16.msra.mxu0 %v540
    %622 = vmatpush.bf16.msra.mxu0 %v536
    %623 = vmatpush.bf16.msra.mxu0 %v532
    %624 = vmatpush.bf16.msra.mxu0 %v528
    %625 = vmatpush.bf16.msra.mxu0 %v524
    %626 = vmatpush.bf16.msra.mxu0 %v520
    %627 = vmatpush.bf16.msra.mxu0 %v516
    %628 = vmatpush.bf16.msra.mxu0 %v512
    %629 = vmatmul.bf16.gmra.mxu0 %v285
    %v630 = vpop.f32.mrf.mxu0
    %v631 = vadd.f32 %v618, %v630
    %v632 = vpop.f32.mrf.mxu0
    %633 = vdwg.mxu0
    %634 = vmatpush.bf16.msra.mxu0 %v509
    %635 = vmatpush.bf16.msra.mxu0 %v505
    %636 = vmatpush.bf16.msra.mxu0 %v501
    %637 = vmatpush.bf16.msra.mxu0 %v497
    %638 = vmatpush.bf16.msra.mxu0 %v493
    %639 = vmatpush.bf16.msra.mxu0 %v489
    %640 = vmatpush.bf16.msra.mxu0 %v485
    %641 = vmatpush.bf16.msra.mxu0 %v481
    %642 = vmatmul.bf16.gmra.mxu0 %v284
    %v643 = vpop.f32.mrf.mxu0
    %v644 = vadd.f32 0.0, %v643
    %v645 = vpop.f32.mrf.mxu0
    %646 = vdwg.mxu0
    %647 = vmatpush.bf16.msra.mxu0 %v541
    %648 = vmatpush.bf16.msra.mxu0 %v537
    %649 = vmatpush.bf16.msra.mxu0 %v533
    %650 = vmatpush.bf16.msra.mxu0 %v529
    %651 = vmatpush.bf16.msra.mxu0 %v525
    %652 = vmatpush.bf16.msra.mxu0 %v521
    %653 = vmatpush.bf16.msra.mxu0 %v517
    %654 = vmatpush.bf16.msra.mxu0 %v513
    %655 = vmatmul.bf16.gmra.mxu0 %v285
    %v656 = vpop.f32.mrf.mxu0
    %v657 = vadd.f32 %v644, %v656
    %v658 = vpop.f32.mrf.mxu0
    %659 = vdwg.mxu0
    %660 = vmatpush.bf16.msra.mxu0 %v510
    %661 = vmatpush.bf16.msra.mxu0 %v506
    %662 = vmatpush.bf16.msra.mxu0 %v502
    %663 = vmatpush.bf16.msra.mxu0 %v498
    %664 = vmatpush.bf16.msra.mxu0 %v494
    %665 = vmatpush.bf16.msra.mxu0 %v490
    %666 = vmatpush.bf16.msra.mxu0 %v486
    %667 = vmatpush.bf16.msra.mxu0 %v482
    %668 = vmatmul.bf16.gmra.mxu0 %v284
    %v669 = vpop.f32.mrf.mxu0
    %v670 = vadd.f32 0.0, %v669
    %v671 = vpop.f32.mrf.mxu0
    %672 = vdwg.mxu0
    %673 = vmatpush.bf16.msra.mxu0 %v542
    %674 = vmatpush.bf16.msra.mxu0 %v538
    %675 = vmatpush.bf16.msra.mxu0 %v534
    %676 = vmatpush.bf16.msra.mxu0 %v530
    %677 = vmatpush.bf16.msra.mxu0 %v526
    %678 = vmatpush.bf16.msra.mxu0 %v522
    %679 = vmatpush.bf16.msra.mxu0 %v518
    %680 = vmatpush.bf16.msra.mxu0 %v514
    %681 = vmatmul.bf16.gmra.mxu0 %v285
    %v682 = vpop.f32.mrf.mxu0
    %v683 = vadd.f32 %v670, %v682
    %v684 = vpop.f32.mrf.mxu0
    %685 = vdwg.mxu0
    %686 = vmatpush.bf16.msra.mxu0 %v511
    %687 = vmatpush.bf16.msra.mxu0 %v507
    %688 = vmatpush.bf16.msra.mxu0 %v503
    %689 = vmatpush.bf16.msra.mxu0 %v499
    %690 = vmatpush.bf16.msra.mxu0 %v495
    %691 = vmatpush.bf16.msra.mxu0 %v491
    %692 = vmatpush.bf16.msra.mxu0 %v487
    %693 = vmatpush.bf16.msra.mxu0 %v483
    %694 = vmatmul.bf16.gmra.mxu0 %v284
    %v695 = vpop.f32.mrf.mxu0
    %v696 = vadd.f32 0.0, %v695
    %v697 = vpop.f32.mrf.mxu0
    %698 = vdwg.mxu0
    %699 = vmatpush.bf16.msra.mxu0 %v543
    %700 = vmatpush.bf16.msra.mxu0 %v539
    %701 = vmatpush.bf16.msra.mxu0 %v535
    %702 = vmatpush.bf16.msra.mxu0 %v531
    %703 = vmatpush.bf16.msra.mxu0 %v527
    %704 = vmatpush.bf16.msra.mxu0 %v523
    %705 = vmatpush.bf16.msra.mxu0 %v519
    %706 = vmatpush.bf16.msra.mxu0 %v515
    %707 = vmatmul.bf16.gmra.mxu0 %v285
    %v708 = vpop.f32.mrf.mxu0
    %v709 = vadd.f32 %v696, %v708
    %v710 = vpop.f32.mrf.mxu0
    %711 = vdwg.mxu0
    %v840 = vunpack.c.l.b16 %v88
    %v841 = vunpack.c.h.b16 %v88
    %v842 = vunpack.c.l.b16 %v89
    %v843 = vunpack.c.h.b16 %v89
    %v844 = vunpack.c.l.b16 %v90
    %v845 = vunpack.c.h.b16 %v90
    %v846 = vunpack.c.l.b16 %v91
    %v847 = vunpack.c.h.b16 %v91
    %v848 = vunpack.c.l.b16 %v92
    %v849 = vunpack.c.h.b16 %v92
    %v850 = vunpack.c.l.b16 %v93
    %v851 = vunpack.c.h.b16 %v93
    %v852 = vunpack.c.l.b16 %v94
    %v853 = vunpack.c.h.b16 %v94
    %v854 = vunpack.c.l.b16 %v95
    %v855 = vunpack.c.h.b16 %v95
    %v856 = vunpack.c.l.b16 %v96
    %v857 = vunpack.c.h.b16 %v96
    %v858 = vunpack.c.l.b16 %v97
    %v859 = vunpack.c.h.b16 %v97
    %v860 = vunpack.c.l.b16 %v98
    %v861 = vunpack.c.h.b16 %v98
    %v862 = vunpack.c.l.b16 %v99
    %v863 = vunpack.c.h.b16 %v99
    %v864 = vunpack.c.l.b16 %v100
    %v865 = vunpack.c.h.b16 %v100
    %v866 = vunpack.c.l.b16 %v101
    %v867 = vunpack.c.h.b16 %v101
    %v868 = vunpack.c.l.b16 %v102
    %v869 = vunpack.c.h.b16 %v102
    %v870 = vunpack.c.l.b16 %v103
    %v871 = vunpack.c.h.b16 %v103
    %v872 = vunpack.c.l.b16 %v104
    %v873 = vunpack.c.h.b16 %v104
    %v874 = vunpack.c.l.b16 %v105
    %v875 = vunpack.c.h.b16 %v105
    %v876 = vunpack.c.l.b16 %v106
    %v877 = vunpack.c.h.b16 %v106
    %v878 = vunpack.c.l.b16 %v107
    %v879 = vunpack.c.h.b16 %v107
    %v880 = vunpack.c.l.b16 %v108
    %v881 = vunpack.c.h.b16 %v108
    %v882 = vunpack.c.l.b16 %v109
    %v883 = vunpack.c.h.b16 %v109
    %v884 = vunpack.c.l.b16 %v110
    %v885 = vunpack.c.h.b16 %v110
    %v886 = vunpack.c.l.b16 %v111
    %v887 = vunpack.c.h.b16 %v111
    %v888 = vunpack.c.l.b16 %v112
    %v889 = vunpack.c.h.b16 %v112
    %v890 = vunpack.c.l.b16 %v113
    %v891 = vunpack.c.h.b16 %v113
    %v892 = vunpack.c.l.b16 %v114
    %v893 = vunpack.c.h.b16 %v114
    %v894 = vunpack.c.l.b16 %v115
    %v895 = vunpack.c.h.b16 %v115
    %v896 = vunpack.c.l.b16 %v116
    %v897 = vunpack.c.h.b16 %v116
    %v898 = vunpack.c.l.b16 %v117
    %v899 = vunpack.c.h.b16 %v117
    %v900 = vunpack.c.l.b16 %v118
    %v901 = vunpack.c.h.b16 %v118
    %v902 = vunpack.c.l.b16 %v119
    %v903 = vunpack.c.h.b16 %v119
    %v904 = vunpack.c.l.b16 %v120
    %v905 = vunpack.c.h.b16 %v120
    %v906 = vunpack.c.l.b16 %v121
    %v907 = vunpack.c.h.b16 %v121
    %v908 = vunpack.c.l.b16 %v122
    %v909 = vunpack.c.h.b16 %v122
    %v910 = vunpack.c.l.b16 %v123
    %v911 = vunpack.c.h.b16 %v123
    %v912 = vunpack.c.l.b16 %v124
    %v913 = vunpack.c.h.b16 %v124
    %v914 = vunpack.c.l.b16 %v125
    %v915 = vunpack.c.h.b16 %v125
    %v916 = vunpack.c.l.b16 %v126
    %v917 = vunpack.c.h.b16 %v126
    %v918 = vunpack.c.l.b16 %v127
    %v919 = vunpack.c.h.b16 %v127
    %v920 = vunpack.c.l.b16 %v128
    %v921 = vunpack.c.h.b16 %v128
    %v922 = vunpack.c.l.b16 %v129
    %v923 = vunpack.c.h.b16 %v129
    %v924 = vunpack.c.l.b16 %v130
    %v925 = vunpack.c.h.b16 %v130
    %v926 = vunpack.c.l.b16 %v131
    %v927 = vunpack.c.h.b16 %v131
    %v928 = vunpack.c.l.b16 %v132
    %v929 = vunpack.c.h.b16 %v132
    %v930 = vunpack.c.l.b16 %v133
    %v931 = vunpack.c.h.b16 %v133
    %v932 = vunpack.c.l.b16 %v134
    %v933 = vunpack.c.h.b16 %v134
    %v934 = vunpack.c.l.b16 %v135
    %v935 = vunpack.c.h.b16 %v135
    %v936 = vunpack.c.l.b16 %v136
    %v937 = vunpack.c.h.b16 %v136
    %v938 = vunpack.c.l.b16 %v137
    %v939 = vunpack.c.h.b16 %v137
    %v940 = vunpack.c.l.b16 %v138
    %v941 = vunpack.c.h.b16 %v138
    %v942 = vunpack.c.l.b16 %v139
    %v943 = vunpack.c.h.b16 %v139
    %v944 = vunpack.c.l.b16 %v140
    %v945 = vunpack.c.h.b16 %v140
    %v946 = vunpack.c.l.b16 %v141
    %v947 = vunpack.c.h.b16 %v141
    %v948 = vunpack.c.l.b16 %v142
    %v949 = vunpack.c.h.b16 %v142
    %v950 = vunpack.c.l.b16 %v143
    %v951 = vunpack.c.h.b16 %v143
    %v952 = vunpack.c.l.b16 %v144
    %v953 = vunpack.c.h.b16 %v144
    %v954 = vunpack.c.l.b16 %v145
    %v955 = vunpack.c.h.b16 %v145
    %v956 = vunpack.c.l.b16 %v146
    %v957 = vunpack.c.h.b16 %v146
    %v958 = vunpack.c.l.b16 %v147
    %v959 = vunpack.c.h.b16 %v147
    %v960 = vunpack.c.l.b16 %v148
    %v961 = vunpack.c.h.b16 %v148
    %v962 = vunpack.c.l.b16 %v149
    %v963 = vunpack.c.h.b16 %v149
    %v964 = vunpack.c.l.b16 %v150
    %v965 = vunpack.c.h.b16 %v150
    %v966 = vunpack.c.l.b16 %v151
    %v967 = vunpack.c.h.b16 %v151
    %v968 = vunpack.c.l.b16 %v152
    %v969 = vunpack.c.h.b16 %v152
    %v970 = vunpack.c.l.b16 %v153
    %v971 = vunpack.c.h.b16 %v153
    %v972 = vunpack.c.l.b16 %v154
    %v973 = vunpack.c.h.b16 %v154
    %v974 = vunpack.c.l.b16 %v155
    %v975 = vunpack.c.h.b16 %v155
    %v976 = vunpack.c.l.b16 %v156
    %v977 = vunpack.c.h.b16 %v156
    %v978 = vunpack.c.l.b16 %v157
    %v979 = vunpack.c.h.b16 %v157
    %v980 = vunpack.c.l.b16 %v158
    %v981 = vunpack.c.h.b16 %v158
    %v982 = vunpack.c.l.b16 %v159
    %v983 = vunpack.c.h.b16 %v159
    %v984 = vunpack.c.l.b16 %v160
    %v985 = vunpack.c.h.b16 %v160
    %v986 = vunpack.c.l.b16 %v161
    %v987 = vunpack.c.h.b16 %v161
    %v988 = vunpack.c.l.b16 %v162
    %v989 = vunpack.c.h.b16 %v162
    %v990 = vunpack.c.l.b16 %v163
    %v991 = vunpack.c.h.b16 %v163
    %v992 = vunpack.c.l.b16 %v164
    %v993 = vunpack.c.h.b16 %v164
    %v994 = vunpack.c.l.b16 %v165
    %v995 = vunpack.c.h.b16 %v165
    %v996 = vunpack.c.l.b16 %v166
    %v997 = vunpack.c.h.b16 %v166
    %v998 = vunpack.c.l.b16 %v167
    %v999 = vunpack.c.h.b16 %v167
    %v1000 = vunpack.c.l.b16 %v168
    %v1001 = vunpack.c.h.b16 %v168
    %v1002 = vunpack.c.l.b16 %v169
    %v1003 = vunpack.c.h.b16 %v169
    %v1004 = vunpack.c.l.b16 %v170
    %v1005 = vunpack.c.h.b16 %v170
    %v1006 = vunpack.c.l.b16 %v171
    %v1007 = vunpack.c.h.b16 %v171
    %v1008 = vunpack.c.l.b16 %v172
    %v1009 = vunpack.c.h.b16 %v172
    %v1010 = vunpack.c.l.b16 %v173
    %v1011 = vunpack.c.h.b16 %v173
    %v1012 = vunpack.c.l.b16 %v174
    %v1013 = vunpack.c.h.b16 %v174
    %v1014 = vunpack.c.l.b16 %v175
    %v1015 = vunpack.c.h.b16 %v175
    %v1016 = vunpack.c.l.b16 %v176
    %v1017 = vunpack.c.h.b16 %v176
    %v1018 = vunpack.c.l.b16 %v177
    %v1019 = vunpack.c.h.b16 %v177
    %v1020 = vunpack.c.l.b16 %v178
    %v1021 = vunpack.c.h.b16 %v178
    %v1022 = vunpack.c.l.b16 %v179
    %v1023 = vunpack.c.h.b16 %v179
    %v1024 = vunpack.c.l.b16 %v180
    %v1025 = vunpack.c.h.b16 %v180
    %v1026 = vunpack.c.l.b16 %v181
    %v1027 = vunpack.c.h.b16 %v181
    %v1028 = vunpack.c.l.b16 %v182
    %v1029 = vunpack.c.h.b16 %v182
    %v1030 = vunpack.c.l.b16 %v183
    %v1031 = vunpack.c.h.b16 %v183
    %v1032 = vunpack.c.l.b16 %v184
    %v1033 = vunpack.c.h.b16 %v184
    %v1034 = vunpack.c.l.b16 %v185
    %v1035 = vunpack.c.h.b16 %v185
    %v1036 = vunpack.c.l.b16 %v186
    %v1037 = vunpack.c.h.b16 %v186
    %v1038 = vunpack.c.l.b16 %v187
    %v1039 = vunpack.c.h.b16 %v187
    %v1040 = vunpack.c.l.b16 %v188
    %v1041 = vunpack.c.h.b16 %v188
    %v1042 = vunpack.c.l.b16 %v189
    %v1043 = vunpack.c.h.b16 %v189
    %v1044 = vunpack.c.l.b16 %v190
    %v1045 = vunpack.c.h.b16 %v190
    %v1046 = vunpack.c.l.b16 %v191
    %v1047 = vunpack.c.h.b16 %v191
    %v1048 = vunpack.c.l.b16 %v192
    %v1049 = vunpack.c.h.b16 %v192
    %v1050 = vunpack.c.l.b16 %v193
    %v1051 = vunpack.c.h.b16 %v193
    %v1052 = vunpack.c.l.b16 %v194
    %v1053 = vunpack.c.h.b16 %v194
    %v1054 = vunpack.c.l.b16 %v195
    %v1055 = vunpack.c.h.b16 %v195
    %v1056 = vunpack.c.l.b16 %v196
    %v1057 = vunpack.c.h.b16 %v196
    %v1058 = vunpack.c.l.b16 %v197
    %v1059 = vunpack.c.h.b16 %v197
    %v1060 = vunpack.c.l.b16 %v198
    %v1061 = vunpack.c.h.b16 %v198
    %v1062 = vunpack.c.l.b16 %v199
    %v1063 = vunpack.c.h.b16 %v199
    %v1064 = vunpack.c.l.b16 %v200
    %v1065 = vunpack.c.h.b16 %v200
    %v1066 = vunpack.c.l.b16 %v201
    %v1067 = vunpack.c.h.b16 %v201
    %v1068 = vunpack.c.l.b16 %v202
    %v1069 = vunpack.c.h.b16 %v202
    %v1070 = vunpack.c.l.b16 %v203
    %v1071 = vunpack.c.h.b16 %v203
    %v1072 = vunpack.c.l.b16 %v204
    %v1073 = vunpack.c.h.b16 %v204
    %v1074 = vunpack.c.l.b16 %v205
    %v1075 = vunpack.c.h.b16 %v205
    %v1076 = vunpack.c.l.b16 %v206
    %v1077 = vunpack.c.h.b16 %v206
    %v1078 = vunpack.c.l.b16 %v207
    %v1079 = vunpack.c.h.b16 %v207
    %v1080 = vunpack.c.l.b16 %v208
    %v1081 = vunpack.c.h.b16 %v208
    %v1082 = vunpack.c.l.b16 %v209
    %v1083 = vunpack.c.h.b16 %v209
    %v1084 = vunpack.c.l.b16 %v210
    %v1085 = vunpack.c.h.b16 %v210
    %v1086 = vunpack.c.l.b16 %v211
    %v1087 = vunpack.c.h.b16 %v211
    %v1088 = vunpack.c.l.b16 %v212
    %v1089 = vunpack.c.h.b16 %v212
    %v1090 = vunpack.c.l.b16 %v213
    %v1091 = vunpack.c.h.b16 %v213
    %v1092 = vunpack.c.l.b16 %v214
    %v1093 = vunpack.c.h.b16 %v214
    %v1094 = vunpack.c.l.b16 %v215
    %v1095 = vunpack.c.h.b16 %v215
    %v1096 = vpack.c.b16 %v844, %v840
    %v1097 = vpack.c.b16 %v845, %v841
    %v1098 = vpack.c.b16 %v846, %v842
    %v1099 = vpack.c.b16 %v847, %v843
    %v1100 = vpack.c.b16 %v852, %v848
    %v1101 = vpack.c.b16 %v853, %v849
    %v1102 = vpack.c.b16 %v854, %v850
    %v1103 = vpack.c.b16 %v855, %v851
    %v1104 = vpack.c.b16 %v860, %v856
    %v1105 = vpack.c.b16 %v861, %v857
    %v1106 = vpack.c.b16 %v862, %v858
    %v1107 = vpack.c.b16 %v863, %v859
    %v1108 = vpack.c.b16 %v868, %v864
    %v1109 = vpack.c.b16 %v869, %v865
    %v1110 = vpack.c.b16 %v870, %v866
    %v1111 = vpack.c.b16 %v871, %v867
    %v1112 = vpack.c.b16 %v876, %v872
    %v1113 = vpack.c.b16 %v877, %v873
    %v1114 = vpack.c.b16 %v878, %v874
    %v1115 = vpack.c.b16 %v879, %v875
    %v1116 = vpack.c.b16 %v884, %v880
    %v1117 = vpack.c.b16 %v885, %v881
    %v1118 = vpack.c.b16 %v886, %v882
    %v1119 = vpack.c.b16 %v887, %v883
    %v1120 = vpack.c.b16 %v892, %v888
    %v1121 = vpack.c.b16 %v893, %v889
    %v1122 = vpack.c.b16 %v894, %v890
    %v1123 = vpack.c.b16 %v895, %v891
    %v1124 = vpack.c.b16 %v900, %v896
    %v1125 = vpack.c.b16 %v901, %v897
    %v1126 = vpack.c.b16 %v902, %v898
    %v1127 = vpack.c.b16 %v903, %v899
    %v1128 = vpack.c.b16 %v908, %v904
    %v1129 = vpack.c.b16 %v909, %v905
    %v1130 = vpack.c.b16 %v910, %v906
    %v1131 = vpack.c.b16 %v911, %v907
    %v1132 = vpack.c.b16 %v916, %v912
    %v1133 = vpack.c.b16 %v917, %v913
    %v1134 = vpack.c.b16 %v918, %v914
    %v1135 = vpack.c.b16 %v919, %v915
    %v1136 = vpack.c.b16 %v924, %v920
    %v1137 = vpack.c.b16 %v925, %v921
    %v1138 = vpack.c.b16 %v926, %v922
    %v1139 = vpack.c.b16 %v927, %v923
    %v1140 = vpack.c.b16 %v932, %v928
    %v1141 = vpack.c.b16 %v933, %v929
    %v1142 = vpack.c.b16 %v934, %v930
    %v1143 = vpack.c.b16 %v935, %v931
    %v1144 = vpack.c.b16 %v940, %v936
    %v1145 = vpack.c.b16 %v941, %v937
    %v1146 = vpack.c.b16 %v942, %v938
    %v1147 = vpack.c.b16 %v943, %v939
    %v1148 = vpack.c.b16 %v948, %v944
    %v1149 = vpack.c.b16 %v949, %v945
    %v1150 = vpack.c.b16 %v950, %v946
    %v1151 = vpack.c.b16 %v951, %v947
    %v1152 = vpack.c.b16 %v956, %v952
    %v1153 = vpack.c.b16 %v957, %v953
    %v1154 = vpack.c.b16 %v958, %v954
    %v1155 = vpack.c.b16 %v959, %v955
    %v1156 = vpack.c.b16 %v964, %v960
    %v1157 = vpack.c.b16 %v965, %v961
    %v1158 = vpack.c.b16 %v966, %v962
    %v1159 = vpack.c.b16 %v967, %v963
    %v1160 = vpack.c.b16 %v972, %v968
    %v1161 = vpack.c.b16 %v973, %v969
    %v1162 = vpack.c.b16 %v974, %v970
    %v1163 = vpack.c.b16 %v975, %v971
    %v1164 = vpack.c.b16 %v980, %v976
    %v1165 = vpack.c.b16 %v981, %v977
    %v1166 = vpack.c.b16 %v982, %v978
    %v1167 = vpack.c.b16 %v983, %v979
    %v1168 = vpack.c.b16 %v988, %v984
    %v1169 = vpack.c.b16 %v989, %v985
    %v1170 = vpack.c.b16 %v990, %v986
    %v1171 = vpack.c.b16 %v991, %v987
    %v1172 = vpack.c.b16 %v996, %v992
    %v1173 = vpack.c.b16 %v997, %v993
    %v1174 = vpack.c.b16 %v998, %v994
    %v1175 = vpack.c.b16 %v999, %v995
    %v1176 = vpack.c.b16 %v1004, %v1000
    %v1177 = vpack.c.b16 %v1005, %v1001
    %v1178 = vpack.c.b16 %v1006, %v1002
    %v1179 = vpack.c.b16 %v1007, %v1003
    %v1180 = vpack.c.b16 %v1012, %v1008
    %v1181 = vpack.c.b16 %v1013, %v1009
    %v1182 = vpack.c.b16 %v1014, %v1010
    %v1183 = vpack.c.b16 %v1015, %v1011
    %v1184 = vpack.c.b16 %v1020, %v1016
    %v1185 = vpack.c.b16 %v1021, %v1017
    %v1186 = vpack.c.b16 %v1022, %v1018
    %v1187 = vpack.c.b16 %v1023, %v1019
    %v1188 = vpack.c.b16 %v1028, %v1024
    %v1189 = vpack.c.b16 %v1029, %v1025
    %v1190 = vpack.c.b16 %v1030, %v1026
    %v1191 = vpack.c.b16 %v1031, %v1027
    %v1192 = vpack.c.b16 %v1036, %v1032
    %v1193 = vpack.c.b16 %v1037, %v1033
    %v1194 = vpack.c.b16 %v1038, %v1034
    %v1195 = vpack.c.b16 %v1039, %v1035
    %v1196 = vpack.c.b16 %v1044, %v1040
    %v1197 = vpack.c.b16 %v1045, %v1041
    %v1198 = vpack.c.b16 %v1046, %v1042
    %v1199 = vpack.c.b16 %v1047, %v1043
    %v1200 = vpack.c.b16 %v1052, %v1048
    %v1201 = vpack.c.b16 %v1053, %v1049
    %v1202 = vpack.c.b16 %v1054, %v1050
    %v1203 = vpack.c.b16 %v1055, %v1051
    %v1204 = vpack.c.b16 %v1060, %v1056
    %v1205 = vpack.c.b16 %v1061, %v1057
    %v1206 = vpack.c.b16 %v1062, %v1058
    %v1207 = vpack.c.b16 %v1063, %v1059
    %v1208 = vpack.c.b16 %v1068, %v1064
    %v1209 = vpack.c.b16 %v1069, %v1065
    %v1210 = vpack.c.b16 %v1070, %v1066
    %v1211 = vpack.c.b16 %v1071, %v1067
    %v1212 = vpack.c.b16 %v1076, %v1072
    %v1213 = vpack.c.b16 %v1077, %v1073
    %v1214 = vpack.c.b16 %v1078, %v1074
    %v1215 = vpack.c.b16 %v1079, %v1075
    %v1216 = vpack.c.b16 %v1084, %v1080
    %v1217 = vpack.c.b16 %v1085, %v1081
    %v1218 = vpack.c.b16 %v1086, %v1082
    %v1219 = vpack.c.b16 %v1087, %v1083
    %v1220 = vpack.c.b16 %v1092, %v1088
    %v1221 = vpack.c.b16 %v1093, %v1089
    %v1222 = vpack.c.b16 %v1094, %v1090
    %v1223 = vpack.c.b16 %v1095, %v1091
    %1352 = vmatpush.bf16.msra.mxu0 %v1124
    %1353 = vmatpush.bf16.msra.mxu0 %v1120
    %1354 = vmatpush.bf16.msra.mxu0 %v1116
    %1355 = vmatpush.bf16.msra.mxu0 %v1112
    %1356 = vmatpush.bf16.msra.mxu0 %v1108
    %1357 = vmatpush.bf16.msra.mxu0 %v1104
    %1358 = vmatpush.bf16.msra.mxu0 %v1100
    %1359 = vmatpush.bf16.msra.mxu0 %v1096
    %1360 = vmatmul.bf16.gmra.mxu0 %v84
    %v1361 = vpop.f32.mrf.mxu0
    %v1362 = vadd.f32 %v631, %v1361
    %v1363 = vpop.f32.mrf.mxu0
    %1364 = vdwg.mxu0
    %1365 = vmatpush.bf16.msra.mxu0 %v1156
    %1366 = vmatpush.bf16.msra.mxu0 %v1152
    %1367 = vmatpush.bf16.msra.mxu0 %v1148
    %1368 = vmatpush.bf16.msra.mxu0 %v1144
    %1369 = vmatpush.bf16.msra.mxu0 %v1140
    %1370 = vmatpush.bf16.msra.mxu0 %v1136
    %1371 = vmatpush.bf16.msra.mxu0 %v1132
    %1372 = vmatpush.bf16.msra.mxu0 %v1128
    %1373 = vmatmul.bf16.gmra.mxu0 %v85
    %v1374 = vpop.f32.mrf.mxu0
    %v1375 = vadd.f32 %v1362, %v1374
    %v1376 = vpop.f32.mrf.mxu0
    %1377 = vdwg.mxu0
    %1378 = vmatpush.bf16.msra.mxu0 %v1188
    %1379 = vmatpush.bf16.msra.mxu0 %v1184
    %1380 = vmatpush.bf16.msra.mxu0 %v1180
    %1381 = vmatpush.bf16.msra.mxu0 %v1176
    %1382 = vmatpush.bf16.msra.mxu0 %v1172
    %1383 = vmatpush.bf16.msra.mxu0 %v1168
    %1384 = vmatpush.bf16.msra.mxu0 %v1164
    %1385 = vmatpush.bf16.msra.mxu0 %v1160
    %1386 = vmatmul.bf16.gmra.mxu0 %v86
    %v1387 = vpop.f32.mrf.mxu0
    %v1388 = vadd.f32 %v1375, %v1387
    %v1389 = vpop.f32.mrf.mxu0
    %1390 = vdwg.mxu0
    %1391 = vmatpush.bf16.msra.mxu0 %v1220
    %1392 = vmatpush.bf16.msra.mxu0 %v1216
    %1393 = vmatpush.bf16.msra.mxu0 %v1212
    %1394 = vmatpush.bf16.msra.mxu0 %v1208
    %1395 = vmatpush.bf16.msra.mxu0 %v1204
    %1396 = vmatpush.bf16.msra.mxu0 %v1200
    %1397 = vmatpush.bf16.msra.mxu0 %v1196
    %1398 = vmatpush.bf16.msra.mxu0 %v1192
    %1399 = vmatmul.bf16.gmra.mxu0 %v87
    %v1400 = vpop.f32.mrf.mxu0
    %v1401 = vadd.f32 %v1388, %v1400
    %v1402 = vpop.f32.mrf.mxu0
    %1403 = vdwg.mxu0
    %1404 = vmatpush.bf16.msra.mxu0 %v1125
    %1405 = vmatpush.bf16.msra.mxu0 %v1121
    %1406 = vmatpush.bf16.msra.mxu0 %v1117
    %1407 = vmatpush.bf16.msra.mxu0 %v1113
    %1408 = vmatpush.bf16.msra.mxu0 %v1109
    %1409 = vmatpush.bf16.msra.mxu0 %v1105
    %1410 = vmatpush.bf16.msra.mxu0 %v1101
    %1411 = vmatpush.bf16.msra.mxu0 %v1097
    %1412 = vmatmul.bf16.gmra.mxu0 %v84
    %v1413 = vpop.f32.mrf.mxu0
    %v1414 = vadd.f32 %v657, %v1413
    %v1415 = vpop.f32.mrf.mxu0
    %1416 = vdwg.mxu0
    %1417 = vmatpush.bf16.msra.mxu0 %v1157
    %1418 = vmatpush.bf16.msra.mxu0 %v1153
    %1419 = vmatpush.bf16.msra.mxu0 %v1149
    %1420 = vmatpush.bf16.msra.mxu0 %v1145
    %1421 = vmatpush.bf16.msra.mxu0 %v1141
    %1422 = vmatpush.bf16.msra.mxu0 %v1137
    %1423 = vmatpush.bf16.msra.mxu0 %v1133
    %1424 = vmatpush.bf16.msra.mxu0 %v1129
    %1425 = vmatmul.bf16.gmra.mxu0 %v85
    %v1426 = vpop.f32.mrf.mxu0
    %v1427 = vadd.f32 %v1414, %v1426
    %v1428 = vpop.f32.mrf.mxu0
    %1429 = vdwg.mxu0
    %1430 = vmatpush.bf16.msra.mxu0 %v1189
    %1431 = vmatpush.bf16.msra.mxu0 %v1185
    %1432 = vmatpush.bf16.msra.mxu0 %v1181
    %1433 = vmatpush.bf16.msra.mxu0 %v1177
    %1434 = vmatpush.bf16.msra.mxu0 %v1173
    %1435 = vmatpush.bf16.msra.mxu0 %v1169
    %1436 = vmatpush.bf16.msra.mxu0 %v1165
    %1437 = vmatpush.bf16.msra.mxu0 %v1161
    %1438 = vmatmul.bf16.gmra.mxu0 %v86
    %v1439 = vpop.f32.mrf.mxu0
    %v1440 = vadd.f32 %v1427, %v1439
    %v1441 = vpop.f32.mrf.mxu0
    %1442 = vdwg.mxu0
    %1443 = vmatpush.bf16.msra.mxu0 %v1221
    %1444 = vmatpush.bf16.msra.mxu0 %v1217
    %1445 = vmatpush.bf16.msra.mxu0 %v1213
    %1446 = vmatpush.bf16.msra.mxu0 %v1209
    %1447 = vmatpush.bf16.msra.mxu0 %v1205
    %1448 = vmatpush.bf16.msra.mxu0 %v1201
    %1449 = vmatpush.bf16.msra.mxu0 %v1197
    %1450 = vmatpush.bf16.msra.mxu0 %v1193
    %1451 = vmatmul.bf16.gmra.mxu0 %v87
    %v1452 = vpop.f32.mrf.mxu0
    %v1453 = vadd.f32 %v1440, %v1452
    %v1454 = vpop.f32.mrf.mxu0
    %1455 = vdwg.mxu0
    %1456 = vmatpush.bf16.msra.mxu0 %v1126
    %1457 = vmatpush.bf16.msra.mxu0 %v1122
    %1458 = vmatpush.bf16.msra.mxu0 %v1118
    %1459 = vmatpush.bf16.msra.mxu0 %v1114
    %1460 = vmatpush.bf16.msra.mxu0 %v1110
    %1461 = vmatpush.bf16.msra.mxu0 %v1106
    %1462 = vmatpush.bf16.msra.mxu0 %v1102
    %1463 = vmatpush.bf16.msra.mxu0 %v1098
    %1464 = vmatmul.bf16.gmra.mxu0 %v84
    %v1465 = vpop.f32.mrf.mxu0
    %v1466 = vadd.f32 %v683, %v1465
    %v1467 = vpop.f32.mrf.mxu0
    %1468 = vdwg.mxu0
    %1469 = vmatpush.bf16.msra.mxu0 %v1158
    %1470 = vmatpush.bf16.msra.mxu0 %v1154
    %1471 = vmatpush.bf16.msra.mxu0 %v1150
    %1472 = vmatpush.bf16.msra.mxu0 %v1146
    %1473 = vmatpush.bf16.msra.mxu0 %v1142
    %1474 = vmatpush.bf16.msra.mxu0 %v1138
    %1475 = vmatpush.bf16.msra.mxu0 %v1134
    %1476 = vmatpush.bf16.msra.mxu0 %v1130
    %1477 = vmatmul.bf16.gmra.mxu0 %v85
    %v1478 = vpop.f32.mrf.mxu0
    %v1479 = vadd.f32 %v1466, %v1478
    %v1480 = vpop.f32.mrf.mxu0
    %1481 = vdwg.mxu0
    %1482 = vmatpush.bf16.msra.mxu0 %v1190
    %1483 = vmatpush.bf16.msra.mxu0 %v1186
    %1484 = vmatpush.bf16.msra.mxu0 %v1182
    %1485 = vmatpush.bf16.msra.mxu0 %v1178
    %1486 = vmatpush.bf16.msra.mxu0 %v1174
    %1487 = vmatpush.bf16.msra.mxu0 %v1170
    %1488 = vmatpush.bf16.msra.mxu0 %v1166
    %1489 = vmatpush.bf16.msra.mxu0 %v1162
    %1490 = vmatmul.bf16.gmra.mxu0 %v86
    %v1491 = vpop.f32.mrf.mxu0
    %v1492 = vadd.f32 %v1479, %v1491
    %v1493 = vpop.f32.mrf.mxu0
    %1494 = vdwg.mxu0
    %1495 = vmatpush.bf16.msra.mxu0 %v1222
    %1496 = vmatpush.bf16.msra.mxu0 %v1218
    %1497 = vmatpush.bf16.msra.mxu0 %v1214
    %1498 = vmatpush.bf16.msra.mxu0 %v1210
    %1499 = vmatpush.bf16.msra.mxu0 %v1206
    %1500 = vmatpush.bf16.msra.mxu0 %v1202
    %1501 = vmatpush.bf16.msra.mxu0 %v1198
    %1502 = vmatpush.bf16.msra.mxu0 %v1194
    %1503 = vmatmul.bf16.gmra.mxu0 %v87
    %v1504 = vpop.f32.mrf.mxu0
    %v1505 = vadd.f32 %v1492, %v1504
    %v1506 = vpop.f32.mrf.mxu0
    %1507 = vdwg.mxu0
    %1508 = vmatpush.bf16.msra.mxu0 %v1127
    %1509 = vmatpush.bf16.msra.mxu0 %v1123
    %1510 = vmatpush.bf16.msra.mxu0 %v1119
    %1511 = vmatpush.bf16.msra.mxu0 %v1115
    %1512 = vmatpush.bf16.msra.mxu0 %v1111
    %1513 = vmatpush.bf16.msra.mxu0 %v1107
    %1514 = vmatpush.bf16.msra.mxu0 %v1103
    %1515 = vmatpush.bf16.msra.mxu0 %v1099
    %1516 = vmatmul.bf16.gmra.mxu0 %v84
    %v1517 = vpop.f32.mrf.mxu0
    %v1518 = vadd.f32 %v709, %v1517
    %v1519 = vpop.f32.mrf.mxu0
    %1520 = vdwg.mxu0
    %1521 = vmatpush.bf16.msra.mxu0 %v1159
    %1522 = vmatpush.bf16.msra.mxu0 %v1155
    %1523 = vmatpush.bf16.msra.mxu0 %v1151
    %1524 = vmatpush.bf16.msra.mxu0 %v1147
    %1525 = vmatpush.bf16.msra.mxu0 %v1143
    %1526 = vmatpush.bf16.msra.mxu0 %v1139
    %1527 = vmatpush.bf16.msra.mxu0 %v1135
    %1528 = vmatpush.bf16.msra.mxu0 %v1131
    %1529 = vmatmul.bf16.gmra.mxu0 %v85
    %v1530 = vpop.f32.mrf.mxu0
    %v1531 = vadd.f32 %v1518, %v1530
    %v1532 = vpop.f32.mrf.mxu0
    %1533 = vdwg.mxu0
    %1534 = vmatpush.bf16.msra.mxu0 %v1191
    %1535 = vmatpush.bf16.msra.mxu0 %v1187
    %1536 = vmatpush.bf16.msra.mxu0 %v1183
    %1537 = vmatpush.bf16.msra.mxu0 %v1179
    %1538 = vmatpush.bf16.msra.mxu0 %v1175
    %1539 = vmatpush.bf16.msra.mxu0 %v1171
    %1540 = vmatpush.bf16.msra.mxu0 %v1167
    %1541 = vmatpush.bf16.msra.mxu0 %v1163
    %1542 = vmatmul.bf16.gmra.mxu0 %v86
    %v1543 = vpop.f32.mrf.mxu0
    %v1544 = vadd.f32 %v1531, %v1543
    %v1545 = vpop.f32.mrf.mxu0
    %1546 = vdwg.mxu0
    %1547 = vmatpush.bf16.msra.mxu0 %v1223
    %1548 = vmatpush.bf16.msra.mxu0 %v1219
    %1549 = vmatpush.bf16.msra.mxu0 %v1215
    %1550 = vmatpush.bf16.msra.mxu0 %v1211
    %1551 = vmatpush.bf16.msra.mxu0 %v1207
    %1552 = vmatpush.bf16.msra.mxu0 %v1203
    %1553 = vmatpush.bf16.msra.mxu0 %v1199
    %1554 = vmatpush.bf16.msra.mxu0 %v1195
    %1555 = vmatmul.bf16.gmra.mxu0 %v87
    %v1556 = vpop.f32.mrf.mxu0
    %v1557 = vadd.f32 %v1544, %v1556
    %v1558 = vpop.f32.mrf.mxu0
    %1559 = vdwg.mxu0
    %v1560 = vld [vmem:[#allocation2] sm:$0xf]
    %v1562 = vperm.slane %v1560, 0
    %v1563 = vperm.slane %v1560, 1
    %v1564 = vperm.slane %v1560, 2
    %v1565 = vperm.slane %v1560, 3
    %v1570 = vadd.f32 %v1401, %v1562
    %v1571 = vadd.f32 %v1453, %v1563
    %v1572 = vadd.f32 %v1505, %v1564
    %v1573 = vadd.f32 %v1557, %v1565
    %v1574 = vmax.f32 %v1570, 0.0
    %v1575 = vmax.f32 %v1571, 0.0
    %v1576 = vmax.f32 %v1572, 0.0
    %v1577 = vmax.f32 %v1573, 0.0
    %v1578 = vld [vmem:[%s6] sm:$0xff]
    %v1579 = vld [vmem:[%s6 + $0x8] sm:$0xff]
    %v1580 = vld [vmem:[%s6 + $0x10] sm:$0xff]
    %v1581 = vld [vmem:[%s6 + $0x18] sm:$0xff]
    %v1582 = vld [vmem:[%s6 + $0x20] sm:$0xff]
    %v1583 = vld [vmem:[%s6 + $0x28] sm:$0xff]
    %v1584 = vld [vmem:[%s6 + $0x30] sm:$0xff]
    %v1585 = vld [vmem:[%s6 + $0x38] sm:$0xff]
    %v1586 = vld [vmem:[%s6 + $0x40] sm:$0xff]
    %v1587 = vld [vmem:[%s6 + $0x48] sm:$0xff]
    %v1588 = vld [vmem:[%s6 + $0x50] sm:$0xff]
    %v1589 = vld [vmem:[%s6 + $0x58] sm:$0xff]
    %v1590 = vld [vmem:[%s6 + $0x60] sm:$0xff]
    %v1591 = vld [vmem:[%s6 + $0x68] sm:$0xff]
    %v1592 = vld [vmem:[%s6 + $0x70] sm:$0xff]
    %v1593 = vld [vmem:[%s6 + $0x78] sm:$0xff]
    %v1594 = vld [vmem:[%s6 + $0x80] sm:$0xff]
    %v1595 = vld [vmem:[%s6 + $0x88] sm:$0xff]
    %v1596 = vld [vmem:[%s6 + $0x90] sm:$0xff]
    %v1597 = vld [vmem:[%s6 + $0x98] sm:$0xff]
    %v1598 = vld [vmem:[%s6 + $0xa0] sm:$0xff]
    %v1599 = vld [vmem:[%s6 + $0xa8] sm:$0xff]
    %v1600 = vld [vmem:[%s6 + $0xb0] sm:$0xff]
    %v1601 = vld [vmem:[%s6 + $0xb8] sm:$0xff]
    %v1602 = vld [vmem:[%s6 + $0xc0] sm:$0xff]
    %v1603 = vld [vmem:[%s6 + $0xc8] sm:$0xff]
    %v1604 = vld [vmem:[%s6 + $0xd0] sm:$0xff]
    %v1605 = vld [vmem:[%s6 + $0xd8] sm:$0xff]
    %v1606 = vld [vmem:[%s6 + $0xe0] sm:$0xff]
    %v1607 = vld [vmem:[%s6 + $0xe8] sm:$0xff]
    %v1608 = vld [vmem:[%s6 + $0xf0] sm:$0xff]
    %v1609 = vld [vmem:[%s6 + $0xf8] sm:$0xff]
    %v1610 = vld [vmem:[%s6 + $0x100] sm:$0xff]
    %v1611 = vld [vmem:[%s6 + $0x108] sm:$0xff]
    %v1612 = vld [vmem:[%s6 + $0x110] sm:$0xff]
    %v1613 = vld [vmem:[%s6 + $0x118] sm:$0xff]
    %v1614 = vld [vmem:[%s6 + $0x120] sm:$0xff]
    %v1615 = vld [vmem:[%s6 + $0x128] sm:$0xff]
    %v1616 = vld [vmem:[%s6 + $0x130] sm:$0xff]
    %v1617 = vld [vmem:[%s6 + $0x138] sm:$0xff]
    %v1618 = vld [vmem:[%s6 + $0x140] sm:$0xff]
    %v1619 = vld [vmem:[%s6 + $0x148] sm:$0xff]
    %v1620 = vld [vmem:[%s6 + $0x150] sm:$0xff]
    %v1621 = vld [vmem:[%s6 + $0x158] sm:$0xff]
    %v1622 = vld [vmem:[%s6 + $0x160] sm:$0xff]
    %v1623 = vld [vmem:[%s6 + $0x168] sm:$0xff]
    %v1624 = vld [vmem:[%s6 + $0x170] sm:$0xff]
    %v1625 = vld [vmem:[%s6 + $0x178] sm:$0xff]
    %v1626 = vld [vmem:[%s6 + $0x180] sm:$0xff]
    %v1627 = vld [vmem:[%s6 + $0x188] sm:$0xff]
    %v1628 = vld [vmem:[%s6 + $0x190] sm:$0xff]
    %v1629 = vld [vmem:[%s6 + $0x198] sm:$0xff]
    %v1630 = vld [vmem:[%s6 + $0x1a0] sm:$0xff]
    %v1631 = vld [vmem:[%s6 + $0x1a8] sm:$0xff]
    %v1632 = vld [vmem:[%s6 + $0x1b0] sm:$0xff]
    %v1633 = vld [vmem:[%s6 + $0x1b8] sm:$0xff]
    %v1634 = vld [vmem:[%s6 + $0x1c0] sm:$0xff]
    %v1635 = vld [vmem:[%s6 + $0x1c8] sm:$0xff]
    %v1636 = vld [vmem:[%s6 + $0x1d0] sm:$0xff]
    %v1637 = vld [vmem:[%s6 + $0x1d8] sm:$0xff]
    %v1638 = vld [vmem:[%s6 + $0x1e0] sm:$0xff]
    %v1639 = vld [vmem:[%s6 + $0x1e8] sm:$0xff]
    %v1640 = vld [vmem:[%s6 + $0x1f0] sm:$0xff]
    %v1641 = vld [vmem:[%s6 + $0x1f8] sm:$0xff]
    %v1642 = vld [vmem:[#allocation4] sm:$0x3]
    %v1643 = vpack.c.bf16 %v1574, %v1574
    %v1644 = vpack.c.bf16 %v1575, %v1575
    %v1645 = vpack.c.bf16 %v1576, %v1576
    %v1646 = vpack.c.bf16 %v1577, %v1577
    %v1648 = vperm.slane %v1642, 0
    %v1649 = vperm.slane %v1642, 1
    %v1716 = vunpack.c.l.b16 %v1578
    %v1717 = vunpack.c.h.b16 %v1578
    %v1718 = vunpack.c.l.b16 %v1579
    %v1719 = vunpack.c.h.b16 %v1579
    %v1720 = vunpack.c.l.b16 %v1580
    %v1721 = vunpack.c.h.b16 %v1580
    %v1722 = vunpack.c.l.b16 %v1581
    %v1723 = vunpack.c.h.b16 %v1581
    %v1724 = vunpack.c.l.b16 %v1582
    %v1725 = vunpack.c.h.b16 %v1582
    %v1726 = vunpack.c.l.b16 %v1583
    %v1727 = vunpack.c.h.b16 %v1583
    %v1728 = vunpack.c.l.b16 %v1584
    %v1729 = vunpack.c.h.b16 %v1584
    %v1730 = vunpack.c.l.b16 %v1585
    %v1731 = vunpack.c.h.b16 %v1585
    %v1732 = vunpack.c.l.b16 %v1586
    %v1733 = vunpack.c.h.b16 %v1586
    %v1734 = vunpack.c.l.b16 %v1587
    %v1735 = vunpack.c.h.b16 %v1587
    %v1736 = vunpack.c.l.b16 %v1588
    %v1737 = vunpack.c.h.b16 %v1588
    %v1738 = vunpack.c.l.b16 %v1589
    %v1739 = vunpack.c.h.b16 %v1589
    %v1740 = vunpack.c.l.b16 %v1590
    %v1741 = vunpack.c.h.b16 %v1590
    %v1742 = vunpack.c.l.b16 %v1591
    %v1743 = vunpack.c.h.b16 %v1591
    %v1744 = vunpack.c.l.b16 %v1592
    %v1745 = vunpack.c.h.b16 %v1592
    %v1746 = vunpack.c.l.b16 %v1593
    %v1747 = vunpack.c.h.b16 %v1593
    %v1748 = vunpack.c.l.b16 %v1594
    %v1749 = vunpack.c.h.b16 %v1594
    %v1750 = vunpack.c.l.b16 %v1595
    %v1751 = vunpack.c.h.b16 %v1595
    %v1752 = vunpack.c.l.b16 %v1596
    %v1753 = vunpack.c.h.b16 %v1596
    %v1754 = vunpack.c.l.b16 %v1597
    %v1755 = vunpack.c.h.b16 %v1597
    %v1756 = vunpack.c.l.b16 %v1598
    %v1757 = vunpack.c.h.b16 %v1598
    %v1758 = vunpack.c.l.b16 %v1599
    %v1759 = vunpack.c.h.b16 %v1599
    %v1760 = vunpack.c.l.b16 %v1600
    %v1761 = vunpack.c.h.b16 %v1600
    %v1762 = vunpack.c.l.b16 %v1601
    %v1763 = vunpack.c.h.b16 %v1601
    %v1764 = vunpack.c.l.b16 %v1602
    %v1765 = vunpack.c.h.b16 %v1602
    %v1766 = vunpack.c.l.b16 %v1603
    %v1767 = vunpack.c.h.b16 %v1603
    %v1768 = vunpack.c.l.b16 %v1604
    %v1769 = vunpack.c.h.b16 %v1604
    %v1770 = vunpack.c.l.b16 %v1605
    %v1771 = vunpack.c.h.b16 %v1605
    %v1772 = vunpack.c.l.b16 %v1606
    %v1773 = vunpack.c.h.b16 %v1606
    %v1774 = vunpack.c.l.b16 %v1607
    %v1775 = vunpack.c.h.b16 %v1607
    %v1776 = vunpack.c.l.b16 %v1608
    %v1777 = vunpack.c.h.b16 %v1608
    %v1778 = vunpack.c.l.b16 %v1609
    %v1779 = vunpack.c.h.b16 %v1609
    %v1780 = vunpack.c.l.b16 %v1610
    %v1781 = vunpack.c.h.b16 %v1610
    %v1782 = vunpack.c.l.b16 %v1611
    %v1783 = vunpack.c.h.b16 %v1611
    %v1784 = vunpack.c.l.b16 %v1612
    %v1785 = vunpack.c.h.b16 %v1612
    %v1786 = vunpack.c.l.b16 %v1613
    %v1787 = vunpack.c.h.b16 %v1613
    %v1788 = vunpack.c.l.b16 %v1614
    %v1789 = vunpack.c.h.b16 %v1614
    %v1790 = vunpack.c.l.b16 %v1615
    %v1791 = vunpack.c.h.b16 %v1615
    %v1792 = vunpack.c.l.b16 %v1616
    %v1793 = vunpack.c.h.b16 %v1616
    %v1794 = vunpack.c.l.b16 %v1617
    %v1795 = vunpack.c.h.b16 %v1617
    %v1796 = vunpack.c.l.b16 %v1618
    %v1797 = vunpack.c.h.b16 %v1618
    %v1798 = vunpack.c.l.b16 %v1619
    %v1799 = vunpack.c.h.b16 %v1619
    %v1800 = vunpack.c.l.b16 %v1620
    %v1801 = vunpack.c.h.b16 %v1620
    %v1802 = vunpack.c.l.b16 %v1621
    %v1803 = vunpack.c.h.b16 %v1621
    %v1804 = vunpack.c.l.b16 %v1622
    %v1805 = vunpack.c.h.b16 %v1622
    %v1806 = vunpack.c.l.b16 %v1623
    %v1807 = vunpack.c.h.b16 %v1623
    %v1808 = vunpack.c.l.b16 %v1624
    %v1809 = vunpack.c.h.b16 %v1624
    %v1810 = vunpack.c.l.b16 %v1625
    %v1811 = vunpack.c.h.b16 %v1625
    %v1812 = vunpack.c.l.b16 %v1626
    %v1813 = vunpack.c.h.b16 %v1626
    %v1814 = vunpack.c.l.b16 %v1627
    %v1815 = vunpack.c.h.b16 %v1627
    %v1816 = vunpack.c.l.b16 %v1628
    %v1817 = vunpack.c.h.b16 %v1628
    %v1818 = vunpack.c.l.b16 %v1629
    %v1819 = vunpack.c.h.b16 %v1629
    %v1820 = vunpack.c.l.b16 %v1630
    %v1821 = vunpack.c.h.b16 %v1630
    %v1822 = vunpack.c.l.b16 %v1631
    %v1823 = vunpack.c.h.b16 %v1631
    %v1824 = vunpack.c.l.b16 %v1632
    %v1825 = vunpack.c.h.b16 %v1632
    %v1826 = vunpack.c.l.b16 %v1633
    %v1827 = vunpack.c.h.b16 %v1633
    %v1828 = vunpack.c.l.b16 %v1634
    %v1829 = vunpack.c.h.b16 %v1634
    %v1830 = vunpack.c.l.b16 %v1635
    %v1831 = vunpack.c.h.b16 %v1635
    %v1832 = vunpack.c.l.b16 %v1636
    %v1833 = vunpack.c.h.b16 %v1636
    %v1834 = vunpack.c.l.b16 %v1637
    %v1835 = vunpack.c.h.b16 %v1637
    %v1836 = vunpack.c.l.b16 %v1638
    %v1837 = vunpack.c.h.b16 %v1638
    %v1838 = vunpack.c.l.b16 %v1639
    %v1839 = vunpack.c.h.b16 %v1639
    %v1840 = vunpack.c.l.b16 %v1640
    %v1841 = vunpack.c.h.b16 %v1640
    %v1842 = vunpack.c.l.b16 %v1641
    %v1843 = vunpack.c.h.b16 %v1641
    %v1844 = vpack.c.b16 %v1718, %v1716
    %v1845 = vpack.c.b16 %v1719, %v1717
    %v1846 = vpack.c.b16 %v1722, %v1720
    %v1847 = vpack.c.b16 %v1723, %v1721
    %v1848 = vpack.c.b16 %v1726, %v1724
    %v1849 = vpack.c.b16 %v1727, %v1725
    %v1850 = vpack.c.b16 %v1730, %v1728
    %v1851 = vpack.c.b16 %v1731, %v1729
    %v1852 = vpack.c.b16 %v1734, %v1732
    %v1853 = vpack.c.b16 %v1735, %v1733
    %v1854 = vpack.c.b16 %v1738, %v1736
    %v1855 = vpack.c.b16 %v1739, %v1737
    %v1856 = vpack.c.b16 %v1742, %v1740
    %v1857 = vpack.c.b16 %v1743, %v1741
    %v1858 = vpack.c.b16 %v1746, %v1744
    %v1859 = vpack.c.b16 %v1747, %v1745
    %v1860 = vpack.c.b16 %v1750, %v1748
    %v1861 = vpack.c.b16 %v1751, %v1749
    %v1862 = vpack.c.b16 %v1754, %v1752
    %v1863 = vpack.c.b16 %v1755, %v1753
    %v1864 = vpack.c.b16 %v1758, %v1756
    %v1865 = vpack.c.b16 %v1759, %v1757
    %v1866 = vpack.c.b16 %v1762, %v1760
    %v1867 = vpack.c.b16 %v1763, %v1761
    %v1868 = vpack.c.b16 %v1766, %v1764
    %v1869 = vpack.c.b16 %v1767, %v1765
    %v1870 = vpack.c.b16 %v1770, %v1768
    %v1871 = vpack.c.b16 %v1771, %v1769
    %v1872 = vpack.c.b16 %v1774, %v1772
    %v1873 = vpack.c.b16 %v1775, %v1773
    %v1874 = vpack.c.b16 %v1778, %v1776
    %v1875 = vpack.c.b16 %v1779, %v1777
    %v1876 = vpack.c.b16 %v1782, %v1780
    %v1877 = vpack.c.b16 %v1783, %v1781
    %v1878 = vpack.c.b16 %v1786, %v1784
    %v1879 = vpack.c.b16 %v1787, %v1785
    %v1880 = vpack.c.b16 %v1790, %v1788
    %v1881 = vpack.c.b16 %v1791, %v1789
    %v1882 = vpack.c.b16 %v1794, %v1792
    %v1883 = vpack.c.b16 %v1795, %v1793
    %v1884 = vpack.c.b16 %v1798, %v1796
    %v1885 = vpack.c.b16 %v1799, %v1797
    %v1886 = vpack.c.b16 %v1802, %v1800
    %v1887 = vpack.c.b16 %v1803, %v1801
    %v1888 = vpack.c.b16 %v1806, %v1804
    %v1889 = vpack.c.b16 %v1807, %v1805
    %v1890 = vpack.c.b16 %v1810, %v1808
    %v1891 = vpack.c.b16 %v1811, %v1809
    %v1892 = vpack.c.b16 %v1814, %v1812
    %v1893 = vpack.c.b16 %v1815, %v1813
    %v1894 = vpack.c.b16 %v1818, %v1816
    %v1895 = vpack.c.b16 %v1819, %v1817
    %v1896 = vpack.c.b16 %v1822, %v1820
    %v1897 = vpack.c.b16 %v1823, %v1821
    %v1898 = vpack.c.b16 %v1826, %v1824
    %v1899 = vpack.c.b16 %v1827, %v1825
    %v1900 = vpack.c.b16 %v1830, %v1828
    %v1901 = vpack.c.b16 %v1831, %v1829
    %v1902 = vpack.c.b16 %v1834, %v1832
    %v1903 = vpack.c.b16 %v1835, %v1833
    %v1904 = vpack.c.b16 %v1838, %v1836
    %v1905 = vpack.c.b16 %v1839, %v1837
    %v1906 = vpack.c.b16 %v1842, %v1840
    %v1907 = vpack.c.b16 %v1843, %v1841
    %1972 = vmatpush.bf16.msra.mxu0 %v1858
    %1973 = vmatpush.bf16.msra.mxu0 %v1856
    %1974 = vmatpush.bf16.msra.mxu0 %v1854
    %1975 = vmatpush.bf16.msra.mxu0 %v1852
    %1976 = vmatpush.bf16.msra.mxu0 %v1850
    %1977 = vmatpush.bf16.msra.mxu0 %v1848
    %1978 = vmatpush.bf16.msra.mxu0 %v1846
    %1979 = vmatpush.bf16.msra.mxu0 %v1844
    %1980 = vmatmul.bf16.gmra.mxu0 %v1643
    %v1981 = vpop.f32.mrf.mxu0
    %v1982 = vadd.f32 %v1648, %v1981
    %v1983 = vpop.f32.mrf.mxu0
    %1984 = vdwg.mxu0
    %1985 = vmatpush.bf16.msra.mxu0 %v1874
    %1986 = vmatpush.bf16.msra.mxu0 %v1872
    %1987 = vmatpush.bf16.msra.mxu0 %v1870
    %1988 = vmatpush.bf16.msra.mxu0 %v1868
    %1989 = vmatpush.bf16.msra.mxu0 %v1866
    %1990 = vmatpush.bf16.msra.mxu0 %v1864
    %1991 = vmatpush.bf16.msra.mxu0 %v1862
    %1992 = vmatpush.bf16.msra.mxu0 %v1860
    %1993 = vmatmul.bf16.gmra.mxu0 %v1644
    %v1994 = vpop.f32.mrf.mxu0
    %v1995 = vadd.f32 %v1982, %v1994
    %v1996 = vpop.f32.mrf.mxu0
    %1997 = vdwg.mxu0
    %1998 = vmatpush.bf16.msra.mxu0 %v1890
    %1999 = vmatpush.bf16.msra.mxu0 %v1888
    %2000 = vmatpush.bf16.msra.mxu0 %v1886
    %2001 = vmatpush.bf16.msra.mxu0 %v1884
    %2002 = vmatpush.bf16.msra.mxu0 %v1882
    %2003 = vmatpush.bf16.msra.mxu0 %v1880
    %2004 = vmatpush.bf16.msra.mxu0 %v1878
    %2005 = vmatpush.bf16.msra.mxu0 %v1876
    %2006 = vmatmul.bf16.gmra.mxu0 %v1645
    %v2007 = vpop.f32.mrf.mxu0
    %v2008 = vadd.f32 %v1995, %v2007
    %v2009 = vpop.f32.mrf.mxu0
    %2010 = vdwg.mxu0
    %2011 = vmatpush.bf16.msra.mxu0 %v1906
    %2012 = vmatpush.bf16.msra.mxu0 %v1904
    %2013 = vmatpush.bf16.msra.mxu0 %v1902
    %2014 = vmatpush.bf16.msra.mxu0 %v1900
    %2015 = vmatpush.bf16.msra.mxu0 %v1898
    %2016 = vmatpush.bf16.msra.mxu0 %v1896
    %2017 = vmatpush.bf16.msra.mxu0 %v1894
    %2018 = vmatpush.bf16.msra.mxu0 %v1892
    %2019 = vmatmul.bf16.gmra.mxu0 %v1646
    %v2020 = vpop.f32.mrf.mxu0
    %v2021 = vadd.f32 %v2008, %v2020
    %v2022 = vpop.f32.mrf.mxu0
    %2023 = vdwg.mxu0
    %2024 = vmatpush.bf16.msra.mxu0 %v1859
    %2025 = vmatpush.bf16.msra.mxu0 %v1857
    %2026 = vmatpush.bf16.msra.mxu0 %v1855
    %2027 = vmatpush.bf16.msra.mxu0 %v1853
    %2028 = vmatpush.bf16.msra.mxu0 %v1851
    %2029 = vmatpush.bf16.msra.mxu0 %v1849
    %2030 = vmatpush.bf16.msra.mxu0 %v1847
    %2031 = vmatpush.bf16.msra.mxu0 %v1845
    %2032 = vmatmul.bf16.gmra.mxu0 %v1643
    %v2033 = vpop.f32.mrf.mxu0
    %v2034 = vadd.f32 %v1649, %v2033
    %v2035 = vpop.f32.mrf.mxu0
    %2036 = vdwg.mxu0
    %2037 = vmatpush.bf16.msra.mxu0 %v1875
    %2038 = vmatpush.bf16.msra.mxu0 %v1873
    %2039 = vmatpush.bf16.msra.mxu0 %v1871
    %2040 = vmatpush.bf16.msra.mxu0 %v1869
    %2041 = vmatpush.bf16.msra.mxu0 %v1867
    %2042 = vmatpush.bf16.msra.mxu0 %v1865
    %2043 = vmatpush.bf16.msra.mxu0 %v1863
    %2044 = vmatpush.bf16.msra.mxu0 %v1861
    %2045 = vmatmul.bf16.gmra.mxu0 %v1644
    %v2046 = vpop.f32.mrf.mxu0
    %v2047 = vadd.f32 %v2034, %v2046
    %v2048 = vpop.f32.mrf.mxu0
    %2049 = vdwg.mxu0
    %2050 = vmatpush.bf16.msra.mxu0 %v1891
    %2051 = vmatpush.bf16.msra.mxu0 %v1889
    %2052 = vmatpush.bf16.msra.mxu0 %v1887
    %2053 = vmatpush.bf16.msra.mxu0 %v1885
    %2054 = vmatpush.bf16.msra.mxu0 %v1883
    %2055 = vmatpush.bf16.msra.mxu0 %v1881
    %2056 = vmatpush.bf16.msra.mxu0 %v1879
    %2057 = vmatpush.bf16.msra.mxu0 %v1877
    %2058 = vmatmul.bf16.gmra.mxu0 %v1645
    %v2059 = vpop.f32.mrf.mxu0
    %v2060 = vadd.f32 %v2047, %v2059
    %v2061 = vpop.f32.mrf.mxu0
    %2062 = vdwg.mxu0
    %2063 = vmatpush.bf16.msra.mxu0 %v1907
    %2064 = vmatpush.bf16.msra.mxu0 %v1905
    %2065 = vmatpush.bf16.msra.mxu0 %v1903
    %2066 = vmatpush.bf16.msra.mxu0 %v1901
    %2067 = vmatpush.bf16.msra.mxu0 %v1899
    %2068 = vmatpush.bf16.msra.mxu0 %v1897
    %2069 = vmatpush.bf16.msra.mxu0 %v1895
    %2070 = vmatpush.bf16.msra.mxu0 %v1893
    %2071 = vmatmul.bf16.gmra.mxu0 %v1646
    %v2072 = vpop.f32.mrf.mxu0
    %v2073 = vadd.f32 %v2060, %v2072
    %v2074 = vpop.f32.mrf.mxu0
    %2075 = vdwg.mxu0
    %2076 = vst [vmem:[%s8] sm:$0xff] %v2021
    %2077 = vst [vmem:[%s8 + $0x8] sm:$0xff] %v2073
    // Predicated region
    $region42: #{point_encoder_forward.9} parent=1 // pred_check
      _
    $region43: #{point_encoder_forward.9} parent=1 // pred_check_branch
      %2079 = sbr.rel (0) target = $region45
    $region44: #{point_encoder_forward.9} parent=1 // pred_region
      _
    $region45: #{point_encoder_forward.9} parent=1 // pred_fallthru
      _
    // Predicated region
    $region46: #{point_encoder_forward.9} parent=1 // pred_check
      _
    $region47: #{point_encoder_forward.9} parent=1 // pred_check_branch
      %2081 = sbr.rel (0) target = $region49
    $region48: #{point_encoder_forward.9} parent=1 // pred_region
      _
    $region49: #{point_encoder_forward.9} parent=1 // pred_fallthru
      _
    %2082 = vsyncpa [#allocation3], 1
    %2083 = vsyncpa [#allocation5], 1

// kernel: point_encoder_forward.11
$region0: #{point_encoder_forward.11}
  #allocation0 [shape = 'u32[]', space=smem, size = 0x4, offset = 0x4, fixed_abs, tag = 'smem constant byte address 0x4 - core index']
  #allocation1 [shape = 'u32[72,128]{1,0:T(1,128)}', space=vmem, size = 0x9000, scoped, tag = 'internal scratch']
  %s0 = inlined_call_operand.vmem [shape: bf16[3,32,128], index: 0, kind: input, shape index: {}]
  %s1 = inlined_call_operand.vmem [shape: f32[32,3], index: 1, kind: input, shape index: {}]
  %s2 = inlined_call_operand.vmem [shape: bf16[32,3], index: 2, kind: input, shape index: {}]
  %s3 = inlined_call_operand.vmem [shape: bf16[128,128], index: 3, kind: input, shape index: {}]
  %s4 = inlined_call_operand.vmem [shape: bf16[3,128], index: 4, kind: input, shape index: {}]
  %s5 = inlined_call_operand.vmem [shape: f32[1,128], index: 5, kind: input, shape index: {}]
  %s6 = inlined_call_operand.vmem [shape: bf16[128,128], index: 6, kind: input, shape index: {}]
  %s7 = inlined_call_operand.vmem [shape: f32[1,128], index: 7, kind: input, shape index: {}]
  %s8 = inlined_call_operand.vmem [shape: bf16[128,128], index: 8, kind: input, shape index: {}]
  %s9 = inlined_call_operand.vmem [shape: f32[1,128], index: 9, kind: input, shape index: {}]
  %s10 = inlined_call_operand.vmem [shape: f32[32,128], index: 10, kind: output, shape index: {}]
  %s11 = sld [smem:[#allocation0]]
  $region114: #{point_encoder_forward.11} parent=0
    _
  %s13 = ssub.s32 1, %s11
  %s14 = scalar_select 0, %s13, %s11
  $region1: #{point_encoder_forward.11} parent=0
    #allocation2 [shape = 'u8[24576]{0}', space=vmem, size = 0x6000, scoped, tag = 'input window, operand 0']
    loop: start=0, step=1, limit=4
    $region2: #{point_encoder_forward.11} parent=1 // loop_pre_header
      _
    $region3: #{point_encoder_forward.11} parent=1 // loop_header
      %s16 = sphi 0, %s20
      %p17 = scmp.ge.s32.totalorder %s16, 4
      %s26 = sphi 0, %s28
      %s29 = sphi 0, %s26
      %s30 = sphi 0, %s29
      %s46 = sphi 0, %s30
      %s52 = sphi 0, %s54
      %s55 = sphi 0, %s52
      %s56 = sphi 0, %s55
      %s72 = sphi 0, %s56
      %s78 = sphi 0, %s80
      %s81 = sphi 0, %s78
      %s82 = sphi 0, %s81
      %s98 = sphi 0, %s82
      %s102 = sphi 0, %s102
      %s104 = sphi 0, %s102
      %s105 = sphi 0, %s104
      %s119 = sphi 0, %s105
      %s123 = sphi 0, %s123
      %s125 = sphi 0, %s123
      %s126 = sphi 0, %s125
      %s140 = sphi 0, %s126
      %s144 = sphi 0, %s144
      %s146 = sphi 0, %s144
      %s147 = sphi 0, %s146
      %s161 = sphi 0, %s147
      %s165 = sphi 0, %s165
      %s167 = sphi 0, %s165
      %s168 = sphi 0, %s167
      %s182 = sphi 0, %s168
      %s186 = sphi 0, %s186
      %s188 = sphi 0, %s186
      %s189 = sphi 0, %s188
      %s203 = sphi 0, %s189
      %s207 = sphi 0, %s207
      %s209 = sphi 0, %s207
      %s210 = sphi 0, %s209
      %s224 = sphi 0, %s210
      %s228 = sphi 0, %s228
      %s230 = sphi 0, %s228
      %s231 = sphi 0, %s230
      %s245 = sphi 0, %s231
      %s251 = sphi 0, %s253
      %s254 = sphi 0, %s251
      %s255 = sphi 0, %s254
      %s271 = sphi 0, %s255
    $region4: #{point_encoder_forward.11} parent=1 // loop_header_branch
      %19 = sbr.rel (%p17) target = $region8
    $region5: #{point_encoder_forward.11} parent=1 // loop_body
      %s21 = ssub.s32 %s16, 1
      %s22 = ssub.s32 %s16, 2
      %s23 = sadd.s32 %s16, 1
      %s24 = ssub.s32 %s16, %s23
      %p25 = scmp.eq.s32.totalorder %s24, 0
      %s27 = sadd.s32 %s26, 1
      %s28 = scalar_select %p25, %s26, %s27
      %p31 = pneg %p25
      %p32 = scmp.eq.s32.totalorder %s16, 1
      %p33 = por %p31, %p32
      %p34 = scmp.ne.s32.totalorder %s26, %s29
      %p35 = scmp.eq.s32.totalorder %s16, 0
      %p36 = por %p34, %p35
      %p37 = scmp.ne.s32.totalorder %s26, %s29
      %p38 = scmp.eq.s32.totalorder %s21, 1
      %p39 = por %p37, %p38
      %p40 = scmp.ne.s32.totalorder %s29, %s30
      %p41 = scmp.eq.s32.totalorder %s21, 0
      %p42 = por %p40, %p41
      %p43 = scmp.ne.s32.totalorder %s29, %s30
      %p44 = scmp.eq.s32.totalorder %s22, 1
      %p45 = por %p43, %p44
      %p47 = scmp.ne.s32.totalorder %s30, %s46
      %p48 = scmp.eq.s32.totalorder %s22, 0
      %p49 = por %p47, %p48
      %s50 = ssub.s32 %s16, %s23
      %p51 = scmp.eq.s32.totalorder %s50, 0
      %s53 = sadd.s32 %s52, 1
      %s54 = scalar_select %p51, %s52, %s53
      %p57 = pneg %p51
      %p58 = scmp.eq.s32.totalorder %s16, 1
      %p59 = por %p57, %p58
      %p60 = scmp.ne.s32.totalorder %s52, %s55
      %p61 = scmp.eq.s32.totalorder %s16, 0
      %p62 = por %p60, %p61
      %p63 = scmp.ne.s32.totalorder %s52, %s55
      %p64 = scmp.eq.s32.totalorder %s21, 1
      %p65 = por %p63, %p64
      %p66 = scmp.ne.s32.totalorder %s55, %s56
      %p67 = scmp.eq.s32.totalorder %s21, 0
      %p68 = por %p66, %p67
      %p69 = scmp.ne.s32.totalorder %s55, %s56
      %p70 = scmp.eq.s32.totalorder %s22, 1
      %p71 = por %p69, %p70
      %p73 = scmp.ne.s32.totalorder %s56, %s72
      %p74 = scmp.eq.s32.totalorder %s22, 0
      %p75 = por %p73, %p74
      %s76 = ssub.s32 %s16, %s23
      %p77 = scmp.eq.s32.totalorder %s76, 0
      %s79 = sadd.s32 %s78, 1
      %s80 = scalar_select %p77, %s78, %s79
      %p83 = pneg %p77
      %p84 = scmp.eq.s32.totalorder %s16, 1
      %p85 = por %p83, %p84
      %p86 = scmp.ne.s32.totalorder %s78, %s81
      %p87 = scmp.eq.s32.totalorder %s16, 0
      %p88 = por %p86, %p87
      %p89 = scmp.ne.s32.totalorder %s78, %s81
      %p90 = scmp.eq.s32.totalorder %s21, 1
      %p91 = por %p89, %p90
      %p92 = scmp.ne.s32.totalorder %s81, %s82
      %p93 = scmp.eq.s32.totalorder %s21, 0
      %p94 = por %p92, %p93
      %p95 = scmp.ne.s32.totalorder %s81, %s82
      %p96 = scmp.eq.s32.totalorder %s22, 1
      %p97 = por %p95, %p96
      %p99 = scmp.ne.s32.totalorder %s82, %s98
      %p100 = scmp.eq.s32.totalorder %s22, 0
      %p101 = por %p99, %p100
      %s103 = sadd.s32 %s102, 1
      %p106 = scmp.eq.s32.totalorder %s16, 1
      %p107 = scmp.ne.s32.totalorder %s102, %s104
      %p108 = scmp.eq.s32.totalorder %s16, 0
      %p109 = por %p107, %p108
      %p110 = scmp.ne.s32.totalorder %s102, %s104
      %p111 = scmp.eq.s32.totalorder %s21, 1
      %p112 = por %p110, %p111
      %p113 = scmp.ne.s32.totalorder %s104, %s105
      %p114 = scmp.eq.s32.totalorder %s21, 0
      %p115 = por %p113, %p114
      %p116 = scmp.ne.s32.totalorder %s104, %s105
      %p117 = scmp.eq.s32.totalorder %s22, 1
      %p118 = por %p116, %p117
      %p120 = scmp.ne.s32.totalorder %s105, %s119
      %p121 = scmp.eq.s32.totalorder %s22, 0
      %p122 = por %p120, %p121
      %s124 = sadd.s32 %s123, 1
      %p127 = scmp.eq.s32.totalorder %s16, 1
      %p128 = scmp.ne.s32.totalorder %s123, %s125
      %p129 = scmp.eq.s32.totalorder %s16, 0
      %p130 = por %p128, %p129
      %p131 = scmp.ne.s32.totalorder %s123, %s125
      %p132 = scmp.eq.s32.totalorder %s21, 1
      %p133 = por %p131, %p132
      %p134 = scmp.ne.s32.totalorder %s125, %s126
      %p135 = scmp.eq.s32.totalorder %s21, 0
      %p136 = por %p134, %p135
      %p137 = scmp.ne.s32.totalorder %s125, %s126
      %p138 = scmp.eq.s32.totalorder %s22, 1
      %p139 = por %p137, %p138
      %p141 = scmp.ne.s32.totalorder %s126, %s140
      %p142 = scmp.eq.s32.totalorder %s22, 0
      %p143 = por %p141, %p142
      %s145 = sadd.s32 %s144, 1
      %p148 = scmp.eq.s32.totalorder %s16, 1
      %p149 = scmp.ne.s32.totalorder %s144, %s146
      %p150 = scmp.eq.s32.totalorder %s16, 0
      %p151 = por %p149, %p150
      %p152 = scmp.ne.s32.totalorder %s144, %s146
      %p153 = scmp.eq.s32.totalorder %s21, 1
      %p154 = por %p152, %p153
      %p155 = scmp.ne.s32.totalorder %s146, %s147
      %p156 = scmp.eq.s32.totalorder %s21, 0
      %p157 = por %p155, %p156
      %p158 = scmp.ne.s32.totalorder %s146, %s147
      %p159 = scmp.eq.s32.totalorder %s22, 1
      %p160 = por %p158, %p159
      %p162 = scmp.ne.s32.totalorder %s147, %s161
      %p163 = scmp.eq.s32.totalorder %s22, 0
      %p164 = por %p162, %p163
      %s166 = sadd.s32 %s165, 1
      %p169 = scmp.eq.s32.totalorder %s16, 1
      %p170 = scmp.ne.s32.totalorder %s165, %s167
      %p171 = scmp.eq.s32.totalorder %s16, 0
      %p172 = por %p170, %p171
      %p173 = scmp.ne.s32.totalorder %s165, %s167
      %p174 = scmp.eq.s32.totalorder %s21, 1
      %p175 = por %p173, %p174
      %p176 = scmp.ne.s32.totalorder %s167, %s168
      %p177 = scmp.eq.s32.totalorder %s21, 0
      %p178 = por %p176, %p177
      %p179 = scmp.ne.s32.totalorder %s167, %s168
      %p180 = scmp.eq.s32.totalorder %s22, 1
      %p181 = por %p179, %p180
      %p183 = scmp.ne.s32.totalorder %s168, %s182
      %p184 = scmp.eq.s32.totalorder %s22, 0
      %p185 = por %p183, %p184
      %s187 = sadd.s32 %s186, 1
      %p190 = scmp.eq.s32.totalorder %s16, 1
      %p191 = scmp.ne.s32.totalorder %s186, %s188
      %p192 = scmp.eq.s32.totalorder %s16, 0
      %p193 = por %p191, %p192
      %p194 = scmp.ne.s32.totalorder %s186, %s188
      %p195 = scmp.eq.s32.totalorder %s21, 1
      %p196 = por %p194, %p195
      %p197 = scmp.ne.s32.totalorder %s188, %s189
      %p198 = scmp.eq.s32.totalorder %s21, 0
      %p199 = por %p197, %p198
      %p200 = scmp.ne.s32.totalorder %s188, %s189
      %p201 = scmp.eq.s32.totalorder %s22, 1
      %p202 = por %p200, %p201
      %p204 = scmp.ne.s32.totalorder %s189, %s203
      %p205 = scmp.eq.s32.totalorder %s22, 0
      %p206 = por %p204, %p205
      %s208 = sadd.s32 %s207, 1
      %p211 = scmp.eq.s32.totalorder %s16, 1
      %p212 = scmp.ne.s32.totalorder %s207, %s209
      %p213 = scmp.eq.s32.totalorder %s16, 0
      %p214 = por %p212, %p213
      %p215 = scmp.ne.s32.totalorder %s207, %s209
      %p216 = scmp.eq.s32.totalorder %s21, 1
      %p217 = por %p215, %p216
      %p218 = scmp.ne.s32.totalorder %s209, %s210
      %p219 = scmp.eq.s32.totalorder %s21, 0
      %p220 = por %p218, %p219
      %p221 = scmp.ne.s32.totalorder %s209, %s210
      %p222 = scmp.eq.s32.totalorder %s22, 1
      %p223 = por %p221, %p222
      %p225 = scmp.ne.s32.totalorder %s210, %s224
      %p226 = scmp.eq.s32.totalorder %s22, 0
      %p227 = por %p225, %p226
      %s229 = sadd.s32 %s228, 1
      %p232 = scmp.eq.s32.totalorder %s16, 1
      %p233 = scmp.ne.s32.totalorder %s228, %s230
      %p234 = scmp.eq.s32.totalorder %s16, 0
      %p235 = por %p233, %p234
      %p236 = scmp.ne.s32.totalorder %s228, %s230
      %p237 = scmp.eq.s32.totalorder %s21, 1
      %p238 = por %p236, %p237
      %p239 = scmp.ne.s32.totalorder %s230, %s231
      %p240 = scmp.eq.s32.totalorder %s21, 0
      %p241 = por %p239, %p240
      %p242 = scmp.ne.s32.totalorder %s230, %s231
      %p243 = scmp.eq.s32.totalorder %s22, 1
      %p244 = por %p242, %p243
      %p246 = scmp.ne.s32.totalorder %s231, %s245
      %p247 = scmp.eq.s32.totalorder %s22, 0
      %p248 = por %p246, %p247
      %s249 = ssub.s32 %s16, %s23
      %p250 = scmp.eq.s32.totalorder %s249, 0
      %s252 = sadd.s32 %s251, 1
      %s253 = scalar_select %p250, %s251, %s252
      %p256 = pneg %p250
      %p257 = scmp.eq.s32.totalorder %s16, 1
      %p258 = por %p256, %p257
      %p259 = scmp.ne.s32.totalorder %s251, %s254
      %p260 = scmp.eq.s32.totalorder %s16, 0
      %p261 = por %p259, %p260
      %p262 = scmp.ne.s32.totalorder %s251, %s254
      %p263 = scmp.eq.s32.totalorder %s21, 1
      %p264 = por %p262, %p263
      %p265 = scmp.ne.s32.totalorder %s254, %s255
      %p266 = scmp.eq.s32.totalorder %s21, 0
      %p267 = por %p265, %p266
      %p268 = scmp.ne.s32.totalorder %s254, %s255
      %p269 = scmp.eq.s32.totalorder %s22, 1
      %p270 = por %p268, %p269
      %p272 = scmp.ne.s32.totalorder %s255, %s271
      %p273 = scmp.eq.s32.totalorder %s22, 0
      %p274 = por %p272, %p273
      %p275 = scmp.le.s32.totalorder 1, %s16
      %p276 = scmp.lt.s32.totalorder %s16, 3
      %p277 = pnand %p275, %p276
      %p278 = pneg %p277
      // Predicated region
      $region9: #{point_encoder_forward.11} parent=5 // pred_check
        _
      $region10: #{point_encoder_forward.11} parent=5 // pred_check_branch
        %280 = sbr.rel (%p277) target = $region12
      $region11: #{point_encoder_forward.11} parent=5 // pred_region
        %s281 = ssub.s32 %s16, 1
        // Predicated region
        $region13: #{point_encoder_forward.11} parent=11 // pred_check
          %p282 = pneg %p115
        $region14: #{point_encoder_forward.11} parent=11 // pred_check_branch
          %284 = sbr.rel (%p282) target = $region16
        $region15: #{point_encoder_forward.11} parent=11 // pred_region
          _
        $region16: #{point_encoder_forward.11} parent=11 // pred_fallthru
          _
        // Predicated region
        $region17: #{point_encoder_forward.11} parent=11 // pred_check
          %p285 = pneg %p136
        $region18: #{point_encoder_forward.11} parent=11 // pred_check_branch
          %287 = sbr.rel (%p285) target = $region20
        $region19: #{point_encoder_forward.11} parent=11 // pred_region
          _
        $region20: #{point_encoder_forward.11} parent=11 // pred_fallthru
          _
        // Predicated region
        $region21: #{point_encoder_forward.11} parent=11 // pred_check
          %p288 = pneg %p157
        $region22: #{point_encoder_forward.11} parent=11 // pred_check_branch
          %290 = sbr.rel (%p288) target = $region24
        $region23: #{point_encoder_forward.11} parent=11 // pred_region
          _
        $region24: #{point_encoder_forward.11} parent=11 // pred_fallthru
          _
        // Predicated region
        $region25: #{point_encoder_forward.11} parent=11 // pred_check
          %p291 = pneg %p178
        $region26: #{point_encoder_forward.11} parent=11 // pred_check_branch
          %293 = sbr.rel (%p291) target = $region28
        $region27: #{point_encoder_forward.11} parent=11 // pred_region
          _
        $region28: #{point_encoder_forward.11} parent=11 // pred_fallthru
          _
        // Predicated region
        $region29: #{point_encoder_forward.11} parent=11 // pred_check
          %p294 = pneg %p199
        $region30: #{point_encoder_forward.11} parent=11 // pred_check_branch
          %296 = sbr.rel (%p294) target = $region32
        $region31: #{point_encoder_forward.11} parent=11 // pred_region
          _
        $region32: #{point_encoder_forward.11} parent=11 // pred_fallthru
          _
        // Predicated region
        $region33: #{point_encoder_forward.11} parent=11 // pred_check
          %p297 = pneg %p220
        $region34: #{point_encoder_forward.11} parent=11 // pred_check_branch
          %299 = sbr.rel (%p297) target = $region36
        $region35: #{point_encoder_forward.11} parent=11 // pred_region
          _
        $region36: #{point_encoder_forward.11} parent=11 // pred_fallthru
          _
        // Predicated region
        $region37: #{point_encoder_forward.11} parent=11 // pred_check
          %p300 = pneg %p241
        $region38: #{point_encoder_forward.11} parent=11 // pred_check_branch
          %302 = sbr.rel (%p300) target = $region40
        $region39: #{point_encoder_forward.11} parent=11 // pred_region
          _
        $region40: #{point_encoder_forward.11} parent=11 // pred_fallthru
          _
      $region12: #{point_encoder_forward.11} parent=5 // pred_fallthru
        _
      %p303 = scmp.lt.s32.totalorder %s16, 2
      // Predicated region
      $region41: #{point_encoder_forward.11} parent=5 // pred_check
        %p304 = pneg %p303
      $region42: #{point_encoder_forward.11} parent=5 // pred_check_branch
        %306 = sbr.rel (%p304) target = $region44
      $region43: #{point_encoder_forward.11} parent=5 // pred_region
        // Predicated region
        $region45: #{point_encoder_forward.11} parent=43 // pred_check
          %p307 = pneg %p36
        $region46: #{point_encoder_forward.11} parent=43 // pred_check_branch
          %309 = sbr.rel (%p307) target = $region48
        $region47: #{point_encoder_forward.11} parent=43 // pred_region
          %s310 = sand.u32 %s26, 1
          %s311 = sand.u32 %s26, 1
          %s312 = smul.addr %s311, 24
          %s313 = scalar_lea.vmem [#allocation2], %s312
          %s314 = smul.u32 2, %s16
          %s315 = smul.addr %s314, 4
          %s316 = scalar_lea.vmem %s0, %s315
          // Predicated region
          $region49: #{point_encoder_forward.11} parent=47 // pred_check
            _
          $region50: #{point_encoder_forward.11} parent=47 // pred_check_branch
            %318 = sbr.rel (0) target = $region52
          $region51: #{point_encoder_forward.11} parent=47 // pred_region
            // Predicated region
            $region53: #{point_encoder_forward.11} parent=51 // pred_check
              _
            $region54: #{point_encoder_forward.11} parent=51 // pred_check_branch
              %320 = sbr.rel target = $region56
            $region55: #{point_encoder_forward.11} parent=51 // pred_region
              // Predicated region
              $region68: #{point_encoder_forward.11} parent=55 // pred_check
                _
              $region69: #{point_encoder_forward.11} parent=55 // pred_check_branch
                %346 = sbr.rel (0) target = $region71
              $region70: #{point_encoder_forward.11} parent=55 // pred_region
                loop: start=0, step=1, limit=1
                $region72: #{point_encoder_forward.11} parent=70 // loop_pre_header
                  _
                $region73: #{point_encoder_forward.11} parent=70 // loop_header
                  %s348 = sphi 0, %s352
                  %p349 = scmp.ge.s32.totalorder %s348, 1
                  %s353 = sphi %s316, %s316
                  %s354 = sphi %s313, %s313
                $region74: #{point_encoder_forward.11} parent=70 // loop_header_branch
                  %351 = sbr.rel (%p349) target = $region78
                $region75: #{point_encoder_forward.11} parent=70 // loop_body
                  _
                $region76: #{point_encoder_forward.11} parent=70 // loop_footer
                  %s352 = sadd.s32 1, %s348
                $region77: #{point_encoder_forward.11} parent=70 // loop_footer_branch
                  %347 = sbr.rel target = $region73
                $region78: #{point_encoder_forward.11} parent=70 // loop_exit
                  _
                %s356 = ssub.s32 16, 1
                loop: start=0, step=1, limit=1
                $region79: #{point_encoder_forward.11} parent=70 // loop_pre_header
                  _
                $region80: #{point_encoder_forward.11} parent=70 // loop_header
                  %s358 = sphi 0, %s362
                  %p359 = scmp.ge.s32.totalorder %s358, 1
                  %s363 = sphi %s316, %s316
                  %s364 = sphi %s313, %s313
                $region81: #{point_encoder_forward.11} parent=70 // loop_header_branch
                  %361 = sbr.rel (%p359) target = $region85
                $region82: #{point_encoder_forward.11} parent=70 // loop_body
                  %v365 = vld [vmem:[%s363] sm:%s356]
                  %366 = vst [vmem:[%s364] sm:%s356] %v365
                  %v367 = vld [vmem:[%s363 + $0x4] sm:%s356]
                  %368 = vst [vmem:[%s364 + $0x4] sm:%s356] %v367
                  %v369 = vld [vmem:[%s363 + $0x10] sm:%s356]
                  %370 = vst [vmem:[%s364 + $0x8] sm:%s356] %v369
                  %v371 = vld [vmem:[%s363 + $0x14] sm:%s356]
                  %372 = vst [vmem:[%s364 + $0xc] sm:%s356] %v371
                  %v373 = vld [vmem:[%s363 + $0x20] sm:%s356]
                  %374 = vst [vmem:[%s364 + $0x10] sm:%s356] %v373
                  %v375 = vld [vmem:[%s363 + $0x24] sm:%s356]
                  %376 = vst [vmem:[%s364 + $0x14] sm:%s356] %v375
                $region83: #{point_encoder_forward.11} parent=70 // loop_footer
                  %s362 = sadd.s32 1, %s358
                $region84: #{point_encoder_forward.11} parent=70 // loop_footer_branch
                  %357 = sbr.rel target = $region80
                $region85: #{point_encoder_forward.11} parent=70 // loop_exit
                  _
              $region71: #{point_encoder_forward.11} parent=55 // pred_fallthru
                _
            $region56: #{point_encoder_forward.11} parent=51 // pred_fallthru
              _
            // Predicated region
            $region57: #{point_encoder_forward.11} parent=51 // pred_check
              _
            $region58: #{point_encoder_forward.11} parent=51 // pred_check_branch
              %322 = sbr.rel (0) target = $region60
            $region59: #{point_encoder_forward.11} parent=51 // pred_region
              %s324 = ssub.s32 16, 1
              loop: start=0, step=1, limit=1
              $region61: #{point_encoder_forward.11} parent=59 // loop_pre_header
                _
              $region62: #{point_encoder_forward.11} parent=59 // loop_header
                %s326 = sphi 0, %s330
                %p327 = scmp.ge.s32.totalorder %s326, 1
                %s331 = sphi %s316, %s316
                %s332 = sphi %s313, %s313
              $region63: #{point_encoder_forward.11} parent=59 // loop_header_branch
                %329 = sbr.rel (%p327) target = $region67
              $region64: #{point_encoder_forward.11} parent=59 // loop_body
                %v333 = vld [vmem:[%s331] sm:%s324]
                %334 = vst [vmem:[%s332] sm:%s324] %v333
                %v335 = vld [vmem:[%s331 + $0x4] sm:%s324]
                %336 = vst [vmem:[%s332 + $0x4] sm:%s324] %v335
                %v337 = vld [vmem:[%s331 + $0x10] sm:%s324]
                %338 = vst [vmem:[%s332 + $0x8] sm:%s324] %v337
                %v339 = vld [vmem:[%s331 + $0x14] sm:%s324]
                %340 = vst [vmem:[%s332 + $0xc] sm:%s324] %v339
                %v341 = vld [vmem:[%s331 + $0x20] sm:%s324]
                %342 = vst [vmem:[%s332 + $0x10] sm:%s324] %v341
                %v343 = vld [vmem:[%s331 + $0x24] sm:%s324]
                %344 = vst [vmem:[%s332 + $0x14] sm:%s324] %v343
              $region65: #{point_encoder_forward.11} parent=59 // loop_footer
                %s330 = sadd.s32 1, %s326
              $region66: #{point_encoder_forward.11} parent=59 // loop_footer_branch
                %325 = sbr.rel target = $region62
              $region67: #{point_encoder_forward.11} parent=59 // loop_exit
                _
            $region60: #{point_encoder_forward.11} parent=51 // pred_fallthru
              _
          $region52: #{point_encoder_forward.11} parent=47 // pred_fallthru
            _
          %377 = vnop
        $region48: #{point_encoder_forward.11} parent=43 // pred_fallthru
          _
        // Predicated region
        $region86: #{point_encoder_forward.11} parent=43 // pred_check
          %p378 = pneg %p62
        $region87: #{point_encoder_forward.11} parent=43 // pred_check_branch
          %380 = sbr.rel (%p378) target = $region89
        $region88: #{point_encoder_forward.11} parent=43 // pred_region
          %s381 = smul.u32 2, %s16
          %p382 = scmp.lt.s32.totalorder %s381, 3
          %s383 = scalar_select %p382, %s381, 3
          %s384 = smul.addr %s383, 8
          %s385 = scalar_lea.vmem %s1, %s384
          %s386 = smul.u32 2, %s16
        $region89: #{point_encoder_forward.11} parent=43 // pred_fallthru
          _
        // Predicated region
        $region90: #{point_encoder_forward.11} parent=43 // pred_check
          %p387 = pneg %p88
        $region91: #{point_encoder_forward.11} parent=43 // pred_check_branch
          %389 = sbr.rel (%p387) target = $region93
        $region92: #{point_encoder_forward.11} parent=43 // pred_region
          %s390 = smul.u32 2, %s16
          %p391 = scmp.lt.s32.totalorder %s390, 3
          %s392 = scalar_select %p391, %s390, 3
          %s393 = smul.addr %s392, 4
          %s394 = scalar_lea.vmem %s2, %s393
          %s395 = smul.u32 2, %s16
        $region93: #{point_encoder_forward.11} parent=43 // pred_fallthru
          _
      $region44: #{point_encoder_forward.11} parent=5 // pred_fallthru
        _
      %p396 = scmp.le.s32.totalorder 1, %s16
      %p397 = scmp.lt.s32.totalorder %s16, 3
      %p398 = pnand %p396, %p397
      %p399 = pneg %p398
      // Predicated region
      $region94: #{point_encoder_forward.11} parent=5 // pred_check
        _
      $region95: #{point_encoder_forward.11} parent=5 // pred_check_branch
        %401 = sbr.rel (%p398) target = $region97
      $region96: #{point_encoder_forward.11} parent=5 // pred_region
        %s402 = ssub.s32 %s16, 1
        %s403 = sand.u32 %s29, 1
        %s404 = sand.u32 %s29, 1
        %s405 = smul.addr %s404, 24
        %s406 = scalar_lea.vmem [#allocation2], %s405
        // Predicated region
        $region98: #{point_encoder_forward.11} parent=96 // pred_check
          %p407 = pneg %p42
        $region99: #{point_encoder_forward.11} parent=96 // pred_check_branch
          %409 = sbr.rel (%p407) target = $region101
        $region100: #{point_encoder_forward.11} parent=96 // pred_region
          _
        $region101: #{point_encoder_forward.11} parent=96 // pred_fallthru
          _
        %s410 = sand.u32 %s29, 1
        %s411 = sand.u32 %s29, 1
        %s412 = smul.addr %s411, 24
        %s413 = scalar_lea.vmem [#allocation2], %s412
        %p414 = pneg %p42
        %p415 = pneg %p39
        %s416 = smul.u32 2, %s21
        %p417 = scmp.lt.s32.totalorder %s416, 3
        %s418 = scalar_select %p417, %s416, 3
        %s419 = smul.addr %s418, 8
        %s420 = scalar_lea.vmem %s1, %s419
        %p421 = pneg %p68
        %p422 = pneg %p65
        %s423 = smul.u32 2, %s21
        %p424 = scmp.lt.s32.totalorder %s423, 3
        %s425 = scalar_select %p424, %s423, 3
        %s426 = smul.addr %s425, 4
        %s427 = scalar_lea.vmem %s2, %s426
        %p428 = pneg %p94
        %p429 = pneg %p91
        %p430 = pneg %p115
        %p431 = pneg %p112
        %p432 = pneg %p136
        %p433 = pneg %p133
        %p434 = pneg %p157
        %p435 = pneg %p154
        %p436 = pneg %p178
        %p437 = pneg %p175
        %p438 = pneg %p199
        %p439 = pneg %p196
        %p440 = pneg %p220
        %p441 = pneg %p217
        %p442 = pneg %p241
        %p443 = pneg %p238
        %p444 = pneg %p267
        %p445 = pneg %p264
        %s446 = smul.u32 2, %s21
        %p447 = scmp.lt.s32.totalorder %s446, 3
        %s448 = scalar_select %p447, %s446, 3
        %s449 = smul.addr %s448, 8
        %s450 = scalar_lea.vmem %s10, %s449
        %s451 = smul.u32 2, %s21
        %s452 = smul.u32 2, %s21
        %p453 = scmp.lt.s32.totalorder %s452, 3
        %s454 = scalar_select %p453, %s452, 3
        %s455 = smul.addr %s454, 8
        %s456 = scalar_lea.vmem %s1, %s455
        %s457 = smul.u32 2, %s21
        %s458 = smul.u32 2, %s21
        %p459 = scmp.lt.s32.totalorder %s458, 3
        %s460 = scalar_select %p459, %s458, 3
        %s461 = smul.addr %s460, 4
        %s462 = scalar_lea.vmem %s2, %s461
        %s463 = smul.u32 2, %s21
        %s464 = smul.u32 2, %s21
        %p465 = scmp.lt.s32.totalorder %s464, 3
        %s466 = scalar_select %p465, %s464, 3
        %s467 = smul.addr %s466, 8
        %s468 = scalar_lea.vmem %s10, %s467
        %s469 = smul.u32 2, %s21
        %v471 = vld [vmem:[%s456] sm:$0xff]
        %v472 = vld [vmem:[%s456 + $0x8] sm:$0xff]
        %vm473 = vcmask 23552
        %v474 = vsel %vm473, %v471, 0.0
        %475 = vadd.xlane.f32.xlu0 %v474
        %v476 = vpop.xlane.xlu0 %475
        %v477 = vsel %vm473, %v472, 0.0
        %478 = vadd.xlane.f32.xlu0 %v477
        %v479 = vpop.xlane.xlu0 %478
        %v480 = vrcp.pop %v476
        %v481 = vrcp.pop %v479
        %v482 = vld [vmem:[%s406] sm:$0xf]
        %v483 = vld [vmem:[%s406 + $0x4] sm:$0xf]
        %v484 = vunpack.c.l.bf16 %v482
        %v485 = vunpack.c.l.bf16 %v483
        %487 = vset.pattern.permute.xlu0 0
        %488 = vperm.xlu0 %487, %v471
        %v489 = vpop.permute.xlu0 %488
        %492 = vset.pattern.permute.xlu0 0
        %493 = vperm.xlu0 %492, %v472
        %v494 = vpop.permute.xlu0 %493
        %v496 = vmul.f32 %v484, %v489
        %v497 = vmul.f32 %v485, %v494
        %s498 = scalar_lea.vmem %s406, 8 [#allocation2]
        %v499 = vld [vmem:[%s498] sm:$0xf]
        %v500 = vld [vmem:[%s498 + $0x4] sm:$0xf]
        %v501 = vunpack.c.l.bf16 %v499
        %v502 = vunpack.c.l.bf16 %v500
        %503 = vset.pattern.permute.xlu0 1
        %504 = vperm.xlu0 %503, %v471
        %v505 = vpop.permute.xlu0 %504
        %507 = vset.pattern.permute.xlu0 1
        %508 = vperm.xlu0 %507, %v472
        %v509 = vpop.permute.xlu0 %508
        %v511 = vmul.f32 %v501, %v505
        %v512 = vmul.f32 %v502, %v509
        %v513 = vadd.f32 %v496, %v511
        %v514 = vadd.f32 %v497, %v512
        %s515 = scalar_lea.vmem %s406, 16 [#allocation2]
        %v516 = vld [vmem:[%s515] sm:$0xf]
        %v517 = vld [vmem:[%s515 + $0x4] sm:$0xf]
        %v518 = vunpack.c.l.bf16 %v516
        %v519 = vunpack.c.l.bf16 %v517
        %520 = vset.pattern.permute.xlu0 2
        %521 = vperm.xlu0 %520, %v471
        %v522 = vpop.permute.xlu0 %521
        %524 = vset.pattern.permute.xlu0 2
        %525 = vperm.xlu0 %524, %v472
        %v526 = vpop.permute.xlu0 %525
        %v528 = vmul.f32 %v518, %v522
        %v529 = vmul.f32 %v519, %v526
        %v530 = vadd.f32 %v513, %v528
        %v531 = vadd.f32 %v514, %v529
        %v532 = vmul.f32 %v530, %v480
        %v533 = vmul.f32 %v531, %v481
        %v534 = vpack.c.bf16 %v533, %v532
        %v535 = vld [vmem:[%s3] sm:$0xf]
        %v536 = vld [vmem:[%s3 + $0x4] sm:$0xf]
        %v537 = vld [vmem:[%s3 + $0x8] sm:$0xf]
        %v538 = vld [vmem:[%s3 + $0xc] sm:$0xf]
        %v539 = vld [vmem:[%s3 + $0x10] sm:$0xf]
        %v540 = vld [vmem:[%s3 + $0x14] sm:$0xf]
        %v541 = vld [vmem:[%s3 + $0x18] sm:$0xf]
        %v542 = vld [vmem:[%s3 + $0x1c] sm:$0xf]
        %v543 = vld [vmem:[%s3 + $0x20] sm:$0xf]
        %v544 = vld [vmem:[%s3 + $0x24] sm:$0xf]
        %v545 = vld [vmem:[%s3 + $0x28] sm:$0xf]
        %v546 = vld [vmem:[%s3 + $0x2c] sm:$0xf]
        %v547 = vld [vmem:[%s3 + $0x30] sm:$0xf]
        %v548 = vld [vmem:[%s3 + $0x34] sm:$0xf]
        %v549 = vld [vmem:[%s3 + $0x38] sm:$0xf]
        %v550 = vld [vmem:[%s3 + $0x3c] sm:$0xf]
        %v551 = vld [vmem:[%s462] sm:$0xf]
        %v552 = vld [vmem:[%s462 + $0x4] sm:$0xf]
        %v553 = vld [vmem:[%s4] sm:$0x3]
        %v556 = vunpack.c.l.b16 %v551
        %v557 = vunpack.c.l.b16 %v552
        %v558 = vpack.c.b16 %v557, %v556
        %v560 = vsel %vm473, %v558, 0
        %vm562 = vcmask 1040384
        %vm563 = vcmask 1041408
        %v564 = vsel %vm562, 4294967295, 65535
        %v565 = vsel %vm563, %v564, 0
        %v567 = vand.u32 %v553, %v565
        %569 = vmatpush.bf16.msra.mxu0 0
        %570 = vmatpush.bf16.msra.mxu0 0
        %571 = vmatpush.bf16.msra.mxu0 0
        %572 = vmatpush.bf16.msra.mxu0 0
        %573 = vmatpush.bf16.msra.mxu0 0
        %574 = vmatpush.bf16.msra.mxu0 0
        %575 = vmatpush.bf16.msra.mxu0 0
        %576 = vmatpush.bf16.msra.mxu0 %v567
        %577 = vmatmul.bf16.gmra.mxu0 %v560
        %v578 = vpop.f32.mrf.mxu0
        %v579 = vadd.f32 0.0, %v578
        %v580 = vpop.f32.mrf.mxu0
        %v581 = vadd.f32 0.0, %v580
        %582 = vdwg.mxu0
        %v599 = vunpack.c.l.b16 %v535
        %v600 = vunpack.c.l.b16 %v536
        %v601 = vunpack.c.l.b16 %v537
        %v602 = vunpack.c.l.b16 %v538
        %v603 = vunpack.c.l.b16 %v539
        %v604 = vunpack.c.l.b16 %v540
        %v605 = vunpack.c.l.b16 %v541
        %v606 = vunpack.c.l.b16 %v542
        %v607 = vunpack.c.l.b16 %v543
        %v608 = vunpack.c.l.b16 %v544
        %v609 = vunpack.c.l.b16 %v545
        %v610 = vunpack.c.l.b16 %v546
        %v611 = vunpack.c.l.b16 %v547
        %v612 = vunpack.c.l.b16 %v548
        %v613 = vunpack.c.l.b16 %v549
        %v614 = vunpack.c.l.b16 %v550
        %v615 = vpack.c.b16 %v600, %v599
        %v616 = vpack.c.b16 %v602, %v601
        %v617 = vpack.c.b16 %v604, %v603
        %v618 = vpack.c.b16 %v606, %v605
        %v619 = vpack.c.b16 %v608, %v607
        %v620 = vpack.c.b16 %v610, %v609
        %v621 = vpack.c.b16 %v612, %v611
        %v622 = vpack.c.b16 %v614, %v613
        %631 = vmatpush.bf16.msra.mxu0 %v622
        %632 = vmatpush.bf16.msra.mxu0 %v621
        %633 = vmatpush.bf16.msra.mxu0 %v620
        %634 = vmatpush.bf16.msra.mxu0 %v619
        %635 = vmatpush.bf16.msra.mxu0 %v618
        %636 = vmatpush.bf16.msra.mxu0 %v617
        %637 = vmatpush.bf16.msra.mxu0 %v616
        %638 = vmatpush.bf16.msra.mxu0 %v615
        %639 = vmatmul.bf16.gmra.mxu0 %v534
        %v640 = vpop.f32.mrf.mxu0
        %v641 = vadd.f32 %v579, %v640
        %v642 = vpop.f32.mrf.mxu0
        %v643 = vadd.f32 %v581, %v642
        %644 = vdwg.mxu0
        %v645 = vld [vmem:[%s5] sm:$0x1]
        %v647 = vperm.slane %v645, 0
        %v649 = vadd.f32 %v641, %v647
        %v650 = vadd.f32 %v643, %v647
        %v651 = vmax.f32 %v649, 0.0
        %v652 = vmax.f32 %v650, 0.0
        %v653 = vld [vmem:[%s6] sm:$0xf]
        %v654 = vld [vmem:[%s6 + $0x4] sm:$0xf]
        %v655 = vld [vmem:[%s6 + $0x8] sm:$0xf]
        %v656 = vld [vmem:[%s6 + $0xc] sm:$0xf]
        %v657 = vld [vmem:[%s6 + $0x10] sm:$0xf]
        %v658 = vld [vmem:[%s6 + $0x14] sm:$0xf]
        %v659 = vld [vmem:[%s6 + $0x18] sm:$0xf]
        %v660 = vld [vmem:[%s6 + $0x1c] sm:$0xf]
        %v661 = vld [vmem:[%s6 + $0x20] sm:$0xf]
        %v662 = vld [vmem:[%s6 + $0x24] sm:$0xf]
        %v663 = vld [vmem:[%s6 + $0x28] sm:$0xf]
        %v664 = vld [vmem:[%s6 + $0x2c] sm:$0xf]
        %v665 = vld [vmem:[%s6 + $0x30] sm:$0xf]
        %v666 = vld [vmem:[%s6 + $0x34] sm:$0xf]
        %v667 = vld [vmem:[%s6 + $0x38] sm:$0xf]
        %v668 = vld [vmem:[%s6 + $0x3c] sm:$0xf]
        %v669 = vld [vmem:[%s7] sm:$0x1]
        %v670 = vpack.c.bf16 %v652, %v651
        %v672 = vperm.slane %v669, 0
        %v690 = vunpack.c.l.b16 %v653
        %v691 = vunpack.c.l.b16 %v654
        %v692 = vunpack.c.l.b16 %v655
        %v693 = vunpack.c.l.b16 %v656
        %v694 = vunpack.c.l.b16 %v657
        %v695 = vunpack.c.l.b16 %v658
        %v696 = vunpack.c.l.b16 %v659
        %v697 = vunpack.c.l.b16 %v660
        %v698 = vunpack.c.l.b16 %v661
        %v699 = vunpack.c.l.b16 %v662
        %v700 = vunpack.c.l.b16 %v663
        %v701 = vunpack.c.l.b16 %v664
        %v702 = vunpack.c.l.b16 %v665
        %v703 = vunpack.c.l.b16 %v666
        %v704 = vunpack.c.l.b16 %v667
        %v705 = vunpack.c.l.b16 %v668
        %v706 = vpack.c.b16 %v691, %v690
        %v707 = vpack.c.b16 %v693, %v692
        %v708 = vpack.c.b16 %v695, %v694
        %v709 = vpack.c.b16 %v697, %v696
        %v710 = vpack.c.b16 %v699, %v698
        %v711 = vpack.c.b16 %v701, %v700
        %v712 = vpack.c.b16 %v703, %v702
        %v713 = vpack.c.b16 %v705, %v704
        %722 = vmatpush.bf16.msra.mxu0 %v713
        %723 = vmatpush.bf16.msra.mxu0 %v712
        %724 = vmatpush.bf16.msra.mxu0 %v711
        %725 = vmatpush.bf16.msra.mxu0 %v710
        %726 = vmatpush.bf16.msra.mxu0 %v709
        %727 = vmatpush.bf16.msra.mxu0 %v708
        %728 = vmatpush.bf16.msra.mxu0 %v707
        %729 = vmatpush.bf16.msra.mxu0 %v706
        %730 = vmatmul.bf16.gmra.mxu0 %v670
        %v731 = vpop.f32.mrf.mxu0
        %v732 = vadd.f32 %v672, %v731
        %v733 = vpop.f32.mrf.mxu0
        %v734 = vadd.f32 %v672, %v733
        %735 = vdwg.mxu0
        %v736 = vmax.f32 %v732, 0.0
        %v737 = vmax.f32 %v734, 0.0
        %v738 = vld [vmem:[%s8] sm:$0xf]
        %v739 = vld [vmem:[%s8 + $0x4] sm:$0xf]
        %v740 = vld [vmem:[%s8 + $0x8] sm:$0xf]
        %v741 = vld [vmem:[%s8 + $0xc] sm:$0xf]
        %v742 = vld [vmem:[%s8 + $0x10] sm:$0xf]
        %v743 = vld [vmem:[%s8 + $0x14] sm:$0xf]
        %v744 = vld [vmem:[%s8 + $0x18] sm:$0xf]
        %v745 = vld [vmem:[%s8 + $0x1c] sm:$0xf]
        %v746 = vld [vmem:[%s8 + $0x20] sm:$0xf]
        %v747 = vld [vmem:[%s8 + $0x24] sm:$0xf]
        %v748 = vld [vmem:[%s8 + $0x28] sm:$0xf]
        %v749 = vld [vmem:[%s8 + $0x2c] sm:$0xf]
        %v750 = vld [vmem:[%s8 + $0x30] sm:$0xf]
        %v751 = vld [vmem:[%s8 + $0x34] sm:$0xf]
        %v752 = vld [vmem:[%s8 + $0x38] sm:$0xf]
        %v753 = vld [vmem:[%s8 + $0x3c] sm:$0xf]
        %v754 = vld [vmem:[%s9] sm:$0x1]
        %v755 = vpack.c.bf16 %v737, %v736
        %v757 = vperm.slane %v754, 0
        %v775 = vunpack.c.l.b16 %v738
        %v776 = vunpack.c.l.b16 %v739
        %v777 = vunpack.c.l.b16 %v740
        %v778 = vunpack.c.l.b16 %v741
        %v779 = vunpack.c.l.b16 %v742
        %v780 = vunpack.c.l.b16 %v743
        %v781 = vunpack.c.l.b16 %v744
        %v782 = vunpack.c.l.b16 %v745
        %v783 = vunpack.c.l.b16 %v746
        %v784 = vunpack.c.l.b16 %v747
        %v785 = vunpack.c.l.b16 %v748
        %v786 = vunpack.c.l.b16 %v749
        %v787 = vunpack.c.l.b16 %v750
        %v788 = vunpack.c.l.b16 %v751
        %v789 = vunpack.c.l.b16 %v752
        %v790 = vunpack.c.l.b16 %v753
        %v791 = vpack.c.b16 %v776, %v775
        %v792 = vpack.c.b16 %v778, %v777
        %v793 = vpack.c.b16 %v780, %v779
        %v794 = vpack.c.b16 %v782, %v781
        %v795 = vpack.c.b16 %v784, %v783
        %v796 = vpack.c.b16 %v786, %v785
        %v797 = vpack.c.b16 %v788, %v787
        %v798 = vpack.c.b16 %v790, %v789
        %807 = vmatpush.bf16.msra.mxu0 %v798
        %808 = vmatpush.bf16.msra.mxu0 %v797
        %809 = vmatpush.bf16.msra.mxu0 %v796
        %810 = vmatpush.bf16.msra.mxu0 %v795
        %811 = vmatpush.bf16.msra.mxu0 %v794
        %812 = vmatpush.bf16.msra.mxu0 %v793
        %813 = vmatpush.bf16.msra.mxu0 %v792
        %814 = vmatpush.bf16.msra.mxu0 %v791
        %815 = vmatmul.bf16.gmra.mxu0 %v755
        %v816 = vpop.f32.mrf.mxu0
        %v817 = vadd.f32 %v757, %v816
        %v818 = vpop.f32.mrf.mxu0
        %v819 = vadd.f32 %v757, %v818
        %820 = vdwg.mxu0
        %821 = vst [vmem:[%s468] sm:$0xff] %v817
        %822 = vst [vmem:[%s468 + $0x8] sm:$0xff] %v819
        %s823 = smul.u32 2, %s21
        %p824 = scmp.lt.s32.totalorder %s823, 3
        %s825 = scalar_select %p824, %s823, 3
        %s826 = smul.addr %s825, 8
        %s827 = scalar_lea.vmem %s10, %s826
        // Predicated region
        $region102: #{point_encoder_forward.11} parent=96 // pred_check
          %p828 = pneg %p264
        $region103: #{point_encoder_forward.11} parent=96 // pred_check_branch
          %830 = sbr.rel (%p828) target = $region105
        $region104: #{point_encoder_forward.11} parent=96 // pred_region
          %s831 = smul.u32 2, %s21
        $region105: #{point_encoder_forward.11} parent=96 // pred_fallthru
          _
      $region97: #{point_encoder_forward.11} parent=5 // pred_fallthru
        _
      %p832 = scmp.le.s32.totalorder 2, %s16
      // Predicated region
      $region106: #{point_encoder_forward.11} parent=5 // pred_check
        %p833 = pneg %p832
      $region107: #{point_encoder_forward.11} parent=5 // pred_check_branch
        %835 = sbr.rel (%p833) target = $region109
      $region108: #{point_encoder_forward.11} parent=5 // pred_region
        %s836 = ssub.s32 %s16, 2
        // Predicated region
        $region110: #{point_encoder_forward.11} parent=108 // pred_check
          %p837 = pneg %p270
        $region111: #{point_encoder_forward.11} parent=108 // pred_check_branch
          %839 = sbr.rel (%p837) target = $region113
        $region112: #{point_encoder_forward.11} parent=108 // pred_region
          %s840 = smul.u32 2, %s22
          %p841 = scmp.lt.s32.totalorder %s840, 3
          %s842 = scalar_select %p841, %s840, 3
          %s843 = smul.addr %s842, 8
          %s844 = scalar_lea.vmem %s10, %s843
        $region113: #{point_encoder_forward.11} parent=108 // pred_fallthru
          _
      $region109: #{point_encoder_forward.11} parent=5 // pred_fallthru
        _
    $region6: #{point_encoder_forward.11} parent=1 // loop_footer
      %s20 = sadd.s32 1, %s16
    $region7: #{point_encoder_forward.11} parent=1 // loop_footer_branch
      %15 = sbr.rel target = $region3
    $region8: #{point_encoder_forward.11} parent=1 // loop_exit
      _

</llo_original>
